<compile_context>
chip_gen: v6e
topology: v6e:2x2x1
jax: 0.10.0
libtpu: 0.0.40
codegen_flags: <defaults>
</compile_context>

<pallas_src>
import functools

import jax
import jax.numpy as jnp
from jax.experimental import pallas as pl
from jax.experimental.pallas import tpu as pltpu


def _conv_stack_kernel(x_ref, w1_ref, b1_ref, w2_ref, b2_ref, w3_ref, b3_ref,
                       h3_ref):
    """Three valid 1D convs + ReLU on a flat (Bt*Lp, C) channels-last block.

    Row r = b*Lp + t of the flat activation holds sample b, time t.  A valid
    conv with kernel K is K roll-shifted rank-2 matmuls on the MXU (shifts on
    the XLU, operands stay sublane-aligned).  Rows whose receptive field
    crosses a sample boundary (or wraps) are garbage but are never read:
    every later read stays inside each sample's valid t-range, and only the
    first L3 rows of each sample are written out -- transposed to (C3, L3) so
    the store is lane-dense and matches torch's channel-major flatten.
    """
    Bt, C3, L3 = h3_ref.shape
    R = x_ref.shape[0]          # Bt * Lp
    Lp = R // Bt

    def conv_relu(h32, w_ref, b_ref):
        # h32: (R, C_in) f32.  w_ref: (K, C_in, C_out) in compute dtype.
        K = w_ref.shape[0]
        cdt = w_ref.dtype
        acc = jnp.dot(h32.astype(cdt), w_ref[0],
                      preferred_element_type=jnp.float32)
        for k in range(1, K):                       # static unroll, K in {9,9,11}
            shifted = pltpu.roll(h32, shift=R - k, axis=0)   # row r -> h[r+k]
            acc = acc + jnp.dot(shifted.astype(cdt), w_ref[k],
                                preferred_element_type=jnp.float32)
        # f32 epilogue (v5e VPU has no bf16).
        return jnp.maximum(acc + b_ref[...], 0.0)

    h = x_ref[...].astype(jnp.float32)          # (Bt*Lp, C_in)
    h = conv_relu(h, w1_ref, b1_ref)            # (Bt*Lp, 9)
    h = conv_relu(h, w2_ref, b2_ref)            # (Bt*Lp, 10)
    h = conv_relu(h, w3_ref, b3_ref)            # (Bt*Lp, 11)

    # One transpose (XLU), then per-sample lane-dense (C3, L3) stores of the
    # valid rows only (sublane starts b*Lp are aligned since Lp % 8 == 0).
    hT = h.T                                    # (C3, Bt*Lp)
    for b in range(Bt):
        h3_ref[b] = hT[:, b * Lp: b * Lp + L3].astype(h3_ref.dtype)


def _head_kernel(h3f_ref, w0_ref, b0_ref, wh_ref, bh_ref, out_ref):
    """fc_0 (one wide contraction) + fused fc_mu / fc_var heads.

    M = Bt_head (default 128) rows per step so the MXU rows are filled; the
    only HBM store is the lane-dense (Bt_head, 2*hidden) block.
    """
    cdt = w0_ref.dtype
    h0 = jnp.dot(h3f_ref[...].astype(cdt), w0_ref[...],
                 preferred_element_type=jnp.float32) + b0_ref[...]
    out = jnp.dot(h0.astype(cdt), wh_ref[...],
                  preferred_element_type=jnp.float32) + bh_ref[...]
    out_ref[...] = out.astype(out_ref.dtype)


def encoder_zinc_forward(x, params, *, block_batch_conv=8,
                         block_batch_head=128,
                         compute_dtype=jnp.bfloat16):
    """x: (B, L, C_in) float32.  Returns (mu, logvar), each (B, hidden) f32.

    compute_dtype controls the MXU operand dtype (accumulation is always f32):
    bfloat16 (default) for MXU-rate/DMA wins on v5e/v6e/v7x, float32 for exact
    parity with the PyTorch reference.
    """
    w1, b1, w2, b2, w3, b3, w0, b0, wmu, bmu, wvar, bvar = params
    B, L, Cin = x.shape
    hidden = w0.shape[0]
    K1, K2, K3 = w1.shape[2], w2.shape[2], w3.shape[2]
    C3 = w3.shape[0]
    L3 = L - (K1 - 1) - (K2 - 1) - (K3 - 1)
    assert w0.shape[1] == C3 * L3, "linear_input must equal 11*(L-26)"
    cdt = jnp.dtype(compute_dtype)

    # ---- batch / time padding (wrapper-side layout glue) ----
    Bt_c = block_batch_conv
    B_pad_c = -(-B // Bt_c) * Bt_c
    Lp = -(-L // 8) * 8                          # sublane-aligned row stride
    xp = jnp.pad(x, ((0, B_pad_c - B), (0, Lp - L), (0, 0)))
    x2d = xp.reshape(B_pad_c * Lp, Cin).astype(cdt)   # flat (sample,time) rows

    # ---- weight layout glue (plain JAX, outside the kernels) ----
    w1k = jnp.transpose(w1, (2, 1, 0)).astype(cdt)    # (K1, Cin, 9)
    w2k = jnp.transpose(w2, (2, 1, 0)).astype(cdt)    # (K2, 9, 10)
    w3k = jnp.transpose(w3, (2, 1, 0)).astype(cdt)    # (K3, 10, 11)
    # Conv output is stored (C3, L3) per sample, so its row-major flatten is
    # torch's channel-major flatten: fc_0 weight needs no permutation.
    w0t = w0.T.astype(cdt)                            # (C3*L3, H)
    wh = jnp.concatenate([wmu.T, wvar.T], axis=1).astype(cdt)   # (H, 2H)
    bh = jnp.concatenate([bmu, bvar]).reshape(1, -1).astype(jnp.float32)
    b1r = b1.reshape(1, -1).astype(jnp.float32)
    b2r = b2.reshape(1, -1).astype(jnp.float32)
    b3r = b3.reshape(1, -1).astype(jnp.float32)
    b0r = b0.reshape(1, -1).astype(jnp.float32)

    def rspec(a):                                 # grid-invariant (resident) block
        n = a.ndim
        return pl.BlockSpec(a.shape, lambda i, _n=n: (0,) * _n)

    cparams = pltpu.CompilerParams(
        dimension_semantics=("parallel",),
        vmem_limit_bytes=48 * 1024 * 1024)

    # ---- kernel 1: conv stack (M = Bt_c*Lp rows per step) ----
    h3 = pl.pallas_call(
        _conv_stack_kernel,
        grid=(B_pad_c // Bt_c,),
        in_specs=[pl.BlockSpec((Bt_c * Lp, Cin), lambda i: (i, 0)),
                  rspec(w1k), rspec(b1r),
                  rspec(w2k), rspec(b2r),
                  rspec(w3k), rspec(b3r)],
        out_specs=pl.BlockSpec((Bt_c, C3, L3), lambda i: (i, 0, 0)),
        out_shape=jax.ShapeDtypeStruct((B_pad_c, C3, L3), jnp.float32),
        compiler_params=cparams,
    )(x2d, w1k, b1r, w2k, b2r, w3k, b3r)

    # Contiguous, free reshape: (B, C3, L3) -> (B, C3*L3) == torch x.view(B,-1).
    h3f = h3.reshape(B_pad_c, C3 * L3)

    # ---- kernel 2: fc_0 + fused mu/var heads at a larger batch tile ----
    Bt_h = min(block_batch_head, B_pad_c)
    B_pad_h = -(-B_pad_c // Bt_h) * Bt_h
    if B_pad_h != B_pad_c:
        h3f = jnp.pad(h3f, ((0, B_pad_h - B_pad_c), (0, 0)))

    out = pl.pallas_call(
        _head_kernel,
        grid=(B_pad_h // Bt_h,),
        in_specs=[pl.BlockSpec((Bt_h, C3 * L3), lambda i: (i, 0)),
                  rspec(w0t), rspec(b0r), rspec(wh), rspec(bh)],
        out_specs=pl.BlockSpec((Bt_h, 2 * hidden), lambda i: (i, 0)),
        out_shape=jax.ShapeDtypeStruct((B_pad_h, 2 * hidden), jnp.float32),
        compiler_params=cparams,
    )(h3f, w0t, b0r, wh, bh)

    return out[:B, :hidden], out[:B, hidden:]


def init_params(key, input_channels, seq_len, hidden_n):
    """Deterministic init, PyTorch-default style U(-1/sqrt(fan_in), +)."""
    L3 = seq_len - 8 - 8 - 10
    linear_input = 11 * L3

    def u(k, shape, fan_in):
        bound = 1.0 / jnp.sqrt(jnp.float32(fan_in))
        return jax.random.uniform(k, shape, jnp.float32, -bound, bound)

    ks = jax.random.split(key, 12)
    w1 = u(ks[0], (9, input_channels, 9), input_channels * 9)
    b1 = u(ks[1], (9,), input_channels * 9)
    w2 = u(ks[2], (10, 9, 9), 9 * 9)
    b2 = u(ks[3], (10,), 9 * 9)
    w3 = u(ks[4], (11, 10, 11), 10 * 11)
    b3 = u(ks[5], (11,), 10 * 11)
    w0 = u(ks[6], (hidden_n, linear_input), linear_input)
    b0 = u(ks[7], (hidden_n,), linear_input)
    wmu = u(ks[8], (hidden_n, hidden_n), hidden_n)
    bmu = u(ks[9], (hidden_n,), hidden_n)
    wvar = u(ks[10], (hidden_n, hidden_n), hidden_n)
    bvar = u(ks[11], (hidden_n,), hidden_n)
    return (w1, b1, w2, b2, w3, b3, w0, b0, wmu, bmu, wvar, bvar)


def ref_forward(x, params):
    """Pure-JAX reference mirroring the PyTorch forward (NCL conv + flatten)."""
    w1, b1, w2, b2, w3, b3, w0, b0, wmu, bmu, wvar, bvar = params
    xt = jnp.transpose(x, (0, 2, 1))  # (B, C, L) like x.transpose(1, 2)

    def conv(h, w, b):
        y = jax.lax.conv_general_dilated(
            h, w, (1,), 'VALID', dimension_numbers=('NCH', 'OIH', 'NCH'))
        return jax.nn.relu(y + b[None, :, None])

    h = conv(xt, w1, b1)
    h = conv(h, w2, b2)
    h = conv(h, w3, b3)
    flat = h.reshape(h.shape[0], -1)          # channel-major flatten (NCL)
    h0 = flat @ w0.T + b0
    return h0 @ wmu.T + bmu, h0 @ wvar.T + bvar


if __name__ == "__main__":
    B, L, Cin, hidden = 2, 40, 8, 32   # small shapes; L > 26 so L3 = 14
    key = jax.random.PRNGKey(0)
    kx, kp = jax.random.split(key)
    x = jax.random.normal(kx, (B, L, Cin), jnp.float32)
    params = init_params(kp, Cin, L, hidden)

    mu_ref, var_ref = ref_forward(x, params)

    # Exact-parity path (f32 MXU operands).
    fwd_f32 = jax.jit(functools.partial(encoder_zinc_forward,
                                        compute_dtype=jnp.float32))
    mu32, var32 = fwd_f32(x, params)
    jax.block_until_ready((mu32, var32))
    assert mu32.shape == (B, hidden) and var32.shape == (B, hidden)
    assert jnp.allclose(mu32, mu_ref, rtol=1e-4, atol=1e-4)
    assert jnp.allclose(var32, var_ref, rtol=1e-4, atol=1e-4)

    # Performance-default path (bf16 MXU operands, f32 accumulation).
    fwd_bf16 = jax.jit(functools.partial(encoder_zinc_forward,
                                         compute_dtype=jnp.bfloat16))
    mu16, var16 = fwd_bf16(x, params)
    jax.block_until_ready((mu16, var16))
    assert mu16.shape == (B, hidden) and var16.shape == (B, hidden)
    assert jnp.allclose(mu16, mu_ref, rtol=5e-2, atol=5e-2)
    assert jnp.allclose(var16, var_ref, rtol=5e-2, atol=5e-2)

    print("KERNEL_OK")
</pallas_src>

<mosaic_0001>
module attributes {stable_mosaic.version = 11 : i64} {
  func.func @_conv_stack_kernel(%arg0: i32, %arg1: memref<320x8xf32, #tpu.memory_space<vmem>>, %arg2: memref<9x8x9xf32, #tpu.memory_space<vmem>>, %arg3: memref<1x9xf32, #tpu.memory_space<vmem>>, %arg4: memref<9x9x10xf32, #tpu.memory_space<vmem>>, %arg5: memref<1x10xf32, #tpu.memory_space<vmem>>, %arg6: memref<11x10x11xf32, #tpu.memory_space<vmem>>, %arg7: memref<1x11xf32, #tpu.memory_space<vmem>>, %arg8: memref<8x11x14xf32, #tpu.memory_space<vmem>>) attributes {dimension_semantics = [#tpu.dimension_semantics<parallel>], iteration_bounds = array<i64: 1>, scalar_prefetch = 0 : i64, scratch_operands = 0 : i64, tpu.core_type = #tpu.core_type<tc>, window_params = [{transform_indices = @transform_0, window_bounds = array<i64: 320, 8>}, {pipeline_mode = #tpu.pipeline_mode<synchronous>, transform_indices = @transform_1, window_bounds = array<i64: 9, 8, 9>}, {pipeline_mode = #tpu.pipeline_mode<synchronous>, transform_indices = @transform_2, window_bounds = array<i64: 1, 9>}, {pipeline_mode = #tpu.pipeline_mode<synchronous>, transform_indices = @transform_3, window_bounds = array<i64: 9, 9, 10>}, {pipeline_mode = #tpu.pipeline_mode<synchronous>, transform_indices = @transform_4, window_bounds = array<i64: 1, 10>}, {pipeline_mode = #tpu.pipeline_mode<synchronous>, transform_indices = @transform_5, window_bounds = array<i64: 11, 10, 11>}, {pipeline_mode = #tpu.pipeline_mode<synchronous>, transform_indices = @transform_6, window_bounds = array<i64: 1, 11>}, {transform_indices = @transform_7, window_bounds = array<i64: 8, 11, 14>}]} {
    %c0 = arith.constant 0 : index
    %c0_0 = arith.constant 0 : index
    %0 = vector.load %arg1[%c0, %c0_0] : memref<320x8xf32, #tpu.memory_space<vmem>>, vector<320x8xf32>
    %c0_1 = arith.constant 0 : index
    %c0_2 = arith.constant 0 : index
    %c0_3 = arith.constant 0 : index
    %1 = vector.load %arg2[%c0_1, %c0_2, %c0_3] : memref<9x8x9xf32, #tpu.memory_space<vmem>>, vector<1x8x9xf32>
    %2 = vector.shape_cast %1 : vector<1x8x9xf32> to vector<8x9xf32>
    %cst = arith.constant dense<0.000000e+00> : vector<320x9xf32>
    %3 = tpu.matmul %0, %2, %cst {dimension_numbers = #tpu.dot_dimension_numbers<[1], [0], [0], [1], [0, 0, 1, 1], [], []>} : vector<320x8xf32>, vector<8x9xf32>, vector<320x9xf32> -> vector<320x9xf32>
    %c319_i32 = arith.constant 319 : i32
    %4 = tpu.dynamic_rotate %0 by %c319_i32 dim 0 : vector<320x8xf32>, i32 -> vector<320x8xf32>
    %c1 = arith.constant 1 : index
    %c0_4 = arith.constant 0 : index
    %c0_5 = arith.constant 0 : index
    %5 = vector.load %arg2[%c1, %c0_4, %c0_5] : memref<9x8x9xf32, #tpu.memory_space<vmem>>, vector<1x8x9xf32>
    %6 = vector.shape_cast %5 : vector<1x8x9xf32> to vector<8x9xf32>
    %cst_6 = arith.constant dense<0.000000e+00> : vector<320x9xf32>
    %7 = tpu.matmul %4, %6, %cst_6 {dimension_numbers = #tpu.dot_dimension_numbers<[1], [0], [0], [1], [0, 0, 1, 1], [], []>} : vector<320x8xf32>, vector<8x9xf32>, vector<320x9xf32> -> vector<320x9xf32>
    %8 = arith.addf %3, %7 : vector<320x9xf32>
    %c318_i32 = arith.constant 318 : i32
    %9 = tpu.dynamic_rotate %0 by %c318_i32 dim 0 : vector<320x8xf32>, i32 -> vector<320x8xf32>
    %c2 = arith.constant 2 : index
    %c0_7 = arith.constant 0 : index
    %c0_8 = arith.constant 0 : index
    %10 = vector.load %arg2[%c2, %c0_7, %c0_8] : memref<9x8x9xf32, #tpu.memory_space<vmem>>, vector<1x8x9xf32>
    %11 = vector.shape_cast %10 : vector<1x8x9xf32> to vector<8x9xf32>
    %cst_9 = arith.constant dense<0.000000e+00> : vector<320x9xf32>
    %12 = tpu.matmul %9, %11, %cst_9 {dimension_numbers = #tpu.dot_dimension_numbers<[1], [0], [0], [1], [0, 0, 1, 1], [], []>} : vector<320x8xf32>, vector<8x9xf32>, vector<320x9xf32> -> vector<320x9xf32>
    %13 = arith.addf %8, %12 : vector<320x9xf32>
    %c317_i32 = arith.constant 317 : i32
    %14 = tpu.dynamic_rotate %0 by %c317_i32 dim 0 : vector<320x8xf32>, i32 -> vector<320x8xf32>
    %c3 = arith.constant 3 : index
    %c0_10 = arith.constant 0 : index
    %c0_11 = arith.constant 0 : index
    %15 = vector.load %arg2[%c3, %c0_10, %c0_11] : memref<9x8x9xf32, #tpu.memory_space<vmem>>, vector<1x8x9xf32>
    %16 = vector.shape_cast %15 : vector<1x8x9xf32> to vector<8x9xf32>
    %cst_12 = arith.constant dense<0.000000e+00> : vector<320x9xf32>
    %17 = tpu.matmul %14, %16, %cst_12 {dimension_numbers = #tpu.dot_dimension_numbers<[1], [0], [0], [1], [0, 0, 1, 1], [], []>} : vector<320x8xf32>, vector<8x9xf32>, vector<320x9xf32> -> vector<320x9xf32>
    %18 = arith.addf %13, %17 : vector<320x9xf32>
    %c316_i32 = arith.constant 316 : i32
    %19 = tpu.dynamic_rotate %0 by %c316_i32 dim 0 : vector<320x8xf32>, i32 -> vector<320x8xf32>
    %c4 = arith.constant 4 : index
    %c0_13 = arith.constant 0 : index
    %c0_14 = arith.constant 0 : index
    %20 = vector.load %arg2[%c4, %c0_13, %c0_14] : memref<9x8x9xf32, #tpu.memory_space<vmem>>, vector<1x8x9xf32>
    %21 = vector.shape_cast %20 : vector<1x8x9xf32> to vector<8x9xf32>
    %cst_15 = arith.constant dense<0.000000e+00> : vector<320x9xf32>
    %22 = tpu.matmul %19, %21, %cst_15 {dimension_numbers = #tpu.dot_dimension_numbers<[1], [0], [0], [1], [0, 0, 1, 1], [], []>} : vector<320x8xf32>, vector<8x9xf32>, vector<320x9xf32> -> vector<320x9xf32>
    %23 = arith.addf %18, %22 : vector<320x9xf32>
    %c315_i32 = arith.constant 315 : i32
    %24 = tpu.dynamic_rotate %0 by %c315_i32 dim 0 : vector<320x8xf32>, i32 -> vector<320x8xf32>
    %c5 = arith.constant 5 : index
    %c0_16 = arith.constant 0 : index
    %c0_17 = arith.constant 0 : index
    %25 = vector.load %arg2[%c5, %c0_16, %c0_17] : memref<9x8x9xf32, #tpu.memory_space<vmem>>, vector<1x8x9xf32>
    %26 = vector.shape_cast %25 : vector<1x8x9xf32> to vector<8x9xf32>
    %cst_18 = arith.constant dense<0.000000e+00> : vector<320x9xf32>
    %27 = tpu.matmul %24, %26, %cst_18 {dimension_numbers = #tpu.dot_dimension_numbers<[1], [0], [0], [1], [0, 0, 1, 1], [], []>} : vector<320x8xf32>, vector<8x9xf32>, vector<320x9xf32> -> vector<320x9xf32>
    %28 = arith.addf %23, %27 : vector<320x9xf32>
    %c314_i32 = arith.constant 314 : i32
    %29 = tpu.dynamic_rotate %0 by %c314_i32 dim 0 : vector<320x8xf32>, i32 -> vector<320x8xf32>
    %c6 = arith.constant 6 : index
    %c0_19 = arith.constant 0 : index
    %c0_20 = arith.constant 0 : index
    %30 = vector.load %arg2[%c6, %c0_19, %c0_20] : memref<9x8x9xf32, #tpu.memory_space<vmem>>, vector<1x8x9xf32>
    %31 = vector.shape_cast %30 : vector<1x8x9xf32> to vector<8x9xf32>
    %cst_21 = arith.constant dense<0.000000e+00> : vector<320x9xf32>
    %32 = tpu.matmul %29, %31, %cst_21 {dimension_numbers = #tpu.dot_dimension_numbers<[1], [0], [0], [1], [0, 0, 1, 1], [], []>} : vector<320x8xf32>, vector<8x9xf32>, vector<320x9xf32> -> vector<320x9xf32>
    %33 = arith.addf %28, %32 : vector<320x9xf32>
    %c313_i32 = arith.constant 313 : i32
    %34 = tpu.dynamic_rotate %0 by %c313_i32 dim 0 : vector<320x8xf32>, i32 -> vector<320x8xf32>
    %c7 = arith.constant 7 : index
    %c0_22 = arith.constant 0 : index
    %c0_23 = arith.constant 0 : index
    %35 = vector.load %arg2[%c7, %c0_22, %c0_23] : memref<9x8x9xf32, #tpu.memory_space<vmem>>, vector<1x8x9xf32>
    %36 = vector.shape_cast %35 : vector<1x8x9xf32> to vector<8x9xf32>
    %cst_24 = arith.constant dense<0.000000e+00> : vector<320x9xf32>
    %37 = tpu.matmul %34, %36, %cst_24 {dimension_numbers = #tpu.dot_dimension_numbers<[1], [0], [0], [1], [0, 0, 1, 1], [], []>} : vector<320x8xf32>, vector<8x9xf32>, vector<320x9xf32> -> vector<320x9xf32>
    %38 = arith.addf %33, %37 : vector<320x9xf32>
    %c312_i32 = arith.constant 312 : i32
    %39 = tpu.dynamic_rotate %0 by %c312_i32 dim 0 : vector<320x8xf32>, i32 -> vector<320x8xf32>
    %c8 = arith.constant 8 : index
    %c0_25 = arith.constant 0 : index
    %c0_26 = arith.constant 0 : index
    %40 = vector.load %arg2[%c8, %c0_25, %c0_26] : memref<9x8x9xf32, #tpu.memory_space<vmem>>, vector<1x8x9xf32>
    %41 = vector.shape_cast %40 : vector<1x8x9xf32> to vector<8x9xf32>
    %cst_27 = arith.constant dense<0.000000e+00> : vector<320x9xf32>
    %42 = tpu.matmul %39, %41, %cst_27 {dimension_numbers = #tpu.dot_dimension_numbers<[1], [0], [0], [1], [0, 0, 1, 1], [], []>} : vector<320x8xf32>, vector<8x9xf32>, vector<320x9xf32> -> vector<320x9xf32>
    %43 = arith.addf %38, %42 : vector<320x9xf32>
    %c0_28 = arith.constant 0 : index
    %c0_29 = arith.constant 0 : index
    %44 = vector.load %arg3[%c0_28, %c0_29] : memref<1x9xf32, #tpu.memory_space<vmem>>, vector<1x9xf32>
    %45 = vector.broadcast %44 : vector<1x9xf32> to vector<320x9xf32>
    %46 = arith.addf %43, %45 : vector<320x9xf32>
    %cst_30 = arith.constant 0.000000e+00 : f32
    %47 = vector.broadcast %cst_30 : f32 to vector<320x9xf32>
    %48 = arith.maximumf %46, %47 : vector<320x9xf32>
    %c0_31 = arith.constant 0 : index
    %c0_32 = arith.constant 0 : index
    %c0_33 = arith.constant 0 : index
    %49 = vector.load %arg4[%c0_31, %c0_32, %c0_33] : memref<9x9x10xf32, #tpu.memory_space<vmem>>, vector<1x9x10xf32>
    %50 = vector.shape_cast %49 : vector<1x9x10xf32> to vector<9x10xf32>
    %cst_34 = arith.constant dense<0.000000e+00> : vector<320x10xf32>
    %51 = tpu.matmul %48, %50, %cst_34 {dimension_numbers = #tpu.dot_dimension_numbers<[1], [0], [0], [1], [0, 0, 1, 1], [], []>} : vector<320x9xf32>, vector<9x10xf32>, vector<320x10xf32> -> vector<320x10xf32>
    %c319_i32_35 = arith.constant 319 : i32
    %52 = tpu.dynamic_rotate %48 by %c319_i32_35 dim 0 : vector<320x9xf32>, i32 -> vector<320x9xf32>
    %c1_36 = arith.constant 1 : index
    %c0_37 = arith.constant 0 : index
    %c0_38 = arith.constant 0 : index
    %53 = vector.load %arg4[%c1_36, %c0_37, %c0_38] : memref<9x9x10xf32, #tpu.memory_space<vmem>>, vector<1x9x10xf32>
    %54 = vector.shape_cast %53 : vector<1x9x10xf32> to vector<9x10xf32>
    %cst_39 = arith.constant dense<0.000000e+00> : vector<320x10xf32>
    %55 = tpu.matmul %52, %54, %cst_39 {dimension_numbers = #tpu.dot_dimension_numbers<[1], [0], [0], [1], [0, 0, 1, 1], [], []>} : vector<320x9xf32>, vector<9x10xf32>, vector<320x10xf32> -> vector<320x10xf32>
    %56 = arith.addf %51, %55 : vector<320x10xf32>
    %c318_i32_40 = arith.constant 318 : i32
    %57 = tpu.dynamic_rotate %48 by %c318_i32_40 dim 0 : vector<320x9xf32>, i32 -> vector<320x9xf32>
    %c2_41 = arith.constant 2 : index
    %c0_42 = arith.constant 0 : index
    %c0_43 = arith.constant 0 : index
    %58 = vector.load %arg4[%c2_41, %c0_42, %c0_43] : memref<9x9x10xf32, #tpu.memory_space<vmem>>, vector<1x9x10xf32>
    %59 = vector.shape_cast %58 : vector<1x9x10xf32> to vector<9x10xf32>
    %cst_44 = arith.constant dense<0.000000e+00> : vector<320x10xf32>
    %60 = tpu.matmul %57, %59, %cst_44 {dimension_numbers = #tpu.dot_dimension_numbers<[1], [0], [0], [1], [0, 0, 1, 1], [], []>} : vector<320x9xf32>, vector<9x10xf32>, vector<320x10xf32> -> vector<320x10xf32>
    %61 = arith.addf %56, %60 : vector<320x10xf32>
    %c317_i32_45 = arith.constant 317 : i32
    %62 = tpu.dynamic_rotate %48 by %c317_i32_45 dim 0 : vector<320x9xf32>, i32 -> vector<320x9xf32>
    %c3_46 = arith.constant 3 : index
    %c0_47 = arith.constant 0 : index
    %c0_48 = arith.constant 0 : index
    %63 = vector.load %arg4[%c3_46, %c0_47, %c0_48] : memref<9x9x10xf32, #tpu.memory_space<vmem>>, vector<1x9x10xf32>
    %64 = vector.shape_cast %63 : vector<1x9x10xf32> to vector<9x10xf32>
    %cst_49 = arith.constant dense<0.000000e+00> : vector<320x10xf32>
    %65 = tpu.matmul %62, %64, %cst_49 {dimension_numbers = #tpu.dot_dimension_numbers<[1], [0], [0], [1], [0, 0, 1, 1], [], []>} : vector<320x9xf32>, vector<9x10xf32>, vector<320x10xf32> -> vector<320x10xf32>
    %66 = arith.addf %61, %65 : vector<320x10xf32>
    %c316_i32_50 = arith.constant 316 : i32
    %67 = tpu.dynamic_rotate %48 by %c316_i32_50 dim 0 : vector<320x9xf32>, i32 -> vector<320x9xf32>
    %c4_51 = arith.constant 4 : index
    %c0_52 = arith.constant 0 : index
    %c0_53 = arith.constant 0 : index
    %68 = vector.load %arg4[%c4_51, %c0_52, %c0_53] : memref<9x9x10xf32, #tpu.memory_space<vmem>>, vector<1x9x10xf32>
    %69 = vector.shape_cast %68 : vector<1x9x10xf32> to vector<9x10xf32>
    %cst_54 = arith.constant dense<0.000000e+00> : vector<320x10xf32>
    %70 = tpu.matmul %67, %69, %cst_54 {dimension_numbers = #tpu.dot_dimension_numbers<[1], [0], [0], [1], [0, 0, 1, 1], [], []>} : vector<320x9xf32>, vector<9x10xf32>, vector<320x10xf32> -> vector<320x10xf32>
    %71 = arith.addf %66, %70 : vector<320x10xf32>
    %c315_i32_55 = arith.constant 315 : i32
    %72 = tpu.dynamic_rotate %48 by %c315_i32_55 dim 0 : vector<320x9xf32>, i32 -> vector<320x9xf32>
    %c5_56 = arith.constant 5 : index
    %c0_57 = arith.constant 0 : index
    %c0_58 = arith.constant 0 : index
    %73 = vector.load %arg4[%c5_56, %c0_57, %c0_58] : memref<9x9x10xf32, #tpu.memory_space<vmem>>, vector<1x9x10xf32>
    %74 = vector.shape_cast %73 : vector<1x9x10xf32> to vector<9x10xf32>
    %cst_59 = arith.constant dense<0.000000e+00> : vector<320x10xf32>
    %75 = tpu.matmul %72, %74, %cst_59 {dimension_numbers = #tpu.dot_dimension_numbers<[1], [0], [0], [1], [0, 0, 1, 1], [], []>} : vector<320x9xf32>, vector<9x10xf32>, vector<320x10xf32> -> vector<320x10xf32>
    %76 = arith.addf %71, %75 : vector<320x10xf32>
    %c314_i32_60 = arith.constant 314 : i32
    %77 = tpu.dynamic_rotate %48 by %c314_i32_60 dim 0 : vector<320x9xf32>, i32 -> vector<320x9xf32>
    %c6_61 = arith.constant 6 : index
    %c0_62 = arith.constant 0 : index
    %c0_63 = arith.constant 0 : index
    %78 = vector.load %arg4[%c6_61, %c0_62, %c0_63] : memref<9x9x10xf32, #tpu.memory_space<vmem>>, vector<1x9x10xf32>
    %79 = vector.shape_cast %78 : vector<1x9x10xf32> to vector<9x10xf32>
    %cst_64 = arith.constant dense<0.000000e+00> : vector<320x10xf32>
    %80 = tpu.matmul %77, %79, %cst_64 {dimension_numbers = #tpu.dot_dimension_numbers<[1], [0], [0], [1], [0, 0, 1, 1], [], []>} : vector<320x9xf32>, vector<9x10xf32>, vector<320x10xf32> -> vector<320x10xf32>
    %81 = arith.addf %76, %80 : vector<320x10xf32>
    %c313_i32_65 = arith.constant 313 : i32
    %82 = tpu.dynamic_rotate %48 by %c313_i32_65 dim 0 : vector<320x9xf32>, i32 -> vector<320x9xf32>
    %c7_66 = arith.constant 7 : index
    %c0_67 = arith.constant 0 : index
    %c0_68 = arith.constant 0 : index
    %83 = vector.load %arg4[%c7_66, %c0_67, %c0_68] : memref<9x9x10xf32, #tpu.memory_space<vmem>>, vector<1x9x10xf32>
    %84 = vector.shape_cast %83 : vector<1x9x10xf32> to vector<9x10xf32>
    %cst_69 = arith.constant dense<0.000000e+00> : vector<320x10xf32>
    %85 = tpu.matmul %82, %84, %cst_69 {dimension_numbers = #tpu.dot_dimension_numbers<[1], [0], [0], [1], [0, 0, 1, 1], [], []>} : vector<320x9xf32>, vector<9x10xf32>, vector<320x10xf32> -> vector<320x10xf32>
    %86 = arith.addf %81, %85 : vector<320x10xf32>
    %c312_i32_70 = arith.constant 312 : i32
    %87 = tpu.dynamic_rotate %48 by %c312_i32_70 dim 0 : vector<320x9xf32>, i32 -> vector<320x9xf32>
    %c8_71 = arith.constant 8 : index
    %c0_72 = arith.constant 0 : index
    %c0_73 = arith.constant 0 : index
    %88 = vector.load %arg4[%c8_71, %c0_72, %c0_73] : memref<9x9x10xf32, #tpu.memory_space<vmem>>, vector<1x9x10xf32>
    %89 = vector.shape_cast %88 : vector<1x9x10xf32> to vector<9x10xf32>
    %cst_74 = arith.constant dense<0.000000e+00> : vector<320x10xf32>
    %90 = tpu.matmul %87, %89, %cst_74 {dimension_numbers = #tpu.dot_dimension_numbers<[1], [0], [0], [1], [0, 0, 1, 1], [], []>} : vector<320x9xf32>, vector<9x10xf32>, vector<320x10xf32> -> vector<320x10xf32>
    %91 = arith.addf %86, %90 : vector<320x10xf32>
    %c0_75 = arith.constant 0 : index
    %c0_76 = arith.constant 0 : index
    %92 = vector.load %arg5[%c0_75, %c0_76] : memref<1x10xf32, #tpu.memory_space<vmem>>, vector<1x10xf32>
    %93 = vector.broadcast %92 : vector<1x10xf32> to vector<320x10xf32>
    %94 = arith.addf %91, %93 : vector<320x10xf32>
    %cst_77 = arith.constant 0.000000e+00 : f32
    %95 = vector.broadcast %cst_77 : f32 to vector<320x10xf32>
    %96 = arith.maximumf %94, %95 : vector<320x10xf32>
    %c0_78 = arith.constant 0 : index
    %c0_79 = arith.constant 0 : index
    %c0_80 = arith.constant 0 : index
    %97 = vector.load %arg6[%c0_78, %c0_79, %c0_80] : memref<11x10x11xf32, #tpu.memory_space<vmem>>, vector<1x10x11xf32>
    %98 = vector.shape_cast %97 : vector<1x10x11xf32> to vector<10x11xf32>
    %cst_81 = arith.constant dense<0.000000e+00> : vector<320x11xf32>
    %99 = tpu.matmul %96, %98, %cst_81 {dimension_numbers = #tpu.dot_dimension_numbers<[1], [0], [0], [1], [0, 0, 1, 1], [], []>} : vector<320x10xf32>, vector<10x11xf32>, vector<320x11xf32> -> vector<320x11xf32>
    %c319_i32_82 = arith.constant 319 : i32
    %100 = tpu.dynamic_rotate %96 by %c319_i32_82 dim 0 : vector<320x10xf32>, i32 -> vector<320x10xf32>
    %c1_83 = arith.constant 1 : index
    %c0_84 = arith.constant 0 : index
    %c0_85 = arith.constant 0 : index
    %101 = vector.load %arg6[%c1_83, %c0_84, %c0_85] : memref<11x10x11xf32, #tpu.memory_space<vmem>>, vector<1x10x11xf32>
    %102 = vector.shape_cast %101 : vector<1x10x11xf32> to vector<10x11xf32>
    %cst_86 = arith.constant dense<0.000000e+00> : vector<320x11xf32>
    %103 = tpu.matmul %100, %102, %cst_86 {dimension_numbers = #tpu.dot_dimension_numbers<[1], [0], [0], [1], [0, 0, 1, 1], [], []>} : vector<320x10xf32>, vector<10x11xf32>, vector<320x11xf32> -> vector<320x11xf32>
    %104 = arith.addf %99, %103 : vector<320x11xf32>
    %c318_i32_87 = arith.constant 318 : i32
    %105 = tpu.dynamic_rotate %96 by %c318_i32_87 dim 0 : vector<320x10xf32>, i32 -> vector<320x10xf32>
    %c2_88 = arith.constant 2 : index
    %c0_89 = arith.constant 0 : index
    %c0_90 = arith.constant 0 : index
    %106 = vector.load %arg6[%c2_88, %c0_89, %c0_90] : memref<11x10x11xf32, #tpu.memory_space<vmem>>, vector<1x10x11xf32>
    %107 = vector.shape_cast %106 : vector<1x10x11xf32> to vector<10x11xf32>
    %cst_91 = arith.constant dense<0.000000e+00> : vector<320x11xf32>
    %108 = tpu.matmul %105, %107, %cst_91 {dimension_numbers = #tpu.dot_dimension_numbers<[1], [0], [0], [1], [0, 0, 1, 1], [], []>} : vector<320x10xf32>, vector<10x11xf32>, vector<320x11xf32> -> vector<320x11xf32>
    %109 = arith.addf %104, %108 : vector<320x11xf32>
    %c317_i32_92 = arith.constant 317 : i32
    %110 = tpu.dynamic_rotate %96 by %c317_i32_92 dim 0 : vector<320x10xf32>, i32 -> vector<320x10xf32>
    %c3_93 = arith.constant 3 : index
    %c0_94 = arith.constant 0 : index
    %c0_95 = arith.constant 0 : index
    %111 = vector.load %arg6[%c3_93, %c0_94, %c0_95] : memref<11x10x11xf32, #tpu.memory_space<vmem>>, vector<1x10x11xf32>
    %112 = vector.shape_cast %111 : vector<1x10x11xf32> to vector<10x11xf32>
    %cst_96 = arith.constant dense<0.000000e+00> : vector<320x11xf32>
    %113 = tpu.matmul %110, %112, %cst_96 {dimension_numbers = #tpu.dot_dimension_numbers<[1], [0], [0], [1], [0, 0, 1, 1], [], []>} : vector<320x10xf32>, vector<10x11xf32>, vector<320x11xf32> -> vector<320x11xf32>
    %114 = arith.addf %109, %113 : vector<320x11xf32>
    %c316_i32_97 = arith.constant 316 : i32
    %115 = tpu.dynamic_rotate %96 by %c316_i32_97 dim 0 : vector<320x10xf32>, i32 -> vector<320x10xf32>
    %c4_98 = arith.constant 4 : index
    %c0_99 = arith.constant 0 : index
    %c0_100 = arith.constant 0 : index
    %116 = vector.load %arg6[%c4_98, %c0_99, %c0_100] : memref<11x10x11xf32, #tpu.memory_space<vmem>>, vector<1x10x11xf32>
    %117 = vector.shape_cast %116 : vector<1x10x11xf32> to vector<10x11xf32>
    %cst_101 = arith.constant dense<0.000000e+00> : vector<320x11xf32>
    %118 = tpu.matmul %115, %117, %cst_101 {dimension_numbers = #tpu.dot_dimension_numbers<[1], [0], [0], [1], [0, 0, 1, 1], [], []>} : vector<320x10xf32>, vector<10x11xf32>, vector<320x11xf32> -> vector<320x11xf32>
    %119 = arith.addf %114, %118 : vector<320x11xf32>
    %c315_i32_102 = arith.constant 315 : i32
    %120 = tpu.dynamic_rotate %96 by %c315_i32_102 dim 0 : vector<320x10xf32>, i32 -> vector<320x10xf32>
    %c5_103 = arith.constant 5 : index
    %c0_104 = arith.constant 0 : index
    %c0_105 = arith.constant 0 : index
    %121 = vector.load %arg6[%c5_103, %c0_104, %c0_105] : memref<11x10x11xf32, #tpu.memory_space<vmem>>, vector<1x10x11xf32>
    %122 = vector.shape_cast %121 : vector<1x10x11xf32> to vector<10x11xf32>
    %cst_106 = arith.constant dense<0.000000e+00> : vector<320x11xf32>
    %123 = tpu.matmul %120, %122, %cst_106 {dimension_numbers = #tpu.dot_dimension_numbers<[1], [0], [0], [1], [0, 0, 1, 1], [], []>} : vector<320x10xf32>, vector<10x11xf32>, vector<320x11xf32> -> vector<320x11xf32>
    %124 = arith.addf %119, %123 : vector<320x11xf32>
    %c314_i32_107 = arith.constant 314 : i32
    %125 = tpu.dynamic_rotate %96 by %c314_i32_107 dim 0 : vector<320x10xf32>, i32 -> vector<320x10xf32>
    %c6_108 = arith.constant 6 : index
    %c0_109 = arith.constant 0 : index
    %c0_110 = arith.constant 0 : index
    %126 = vector.load %arg6[%c6_108, %c0_109, %c0_110] : memref<11x10x11xf32, #tpu.memory_space<vmem>>, vector<1x10x11xf32>
    %127 = vector.shape_cast %126 : vector<1x10x11xf32> to vector<10x11xf32>
    %cst_111 = arith.constant dense<0.000000e+00> : vector<320x11xf32>
    %128 = tpu.matmul %125, %127, %cst_111 {dimension_numbers = #tpu.dot_dimension_numbers<[1], [0], [0], [1], [0, 0, 1, 1], [], []>} : vector<320x10xf32>, vector<10x11xf32>, vector<320x11xf32> -> vector<320x11xf32>
    %129 = arith.addf %124, %128 : vector<320x11xf32>
    %c313_i32_112 = arith.constant 313 : i32
    %130 = tpu.dynamic_rotate %96 by %c313_i32_112 dim 0 : vector<320x10xf32>, i32 -> vector<320x10xf32>
    %c7_113 = arith.constant 7 : index
    %c0_114 = arith.constant 0 : index
    %c0_115 = arith.constant 0 : index
    %131 = vector.load %arg6[%c7_113, %c0_114, %c0_115] : memref<11x10x11xf32, #tpu.memory_space<vmem>>, vector<1x10x11xf32>
    %132 = vector.shape_cast %131 : vector<1x10x11xf32> to vector<10x11xf32>
    %cst_116 = arith.constant dense<0.000000e+00> : vector<320x11xf32>
    %133 = tpu.matmul %130, %132, %cst_116 {dimension_numbers = #tpu.dot_dimension_numbers<[1], [0], [0], [1], [0, 0, 1, 1], [], []>} : vector<320x10xf32>, vector<10x11xf32>, vector<320x11xf32> -> vector<320x11xf32>
    %134 = arith.addf %129, %133 : vector<320x11xf32>
    %c312_i32_117 = arith.constant 312 : i32
    %135 = tpu.dynamic_rotate %96 by %c312_i32_117 dim 0 : vector<320x10xf32>, i32 -> vector<320x10xf32>
    %c8_118 = arith.constant 8 : index
    %c0_119 = arith.constant 0 : index
    %c0_120 = arith.constant 0 : index
    %136 = vector.load %arg6[%c8_118, %c0_119, %c0_120] : memref<11x10x11xf32, #tpu.memory_space<vmem>>, vector<1x10x11xf32>
    %137 = vector.shape_cast %136 : vector<1x10x11xf32> to vector<10x11xf32>
    %cst_121 = arith.constant dense<0.000000e+00> : vector<320x11xf32>
    %138 = tpu.matmul %135, %137, %cst_121 {dimension_numbers = #tpu.dot_dimension_numbers<[1], [0], [0], [1], [0, 0, 1, 1], [], []>} : vector<320x10xf32>, vector<10x11xf32>, vector<320x11xf32> -> vector<320x11xf32>
    %139 = arith.addf %134, %138 : vector<320x11xf32>
    %c311_i32 = arith.constant 311 : i32
    %140 = tpu.dynamic_rotate %96 by %c311_i32 dim 0 : vector<320x10xf32>, i32 -> vector<320x10xf32>
    %c9 = arith.constant 9 : index
    %c0_122 = arith.constant 0 : index
    %c0_123 = arith.constant 0 : index
    %141 = vector.load %arg6[%c9, %c0_122, %c0_123] : memref<11x10x11xf32, #tpu.memory_space<vmem>>, vector<1x10x11xf32>
    %142 = vector.shape_cast %141 : vector<1x10x11xf32> to vector<10x11xf32>
    %cst_124 = arith.constant dense<0.000000e+00> : vector<320x11xf32>
    %143 = tpu.matmul %140, %142, %cst_124 {dimension_numbers = #tpu.dot_dimension_numbers<[1], [0], [0], [1], [0, 0, 1, 1], [], []>} : vector<320x10xf32>, vector<10x11xf32>, vector<320x11xf32> -> vector<320x11xf32>
    %144 = arith.addf %139, %143 : vector<320x11xf32>
    %c310_i32 = arith.constant 310 : i32
    %145 = tpu.dynamic_rotate %96 by %c310_i32 dim 0 : vector<320x10xf32>, i32 -> vector<320x10xf32>
    %c10 = arith.constant 10 : index
    %c0_125 = arith.constant 0 : index
    %c0_126 = arith.constant 0 : index
    %146 = vector.load %arg6[%c10, %c0_125, %c0_126] : memref<11x10x11xf32, #tpu.memory_space<vmem>>, vector<1x10x11xf32>
    %147 = vector.shape_cast %146 : vector<1x10x11xf32> to vector<10x11xf32>
    %cst_127 = arith.constant dense<0.000000e+00> : vector<320x11xf32>
    %148 = tpu.matmul %145, %147, %cst_127 {dimension_numbers = #tpu.dot_dimension_numbers<[1], [0], [0], [1], [0, 0, 1, 1], [], []>} : vector<320x10xf32>, vector<10x11xf32>, vector<320x11xf32> -> vector<320x11xf32>
    %149 = arith.addf %144, %148 : vector<320x11xf32>
    %c0_128 = arith.constant 0 : index
    %c0_129 = arith.constant 0 : index
    %150 = vector.load %arg7[%c0_128, %c0_129] : memref<1x11xf32, #tpu.memory_space<vmem>>, vector<1x11xf32>
    %151 = vector.broadcast %150 : vector<1x11xf32> to vector<320x11xf32>
    %152 = arith.addf %149, %151 : vector<320x11xf32>
    %cst_130 = arith.constant 0.000000e+00 : f32
    %153 = vector.broadcast %cst_130 : f32 to vector<320x11xf32>
    %154 = arith.maximumf %152, %153 : vector<320x11xf32>
    %155 = tpu.transpose %154, [1, 0] : vector<320x11xf32> -> vector<11x320xf32>
    %156 = vector.extract_strided_slice %155 {offsets = [0, 0], sizes = [11, 14], strides = [1, 1]} : vector<11x320xf32> to vector<11x14xf32>
    %c0_131 = arith.constant 0 : index
    %c0_132 = arith.constant 0 : index
    %c0_133 = arith.constant 0 : index
    %157 = vector.load %arg8[%c0_131, %c0_132, %c0_133] : memref<8x11x14xf32, #tpu.memory_space<vmem>>, vector<1x11x14xf32>
    %158 = vector.shape_cast %157 : vector<1x11x14xf32> to vector<11x14xf32>
    %159 = vector.shape_cast %156 : vector<11x14xf32> to vector<1x11x14xf32>
    tpu.vector_store %arg8[%c0_131, %c0_132, %c0_133], %159 {strides = array<i32>} : memref<8x11x14xf32, #tpu.memory_space<vmem>>, vector<1x11x14xf32>,
    %160 = vector.extract_strided_slice %155 {offsets = [0, 40], sizes = [11, 14], strides = [1, 1]} : vector<11x320xf32> to vector<11x14xf32>
    %c1_134 = arith.constant 1 : index
    %c0_135 = arith.constant 0 : index
    %c0_136 = arith.constant 0 : index
    %161 = vector.load %arg8[%c1_134, %c0_135, %c0_136] : memref<8x11x14xf32, #tpu.memory_space<vmem>>, vector<1x11x14xf32>
    %162 = vector.shape_cast %161 : vector<1x11x14xf32> to vector<11x14xf32>
    %163 = vector.shape_cast %160 : vector<11x14xf32> to vector<1x11x14xf32>
    tpu.vector_store %arg8[%c1_134, %c0_135, %c0_136], %163 {strides = array<i32>} : memref<8x11x14xf32, #tpu.memory_space<vmem>>, vector<1x11x14xf32>,
    %164 = vector.extract_strided_slice %155 {offsets = [0, 80], sizes = [11, 14], strides = [1, 1]} : vector<11x320xf32> to vector<11x14xf32>
    %c2_137 = arith.constant 2 : index
    %c0_138 = arith.constant 0 : index
    %c0_139 = arith.constant 0 : index
    %165 = vector.load %arg8[%c2_137, %c0_138, %c0_139] : memref<8x11x14xf32, #tpu.memory_space<vmem>>, vector<1x11x14xf32>
    %166 = vector.shape_cast %165 : vector<1x11x14xf32> to vector<11x14xf32>
    %167 = vector.shape_cast %164 : vector<11x14xf32> to vector<1x11x14xf32>
    tpu.vector_store %arg8[%c2_137, %c0_138, %c0_139], %167 {strides = array<i32>} : memref<8x11x14xf32, #tpu.memory_space<vmem>>, vector<1x11x14xf32>,
    %168 = vector.extract_strided_slice %155 {offsets = [0, 120], sizes = [11, 14], strides = [1, 1]} : vector<11x320xf32> to vector<11x14xf32>
    %c3_140 = arith.constant 3 : index
    %c0_141 = arith.constant 0 : index
    %c0_142 = arith.constant 0 : index
    %169 = vector.load %arg8[%c3_140, %c0_141, %c0_142] : memref<8x11x14xf32, #tpu.memory_space<vmem>>, vector<1x11x14xf32>
    %170 = vector.shape_cast %169 : vector<1x11x14xf32> to vector<11x14xf32>
    %171 = vector.shape_cast %168 : vector<11x14xf32> to vector<1x11x14xf32>
    tpu.vector_store %arg8[%c3_140, %c0_141, %c0_142], %171 {strides = array<i32>} : memref<8x11x14xf32, #tpu.memory_space<vmem>>, vector<1x11x14xf32>,
    %172 = vector.extract_strided_slice %155 {offsets = [0, 160], sizes = [11, 14], strides = [1, 1]} : vector<11x320xf32> to vector<11x14xf32>
    %c4_143 = arith.constant 4 : index
    %c0_144 = arith.constant 0 : index
    %c0_145 = arith.constant 0 : index
    %173 = vector.load %arg8[%c4_143, %c0_144, %c0_145] : memref<8x11x14xf32, #tpu.memory_space<vmem>>, vector<1x11x14xf32>
    %174 = vector.shape_cast %173 : vector<1x11x14xf32> to vector<11x14xf32>
    %175 = vector.shape_cast %172 : vector<11x14xf32> to vector<1x11x14xf32>
    tpu.vector_store %arg8[%c4_143, %c0_144, %c0_145], %175 {strides = array<i32>} : memref<8x11x14xf32, #tpu.memory_space<vmem>>, vector<1x11x14xf32>,
    %176 = vector.extract_strided_slice %155 {offsets = [0, 200], sizes = [11, 14], strides = [1, 1]} : vector<11x320xf32> to vector<11x14xf32>
    %c5_146 = arith.constant 5 : index
    %c0_147 = arith.constant 0 : index
    %c0_148 = arith.constant 0 : index
    %177 = vector.load %arg8[%c5_146, %c0_147, %c0_148] : memref<8x11x14xf32, #tpu.memory_space<vmem>>, vector<1x11x14xf32>
    %178 = vector.shape_cast %177 : vector<1x11x14xf32> to vector<11x14xf32>
    %179 = vector.shape_cast %176 : vector<11x14xf32> to vector<1x11x14xf32>
    tpu.vector_store %arg8[%c5_146, %c0_147, %c0_148], %179 {strides = array<i32>} : memref<8x11x14xf32, #tpu.memory_space<vmem>>, vector<1x11x14xf32>,
    %180 = vector.extract_strided_slice %155 {offsets = [0, 240], sizes = [11, 14], strides = [1, 1]} : vector<11x320xf32> to vector<11x14xf32>
    %c6_149 = arith.constant 6 : index
    %c0_150 = arith.constant 0 : index
    %c0_151 = arith.constant 0 : index
    %181 = vector.load %arg8[%c6_149, %c0_150, %c0_151] : memref<8x11x14xf32, #tpu.memory_space<vmem>>, vector<1x11x14xf32>
    %182 = vector.shape_cast %181 : vector<1x11x14xf32> to vector<11x14xf32>
    %183 = vector.shape_cast %180 : vector<11x14xf32> to vector<1x11x14xf32>
    tpu.vector_store %arg8[%c6_149, %c0_150, %c0_151], %183 {strides = array<i32>} : memref<8x11x14xf32, #tpu.memory_space<vmem>>, vector<1x11x14xf32>,
    %184 = vector.extract_strided_slice %155 {offsets = [0, 280], sizes = [11, 14], strides = [1, 1]} : vector<11x320xf32> to vector<11x14xf32>
    %c7_152 = arith.constant 7 : index
    %c0_153 = arith.constant 0 : index
    %c0_154 = arith.constant 0 : index
    %185 = vector.load %arg8[%c7_152, %c0_153, %c0_154] : memref<8x11x14xf32, #tpu.memory_space<vmem>>, vector<1x11x14xf32>
    %186 = vector.shape_cast %185 : vector<1x11x14xf32> to vector<11x14xf32>
    %187 = vector.shape_cast %184 : vector<11x14xf32> to vector<1x11x14xf32>
    tpu.vector_store %arg8[%c7_152, %c0_153, %c0_154], %187 {strides = array<i32>} : memref<8x11x14xf32, #tpu.memory_space<vmem>>, vector<1x11x14xf32>,
    return
  }
  func.func @transform_0(%arg0: i32) -> (i32, i32) {
    %c0_i32 = arith.constant 0 : i32
    %c0_i32_0 = arith.constant 0 : i32
    return %arg0, %c0_i32 : i32, i32
  }
  func.func @transform_1(%arg0: i32) -> (i32, i32, i32) {
    %c0_i32 = arith.constant 0 : i32
    %c0_i32_0 = arith.constant 0 : i32
    %c0_i32_1 = arith.constant 0 : i32
    %c0_i32_2 = arith.constant 0 : i32
    return %c0_i32, %c0_i32_0, %c0_i32_1 : i32, i32, i32
  }
  func.func @transform_2(%arg0: i32) -> (i32, i32) {
    %c0_i32 = arith.constant 0 : i32
    %c0_i32_0 = arith.constant 0 : i32
    %c0_i32_1 = arith.constant 0 : i32
    return %c0_i32, %c0_i32_0 : i32, i32
  }
  func.func @transform_3(%arg0: i32) -> (i32, i32, i32) {
    %c0_i32 = arith.constant 0 : i32
    %c0_i32_0 = arith.constant 0 : i32
    %c0_i32_1 = arith.constant 0 : i32
    %c0_i32_2 = arith.constant 0 : i32
    return %c0_i32, %c0_i32_0, %c0_i32_1 : i32, i32, i32
  }
  func.func @transform_4(%arg0: i32) -> (i32, i32) {
    %c0_i32 = arith.constant 0 : i32
    %c0_i32_0 = arith.constant 0 : i32
    %c0_i32_1 = arith.constant 0 : i32
    return %c0_i32, %c0_i32_0 : i32, i32
  }
  func.func @transform_5(%arg0: i32) -> (i32, i32, i32) {
    %c0_i32 = arith.constant 0 : i32
    %c0_i32_0 = arith.constant 0 : i32
    %c0_i32_1 = arith.constant 0 : i32
    %c0_i32_2 = arith.constant 0 : i32
    return %c0_i32, %c0_i32_0, %c0_i32_1 : i32, i32, i32
  }
  func.func @transform_6(%arg0: i32) -> (i32, i32) {
    %c0_i32 = arith.constant 0 : i32
    %c0_i32_0 = arith.constant 0 : i32
    %c0_i32_1 = arith.constant 0 : i32
    return %c0_i32, %c0_i32_0 : i32, i32
  }
  func.func @transform_7(%arg0: i32) -> (i32, i32, i32) {
    %c0_i32 = arith.constant 0 : i32
    %c0_i32_0 = arith.constant 0 : i32
    %c0_i32_1 = arith.constant 0 : i32
    return %arg0, %c0_i32, %c0_i32_0 : i32, i32, i32
  }
}

module attributes {stable_mosaic.version = 11 : i64} {
  func.func @_head_kernel(%arg0: i32, %arg1: memref<8x154xf32, #tpu.memory_space<vmem>>, %arg2: memref<154x32xf32, #tpu.memory_space<vmem>>, %arg3: memref<1x32xf32, #tpu.memory_space<vmem>>, %arg4: memref<32x64xf32, #tpu.memory_space<vmem>>, %arg5: memref<1x64xf32, #tpu.memory_space<vmem>>, %arg6: memref<8x64xf32, #tpu.memory_space<vmem>>) attributes {dimension_semantics = [#tpu.dimension_semantics<parallel>], iteration_bounds = array<i64: 1>, scalar_prefetch = 0 : i64, scratch_operands = 0 : i64, tpu.core_type = #tpu.core_type<tc>, window_params = [{transform_indices = @transform_0, window_bounds = array<i64: 8, 154>}, {pipeline_mode = #tpu.pipeline_mode<synchronous>, transform_indices = @transform_1, window_bounds = array<i64: 154, 32>}, {pipeline_mode = #tpu.pipeline_mode<synchronous>, transform_indices = @transform_2, window_bounds = array<i64: 1, 32>}, {pipeline_mode = #tpu.pipeline_mode<synchronous>, transform_indices = @transform_3, window_bounds = array<i64: 32, 64>}, {pipeline_mode = #tpu.pipeline_mode<synchronous>, transform_indices = @transform_4, window_bounds = array<i64: 1, 64>}, {transform_indices = @transform_5, window_bounds = array<i64: 8, 64>}]} {
    %c0 = arith.constant 0 : index
    %c0_0 = arith.constant 0 : index
    %0 = vector.load %arg1[%c0, %c0_0] : memref<8x154xf32, #tpu.memory_space<vmem>>, vector<8x154xf32>
    %c0_1 = arith.constant 0 : index
    %c0_2 = arith.constant 0 : index
    %1 = vector.load %arg2[%c0_1, %c0_2] : memref<154x32xf32, #tpu.memory_space<vmem>>, vector<154x32xf32>
    %cst = arith.constant dense<0.000000e+00> : vector<8x32xf32>
    %2 = tpu.matmul %0, %1, %cst {dimension_numbers = #tpu.dot_dimension_numbers<[1], [0], [0], [1], [0, 0, 1, 1], [], []>} : vector<8x154xf32>, vector<154x32xf32>, vector<8x32xf32> -> vector<8x32xf32>
    %c0_3 = arith.constant 0 : index
    %c0_4 = arith.constant 0 : index
    %3 = vector.load %arg3[%c0_3, %c0_4] : memref<1x32xf32, #tpu.memory_space<vmem>>, vector<1x32xf32>
    %4 = vector.broadcast %3 : vector<1x32xf32> to vector<8x32xf32>
    %5 = arith.addf %2, %4 : vector<8x32xf32>
    %c0_5 = arith.constant 0 : index
    %c0_6 = arith.constant 0 : index
    %6 = vector.load %arg4[%c0_5, %c0_6] : memref<32x64xf32, #tpu.memory_space<vmem>>, vector<32x64xf32>
    %cst_7 = arith.constant dense<0.000000e+00> : vector<8x64xf32>
    %7 = tpu.matmul %5, %6, %cst_7 {dimension_numbers = #tpu.dot_dimension_numbers<[1], [0], [0], [1], [0, 0, 1, 1], [], []>} : vector<8x32xf32>, vector<32x64xf32>, vector<8x64xf32> -> vector<8x64xf32>
    %c0_8 = arith.constant 0 : index
    %c0_9 = arith.constant 0 : index
    %8 = vector.load %arg5[%c0_8, %c0_9] : memref<1x64xf32, #tpu.memory_space<vmem>>, vector<1x64xf32>
    %9 = vector.broadcast %8 : vector<1x64xf32> to vector<8x64xf32>
    %10 = arith.addf %7, %9 : vector<8x64xf32>
    %c0_10 = arith.constant 0 : index
    %c0_11 = arith.constant 0 : index
    %11 = vector.load %arg6[%c0_10, %c0_11] : memref<8x64xf32, #tpu.memory_space<vmem>>, vector<8x64xf32>
    tpu.vector_store %arg6[%c0_10, %c0_11], %10 {strides = array<i32>} : memref<8x64xf32, #tpu.memory_space<vmem>>, vector<8x64xf32>,
    return
  }
  func.func @transform_0(%arg0: i32) -> (i32, i32) {
    %c0_i32 = arith.constant 0 : i32
    %c0_i32_0 = arith.constant 0 : i32
    return %arg0, %c0_i32 : i32, i32
  }
  func.func @transform_1(%arg0: i32) -> (i32, i32) {
    %c0_i32 = arith.constant 0 : i32
    %c0_i32_0 = arith.constant 0 : i32
    %c0_i32_1 = arith.constant 0 : i32
    return %c0_i32, %c0_i32_0 : i32, i32
  }
  func.func @transform_2(%arg0: i32) -> (i32, i32) {
    %c0_i32 = arith.constant 0 : i32
    %c0_i32_0 = arith.constant 0 : i32
    %c0_i32_1 = arith.constant 0 : i32
    return %c0_i32, %c0_i32_0 : i32, i32
  }
  func.func @transform_3(%arg0: i32) -> (i32, i32) {
    %c0_i32 = arith.constant 0 : i32
    %c0_i32_0 = arith.constant 0 : i32
    %c0_i32_1 = arith.constant 0 : i32
    return %c0_i32, %c0_i32_0 : i32, i32
  }
  func.func @transform_4(%arg0: i32) -> (i32, i32) {
    %c0_i32 = arith.constant 0 : i32
    %c0_i32_0 = arith.constant 0 : i32
    %c0_i32_1 = arith.constant 0 : i32
    return %c0_i32, %c0_i32_0 : i32, i32
  }
  func.func @transform_5(%arg0: i32) -> (i32, i32) {
    %c0_i32 = arith.constant 0 : i32
    %c0_i32_0 = arith.constant 0 : i32
    return %arg0, %c0_i32 : i32, i32
  }
}

</mosaic_0001>

<llo_original>
// kernel: encoder_zinc_forward.3
$region0: #{encoder_zinc_forward.3}
  #allocation0 [shape = 'u32[]', space=smem, size = 0x4, offset = 0x4, fixed_abs, tag = 'smem constant byte address 0x4 - core index']
  #allocation1 [shape = 'u32[144,128]{1,0:T(1,128)}', space=vmem, size = 0x12000, scoped, tag = 'internal scratch']
  %s0 = inlined_call_operand.vmem [shape: f32[8,154], index: 0, kind: input, shape index: {}]
  %s1 = inlined_call_operand.vmem [shape: f32[154,32], index: 1, kind: input, shape index: {}]
  %s2 = inlined_call_operand.vmem [shape: f32[1,32], index: 2, kind: input, shape index: {}]
  %s3 = inlined_call_operand.vmem [shape: f32[32,64], index: 3, kind: input, shape index: {}]
  %s4 = inlined_call_operand.vmem [shape: f32[1,64], index: 4, kind: input, shape index: {}]
  %s5 = inlined_call_operand.vmem [shape: f32[8,64], index: 5, kind: output, shape index: {}]
  %s6 = sld [smem:[#allocation0]]
  $region30: #{encoder_zinc_forward.3} parent=0
    _
  %s8 = ssub.s32 1, %s6
  %s9 = scalar_select 0, %s8, %s6
  // Predicated region
  $region2: #{encoder_zinc_forward.3} parent=0 // pred_check
    _
  $region3: #{encoder_zinc_forward.3} parent=0 // pred_check_branch
    %11 = sbr.rel (0) target = $region5
  $region4: #{encoder_zinc_forward.3} parent=0 // pred_region
    _
  $region5: #{encoder_zinc_forward.3} parent=0 // pred_fallthru
    _
  // Predicated region
  $region6: #{encoder_zinc_forward.3} parent=0 // pred_check
    _
  $region7: #{encoder_zinc_forward.3} parent=0 // pred_check_branch
    %13 = sbr.rel (0) target = $region9
  $region8: #{encoder_zinc_forward.3} parent=0 // pred_region
    _
  $region9: #{encoder_zinc_forward.3} parent=0 // pred_fallthru
    _
  // Predicated region
  $region10: #{encoder_zinc_forward.3} parent=0 // pred_check
    _
  $region11: #{encoder_zinc_forward.3} parent=0 // pred_check_branch
    %15 = sbr.rel (0) target = $region13
  $region12: #{encoder_zinc_forward.3} parent=0 // pred_region
    _
  $region13: #{encoder_zinc_forward.3} parent=0 // pred_fallthru
    _
  // Predicated region
  $region14: #{encoder_zinc_forward.3} parent=0 // pred_check
    _
  $region15: #{encoder_zinc_forward.3} parent=0 // pred_check_branch
    %17 = sbr.rel (0) target = $region17
  $region16: #{encoder_zinc_forward.3} parent=0 // pred_region
    _
  $region17: #{encoder_zinc_forward.3} parent=0 // pred_fallthru
    _
  // Predicated region
  $region18: #{encoder_zinc_forward.3} parent=0 // pred_check
    _
  $region19: #{encoder_zinc_forward.3} parent=0 // pred_check_branch
    %19 = sbr.rel (0) target = $region21
  $region20: #{encoder_zinc_forward.3} parent=0 // pred_region
    _
  $region21: #{encoder_zinc_forward.3} parent=0 // pred_fallthru
    _
  %v20 = vld [vmem:[%s0] sm:$0xff]
  %v21 = vld [vmem:[%s0 + $0x8] sm:$0xff]
  %v22 = vld [vmem:[%s1] sm:$0xff]
  %v23 = vld [vmem:[%s1 + $0x8] sm:$0xff]
  %v24 = vld [vmem:[%s1 + $0x10] sm:$0xff]
  %v25 = vld [vmem:[%s1 + $0x18] sm:$0xff]
  %v26 = vld [vmem:[%s1 + $0x20] sm:$0xff]
  %v27 = vld [vmem:[%s1 + $0x28] sm:$0xff]
  %v28 = vld [vmem:[%s1 + $0x30] sm:$0xff]
  %v29 = vld [vmem:[%s1 + $0x38] sm:$0xff]
  %v30 = vld [vmem:[%s1 + $0x40] sm:$0xff]
  %v31 = vld [vmem:[%s1 + $0x48] sm:$0xff]
  %v32 = vld [vmem:[%s1 + $0x50] sm:$0xff]
  %v33 = vld [vmem:[%s1 + $0x58] sm:$0xff]
  %v34 = vld [vmem:[%s1 + $0x60] sm:$0xff]
  %v35 = vld [vmem:[%s1 + $0x68] sm:$0xff]
  %v36 = vld [vmem:[%s1 + $0x70] sm:$0xff]
  %v37 = vld [vmem:[%s1 + $0x78] sm:$0xff]
  %v38 = vld [vmem:[%s1 + $0x80] sm:$0xff]
  %v39 = vld [vmem:[%s1 + $0x88] sm:$0xff]
  %v40 = vld [vmem:[%s1 + $0x90] sm:$0xff]
  %v41 = vld [vmem:[%s1 + $0x98] sm:$0x3]
  %v42 = vld [vmem:[%s2] sm:$0x1]
  %v44 = vlaneseq
  %v45 = vshrl.u32 %v44, 7
  %v46 = vsub.s32 0, %v45
  %v47 = vrot.slane %v42, %v46
  %vm49 = vcmask 211968
  %v51 = vsel %vm49, %v21, 0
  %vm53 = vcmask 1041408
  %v55 = vsel %vm53, %v41, 0
  %57 = vmatprep.subr.mxu0 0.0
  %58 = vmatpush1.msra.mxu0 %v37
  %59 = vmatprep.subr.mxu0 0.0
  %60 = vmatpush1.msra.mxu0 %v36
  %61 = vmatprep.subr.mxu0 0.0
  %62 = vmatpush1.msra.mxu0 %v35
  %63 = vmatprep.subr.mxu0 0.0
  %64 = vmatpush1.msra.mxu0 %v34
  %65 = vmatprep.subr.mxu0 0.0
  %66 = vmatpush1.msra.mxu0 %v33
  %67 = vmatprep.subr.mxu0 0.0
  %68 = vmatpush1.msra.mxu0 %v32
  %69 = vmatprep.subr.mxu0 0.0
  %70 = vmatpush1.msra.mxu0 %v31
  %71 = vmatprep.subr.mxu0 0.0
  %72 = vmatpush1.msra.mxu0 %v30
  %73 = vmatprep.subr.mxu0 0.0
  %74 = vmatpush1.msra.mxu0 %v29
  %75 = vmatprep.subr.mxu0 0.0
  %76 = vmatpush1.msra.mxu0 %v28
  %77 = vmatprep.subr.mxu0 0.0
  %78 = vmatpush1.msra.mxu0 %v27
  %79 = vmatprep.subr.mxu0 0.0
  %80 = vmatpush1.msra.mxu0 %v26
  %81 = vmatprep.subr.mxu0 0.0
  %82 = vmatpush1.msra.mxu0 %v25
  %83 = vmatprep.subr.mxu0 0.0
  %84 = vmatpush1.msra.mxu0 %v24
  %85 = vmatprep.subr.mxu0 0.0
  %86 = vmatpush1.msra.mxu0 %v23
  %87 = vmatprep.subr.mxu0 0.0
  %88 = vmatpush1.msra.mxu0 %v22
  %89 = vmatprep.subr.mxu0 0.0
  %90 = vmatpush2.msra.mxu0 0.0
  %91 = vmatprep.subr.mxu0 0.0
  %92 = vmatpush2.msra.mxu0 0.0
  %93 = vmatprep.subr.mxu0 0.0
  %94 = vmatpush2.msra.mxu0 0.0
  %95 = vmatprep.subr.mxu0 0.0
  %96 = vmatpush2.msra.mxu0 0.0
  %97 = vmatprep.subr.mxu0 0.0
  %98 = vmatpush2.msra.mxu0 0.0
  %99 = vmatprep.subr.mxu0 0.0
  %100 = vmatpush2.msra.mxu0 0.0
  %101 = vmatprep.subr.mxu0 0.0
  %102 = vmatpush2.msra.mxu0 0.0
  %103 = vmatprep.subr.mxu0 0.0
  %104 = vmatpush2.msra.mxu0 0.0
  %105 = vmatprep.subr.mxu0 0.0
  %106 = vmatpush2.msra.mxu0 0.0
  %107 = vmatprep.subr.mxu0 0.0
  %108 = vmatpush2.msra.mxu0 0.0
  %109 = vmatprep.subr.mxu0 0.0
  %110 = vmatpush2.msra.mxu0 0.0
  %111 = vmatprep.subr.mxu0 0.0
  %112 = vmatpush2.msra.mxu0 0.0
  %113 = vmatprep.subr.mxu0 0.0
  %114 = vmatpush2.msra.mxu0 %v55
  %115 = vmatprep.subr.mxu0 0.0
  %116 = vmatpush2.msra.mxu0 %v40
  %117 = vmatprep.subr.mxu0 0.0
  %118 = vmatpush2.msra.mxu0 %v39
  %119 = vmatprep.subr.mxu0 0.0
  %120 = vmatpush2.msra.mxu0 %v38
  %121 = vmatprep.mubr.f32.mxu0 %v51
  %122 = vmatmul.mubr.f32.gmra.mxu0 %v20
  %v123 = vpop.f32.mrf.mxu0
  %v124 = vadd.f32 %v47, %v123
  %v125 = vpop.f32.mrf.mxu0
  %126 = vdwg.mxu0
  %v127 = vld [vmem:[%s3] sm:$0xff]
  %v128 = vld [vmem:[%s3 + $0x8] sm:$0xff]
  %v129 = vld [vmem:[%s3 + $0x10] sm:$0xff]
  %v130 = vld [vmem:[%s3 + $0x18] sm:$0xff]
  %v131 = vld [vmem:[%s4] sm:$0x1]
  %v133 = vlaneseq
  %v134 = vshrl.u32 %v133, 7
  %v135 = vsub.s32 0, %v134
  %v136 = vrot.slane %v131, %v135
  %vm138 = vcmask 261120
  %v140 = vsel %vm138, %v124, 0
  %142 = vmatprep.subr.mxu0 0.0
  %143 = vmatpush1.msra.mxu0 0.0
  %144 = vmatprep.subr.mxu0 0.0
  %145 = vmatpush1.msra.mxu0 0.0
  %146 = vmatprep.subr.mxu0 0.0
  %147 = vmatpush1.msra.mxu0 0.0
  %148 = vmatprep.subr.mxu0 0.0
  %149 = vmatpush1.msra.mxu0 0.0
  %150 = vmatprep.subr.mxu0 0.0
  %151 = vmatpush1.msra.mxu0 0.0
  %152 = vmatprep.subr.mxu0 0.0
  %153 = vmatpush1.msra.mxu0 0.0
  %154 = vmatprep.subr.mxu0 0.0
  %155 = vmatpush1.msra.mxu0 0.0
  %156 = vmatprep.subr.mxu0 0.0
  %157 = vmatpush1.msra.mxu0 0.0
  %158 = vmatprep.subr.mxu0 0.0
  %159 = vmatpush1.msra.mxu0 0.0
  %160 = vmatprep.subr.mxu0 0.0
  %161 = vmatpush1.msra.mxu0 0.0
  %162 = vmatprep.subr.mxu0 0.0
  %163 = vmatpush1.msra.mxu0 0.0
  %164 = vmatprep.subr.mxu0 0.0
  %165 = vmatpush1.msra.mxu0 0.0
  %166 = vmatprep.subr.mxu0 0.0
  %167 = vmatpush1.msra.mxu0 %v130
  %168 = vmatprep.subr.mxu0 0.0
  %169 = vmatpush1.msra.mxu0 %v129
  %170 = vmatprep.subr.mxu0 0.0
  %171 = vmatpush1.msra.mxu0 %v128
  %172 = vmatprep.subr.mxu0 0.0
  %173 = vmatpush1.msra.mxu0 %v127
  %174 = vmatprep.subr.mxu0 0.0
  %175 = vmatpush2.msra.mxu0 0.0
  %176 = vmatprep.subr.mxu0 0.0
  %177 = vmatpush2.msra.mxu0 0.0
  %178 = vmatprep.subr.mxu0 0.0
  %179 = vmatpush2.msra.mxu0 0.0
  %180 = vmatprep.subr.mxu0 0.0
  %181 = vmatpush2.msra.mxu0 0.0
  %182 = vmatprep.subr.mxu0 0.0
  %183 = vmatpush2.msra.mxu0 0.0
  %184 = vmatprep.subr.mxu0 0.0
  %185 = vmatpush2.msra.mxu0 0.0
  %186 = vmatprep.subr.mxu0 0.0
  %187 = vmatpush2.msra.mxu0 0.0
  %188 = vmatprep.subr.mxu0 0.0
  %189 = vmatpush2.msra.mxu0 0.0
  %190 = vmatprep.subr.mxu0 0.0
  %191 = vmatpush2.msra.mxu0 0.0
  %192 = vmatprep.subr.mxu0 0.0
  %193 = vmatpush2.msra.mxu0 0.0
  %194 = vmatprep.subr.mxu0 0.0
  %195 = vmatpush2.msra.mxu0 0.0
  %196 = vmatprep.subr.mxu0 0.0
  %197 = vmatpush2.msra.mxu0 0.0
  %198 = vmatprep.subr.mxu0 0.0
  %199 = vmatpush2.msra.mxu0 0.0
  %200 = vmatprep.subr.mxu0 0.0
  %201 = vmatpush2.msra.mxu0 0.0
  %202 = vmatprep.subr.mxu0 0.0
  %203 = vmatpush2.msra.mxu0 0.0
  %204 = vmatprep.subr.mxu0 0.0
  %205 = vmatpush2.msra.mxu0 0.0
  %206 = vmatprep.mubr.f32.mxu0 0.0
  %207 = vmatmul.mubr.f32.gmra.mxu0 %v140
  %v208 = vpop.f32.mrf.mxu0
  %v209 = vadd.f32 %v136, %v208
  %v210 = vpop.f32.mrf.mxu0
  %211 = vdwg.mxu0
  %vm212 = vcmask 523264
  %213 = vst.msk [vmem:[%s5] sm:$0xff] %vm212, %v209
  // Predicated region
  $region22: #{encoder_zinc_forward.3} parent=0 // pred_check
    _
  $region23: #{encoder_zinc_forward.3} parent=0 // pred_check_branch
    %215 = sbr.rel (0) target = $region25
  $region24: #{encoder_zinc_forward.3} parent=0 // pred_region
    _
  $region25: #{encoder_zinc_forward.3} parent=0 // pred_fallthru
    _
  // Predicated region
  $region26: #{encoder_zinc_forward.3} parent=0 // pred_check
    _
  $region27: #{encoder_zinc_forward.3} parent=0 // pred_check_branch
    %217 = sbr.rel (0) target = $region29
  $region28: #{encoder_zinc_forward.3} parent=0 // pred_region
    _
  $region29: #{encoder_zinc_forward.3} parent=0 // pred_fallthru
    _

// kernel: encoder_zinc_forward.2
$region0: #{encoder_zinc_forward.2}
  #allocation0 [shape = 'u32[]', space=smem, size = 0x4, offset = 0x4, fixed_abs, tag = 'smem constant byte address 0x4 - core index']
  #allocation1 [shape = 'u32[144,128]{1,0:T(1,128)}', space=vmem, size = 0x12000, scoped, tag = 'internal scratch']
  %s0 = inlined_call_operand.vmem [shape: f32[320,8], index: 0, kind: input, shape index: {}]
  %s1 = inlined_call_operand.vmem [shape: f32[9,8,9], index: 1, kind: input, shape index: {}]
  %s2 = inlined_call_operand.vmem [shape: f32[1,9], index: 2, kind: input, shape index: {}]
  %s3 = inlined_call_operand.vmem [shape: f32[9,9,10], index: 3, kind: input, shape index: {}]
  %s4 = inlined_call_operand.vmem [shape: f32[1,10], index: 4, kind: input, shape index: {}]
  %s5 = inlined_call_operand.vmem [shape: f32[11,10,11], index: 5, kind: input, shape index: {}]
  %s6 = inlined_call_operand.vmem [shape: f32[1,11], index: 6, kind: input, shape index: {}]
  %s7 = inlined_call_operand.vmem [shape: f32[8,11,14], index: 7, kind: output, shape index: {}]
  %s8 = sld [smem:[#allocation0]]
  $region38: #{encoder_zinc_forward.2} parent=0
    _
  %s10 = ssub.s32 1, %s8
  %s11 = scalar_select 0, %s10, %s8
  // Predicated region
  $region2: #{encoder_zinc_forward.2} parent=0 // pred_check
    _
  $region3: #{encoder_zinc_forward.2} parent=0 // pred_check_branch
    %13 = sbr.rel (0) target = $region5
  $region4: #{encoder_zinc_forward.2} parent=0 // pred_region
    _
  $region5: #{encoder_zinc_forward.2} parent=0 // pred_fallthru
    _
  // Predicated region
  $region6: #{encoder_zinc_forward.2} parent=0 // pred_check
    _
  $region7: #{encoder_zinc_forward.2} parent=0 // pred_check_branch
    %15 = sbr.rel (0) target = $region9
  $region8: #{encoder_zinc_forward.2} parent=0 // pred_region
    _
  $region9: #{encoder_zinc_forward.2} parent=0 // pred_fallthru
    _
  // Predicated region
  $region10: #{encoder_zinc_forward.2} parent=0 // pred_check
    _
  $region11: #{encoder_zinc_forward.2} parent=0 // pred_check_branch
    %17 = sbr.rel (0) target = $region13
  $region12: #{encoder_zinc_forward.2} parent=0 // pred_region
    _
  $region13: #{encoder_zinc_forward.2} parent=0 // pred_fallthru
    _
  // Predicated region
  $region14: #{encoder_zinc_forward.2} parent=0 // pred_check
    _
  $region15: #{encoder_zinc_forward.2} parent=0 // pred_check_branch
    %19 = sbr.rel (0) target = $region17
  $region16: #{encoder_zinc_forward.2} parent=0 // pred_region
    _
  $region17: #{encoder_zinc_forward.2} parent=0 // pred_fallthru
    _
  // Predicated region
  $region18: #{encoder_zinc_forward.2} parent=0 // pred_check
    _
  $region19: #{encoder_zinc_forward.2} parent=0 // pred_check_branch
    %21 = sbr.rel (0) target = $region21
  $region20: #{encoder_zinc_forward.2} parent=0 // pred_region
    _
  $region21: #{encoder_zinc_forward.2} parent=0 // pred_fallthru
    _
  // Predicated region
  $region22: #{encoder_zinc_forward.2} parent=0 // pred_check
    _
  $region23: #{encoder_zinc_forward.2} parent=0 // pred_check_branch
    %23 = sbr.rel (0) target = $region25
  $region24: #{encoder_zinc_forward.2} parent=0 // pred_region
    _
  $region25: #{encoder_zinc_forward.2} parent=0 // pred_fallthru
    _
  // Predicated region
  $region26: #{encoder_zinc_forward.2} parent=0 // pred_check
    _
  $region27: #{encoder_zinc_forward.2} parent=0 // pred_check_branch
    %25 = sbr.rel (0) target = $region29
  $region28: #{encoder_zinc_forward.2} parent=0 // pred_region
    _
  $region29: #{encoder_zinc_forward.2} parent=0 // pred_fallthru
    _
  %v26 = vld [vmem:[%s0] sm:$0xff]
  %v27 = vld [vmem:[%s0 + $0x8] sm:$0xff]
  %v28 = vld [vmem:[%s0 + $0x10] sm:$0xff]
  %v29 = vld [vmem:[%s0 + $0x18] sm:$0xff]
  %v30 = vld [vmem:[%s0 + $0x20] sm:$0xff]
  %v31 = vld [vmem:[%s0 + $0x28] sm:$0xff]
  %v32 = vld [vmem:[%s0 + $0x30] sm:$0xff]
  %v33 = vld [vmem:[%s0 + $0x38] sm:$0xff]
  %v34 = vld [vmem:[%s0 + $0x40] sm:$0xff]
  %v35 = vld [vmem:[%s0 + $0x48] sm:$0xff]
  %v36 = vld [vmem:[%s0 + $0x50] sm:$0xff]
  %v37 = vld [vmem:[%s0 + $0x58] sm:$0xff]
  %v38 = vld [vmem:[%s0 + $0x60] sm:$0xff]
  %v39 = vld [vmem:[%s0 + $0x68] sm:$0xff]
  %v40 = vld [vmem:[%s0 + $0x70] sm:$0xff]
  %v41 = vld [vmem:[%s0 + $0x78] sm:$0xff]
  %v42 = vld [vmem:[%s0 + $0x80] sm:$0xff]
  %v43 = vld [vmem:[%s0 + $0x88] sm:$0xff]
  %v44 = vld [vmem:[%s0 + $0x90] sm:$0xff]
  %v45 = vld [vmem:[%s0 + $0x98] sm:$0xff]
  %v46 = vld [vmem:[%s0 + $0xa0] sm:$0xff]
  %v47 = vld [vmem:[%s0 + $0xa8] sm:$0xff]
  %v48 = vld [vmem:[%s0 + $0xb0] sm:$0xff]
  %v49 = vld [vmem:[%s0 + $0xb8] sm:$0xff]
  %v50 = vld [vmem:[%s0 + $0xc0] sm:$0xff]
  %v51 = vld [vmem:[%s0 + $0xc8] sm:$0xff]
  %v52 = vld [vmem:[%s0 + $0xd0] sm:$0xff]
  %v53 = vld [vmem:[%s0 + $0xd8] sm:$0xff]
  %v54 = vld [vmem:[%s0 + $0xe0] sm:$0xff]
  %v55 = vld [vmem:[%s0 + $0xe8] sm:$0xff]
  %v56 = vld [vmem:[%s0 + $0xf0] sm:$0xff]
  %v57 = vld [vmem:[%s0 + $0xf8] sm:$0xff]
  %v58 = vld [vmem:[%s0 + $0x100] sm:$0xff]
  %v59 = vld [vmem:[%s0 + $0x108] sm:$0xff]
  %v60 = vld [vmem:[%s0 + $0x110] sm:$0xff]
  %v61 = vld [vmem:[%s0 + $0x118] sm:$0xff]
  %v62 = vld [vmem:[%s0 + $0x120] sm:$0xff]
  %v63 = vld [vmem:[%s0 + $0x128] sm:$0xff]
  %v64 = vld [vmem:[%s0 + $0x130] sm:$0xff]
  %v65 = vld [vmem:[%s0 + $0x138] sm:$0xff]
  %v66 = vld [vmem:[%s1] sm:$0xff]
  %v67 = vrot.slane %v26, 1
  %v68 = vrot.slane %v27, 1
  %v69 = vrot.slane %v28, 1
  %v70 = vrot.slane %v29, 1
  %v71 = vrot.slane %v30, 1
  %v72 = vrot.slane %v31, 1
  %v73 = vrot.slane %v32, 1
  %v74 = vrot.slane %v33, 1
  %v75 = vrot.slane %v34, 1
  %v76 = vrot.slane %v35, 1
  %v77 = vrot.slane %v36, 1
  %v78 = vrot.slane %v37, 1
  %v79 = vrot.slane %v38, 1
  %v80 = vrot.slane %v39, 1
  %v81 = vrot.slane %v40, 1
  %v82 = vrot.slane %v41, 1
  %v83 = vrot.slane %v42, 1
  %v84 = vrot.slane %v43, 1
  %v85 = vrot.slane %v44, 1
  %v86 = vrot.slane %v45, 1
  %v87 = vrot.slane %v46, 1
  %v88 = vrot.slane %v47, 1
  %v89 = vrot.slane %v48, 1
  %v90 = vrot.slane %v49, 1
  %v91 = vrot.slane %v50, 1
  %v92 = vrot.slane %v51, 1
  %v93 = vrot.slane %v52, 1
  %v94 = vrot.slane %v53, 1
  %v95 = vrot.slane %v54, 1
  %v96 = vrot.slane %v55, 1
  %v97 = vrot.slane %v56, 1
  %v98 = vrot.slane %v57, 1
  %v99 = vrot.slane %v58, 1
  %v100 = vrot.slane %v59, 1
  %v101 = vrot.slane %v60, 1
  %v102 = vrot.slane %v61, 1
  %v103 = vrot.slane %v62, 1
  %v104 = vrot.slane %v63, 1
  %v105 = vrot.slane %v64, 1
  %v106 = vrot.slane %v65, 1
  %v107 = vlaneseq
  %v108 = vshrl.u32 %v107, 7
  %vm109 = vcmp.lt.s32.totalorder %v108, 7
  %v110 = vsel %vm109, %v105, %v106
  %v111 = vsel %vm109, %v104, %v105
  %v112 = vsel %vm109, %v103, %v104
  %v113 = vsel %vm109, %v102, %v103
  %v114 = vsel %vm109, %v101, %v102
  %v115 = vsel %vm109, %v100, %v101
  %v116 = vsel %vm109, %v99, %v100
  %v117 = vsel %vm109, %v98, %v99
  %v118 = vsel %vm109, %v97, %v98
  %v119 = vsel %vm109, %v96, %v97
  %v120 = vsel %vm109, %v95, %v96
  %v121 = vsel %vm109, %v94, %v95
  %v122 = vsel %vm109, %v93, %v94
  %v123 = vsel %vm109, %v92, %v93
  %v124 = vsel %vm109, %v91, %v92
  %v125 = vsel %vm109, %v90, %v91
  %v126 = vsel %vm109, %v89, %v90
  %v127 = vsel %vm109, %v88, %v89
  %v128 = vsel %vm109, %v87, %v88
  %v129 = vsel %vm109, %v86, %v87
  %v130 = vsel %vm109, %v85, %v86
  %v131 = vsel %vm109, %v84, %v85
  %v132 = vsel %vm109, %v83, %v84
  %v133 = vsel %vm109, %v82, %v83
  %v134 = vsel %vm109, %v81, %v82
  %v135 = vsel %vm109, %v80, %v81
  %v136 = vsel %vm109, %v79, %v80
  %v137 = vsel %vm109, %v78, %v79
  %v138 = vsel %vm109, %v77, %v78
  %v139 = vsel %vm109, %v76, %v77
  %v140 = vsel %vm109, %v75, %v76
  %v141 = vsel %vm109, %v74, %v75
  %v142 = vsel %vm109, %v73, %v74
  %v143 = vsel %vm109, %v72, %v73
  %v144 = vsel %vm109, %v71, %v72
  %v145 = vsel %vm109, %v70, %v71
  %v146 = vsel %vm109, %v69, %v70
  %v147 = vsel %vm109, %v68, %v69
  %v148 = vsel %vm109, %v67, %v68
  %v149 = vsel %vm109, %v106, %v67
  %s150 = scalar_lea.vmem %s1, 8
  %v151 = vld [vmem:[%s150] sm:$0xff]
  %vm152 = vcmask 64512
  %v154 = vsel %vm152, %v148, 0
  %v157 = vsel %vm152, %v147, 0
  %v160 = vsel %vm152, %v146, 0
  %v163 = vsel %vm152, %v145, 0
  %v166 = vsel %vm152, %v144, 0
  %v169 = vsel %vm152, %v143, 0
  %v172 = vsel %vm152, %v142, 0
  %v175 = vsel %vm152, %v141, 0
  %v178 = vsel %vm152, %v140, 0
  %v181 = vsel %vm152, %v139, 0
  %v184 = vsel %vm152, %v138, 0
  %v187 = vsel %vm152, %v137, 0
  %v190 = vsel %vm152, %v136, 0
  %v193 = vsel %vm152, %v135, 0
  %v196 = vsel %vm152, %v134, 0
  %v199 = vsel %vm152, %v133, 0
  %v202 = vsel %vm152, %v132, 0
  %v205 = vsel %vm152, %v131, 0
  %v208 = vsel %vm152, %v130, 0
  %v211 = vsel %vm152, %v129, 0
  %v214 = vsel %vm152, %v128, 0
  %v217 = vsel %vm152, %v127, 0
  %v220 = vsel %vm152, %v126, 0
  %v223 = vsel %vm152, %v125, 0
  %v226 = vsel %vm152, %v124, 0
  %v229 = vsel %vm152, %v123, 0
  %v232 = vsel %vm152, %v122, 0
  %v235 = vsel %vm152, %v121, 0
  %v238 = vsel %vm152, %v120, 0
  %v241 = vsel %vm152, %v119, 0
  %v244 = vsel %vm152, %v118, 0
  %v247 = vsel %vm152, %v117, 0
  %v250 = vsel %vm152, %v116, 0
  %v253 = vsel %vm152, %v115, 0
  %v256 = vsel %vm152, %v114, 0
  %v259 = vsel %vm152, %v113, 0
  %v262 = vsel %vm152, %v112, 0
  %v265 = vsel %vm152, %v111, 0
  %v268 = vsel %vm152, %v110, 0
  %v271 = vsel %vm152, %v149, 0
  %273 = vmatprep.subr.mxu0 0.0
  %274 = vmatpush1.msra.mxu0 0.0
  %275 = vmatprep.subr.mxu0 0.0
  %276 = vmatpush1.msra.mxu0 0.0
  %277 = vmatprep.subr.mxu0 0.0
  %278 = vmatpush1.msra.mxu0 0.0
  %279 = vmatprep.subr.mxu0 0.0
  %280 = vmatpush1.msra.mxu0 0.0
  %281 = vmatprep.subr.mxu0 0.0
  %282 = vmatpush1.msra.mxu0 0.0
  %283 = vmatprep.subr.mxu0 0.0
  %284 = vmatpush1.msra.mxu0 0.0
  %285 = vmatprep.subr.mxu0 0.0
  %286 = vmatpush1.msra.mxu0 0.0
  %287 = vmatprep.subr.mxu0 0.0
  %288 = vmatpush1.msra.mxu0 0.0
  %289 = vmatprep.subr.mxu0 0.0
  %290 = vmatpush1.msra.mxu0 0.0
  %291 = vmatprep.subr.mxu0 0.0
  %292 = vmatpush1.msra.mxu0 0.0
  %293 = vmatprep.subr.mxu0 0.0
  %294 = vmatpush1.msra.mxu0 0.0
  %295 = vmatprep.subr.mxu0 0.0
  %296 = vmatpush1.msra.mxu0 0.0
  %297 = vmatprep.subr.mxu0 0.0
  %298 = vmatpush1.msra.mxu0 0.0
  %299 = vmatprep.subr.mxu0 0.0
  %300 = vmatpush1.msra.mxu0 0.0
  %301 = vmatprep.subr.mxu0 0.0
  %302 = vmatpush1.msra.mxu0 0.0
  %303 = vmatprep.subr.mxu0 0.0
  %304 = vmatpush1.msra.mxu0 %v151
  %305 = vmatprep.subr.mxu0 0.0
  %306 = vmatpush2.msra.mxu0 0.0
  %307 = vmatprep.subr.mxu0 0.0
  %308 = vmatpush2.msra.mxu0 0.0
  %309 = vmatprep.subr.mxu0 0.0
  %310 = vmatpush2.msra.mxu0 0.0
  %311 = vmatprep.subr.mxu0 0.0
  %312 = vmatpush2.msra.mxu0 0.0
  %313 = vmatprep.subr.mxu0 0.0
  %314 = vmatpush2.msra.mxu0 0.0
  %315 = vmatprep.subr.mxu0 0.0
  %316 = vmatpush2.msra.mxu0 0.0
  %317 = vmatprep.subr.mxu0 0.0
  %318 = vmatpush2.msra.mxu0 0.0
  %319 = vmatprep.subr.mxu0 0.0
  %320 = vmatpush2.msra.mxu0 0.0
  %321 = vmatprep.subr.mxu0 0.0
  %322 = vmatpush2.msra.mxu0 0.0
  %323 = vmatprep.subr.mxu0 0.0
  %324 = vmatpush2.msra.mxu0 0.0
  %325 = vmatprep.subr.mxu0 0.0
  %326 = vmatpush2.msra.mxu0 0.0
  %327 = vmatprep.subr.mxu0 0.0
  %328 = vmatpush2.msra.mxu0 0.0
  %329 = vmatprep.subr.mxu0 0.0
  %330 = vmatpush2.msra.mxu0 0.0
  %331 = vmatprep.subr.mxu0 0.0
  %332 = vmatpush2.msra.mxu0 0.0
  %333 = vmatprep.subr.mxu0 0.0
  %334 = vmatpush2.msra.mxu0 0.0
  %335 = vmatprep.subr.mxu0 0.0
  %336 = vmatpush2.msra.mxu0 0.0
  %337 = vmatprep.mubr.f32.mxu0 0.0
  %338 = vmatmul.mubr.f32.gmra.mxu0 %v154
  %v339 = vpop.f32.mrf.mxu0
  %v340 = vadd.f32 0.0, %v339
  %v341 = vpop.f32.mrf.mxu0
  %342 = vmatprep.mubr.f32.mxu0 0.0
  %343 = vmatmul.mubr.f32.gmra.mxu0 %v157
  %v344 = vpop.f32.mrf.mxu0
  %v345 = vadd.f32 0.0, %v344
  %v346 = vpop.f32.mrf.mxu0
  %347 = vmatprep.mubr.f32.mxu0 0.0
  %348 = vmatmul.mubr.f32.gmra.mxu0 %v160
  %v349 = vpop.f32.mrf.mxu0
  %v350 = vadd.f32 0.0, %v349
  %v351 = vpop.f32.mrf.mxu0
  %352 = vmatprep.mubr.f32.mxu0 0.0
  %353 = vmatmul.mubr.f32.gmra.mxu0 %v163
  %v354 = vpop.f32.mrf.mxu0
  %v355 = vadd.f32 0.0, %v354
  %v356 = vpop.f32.mrf.mxu0
  %357 = vmatprep.mubr.f32.mxu0 0.0
  %358 = vmatmul.mubr.f32.gmra.mxu0 %v166
  %v359 = vpop.f32.mrf.mxu0
  %v360 = vadd.f32 0.0, %v359
  %v361 = vpop.f32.mrf.mxu0
  %362 = vmatprep.mubr.f32.mxu0 0.0
  %363 = vmatmul.mubr.f32.gmra.mxu0 %v169
  %v364 = vpop.f32.mrf.mxu0
  %v365 = vadd.f32 0.0, %v364
  %v366 = vpop.f32.mrf.mxu0
  %367 = vmatprep.mubr.f32.mxu0 0.0
  %368 = vmatmul.mubr.f32.gmra.mxu0 %v172
  %v369 = vpop.f32.mrf.mxu0
  %v370 = vadd.f32 0.0, %v369
  %v371 = vpop.f32.mrf.mxu0
  %372 = vmatprep.mubr.f32.mxu0 0.0
  %373 = vmatmul.mubr.f32.gmra.mxu0 %v175
  %v374 = vpop.f32.mrf.mxu0
  %v375 = vadd.f32 0.0, %v374
  %v376 = vpop.f32.mrf.mxu0
  %377 = vmatprep.mubr.f32.mxu0 0.0
  %378 = vmatmul.mubr.f32.gmra.mxu0 %v178
  %v379 = vpop.f32.mrf.mxu0
  %v380 = vadd.f32 0.0, %v379
  %v381 = vpop.f32.mrf.mxu0
  %382 = vmatprep.mubr.f32.mxu0 0.0
  %383 = vmatmul.mubr.f32.gmra.mxu0 %v181
  %v384 = vpop.f32.mrf.mxu0
  %v385 = vadd.f32 0.0, %v384
  %v386 = vpop.f32.mrf.mxu0
  %387 = vmatprep.mubr.f32.mxu0 0.0
  %388 = vmatmul.mubr.f32.gmra.mxu0 %v184
  %v389 = vpop.f32.mrf.mxu0
  %v390 = vadd.f32 0.0, %v389
  %v391 = vpop.f32.mrf.mxu0
  %392 = vmatprep.mubr.f32.mxu0 0.0
  %393 = vmatmul.mubr.f32.gmra.mxu0 %v187
  %v394 = vpop.f32.mrf.mxu0
  %v395 = vadd.f32 0.0, %v394
  %v396 = vpop.f32.mrf.mxu0
  %397 = vmatprep.mubr.f32.mxu0 0.0
  %398 = vmatmul.mubr.f32.gmra.mxu0 %v190
  %v399 = vpop.f32.mrf.mxu0
  %v400 = vadd.f32 0.0, %v399
  %v401 = vpop.f32.mrf.mxu0
  %402 = vmatprep.mubr.f32.mxu0 0.0
  %403 = vmatmul.mubr.f32.gmra.mxu0 %v193
  %v404 = vpop.f32.mrf.mxu0
  %v405 = vadd.f32 0.0, %v404
  %v406 = vpop.f32.mrf.mxu0
  %407 = vmatprep.mubr.f32.mxu0 0.0
  %408 = vmatmul.mubr.f32.gmra.mxu0 %v196
  %v409 = vpop.f32.mrf.mxu0
  %v410 = vadd.f32 0.0, %v409
  %v411 = vpop.f32.mrf.mxu0
  %412 = vmatprep.mubr.f32.mxu0 0.0
  %413 = vmatmul.mubr.f32.gmra.mxu0 %v199
  %v414 = vpop.f32.mrf.mxu0
  %v415 = vadd.f32 0.0, %v414
  %v416 = vpop.f32.mrf.mxu0
  %417 = vmatprep.mubr.f32.mxu0 0.0
  %418 = vmatmul.mubr.f32.gmra.mxu0 %v202
  %v419 = vpop.f32.mrf.mxu0
  %v420 = vadd.f32 0.0, %v419
  %v421 = vpop.f32.mrf.mxu0
  %422 = vmatprep.mubr.f32.mxu0 0.0
  %423 = vmatmul.mubr.f32.gmra.mxu0 %v205
  %v424 = vpop.f32.mrf.mxu0
  %v425 = vadd.f32 0.0, %v424
  %v426 = vpop.f32.mrf.mxu0
  %427 = vmatprep.mubr.f32.mxu0 0.0
  %428 = vmatmul.mubr.f32.gmra.mxu0 %v208
  %v429 = vpop.f32.mrf.mxu0
  %v430 = vadd.f32 0.0, %v429
  %v431 = vpop.f32.mrf.mxu0
  %432 = vmatprep.mubr.f32.mxu0 0.0
  %433 = vmatmul.mubr.f32.gmra.mxu0 %v211
  %v434 = vpop.f32.mrf.mxu0
  %v435 = vadd.f32 0.0, %v434
  %v436 = vpop.f32.mrf.mxu0
  %437 = vmatprep.mubr.f32.mxu0 0.0
  %438 = vmatmul.mubr.f32.gmra.mxu0 %v214
  %v439 = vpop.f32.mrf.mxu0
  %v440 = vadd.f32 0.0, %v439
  %v441 = vpop.f32.mrf.mxu0
  %442 = vmatprep.mubr.f32.mxu0 0.0
  %443 = vmatmul.mubr.f32.gmra.mxu0 %v217
  %v444 = vpop.f32.mrf.mxu0
  %v445 = vadd.f32 0.0, %v444
  %v446 = vpop.f32.mrf.mxu0
  %447 = vmatprep.mubr.f32.mxu0 0.0
  %448 = vmatmul.mubr.f32.gmra.mxu0 %v220
  %v449 = vpop.f32.mrf.mxu0
  %v450 = vadd.f32 0.0, %v449
  %v451 = vpop.f32.mrf.mxu0
  %452 = vmatprep.mubr.f32.mxu0 0.0
  %453 = vmatmul.mubr.f32.gmra.mxu0 %v223
  %v454 = vpop.f32.mrf.mxu0
  %v455 = vadd.f32 0.0, %v454
  %v456 = vpop.f32.mrf.mxu0
  %457 = vmatprep.mubr.f32.mxu0 0.0
  %458 = vmatmul.mubr.f32.gmra.mxu0 %v226
  %v459 = vpop.f32.mrf.mxu0
  %v460 = vadd.f32 0.0, %v459
  %v461 = vpop.f32.mrf.mxu0
  %462 = vmatprep.mubr.f32.mxu0 0.0
  %463 = vmatmul.mubr.f32.gmra.mxu0 %v229
  %v464 = vpop.f32.mrf.mxu0
  %v465 = vadd.f32 0.0, %v464
  %v466 = vpop.f32.mrf.mxu0
  %467 = vmatprep.mubr.f32.mxu0 0.0
  %468 = vmatmul.mubr.f32.gmra.mxu0 %v232
  %v469 = vpop.f32.mrf.mxu0
  %v470 = vadd.f32 0.0, %v469
  %v471 = vpop.f32.mrf.mxu0
  %472 = vmatprep.mubr.f32.mxu0 0.0
  %473 = vmatmul.mubr.f32.gmra.mxu0 %v235
  %v474 = vpop.f32.mrf.mxu0
  %v475 = vadd.f32 0.0, %v474
  %v476 = vpop.f32.mrf.mxu0
  %477 = vmatprep.mubr.f32.mxu0 0.0
  %478 = vmatmul.mubr.f32.gmra.mxu0 %v238
  %v479 = vpop.f32.mrf.mxu0
  %v480 = vadd.f32 0.0, %v479
  %v481 = vpop.f32.mrf.mxu0
  %482 = vmatprep.mubr.f32.mxu0 0.0
  %483 = vmatmul.mubr.f32.gmra.mxu0 %v241
  %v484 = vpop.f32.mrf.mxu0
  %v485 = vadd.f32 0.0, %v484
  %v486 = vpop.f32.mrf.mxu0
  %487 = vmatprep.mubr.f32.mxu0 0.0
  %488 = vmatmul.mubr.f32.gmra.mxu0 %v244
  %v489 = vpop.f32.mrf.mxu0
  %v490 = vadd.f32 0.0, %v489
  %v491 = vpop.f32.mrf.mxu0
  %492 = vmatprep.mubr.f32.mxu0 0.0
  %493 = vmatmul.mubr.f32.gmra.mxu0 %v247
  %v494 = vpop.f32.mrf.mxu0
  %v495 = vadd.f32 0.0, %v494
  %v496 = vpop.f32.mrf.mxu0
  %497 = vmatprep.mubr.f32.mxu0 0.0
  %498 = vmatmul.mubr.f32.gmra.mxu0 %v250
  %v499 = vpop.f32.mrf.mxu0
  %v500 = vadd.f32 0.0, %v499
  %v501 = vpop.f32.mrf.mxu0
  %502 = vmatprep.mubr.f32.mxu0 0.0
  %503 = vmatmul.mubr.f32.gmra.mxu0 %v253
  %v504 = vpop.f32.mrf.mxu0
  %v505 = vadd.f32 0.0, %v504
  %v506 = vpop.f32.mrf.mxu0
  %507 = vmatprep.mubr.f32.mxu0 0.0
  %508 = vmatmul.mubr.f32.gmra.mxu0 %v256
  %v509 = vpop.f32.mrf.mxu0
  %v510 = vadd.f32 0.0, %v509
  %v511 = vpop.f32.mrf.mxu0
  %512 = vmatprep.mubr.f32.mxu0 0.0
  %513 = vmatmul.mubr.f32.gmra.mxu0 %v259
  %v514 = vpop.f32.mrf.mxu0
  %v515 = vadd.f32 0.0, %v514
  %v516 = vpop.f32.mrf.mxu0
  %517 = vmatprep.mubr.f32.mxu0 0.0
  %518 = vmatmul.mubr.f32.gmra.mxu0 %v262
  %v519 = vpop.f32.mrf.mxu0
  %v520 = vadd.f32 0.0, %v519
  %v521 = vpop.f32.mrf.mxu0
  %522 = vmatprep.mubr.f32.mxu0 0.0
  %523 = vmatmul.mubr.f32.gmra.mxu0 %v265
  %v524 = vpop.f32.mrf.mxu0
  %v525 = vadd.f32 0.0, %v524
  %v526 = vpop.f32.mrf.mxu0
  %527 = vmatprep.mubr.f32.mxu0 0.0
  %528 = vmatmul.mubr.f32.gmra.mxu0 %v268
  %v529 = vpop.f32.mrf.mxu0
  %v530 = vadd.f32 0.0, %v529
  %v531 = vpop.f32.mrf.mxu0
  %532 = vmatprep.mubr.f32.mxu0 0.0
  %533 = vmatmul.mubr.f32.gmra.mxu0 %v271
  %v534 = vpop.f32.mrf.mxu0
  %v535 = vadd.f32 0.0, %v534
  %v536 = vpop.f32.mrf.mxu0
  %537 = vdwg.mxu0
  %v539 = vsel %vm152, %v26, 0
  %v542 = vsel %vm152, %v27, 0
  %v545 = vsel %vm152, %v28, 0
  %v548 = vsel %vm152, %v29, 0
  %v551 = vsel %vm152, %v30, 0
  %v554 = vsel %vm152, %v31, 0
  %v557 = vsel %vm152, %v32, 0
  %v560 = vsel %vm152, %v33, 0
  %v563 = vsel %vm152, %v34, 0
  %v566 = vsel %vm152, %v35, 0
  %v569 = vsel %vm152, %v36, 0
  %v572 = vsel %vm152, %v37, 0
  %v575 = vsel %vm152, %v38, 0
  %v578 = vsel %vm152, %v39, 0
  %v581 = vsel %vm152, %v40, 0
  %v584 = vsel %vm152, %v41, 0
  %v587 = vsel %vm152, %v42, 0
  %v590 = vsel %vm152, %v43, 0
  %v593 = vsel %vm152, %v44, 0
  %v596 = vsel %vm152, %v45, 0
  %v599 = vsel %vm152, %v46, 0
  %v602 = vsel %vm152, %v47, 0
  %v605 = vsel %vm152, %v48, 0
  %v608 = vsel %vm152, %v49, 0
  %v611 = vsel %vm152, %v50, 0
  %v614 = vsel %vm152, %v51, 0
  %v617 = vsel %vm152, %v52, 0
  %v620 = vsel %vm152, %v53, 0
  %v623 = vsel %vm152, %v54, 0
  %v626 = vsel %vm152, %v55, 0
  %v629 = vsel %vm152, %v56, 0
  %v632 = vsel %vm152, %v57, 0
  %v635 = vsel %vm152, %v58, 0
  %v638 = vsel %vm152, %v59, 0
  %v641 = vsel %vm152, %v60, 0
  %v644 = vsel %vm152, %v61, 0
  %v647 = vsel %vm152, %v62, 0
  %v650 = vsel %vm152, %v63, 0
  %v653 = vsel %vm152, %v64, 0
  %v656 = vsel %vm152, %v65, 0
  %658 = vmatprep.subr.mxu0 0.0
  %659 = vmatpush1.msra.mxu0 0.0
  %660 = vmatprep.subr.mxu0 0.0
  %661 = vmatpush1.msra.mxu0 0.0
  %662 = vmatprep.subr.mxu0 0.0
  %663 = vmatpush1.msra.mxu0 0.0
  %664 = vmatprep.subr.mxu0 0.0
  %665 = vmatpush1.msra.mxu0 0.0
  %666 = vmatprep.subr.mxu0 0.0
  %667 = vmatpush1.msra.mxu0 0.0
  %668 = vmatprep.subr.mxu0 0.0
  %669 = vmatpush1.msra.mxu0 0.0
  %670 = vmatprep.subr.mxu0 0.0
  %671 = vmatpush1.msra.mxu0 0.0
  %672 = vmatprep.subr.mxu0 0.0
  %673 = vmatpush1.msra.mxu0 0.0
  %674 = vmatprep.subr.mxu0 0.0
  %675 = vmatpush1.msra.mxu0 0.0
  %676 = vmatprep.subr.mxu0 0.0
  %677 = vmatpush1.msra.mxu0 0.0
  %678 = vmatprep.subr.mxu0 0.0
  %679 = vmatpush1.msra.mxu0 0.0
  %680 = vmatprep.subr.mxu0 0.0
  %681 = vmatpush1.msra.mxu0 0.0
  %682 = vmatprep.subr.mxu0 0.0
  %683 = vmatpush1.msra.mxu0 0.0
  %684 = vmatprep.subr.mxu0 0.0
  %685 = vmatpush1.msra.mxu0 0.0
  %686 = vmatprep.subr.mxu0 0.0
  %687 = vmatpush1.msra.mxu0 0.0
  %688 = vmatprep.subr.mxu0 0.0
  %689 = vmatpush1.msra.mxu0 %v66
  %690 = vmatprep.subr.mxu0 0.0
  %691 = vmatpush2.msra.mxu0 0.0
  %692 = vmatprep.subr.mxu0 0.0
  %693 = vmatpush2.msra.mxu0 0.0
  %694 = vmatprep.subr.mxu0 0.0
  %695 = vmatpush2.msra.mxu0 0.0
  %696 = vmatprep.subr.mxu0 0.0
  %697 = vmatpush2.msra.mxu0 0.0
  %698 = vmatprep.subr.mxu0 0.0
  %699 = vmatpush2.msra.mxu0 0.0
  %700 = vmatprep.subr.mxu0 0.0
  %701 = vmatpush2.msra.mxu0 0.0
  %702 = vmatprep.subr.mxu0 0.0
  %703 = vmatpush2.msra.mxu0 0.0
  %704 = vmatprep.subr.mxu0 0.0
  %705 = vmatpush2.msra.mxu0 0.0
  %706 = vmatprep.subr.mxu0 0.0
  %707 = vmatpush2.msra.mxu0 0.0
  %708 = vmatprep.subr.mxu0 0.0
  %709 = vmatpush2.msra.mxu0 0.0
  %710 = vmatprep.subr.mxu0 0.0
  %711 = vmatpush2.msra.mxu0 0.0
  %712 = vmatprep.subr.mxu0 0.0
  %713 = vmatpush2.msra.mxu0 0.0
  %714 = vmatprep.subr.mxu0 0.0
  %715 = vmatpush2.msra.mxu0 0.0
  %716 = vmatprep.subr.mxu0 0.0
  %717 = vmatpush2.msra.mxu0 0.0
  %718 = vmatprep.subr.mxu0 0.0
  %719 = vmatpush2.msra.mxu0 0.0
  %720 = vmatprep.subr.mxu0 0.0
  %721 = vmatpush2.msra.mxu0 0.0
  %722 = vmatprep.mubr.f32.mxu0 0.0
  %723 = vmatmul.mubr.f32.gmra.mxu0 %v539
  %v724 = vpop.f32.mrf.mxu0
  %v725 = vadd.f32 %v340, %v724
  %v726 = vpop.f32.mrf.mxu0
  %727 = vmatprep.mubr.f32.mxu0 0.0
  %728 = vmatmul.mubr.f32.gmra.mxu0 %v542
  %v729 = vpop.f32.mrf.mxu0
  %v730 = vadd.f32 %v345, %v729
  %v731 = vpop.f32.mrf.mxu0
  %732 = vmatprep.mubr.f32.mxu0 0.0
  %733 = vmatmul.mubr.f32.gmra.mxu0 %v545
  %v734 = vpop.f32.mrf.mxu0
  %v735 = vadd.f32 %v350, %v734
  %v736 = vpop.f32.mrf.mxu0
  %737 = vmatprep.mubr.f32.mxu0 0.0
  %738 = vmatmul.mubr.f32.gmra.mxu0 %v548
  %v739 = vpop.f32.mrf.mxu0
  %v740 = vadd.f32 %v355, %v739
  %v741 = vpop.f32.mrf.mxu0
  %742 = vmatprep.mubr.f32.mxu0 0.0
  %743 = vmatmul.mubr.f32.gmra.mxu0 %v551
  %v744 = vpop.f32.mrf.mxu0
  %v745 = vadd.f32 %v360, %v744
  %v746 = vpop.f32.mrf.mxu0
  %747 = vmatprep.mubr.f32.mxu0 0.0
  %748 = vmatmul.mubr.f32.gmra.mxu0 %v554
  %v749 = vpop.f32.mrf.mxu0
  %v750 = vadd.f32 %v365, %v749
  %v751 = vpop.f32.mrf.mxu0
  %752 = vmatprep.mubr.f32.mxu0 0.0
  %753 = vmatmul.mubr.f32.gmra.mxu0 %v557
  %v754 = vpop.f32.mrf.mxu0
  %v755 = vadd.f32 %v370, %v754
  %v756 = vpop.f32.mrf.mxu0
  %757 = vmatprep.mubr.f32.mxu0 0.0
  %758 = vmatmul.mubr.f32.gmra.mxu0 %v560
  %v759 = vpop.f32.mrf.mxu0
  %v760 = vadd.f32 %v375, %v759
  %v761 = vpop.f32.mrf.mxu0
  %762 = vmatprep.mubr.f32.mxu0 0.0
  %763 = vmatmul.mubr.f32.gmra.mxu0 %v563
  %v764 = vpop.f32.mrf.mxu0
  %v765 = vadd.f32 %v380, %v764
  %v766 = vpop.f32.mrf.mxu0
  %767 = vmatprep.mubr.f32.mxu0 0.0
  %768 = vmatmul.mubr.f32.gmra.mxu0 %v566
  %v769 = vpop.f32.mrf.mxu0
  %v770 = vadd.f32 %v385, %v769
  %v771 = vpop.f32.mrf.mxu0
  %772 = vmatprep.mubr.f32.mxu0 0.0
  %773 = vmatmul.mubr.f32.gmra.mxu0 %v569
  %v774 = vpop.f32.mrf.mxu0
  %v775 = vadd.f32 %v390, %v774
  %v776 = vpop.f32.mrf.mxu0
  %777 = vmatprep.mubr.f32.mxu0 0.0
  %778 = vmatmul.mubr.f32.gmra.mxu0 %v572
  %v779 = vpop.f32.mrf.mxu0
  %v780 = vadd.f32 %v395, %v779
  %v781 = vpop.f32.mrf.mxu0
  %782 = vmatprep.mubr.f32.mxu0 0.0
  %783 = vmatmul.mubr.f32.gmra.mxu0 %v575
  %v784 = vpop.f32.mrf.mxu0
  %v785 = vadd.f32 %v400, %v784
  %v786 = vpop.f32.mrf.mxu0
  %787 = vmatprep.mubr.f32.mxu0 0.0
  %788 = vmatmul.mubr.f32.gmra.mxu0 %v578
  %v789 = vpop.f32.mrf.mxu0
  %v790 = vadd.f32 %v405, %v789
  %v791 = vpop.f32.mrf.mxu0
  %792 = vmatprep.mubr.f32.mxu0 0.0
  %793 = vmatmul.mubr.f32.gmra.mxu0 %v581
  %v794 = vpop.f32.mrf.mxu0
  %v795 = vadd.f32 %v410, %v794
  %v796 = vpop.f32.mrf.mxu0
  %797 = vmatprep.mubr.f32.mxu0 0.0
  %798 = vmatmul.mubr.f32.gmra.mxu0 %v584
  %v799 = vpop.f32.mrf.mxu0
  %v800 = vadd.f32 %v415, %v799
  %v801 = vpop.f32.mrf.mxu0
  %802 = vmatprep.mubr.f32.mxu0 0.0
  %803 = vmatmul.mubr.f32.gmra.mxu0 %v587
  %v804 = vpop.f32.mrf.mxu0
  %v805 = vadd.f32 %v420, %v804
  %v806 = vpop.f32.mrf.mxu0
  %807 = vmatprep.mubr.f32.mxu0 0.0
  %808 = vmatmul.mubr.f32.gmra.mxu0 %v590
  %v809 = vpop.f32.mrf.mxu0
  %v810 = vadd.f32 %v425, %v809
  %v811 = vpop.f32.mrf.mxu0
  %812 = vmatprep.mubr.f32.mxu0 0.0
  %813 = vmatmul.mubr.f32.gmra.mxu0 %v593
  %v814 = vpop.f32.mrf.mxu0
  %v815 = vadd.f32 %v430, %v814
  %v816 = vpop.f32.mrf.mxu0
  %817 = vmatprep.mubr.f32.mxu0 0.0
  %818 = vmatmul.mubr.f32.gmra.mxu0 %v596
  %v819 = vpop.f32.mrf.mxu0
  %v820 = vadd.f32 %v435, %v819
  %v821 = vpop.f32.mrf.mxu0
  %822 = vmatprep.mubr.f32.mxu0 0.0
  %823 = vmatmul.mubr.f32.gmra.mxu0 %v599
  %v824 = vpop.f32.mrf.mxu0
  %v825 = vadd.f32 %v440, %v824
  %v826 = vpop.f32.mrf.mxu0
  %827 = vmatprep.mubr.f32.mxu0 0.0
  %828 = vmatmul.mubr.f32.gmra.mxu0 %v602
  %v829 = vpop.f32.mrf.mxu0
  %v830 = vadd.f32 %v445, %v829
  %v831 = vpop.f32.mrf.mxu0
  %832 = vmatprep.mubr.f32.mxu0 0.0
  %833 = vmatmul.mubr.f32.gmra.mxu0 %v605
  %v834 = vpop.f32.mrf.mxu0
  %v835 = vadd.f32 %v450, %v834
  %v836 = vpop.f32.mrf.mxu0
  %837 = vmatprep.mubr.f32.mxu0 0.0
  %838 = vmatmul.mubr.f32.gmra.mxu0 %v608
  %v839 = vpop.f32.mrf.mxu0
  %v840 = vadd.f32 %v455, %v839
  %v841 = vpop.f32.mrf.mxu0
  %842 = vmatprep.mubr.f32.mxu0 0.0
  %843 = vmatmul.mubr.f32.gmra.mxu0 %v611
  %v844 = vpop.f32.mrf.mxu0
  %v845 = vadd.f32 %v460, %v844
  %v846 = vpop.f32.mrf.mxu0
  %847 = vmatprep.mubr.f32.mxu0 0.0
  %848 = vmatmul.mubr.f32.gmra.mxu0 %v614
  %v849 = vpop.f32.mrf.mxu0
  %v850 = vadd.f32 %v465, %v849
  %v851 = vpop.f32.mrf.mxu0
  %852 = vmatprep.mubr.f32.mxu0 0.0
  %853 = vmatmul.mubr.f32.gmra.mxu0 %v617
  %v854 = vpop.f32.mrf.mxu0
  %v855 = vadd.f32 %v470, %v854
  %v856 = vpop.f32.mrf.mxu0
  %857 = vmatprep.mubr.f32.mxu0 0.0
  %858 = vmatmul.mubr.f32.gmra.mxu0 %v620
  %v859 = vpop.f32.mrf.mxu0
  %v860 = vadd.f32 %v475, %v859
  %v861 = vpop.f32.mrf.mxu0
  %862 = vmatprep.mubr.f32.mxu0 0.0
  %863 = vmatmul.mubr.f32.gmra.mxu0 %v623
  %v864 = vpop.f32.mrf.mxu0
  %v865 = vadd.f32 %v480, %v864
  %v866 = vpop.f32.mrf.mxu0
  %867 = vmatprep.mubr.f32.mxu0 0.0
  %868 = vmatmul.mubr.f32.gmra.mxu0 %v626
  %v869 = vpop.f32.mrf.mxu0
  %v870 = vadd.f32 %v485, %v869
  %v871 = vpop.f32.mrf.mxu0
  %872 = vmatprep.mubr.f32.mxu0 0.0
  %873 = vmatmul.mubr.f32.gmra.mxu0 %v629
  %v874 = vpop.f32.mrf.mxu0
  %v875 = vadd.f32 %v490, %v874
  %v876 = vpop.f32.mrf.mxu0
  %877 = vmatprep.mubr.f32.mxu0 0.0
  %878 = vmatmul.mubr.f32.gmra.mxu0 %v632
  %v879 = vpop.f32.mrf.mxu0
  %v880 = vadd.f32 %v495, %v879
  %v881 = vpop.f32.mrf.mxu0
  %882 = vmatprep.mubr.f32.mxu0 0.0
  %883 = vmatmul.mubr.f32.gmra.mxu0 %v635
  %v884 = vpop.f32.mrf.mxu0
  %v885 = vadd.f32 %v500, %v884
  %v886 = vpop.f32.mrf.mxu0
  %887 = vmatprep.mubr.f32.mxu0 0.0
  %888 = vmatmul.mubr.f32.gmra.mxu0 %v638
  %v889 = vpop.f32.mrf.mxu0
  %v890 = vadd.f32 %v505, %v889
  %v891 = vpop.f32.mrf.mxu0
  %892 = vmatprep.mubr.f32.mxu0 0.0
  %893 = vmatmul.mubr.f32.gmra.mxu0 %v641
  %v894 = vpop.f32.mrf.mxu0
  %v895 = vadd.f32 %v510, %v894
  %v896 = vpop.f32.mrf.mxu0
  %897 = vmatprep.mubr.f32.mxu0 0.0
  %898 = vmatmul.mubr.f32.gmra.mxu0 %v644
  %v899 = vpop.f32.mrf.mxu0
  %v900 = vadd.f32 %v515, %v899
  %v901 = vpop.f32.mrf.mxu0
  %902 = vmatprep.mubr.f32.mxu0 0.0
  %903 = vmatmul.mubr.f32.gmra.mxu0 %v647
  %v904 = vpop.f32.mrf.mxu0
  %v905 = vadd.f32 %v520, %v904
  %v906 = vpop.f32.mrf.mxu0
  %907 = vmatprep.mubr.f32.mxu0 0.0
  %908 = vmatmul.mubr.f32.gmra.mxu0 %v650
  %v909 = vpop.f32.mrf.mxu0
  %v910 = vadd.f32 %v525, %v909
  %v911 = vpop.f32.mrf.mxu0
  %912 = vmatprep.mubr.f32.mxu0 0.0
  %913 = vmatmul.mubr.f32.gmra.mxu0 %v653
  %v914 = vpop.f32.mrf.mxu0
  %v915 = vadd.f32 %v530, %v914
  %v916 = vpop.f32.mrf.mxu0
  %917 = vmatprep.mubr.f32.mxu0 0.0
  %918 = vmatmul.mubr.f32.gmra.mxu0 %v656
  %v919 = vpop.f32.mrf.mxu0
  %v920 = vadd.f32 %v535, %v919
  %v921 = vpop.f32.mrf.mxu0
  %922 = vdwg.mxu0
  %v923 = vrot.slane %v26, 2
  %v924 = vrot.slane %v27, 2
  %v925 = vrot.slane %v28, 2
  %v926 = vrot.slane %v29, 2
  %v927 = vrot.slane %v30, 2
  %v928 = vrot.slane %v31, 2
  %v929 = vrot.slane %v32, 2
  %v930 = vrot.slane %v33, 2
  %v931 = vrot.slane %v34, 2
  %v932 = vrot.slane %v35, 2
  %v933 = vrot.slane %v36, 2
  %v934 = vrot.slane %v37, 2
  %v935 = vrot.slane %v38, 2
  %v936 = vrot.slane %v39, 2
  %v937 = vrot.slane %v40, 2
  %v938 = vrot.slane %v41, 2
  %v939 = vrot.slane %v42, 2
  %v940 = vrot.slane %v43, 2
  %v941 = vrot.slane %v44, 2
  %v942 = vrot.slane %v45, 2
  %v943 = vrot.slane %v46, 2
  %v944 = vrot.slane %v47, 2
  %v945 = vrot.slane %v48, 2
  %v946 = vrot.slane %v49, 2
  %v947 = vrot.slane %v50, 2
  %v948 = vrot.slane %v51, 2
  %v949 = vrot.slane %v52, 2
  %v950 = vrot.slane %v53, 2
  %v951 = vrot.slane %v54, 2
  %v952 = vrot.slane %v55, 2
  %v953 = vrot.slane %v56, 2
  %v954 = vrot.slane %v57, 2
  %v955 = vrot.slane %v58, 2
  %v956 = vrot.slane %v59, 2
  %v957 = vrot.slane %v60, 2
  %v958 = vrot.slane %v61, 2
  %v959 = vrot.slane %v62, 2
  %v960 = vrot.slane %v63, 2
  %v961 = vrot.slane %v64, 2
  %v962 = vrot.slane %v65, 2
  %vm963 = vcmp.lt.s32.totalorder %v108, 6
  %v964 = vsel %vm963, %v961, %v962
  %v965 = vsel %vm963, %v960, %v961
  %v966 = vsel %vm963, %v959, %v960
  %v967 = vsel %vm963, %v958, %v959
  %v968 = vsel %vm963, %v957, %v958
  %v969 = vsel %vm963, %v956, %v957
  %v970 = vsel %vm963, %v955, %v956
  %v971 = vsel %vm963, %v954, %v955
  %v972 = vsel %vm963, %v953, %v954
  %v973 = vsel %vm963, %v952, %v953
  %v974 = vsel %vm963, %v951, %v952
  %v975 = vsel %vm963, %v950, %v951
  %v976 = vsel %vm963, %v949, %v950
  %v977 = vsel %vm963, %v948, %v949
  %v978 = vsel %vm963, %v947, %v948
  %v979 = vsel %vm963, %v946, %v947
  %v980 = vsel %vm963, %v945, %v946
  %v981 = vsel %vm963, %v944, %v945
  %v982 = vsel %vm963, %v943, %v944
  %v983 = vsel %vm963, %v942, %v943
  %v984 = vsel %vm963, %v941, %v942
  %v985 = vsel %vm963, %v940, %v941
  %v986 = vsel %vm963, %v939, %v940
  %v987 = vsel %vm963, %v938, %v939
  %v988 = vsel %vm963, %v937, %v938
  %v989 = vsel %vm963, %v936, %v937
  %v990 = vsel %vm963, %v935, %v936
  %v991 = vsel %vm963, %v934, %v935
  %v992 = vsel %vm963, %v933, %v934
  %v993 = vsel %vm963, %v932, %v933
  %v994 = vsel %vm963, %v931, %v932
  %v995 = vsel %vm963, %v930, %v931
  %v996 = vsel %vm963, %v929, %v930
  %v997 = vsel %vm963, %v928, %v929
  %v998 = vsel %vm963, %v927, %v928
  %v999 = vsel %vm963, %v926, %v927
  %v1000 = vsel %vm963, %v925, %v926
  %v1001 = vsel %vm963, %v924, %v925
  %v1002 = vsel %vm963, %v923, %v924
  %v1003 = vsel %vm963, %v962, %v923
  %s1004 = scalar_lea.vmem %s1, 16
  %v1005 = vld [vmem:[%s1004] sm:$0xff]
  %v1007 = vsel %vm152, %v1002, 0
  %v1010 = vsel %vm152, %v1001, 0
  %v1013 = vsel %vm152, %v1000, 0
  %v1016 = vsel %vm152, %v999, 0
  %v1019 = vsel %vm152, %v998, 0
  %v1022 = vsel %vm152, %v997, 0
  %v1025 = vsel %vm152, %v996, 0
  %v1028 = vsel %vm152, %v995, 0
  %v1031 = vsel %vm152, %v994, 0
  %v1034 = vsel %vm152, %v993, 0
  %v1037 = vsel %vm152, %v992, 0
  %v1040 = vsel %vm152, %v991, 0
  %v1043 = vsel %vm152, %v990, 0
  %v1046 = vsel %vm152, %v989, 0
  %v1049 = vsel %vm152, %v988, 0
  %v1052 = vsel %vm152, %v987, 0
  %v1055 = vsel %vm152, %v986, 0
  %v1058 = vsel %vm152, %v985, 0
  %v1061 = vsel %vm152, %v984, 0
  %v1064 = vsel %vm152, %v983, 0
  %v1067 = vsel %vm152, %v982, 0
  %v1070 = vsel %vm152, %v981, 0
  %v1073 = vsel %vm152, %v980, 0
  %v1076 = vsel %vm152, %v979, 0
  %v1079 = vsel %vm152, %v978, 0
  %v1082 = vsel %vm152, %v977, 0
  %v1085 = vsel %vm152, %v976, 0
  %v1088 = vsel %vm152, %v975, 0
  %v1091 = vsel %vm152, %v974, 0
  %v1094 = vsel %vm152, %v973, 0
  %v1097 = vsel %vm152, %v972, 0
  %v1100 = vsel %vm152, %v971, 0
  %v1103 = vsel %vm152, %v970, 0
  %v1106 = vsel %vm152, %v969, 0
  %v1109 = vsel %vm152, %v968, 0
  %v1112 = vsel %vm152, %v967, 0
  %v1115 = vsel %vm152, %v966, 0
  %v1118 = vsel %vm152, %v965, 0
  %v1121 = vsel %vm152, %v964, 0
  %v1124 = vsel %vm152, %v1003, 0
  %1126 = vmatprep.subr.mxu0 0.0
  %1127 = vmatpush1.msra.mxu0 0.0
  %1128 = vmatprep.subr.mxu0 0.0
  %1129 = vmatpush1.msra.mxu0 0.0
  %1130 = vmatprep.subr.mxu0 0.0
  %1131 = vmatpush1.msra.mxu0 0.0
  %1132 = vmatprep.subr.mxu0 0.0
  %1133 = vmatpush1.msra.mxu0 0.0
  %1134 = vmatprep.subr.mxu0 0.0
  %1135 = vmatpush1.msra.mxu0 0.0
  %1136 = vmatprep.subr.mxu0 0.0
  %1137 = vmatpush1.msra.mxu0 0.0
  %1138 = vmatprep.subr.mxu0 0.0
  %1139 = vmatpush1.msra.mxu0 0.0
  %1140 = vmatprep.subr.mxu0 0.0
  %1141 = vmatpush1.msra.mxu0 0.0
  %1142 = vmatprep.subr.mxu0 0.0
  %1143 = vmatpush1.msra.mxu0 0.0
  %1144 = vmatprep.subr.mxu0 0.0
  %1145 = vmatpush1.msra.mxu0 0.0
  %1146 = vmatprep.subr.mxu0 0.0
  %1147 = vmatpush1.msra.mxu0 0.0
  %1148 = vmatprep.subr.mxu0 0.0
  %1149 = vmatpush1.msra.mxu0 0.0
  %1150 = vmatprep.subr.mxu0 0.0
  %1151 = vmatpush1.msra.mxu0 0.0
  %1152 = vmatprep.subr.mxu0 0.0
  %1153 = vmatpush1.msra.mxu0 0.0
  %1154 = vmatprep.subr.mxu0 0.0
  %1155 = vmatpush1.msra.mxu0 0.0
  %1156 = vmatprep.subr.mxu0 0.0
  %1157 = vmatpush1.msra.mxu0 %v1005
  %1158 = vmatprep.subr.mxu0 0.0
  %1159 = vmatpush2.msra.mxu0 0.0
  %1160 = vmatprep.subr.mxu0 0.0
  %1161 = vmatpush2.msra.mxu0 0.0
  %1162 = vmatprep.subr.mxu0 0.0
  %1163 = vmatpush2.msra.mxu0 0.0
  %1164 = vmatprep.subr.mxu0 0.0
  %1165 = vmatpush2.msra.mxu0 0.0
  %1166 = vmatprep.subr.mxu0 0.0
  %1167 = vmatpush2.msra.mxu0 0.0
  %1168 = vmatprep.subr.mxu0 0.0
  %1169 = vmatpush2.msra.mxu0 0.0
  %1170 = vmatprep.subr.mxu0 0.0
  %1171 = vmatpush2.msra.mxu0 0.0
  %1172 = vmatprep.subr.mxu0 0.0
  %1173 = vmatpush2.msra.mxu0 0.0
  %1174 = vmatprep.subr.mxu0 0.0
  %1175 = vmatpush2.msra.mxu0 0.0
  %1176 = vmatprep.subr.mxu0 0.0
  %1177 = vmatpush2.msra.mxu0 0.0
  %1178 = vmatprep.subr.mxu0 0.0
  %1179 = vmatpush2.msra.mxu0 0.0
  %1180 = vmatprep.subr.mxu0 0.0
  %1181 = vmatpush2.msra.mxu0 0.0
  %1182 = vmatprep.subr.mxu0 0.0
  %1183 = vmatpush2.msra.mxu0 0.0
  %1184 = vmatprep.subr.mxu0 0.0
  %1185 = vmatpush2.msra.mxu0 0.0
  %1186 = vmatprep.subr.mxu0 0.0
  %1187 = vmatpush2.msra.mxu0 0.0
  %1188 = vmatprep.subr.mxu0 0.0
  %1189 = vmatpush2.msra.mxu0 0.0
  %1190 = vmatprep.mubr.f32.mxu0 0.0
  %1191 = vmatmul.mubr.f32.gmra.mxu0 %v1007
  %v1192 = vpop.f32.mrf.mxu0
  %v1193 = vadd.f32 0.0, %v1192
  %v1194 = vpop.f32.mrf.mxu0
  %1195 = vmatprep.mubr.f32.mxu0 0.0
  %1196 = vmatmul.mubr.f32.gmra.mxu0 %v1010
  %v1197 = vpop.f32.mrf.mxu0
  %v1198 = vadd.f32 0.0, %v1197
  %v1199 = vpop.f32.mrf.mxu0
  %1200 = vmatprep.mubr.f32.mxu0 0.0
  %1201 = vmatmul.mubr.f32.gmra.mxu0 %v1013
  %v1202 = vpop.f32.mrf.mxu0
  %v1203 = vadd.f32 0.0, %v1202
  %v1204 = vpop.f32.mrf.mxu0
  %1205 = vmatprep.mubr.f32.mxu0 0.0
  %1206 = vmatmul.mubr.f32.gmra.mxu0 %v1016
  %v1207 = vpop.f32.mrf.mxu0
  %v1208 = vadd.f32 0.0, %v1207
  %v1209 = vpop.f32.mrf.mxu0
  %1210 = vmatprep.mubr.f32.mxu0 0.0
  %1211 = vmatmul.mubr.f32.gmra.mxu0 %v1019
  %v1212 = vpop.f32.mrf.mxu0
  %v1213 = vadd.f32 0.0, %v1212
  %v1214 = vpop.f32.mrf.mxu0
  %1215 = vmatprep.mubr.f32.mxu0 0.0
  %1216 = vmatmul.mubr.f32.gmra.mxu0 %v1022
  %v1217 = vpop.f32.mrf.mxu0
  %v1218 = vadd.f32 0.0, %v1217
  %v1219 = vpop.f32.mrf.mxu0
  %1220 = vmatprep.mubr.f32.mxu0 0.0
  %1221 = vmatmul.mubr.f32.gmra.mxu0 %v1025
  %v1222 = vpop.f32.mrf.mxu0
  %v1223 = vadd.f32 0.0, %v1222
  %v1224 = vpop.f32.mrf.mxu0
  %1225 = vmatprep.mubr.f32.mxu0 0.0
  %1226 = vmatmul.mubr.f32.gmra.mxu0 %v1028
  %v1227 = vpop.f32.mrf.mxu0
  %v1228 = vadd.f32 0.0, %v1227
  %v1229 = vpop.f32.mrf.mxu0
  %1230 = vmatprep.mubr.f32.mxu0 0.0
  %1231 = vmatmul.mubr.f32.gmra.mxu0 %v1031
  %v1232 = vpop.f32.mrf.mxu0
  %v1233 = vadd.f32 0.0, %v1232
  %v1234 = vpop.f32.mrf.mxu0
  %1235 = vmatprep.mubr.f32.mxu0 0.0
  %1236 = vmatmul.mubr.f32.gmra.mxu0 %v1034
  %v1237 = vpop.f32.mrf.mxu0
  %v1238 = vadd.f32 0.0, %v1237
  %v1239 = vpop.f32.mrf.mxu0
  %1240 = vmatprep.mubr.f32.mxu0 0.0
  %1241 = vmatmul.mubr.f32.gmra.mxu0 %v1037
  %v1242 = vpop.f32.mrf.mxu0
  %v1243 = vadd.f32 0.0, %v1242
  %v1244 = vpop.f32.mrf.mxu0
  %1245 = vmatprep.mubr.f32.mxu0 0.0
  %1246 = vmatmul.mubr.f32.gmra.mxu0 %v1040
  %v1247 = vpop.f32.mrf.mxu0
  %v1248 = vadd.f32 0.0, %v1247
  %v1249 = vpop.f32.mrf.mxu0
  %1250 = vmatprep.mubr.f32.mxu0 0.0
  %1251 = vmatmul.mubr.f32.gmra.mxu0 %v1043
  %v1252 = vpop.f32.mrf.mxu0
  %v1253 = vadd.f32 0.0, %v1252
  %v1254 = vpop.f32.mrf.mxu0
  %1255 = vmatprep.mubr.f32.mxu0 0.0
  %1256 = vmatmul.mubr.f32.gmra.mxu0 %v1046
  %v1257 = vpop.f32.mrf.mxu0
  %v1258 = vadd.f32 0.0, %v1257
  %v1259 = vpop.f32.mrf.mxu0
  %1260 = vmatprep.mubr.f32.mxu0 0.0
  %1261 = vmatmul.mubr.f32.gmra.mxu0 %v1049
  %v1262 = vpop.f32.mrf.mxu0
  %v1263 = vadd.f32 0.0, %v1262
  %v1264 = vpop.f32.mrf.mxu0
  %1265 = vmatprep.mubr.f32.mxu0 0.0
  %1266 = vmatmul.mubr.f32.gmra.mxu0 %v1052
  %v1267 = vpop.f32.mrf.mxu0
  %v1268 = vadd.f32 0.0, %v1267
  %v1269 = vpop.f32.mrf.mxu0
  %1270 = vmatprep.mubr.f32.mxu0 0.0
  %1271 = vmatmul.mubr.f32.gmra.mxu0 %v1055
  %v1272 = vpop.f32.mrf.mxu0
  %v1273 = vadd.f32 0.0, %v1272
  %v1274 = vpop.f32.mrf.mxu0
  %1275 = vmatprep.mubr.f32.mxu0 0.0
  %1276 = vmatmul.mubr.f32.gmra.mxu0 %v1058
  %v1277 = vpop.f32.mrf.mxu0
  %v1278 = vadd.f32 0.0, %v1277
  %v1279 = vpop.f32.mrf.mxu0
  %1280 = vmatprep.mubr.f32.mxu0 0.0
  %1281 = vmatmul.mubr.f32.gmra.mxu0 %v1061
  %v1282 = vpop.f32.mrf.mxu0
  %v1283 = vadd.f32 0.0, %v1282
  %v1284 = vpop.f32.mrf.mxu0
  %1285 = vmatprep.mubr.f32.mxu0 0.0
  %1286 = vmatmul.mubr.f32.gmra.mxu0 %v1064
  %v1287 = vpop.f32.mrf.mxu0
  %v1288 = vadd.f32 0.0, %v1287
  %v1289 = vpop.f32.mrf.mxu0
  %1290 = vmatprep.mubr.f32.mxu0 0.0
  %1291 = vmatmul.mubr.f32.gmra.mxu0 %v1067
  %v1292 = vpop.f32.mrf.mxu0
  %v1293 = vadd.f32 0.0, %v1292
  %v1294 = vpop.f32.mrf.mxu0
  %1295 = vmatprep.mubr.f32.mxu0 0.0
  %1296 = vmatmul.mubr.f32.gmra.mxu0 %v1070
  %v1297 = vpop.f32.mrf.mxu0
  %v1298 = vadd.f32 0.0, %v1297
  %v1299 = vpop.f32.mrf.mxu0
  %1300 = vmatprep.mubr.f32.mxu0 0.0
  %1301 = vmatmul.mubr.f32.gmra.mxu0 %v1073
  %v1302 = vpop.f32.mrf.mxu0
  %v1303 = vadd.f32 0.0, %v1302
  %v1304 = vpop.f32.mrf.mxu0
  %1305 = vmatprep.mubr.f32.mxu0 0.0
  %1306 = vmatmul.mubr.f32.gmra.mxu0 %v1076
  %v1307 = vpop.f32.mrf.mxu0
  %v1308 = vadd.f32 0.0, %v1307
  %v1309 = vpop.f32.mrf.mxu0
  %1310 = vmatprep.mubr.f32.mxu0 0.0
  %1311 = vmatmul.mubr.f32.gmra.mxu0 %v1079
  %v1312 = vpop.f32.mrf.mxu0
  %v1313 = vadd.f32 0.0, %v1312
  %v1314 = vpop.f32.mrf.mxu0
  %1315 = vmatprep.mubr.f32.mxu0 0.0
  %1316 = vmatmul.mubr.f32.gmra.mxu0 %v1082
  %v1317 = vpop.f32.mrf.mxu0
  %v1318 = vadd.f32 0.0, %v1317
  %v1319 = vpop.f32.mrf.mxu0
  %1320 = vmatprep.mubr.f32.mxu0 0.0
  %1321 = vmatmul.mubr.f32.gmra.mxu0 %v1085
  %v1322 = vpop.f32.mrf.mxu0
  %v1323 = vadd.f32 0.0, %v1322
  %v1324 = vpop.f32.mrf.mxu0
  %1325 = vmatprep.mubr.f32.mxu0 0.0
  %1326 = vmatmul.mubr.f32.gmra.mxu0 %v1088
  %v1327 = vpop.f32.mrf.mxu0
  %v1328 = vadd.f32 0.0, %v1327
  %v1329 = vpop.f32.mrf.mxu0
  %1330 = vmatprep.mubr.f32.mxu0 0.0
  %1331 = vmatmul.mubr.f32.gmra.mxu0 %v1091
  %v1332 = vpop.f32.mrf.mxu0
  %v1333 = vadd.f32 0.0, %v1332
  %v1334 = vpop.f32.mrf.mxu0
  %1335 = vmatprep.mubr.f32.mxu0 0.0
  %1336 = vmatmul.mubr.f32.gmra.mxu0 %v1094
  %v1337 = vpop.f32.mrf.mxu0
  %v1338 = vadd.f32 0.0, %v1337
  %v1339 = vpop.f32.mrf.mxu0
  %1340 = vmatprep.mubr.f32.mxu0 0.0
  %1341 = vmatmul.mubr.f32.gmra.mxu0 %v1097
  %v1342 = vpop.f32.mrf.mxu0
  %v1343 = vadd.f32 0.0, %v1342
  %v1344 = vpop.f32.mrf.mxu0
  %1345 = vmatprep.mubr.f32.mxu0 0.0
  %1346 = vmatmul.mubr.f32.gmra.mxu0 %v1100
  %v1347 = vpop.f32.mrf.mxu0
  %v1348 = vadd.f32 0.0, %v1347
  %v1349 = vpop.f32.mrf.mxu0
  %1350 = vmatprep.mubr.f32.mxu0 0.0
  %1351 = vmatmul.mubr.f32.gmra.mxu0 %v1103
  %v1352 = vpop.f32.mrf.mxu0
  %v1353 = vadd.f32 0.0, %v1352
  %v1354 = vpop.f32.mrf.mxu0
  %1355 = vmatprep.mubr.f32.mxu0 0.0
  %1356 = vmatmul.mubr.f32.gmra.mxu0 %v1106
  %v1357 = vpop.f32.mrf.mxu0
  %v1358 = vadd.f32 0.0, %v1357
  %v1359 = vpop.f32.mrf.mxu0
  %1360 = vmatprep.mubr.f32.mxu0 0.0
  %1361 = vmatmul.mubr.f32.gmra.mxu0 %v1109
  %v1362 = vpop.f32.mrf.mxu0
  %v1363 = vadd.f32 0.0, %v1362
  %v1364 = vpop.f32.mrf.mxu0
  %1365 = vmatprep.mubr.f32.mxu0 0.0
  %1366 = vmatmul.mubr.f32.gmra.mxu0 %v1112
  %v1367 = vpop.f32.mrf.mxu0
  %v1368 = vadd.f32 0.0, %v1367
  %v1369 = vpop.f32.mrf.mxu0
  %1370 = vmatprep.mubr.f32.mxu0 0.0
  %1371 = vmatmul.mubr.f32.gmra.mxu0 %v1115
  %v1372 = vpop.f32.mrf.mxu0
  %v1373 = vadd.f32 0.0, %v1372
  %v1374 = vpop.f32.mrf.mxu0
  %1375 = vmatprep.mubr.f32.mxu0 0.0
  %1376 = vmatmul.mubr.f32.gmra.mxu0 %v1118
  %v1377 = vpop.f32.mrf.mxu0
  %v1378 = vadd.f32 0.0, %v1377
  %v1379 = vpop.f32.mrf.mxu0
  %1380 = vmatprep.mubr.f32.mxu0 0.0
  %1381 = vmatmul.mubr.f32.gmra.mxu0 %v1121
  %v1382 = vpop.f32.mrf.mxu0
  %v1383 = vadd.f32 0.0, %v1382
  %v1384 = vpop.f32.mrf.mxu0
  %1385 = vmatprep.mubr.f32.mxu0 0.0
  %1386 = vmatmul.mubr.f32.gmra.mxu0 %v1124
  %v1387 = vpop.f32.mrf.mxu0
  %v1388 = vadd.f32 0.0, %v1387
  %v1389 = vpop.f32.mrf.mxu0
  %1390 = vdwg.mxu0
  %v1391 = vadd.f32 %v725, %v1193
  %v1392 = vadd.f32 %v730, %v1198
  %v1393 = vadd.f32 %v735, %v1203
  %v1394 = vadd.f32 %v740, %v1208
  %v1395 = vadd.f32 %v745, %v1213
  %v1396 = vadd.f32 %v750, %v1218
  %v1397 = vadd.f32 %v755, %v1223
  %v1398 = vadd.f32 %v760, %v1228
  %v1399 = vadd.f32 %v765, %v1233
  %v1400 = vadd.f32 %v770, %v1238
  %v1401 = vadd.f32 %v775, %v1243
  %v1402 = vadd.f32 %v780, %v1248
  %v1403 = vadd.f32 %v785, %v1253
  %v1404 = vadd.f32 %v790, %v1258
  %v1405 = vadd.f32 %v795, %v1263
  %v1406 = vadd.f32 %v800, %v1268
  %v1407 = vadd.f32 %v805, %v1273
  %v1408 = vadd.f32 %v810, %v1278
  %v1409 = vadd.f32 %v815, %v1283
  %v1410 = vadd.f32 %v820, %v1288
  %v1411 = vadd.f32 %v825, %v1293
  %v1412 = vadd.f32 %v830, %v1298
  %v1413 = vadd.f32 %v835, %v1303
  %v1414 = vadd.f32 %v840, %v1308
  %v1415 = vadd.f32 %v845, %v1313
  %v1416 = vadd.f32 %v850, %v1318
  %v1417 = vadd.f32 %v855, %v1323
  %v1418 = vadd.f32 %v860, %v1328
  %v1419 = vadd.f32 %v865, %v1333
  %v1420 = vadd.f32 %v870, %v1338
  %v1421 = vadd.f32 %v875, %v1343
  %v1422 = vadd.f32 %v880, %v1348
  %v1423 = vadd.f32 %v885, %v1353
  %v1424 = vadd.f32 %v890, %v1358
  %v1425 = vadd.f32 %v895, %v1363
  %v1426 = vadd.f32 %v900, %v1368
  %v1427 = vadd.f32 %v905, %v1373
  %v1428 = vadd.f32 %v910, %v1378
  %v1429 = vadd.f32 %v915, %v1383
  %v1430 = vadd.f32 %v920, %v1388
  %v1431 = vrot.slane %v26, 3
  %v1432 = vrot.slane %v27, 3
  %v1433 = vrot.slane %v28, 3
  %v1434 = vrot.slane %v29, 3
  %v1435 = vrot.slane %v30, 3
  %v1436 = vrot.slane %v31, 3
  %v1437 = vrot.slane %v32, 3
  %v1438 = vrot.slane %v33, 3
  %v1439 = vrot.slane %v34, 3
  %v1440 = vrot.slane %v35, 3
  %v1441 = vrot.slane %v36, 3
  %v1442 = vrot.slane %v37, 3
  %v1443 = vrot.slane %v38, 3
  %v1444 = vrot.slane %v39, 3
  %v1445 = vrot.slane %v40, 3
  %v1446 = vrot.slane %v41, 3
  %v1447 = vrot.slane %v42, 3
  %v1448 = vrot.slane %v43, 3
  %v1449 = vrot.slane %v44, 3
  %v1450 = vrot.slane %v45, 3
  %v1451 = vrot.slane %v46, 3
  %v1452 = vrot.slane %v47, 3
  %v1453 = vrot.slane %v48, 3
  %v1454 = vrot.slane %v49, 3
  %v1455 = vrot.slane %v50, 3
  %v1456 = vrot.slane %v51, 3
  %v1457 = vrot.slane %v52, 3
  %v1458 = vrot.slane %v53, 3
  %v1459 = vrot.slane %v54, 3
  %v1460 = vrot.slane %v55, 3
  %v1461 = vrot.slane %v56, 3
  %v1462 = vrot.slane %v57, 3
  %v1463 = vrot.slane %v58, 3
  %v1464 = vrot.slane %v59, 3
  %v1465 = vrot.slane %v60, 3
  %v1466 = vrot.slane %v61, 3
  %v1467 = vrot.slane %v62, 3
  %v1468 = vrot.slane %v63, 3
  %v1469 = vrot.slane %v64, 3
  %v1470 = vrot.slane %v65, 3
  %vm1471 = vcmp.lt.s32.totalorder %v108, 5
  %v1472 = vsel %vm1471, %v1469, %v1470
  %v1473 = vsel %vm1471, %v1468, %v1469
  %v1474 = vsel %vm1471, %v1467, %v1468
  %v1475 = vsel %vm1471, %v1466, %v1467
  %v1476 = vsel %vm1471, %v1465, %v1466
  %v1477 = vsel %vm1471, %v1464, %v1465
  %v1478 = vsel %vm1471, %v1463, %v1464
  %v1479 = vsel %vm1471, %v1462, %v1463
  %v1480 = vsel %vm1471, %v1461, %v1462
  %v1481 = vsel %vm1471, %v1460, %v1461
  %v1482 = vsel %vm1471, %v1459, %v1460
  %v1483 = vsel %vm1471, %v1458, %v1459
  %v1484 = vsel %vm1471, %v1457, %v1458
  %v1485 = vsel %vm1471, %v1456, %v1457
  %v1486 = vsel %vm1471, %v1455, %v1456
  %v1487 = vsel %vm1471, %v1454, %v1455
  %v1488 = vsel %vm1471, %v1453, %v1454
  %v1489 = vsel %vm1471, %v1452, %v1453
  %v1490 = vsel %vm1471, %v1451, %v1452
  %v1491 = vsel %vm1471, %v1450, %v1451
  %v1492 = vsel %vm1471, %v1449, %v1450
  %v1493 = vsel %vm1471, %v1448, %v1449
  %v1494 = vsel %vm1471, %v1447, %v1448
  %v1495 = vsel %vm1471, %v1446, %v1447
  %v1496 = vsel %vm1471, %v1445, %v1446
  %v1497 = vsel %vm1471, %v1444, %v1445
  %v1498 = vsel %vm1471, %v1443, %v1444
  %v1499 = vsel %vm1471, %v1442, %v1443
  %v1500 = vsel %vm1471, %v1441, %v1442
  %v1501 = vsel %vm1471, %v1440, %v1441
  %v1502 = vsel %vm1471, %v1439, %v1440
  %v1503 = vsel %vm1471, %v1438, %v1439
  %v1504 = vsel %vm1471, %v1437, %v1438
  %v1505 = vsel %vm1471, %v1436, %v1437
  %v1506 = vsel %vm1471, %v1435, %v1436
  %v1507 = vsel %vm1471, %v1434, %v1435
  %v1508 = vsel %vm1471, %v1433, %v1434
  %v1509 = vsel %vm1471, %v1432, %v1433
  %v1510 = vsel %vm1471, %v1431, %v1432
  %v1511 = vsel %vm1471, %v1470, %v1431
  %s1512 = scalar_lea.vmem %s1, 24
  %v1513 = vld [vmem:[%s1512] sm:$0xff]
  %v1515 = vsel %vm152, %v1510, 0
  %v1518 = vsel %vm152, %v1509, 0
  %v1521 = vsel %vm152, %v1508, 0
  %v1524 = vsel %vm152, %v1507, 0
  %v1527 = vsel %vm152, %v1506, 0
  %v1530 = vsel %vm152, %v1505, 0
  %v1533 = vsel %vm152, %v1504, 0
  %v1536 = vsel %vm152, %v1503, 0
  %v1539 = vsel %vm152, %v1502, 0
  %v1542 = vsel %vm152, %v1501, 0
  %v1545 = vsel %vm152, %v1500, 0
  %v1548 = vsel %vm152, %v1499, 0
  %v1551 = vsel %vm152, %v1498, 0
  %v1554 = vsel %vm152, %v1497, 0
  %v1557 = vsel %vm152, %v1496, 0
  %v1560 = vsel %vm152, %v1495, 0
  %v1563 = vsel %vm152, %v1494, 0
  %v1566 = vsel %vm152, %v1493, 0
  %v1569 = vsel %vm152, %v1492, 0
  %v1572 = vsel %vm152, %v1491, 0
  %v1575 = vsel %vm152, %v1490, 0
  %v1578 = vsel %vm152, %v1489, 0
  %v1581 = vsel %vm152, %v1488, 0
  %v1584 = vsel %vm152, %v1487, 0
  %v1587 = vsel %vm152, %v1486, 0
  %v1590 = vsel %vm152, %v1485, 0
  %v1593 = vsel %vm152, %v1484, 0
  %v1596 = vsel %vm152, %v1483, 0
  %v1599 = vsel %vm152, %v1482, 0
  %v1602 = vsel %vm152, %v1481, 0
  %v1605 = vsel %vm152, %v1480, 0
  %v1608 = vsel %vm152, %v1479, 0
  %v1611 = vsel %vm152, %v1478, 0
  %v1614 = vsel %vm152, %v1477, 0
  %v1617 = vsel %vm152, %v1476, 0
  %v1620 = vsel %vm152, %v1475, 0
  %v1623 = vsel %vm152, %v1474, 0
  %v1626 = vsel %vm152, %v1473, 0
  %v1629 = vsel %vm152, %v1472, 0
  %v1632 = vsel %vm152, %v1511, 0
  %1634 = vmatprep.subr.mxu0 0.0
  %1635 = vmatpush1.msra.mxu0 0.0
  %1636 = vmatprep.subr.mxu0 0.0
  %1637 = vmatpush1.msra.mxu0 0.0
  %1638 = vmatprep.subr.mxu0 0.0
  %1639 = vmatpush1.msra.mxu0 0.0
  %1640 = vmatprep.subr.mxu0 0.0
  %1641 = vmatpush1.msra.mxu0 0.0
  %1642 = vmatprep.subr.mxu0 0.0
  %1643 = vmatpush1.msra.mxu0 0.0
  %1644 = vmatprep.subr.mxu0 0.0
  %1645 = vmatpush1.msra.mxu0 0.0
  %1646 = vmatprep.subr.mxu0 0.0
  %1647 = vmatpush1.msra.mxu0 0.0
  %1648 = vmatprep.subr.mxu0 0.0
  %1649 = vmatpush1.msra.mxu0 0.0
  %1650 = vmatprep.subr.mxu0 0.0
  %1651 = vmatpush1.msra.mxu0 0.0
  %1652 = vmatprep.subr.mxu0 0.0
  %1653 = vmatpush1.msra.mxu0 0.0
  %1654 = vmatprep.subr.mxu0 0.0
  %1655 = vmatpush1.msra.mxu0 0.0
  %1656 = vmatprep.subr.mxu0 0.0
  %1657 = vmatpush1.msra.mxu0 0.0
  %1658 = vmatprep.subr.mxu0 0.0
  %1659 = vmatpush1.msra.mxu0 0.0
  %1660 = vmatprep.subr.mxu0 0.0
  %1661 = vmatpush1.msra.mxu0 0.0
  %1662 = vmatprep.subr.mxu0 0.0
  %1663 = vmatpush1.msra.mxu0 0.0
  %1664 = vmatprep.subr.mxu0 0.0
  %1665 = vmatpush1.msra.mxu0 %v1513
  %1666 = vmatprep.subr.mxu0 0.0
  %1667 = vmatpush2.msra.mxu0 0.0
  %1668 = vmatprep.subr.mxu0 0.0
  %1669 = vmatpush2.msra.mxu0 0.0
  %1670 = vmatprep.subr.mxu0 0.0
  %1671 = vmatpush2.msra.mxu0 0.0
  %1672 = vmatprep.subr.mxu0 0.0
  %1673 = vmatpush2.msra.mxu0 0.0
  %1674 = vmatprep.subr.mxu0 0.0
  %1675 = vmatpush2.msra.mxu0 0.0
  %1676 = vmatprep.subr.mxu0 0.0
  %1677 = vmatpush2.msra.mxu0 0.0
  %1678 = vmatprep.subr.mxu0 0.0
  %1679 = vmatpush2.msra.mxu0 0.0
  %1680 = vmatprep.subr.mxu0 0.0
  %1681 = vmatpush2.msra.mxu0 0.0
  %1682 = vmatprep.subr.mxu0 0.0
  %1683 = vmatpush2.msra.mxu0 0.0
  %1684 = vmatprep.subr.mxu0 0.0
  %1685 = vmatpush2.msra.mxu0 0.0
  %1686 = vmatprep.subr.mxu0 0.0
  %1687 = vmatpush2.msra.mxu0 0.0
  %1688 = vmatprep.subr.mxu0 0.0
  %1689 = vmatpush2.msra.mxu0 0.0
  %1690 = vmatprep.subr.mxu0 0.0
  %1691 = vmatpush2.msra.mxu0 0.0
  %1692 = vmatprep.subr.mxu0 0.0
  %1693 = vmatpush2.msra.mxu0 0.0
  %1694 = vmatprep.subr.mxu0 0.0
  %1695 = vmatpush2.msra.mxu0 0.0
  %1696 = vmatprep.subr.mxu0 0.0
  %1697 = vmatpush2.msra.mxu0 0.0
  %1698 = vmatprep.mubr.f32.mxu0 0.0
  %1699 = vmatmul.mubr.f32.gmra.mxu0 %v1515
  %v1700 = vpop.f32.mrf.mxu0
  %v1701 = vadd.f32 0.0, %v1700
  %v1702 = vpop.f32.mrf.mxu0
  %1703 = vmatprep.mubr.f32.mxu0 0.0
  %1704 = vmatmul.mubr.f32.gmra.mxu0 %v1518
  %v1705 = vpop.f32.mrf.mxu0
  %v1706 = vadd.f32 0.0, %v1705
  %v1707 = vpop.f32.mrf.mxu0
  %1708 = vmatprep.mubr.f32.mxu0 0.0
  %1709 = vmatmul.mubr.f32.gmra.mxu0 %v1521
  %v1710 = vpop.f32.mrf.mxu0
  %v1711 = vadd.f32 0.0, %v1710
  %v1712 = vpop.f32.mrf.mxu0
  %1713 = vmatprep.mubr.f32.mxu0 0.0
  %1714 = vmatmul.mubr.f32.gmra.mxu0 %v1524
  %v1715 = vpop.f32.mrf.mxu0
  %v1716 = vadd.f32 0.0, %v1715
  %v1717 = vpop.f32.mrf.mxu0
  %1718 = vmatprep.mubr.f32.mxu0 0.0
  %1719 = vmatmul.mubr.f32.gmra.mxu0 %v1527
  %v1720 = vpop.f32.mrf.mxu0
  %v1721 = vadd.f32 0.0, %v1720
  %v1722 = vpop.f32.mrf.mxu0
  %1723 = vmatprep.mubr.f32.mxu0 0.0
  %1724 = vmatmul.mubr.f32.gmra.mxu0 %v1530
  %v1725 = vpop.f32.mrf.mxu0
  %v1726 = vadd.f32 0.0, %v1725
  %v1727 = vpop.f32.mrf.mxu0
  %1728 = vmatprep.mubr.f32.mxu0 0.0
  %1729 = vmatmul.mubr.f32.gmra.mxu0 %v1533
  %v1730 = vpop.f32.mrf.mxu0
  %v1731 = vadd.f32 0.0, %v1730
  %v1732 = vpop.f32.mrf.mxu0
  %1733 = vmatprep.mubr.f32.mxu0 0.0
  %1734 = vmatmul.mubr.f32.gmra.mxu0 %v1536
  %v1735 = vpop.f32.mrf.mxu0
  %v1736 = vadd.f32 0.0, %v1735
  %v1737 = vpop.f32.mrf.mxu0
  %1738 = vmatprep.mubr.f32.mxu0 0.0
  %1739 = vmatmul.mubr.f32.gmra.mxu0 %v1539
  %v1740 = vpop.f32.mrf.mxu0
  %v1741 = vadd.f32 0.0, %v1740
  %v1742 = vpop.f32.mrf.mxu0
  %1743 = vmatprep.mubr.f32.mxu0 0.0
  %1744 = vmatmul.mubr.f32.gmra.mxu0 %v1542
  %v1745 = vpop.f32.mrf.mxu0
  %v1746 = vadd.f32 0.0, %v1745
  %v1747 = vpop.f32.mrf.mxu0
  %1748 = vmatprep.mubr.f32.mxu0 0.0
  %1749 = vmatmul.mubr.f32.gmra.mxu0 %v1545
  %v1750 = vpop.f32.mrf.mxu0
  %v1751 = vadd.f32 0.0, %v1750
  %v1752 = vpop.f32.mrf.mxu0
  %1753 = vmatprep.mubr.f32.mxu0 0.0
  %1754 = vmatmul.mubr.f32.gmra.mxu0 %v1548
  %v1755 = vpop.f32.mrf.mxu0
  %v1756 = vadd.f32 0.0, %v1755
  %v1757 = vpop.f32.mrf.mxu0
  %1758 = vmatprep.mubr.f32.mxu0 0.0
  %1759 = vmatmul.mubr.f32.gmra.mxu0 %v1551
  %v1760 = vpop.f32.mrf.mxu0
  %v1761 = vadd.f32 0.0, %v1760
  %v1762 = vpop.f32.mrf.mxu0
  %1763 = vmatprep.mubr.f32.mxu0 0.0
  %1764 = vmatmul.mubr.f32.gmra.mxu0 %v1554
  %v1765 = vpop.f32.mrf.mxu0
  %v1766 = vadd.f32 0.0, %v1765
  %v1767 = vpop.f32.mrf.mxu0
  %1768 = vmatprep.mubr.f32.mxu0 0.0
  %1769 = vmatmul.mubr.f32.gmra.mxu0 %v1557
  %v1770 = vpop.f32.mrf.mxu0
  %v1771 = vadd.f32 0.0, %v1770
  %v1772 = vpop.f32.mrf.mxu0
  %1773 = vmatprep.mubr.f32.mxu0 0.0
  %1774 = vmatmul.mubr.f32.gmra.mxu0 %v1560
  %v1775 = vpop.f32.mrf.mxu0
  %v1776 = vadd.f32 0.0, %v1775
  %v1777 = vpop.f32.mrf.mxu0
  %1778 = vmatprep.mubr.f32.mxu0 0.0
  %1779 = vmatmul.mubr.f32.gmra.mxu0 %v1563
  %v1780 = vpop.f32.mrf.mxu0
  %v1781 = vadd.f32 0.0, %v1780
  %v1782 = vpop.f32.mrf.mxu0
  %1783 = vmatprep.mubr.f32.mxu0 0.0
  %1784 = vmatmul.mubr.f32.gmra.mxu0 %v1566
  %v1785 = vpop.f32.mrf.mxu0
  %v1786 = vadd.f32 0.0, %v1785
  %v1787 = vpop.f32.mrf.mxu0
  %1788 = vmatprep.mubr.f32.mxu0 0.0
  %1789 = vmatmul.mubr.f32.gmra.mxu0 %v1569
  %v1790 = vpop.f32.mrf.mxu0
  %v1791 = vadd.f32 0.0, %v1790
  %v1792 = vpop.f32.mrf.mxu0
  %1793 = vmatprep.mubr.f32.mxu0 0.0
  %1794 = vmatmul.mubr.f32.gmra.mxu0 %v1572
  %v1795 = vpop.f32.mrf.mxu0
  %v1796 = vadd.f32 0.0, %v1795
  %v1797 = vpop.f32.mrf.mxu0
  %1798 = vmatprep.mubr.f32.mxu0 0.0
  %1799 = vmatmul.mubr.f32.gmra.mxu0 %v1575
  %v1800 = vpop.f32.mrf.mxu0
  %v1801 = vadd.f32 0.0, %v1800
  %v1802 = vpop.f32.mrf.mxu0
  %1803 = vmatprep.mubr.f32.mxu0 0.0
  %1804 = vmatmul.mubr.f32.gmra.mxu0 %v1578
  %v1805 = vpop.f32.mrf.mxu0
  %v1806 = vadd.f32 0.0, %v1805
  %v1807 = vpop.f32.mrf.mxu0
  %1808 = vmatprep.mubr.f32.mxu0 0.0
  %1809 = vmatmul.mubr.f32.gmra.mxu0 %v1581
  %v1810 = vpop.f32.mrf.mxu0
  %v1811 = vadd.f32 0.0, %v1810
  %v1812 = vpop.f32.mrf.mxu0
  %1813 = vmatprep.mubr.f32.mxu0 0.0
  %1814 = vmatmul.mubr.f32.gmra.mxu0 %v1584
  %v1815 = vpop.f32.mrf.mxu0
  %v1816 = vadd.f32 0.0, %v1815
  %v1817 = vpop.f32.mrf.mxu0
  %1818 = vmatprep.mubr.f32.mxu0 0.0
  %1819 = vmatmul.mubr.f32.gmra.mxu0 %v1587
  %v1820 = vpop.f32.mrf.mxu0
  %v1821 = vadd.f32 0.0, %v1820
  %v1822 = vpop.f32.mrf.mxu0
  %1823 = vmatprep.mubr.f32.mxu0 0.0
  %1824 = vmatmul.mubr.f32.gmra.mxu0 %v1590
  %v1825 = vpop.f32.mrf.mxu0
  %v1826 = vadd.f32 0.0, %v1825
  %v1827 = vpop.f32.mrf.mxu0
  %1828 = vmatprep.mubr.f32.mxu0 0.0
  %1829 = vmatmul.mubr.f32.gmra.mxu0 %v1593
  %v1830 = vpop.f32.mrf.mxu0
  %v1831 = vadd.f32 0.0, %v1830
  %v1832 = vpop.f32.mrf.mxu0
  %1833 = vmatprep.mubr.f32.mxu0 0.0
  %1834 = vmatmul.mubr.f32.gmra.mxu0 %v1596
  %v1835 = vpop.f32.mrf.mxu0
  %v1836 = vadd.f32 0.0, %v1835
  %v1837 = vpop.f32.mrf.mxu0
  %1838 = vmatprep.mubr.f32.mxu0 0.0
  %1839 = vmatmul.mubr.f32.gmra.mxu0 %v1599
  %v1840 = vpop.f32.mrf.mxu0
  %v1841 = vadd.f32 0.0, %v1840
  %v1842 = vpop.f32.mrf.mxu0
  %1843 = vmatprep.mubr.f32.mxu0 0.0
  %1844 = vmatmul.mubr.f32.gmra.mxu0 %v1602
  %v1845 = vpop.f32.mrf.mxu0
  %v1846 = vadd.f32 0.0, %v1845
  %v1847 = vpop.f32.mrf.mxu0
  %1848 = vmatprep.mubr.f32.mxu0 0.0
  %1849 = vmatmul.mubr.f32.gmra.mxu0 %v1605
  %v1850 = vpop.f32.mrf.mxu0
  %v1851 = vadd.f32 0.0, %v1850
  %v1852 = vpop.f32.mrf.mxu0
  %1853 = vmatprep.mubr.f32.mxu0 0.0
  %1854 = vmatmul.mubr.f32.gmra.mxu0 %v1608
  %v1855 = vpop.f32.mrf.mxu0
  %v1856 = vadd.f32 0.0, %v1855
  %v1857 = vpop.f32.mrf.mxu0
  %1858 = vmatprep.mubr.f32.mxu0 0.0
  %1859 = vmatmul.mubr.f32.gmra.mxu0 %v1611
  %v1860 = vpop.f32.mrf.mxu0
  %v1861 = vadd.f32 0.0, %v1860
  %v1862 = vpop.f32.mrf.mxu0
  %1863 = vmatprep.mubr.f32.mxu0 0.0
  %1864 = vmatmul.mubr.f32.gmra.mxu0 %v1614
  %v1865 = vpop.f32.mrf.mxu0
  %v1866 = vadd.f32 0.0, %v1865
  %v1867 = vpop.f32.mrf.mxu0
  %1868 = vmatprep.mubr.f32.mxu0 0.0
  %1869 = vmatmul.mubr.f32.gmra.mxu0 %v1617
  %v1870 = vpop.f32.mrf.mxu0
  %v1871 = vadd.f32 0.0, %v1870
  %v1872 = vpop.f32.mrf.mxu0
  %1873 = vmatprep.mubr.f32.mxu0 0.0
  %1874 = vmatmul.mubr.f32.gmra.mxu0 %v1620
  %v1875 = vpop.f32.mrf.mxu0
  %v1876 = vadd.f32 0.0, %v1875
  %v1877 = vpop.f32.mrf.mxu0
  %1878 = vmatprep.mubr.f32.mxu0 0.0
  %1879 = vmatmul.mubr.f32.gmra.mxu0 %v1623
  %v1880 = vpop.f32.mrf.mxu0
  %v1881 = vadd.f32 0.0, %v1880
  %v1882 = vpop.f32.mrf.mxu0
  %1883 = vmatprep.mubr.f32.mxu0 0.0
  %1884 = vmatmul.mubr.f32.gmra.mxu0 %v1626
  %v1885 = vpop.f32.mrf.mxu0
  %v1886 = vadd.f32 0.0, %v1885
  %v1887 = vpop.f32.mrf.mxu0
  %1888 = vmatprep.mubr.f32.mxu0 0.0
  %1889 = vmatmul.mubr.f32.gmra.mxu0 %v1629
  %v1890 = vpop.f32.mrf.mxu0
  %v1891 = vadd.f32 0.0, %v1890
  %v1892 = vpop.f32.mrf.mxu0
  %1893 = vmatprep.mubr.f32.mxu0 0.0
  %1894 = vmatmul.mubr.f32.gmra.mxu0 %v1632
  %v1895 = vpop.f32.mrf.mxu0
  %v1896 = vadd.f32 0.0, %v1895
  %v1897 = vpop.f32.mrf.mxu0
  %1898 = vdwg.mxu0
  %v1899 = vadd.f32 %v1391, %v1701
  %v1900 = vadd.f32 %v1392, %v1706
  %v1901 = vadd.f32 %v1393, %v1711
  %v1902 = vadd.f32 %v1394, %v1716
  %v1903 = vadd.f32 %v1395, %v1721
  %v1904 = vadd.f32 %v1396, %v1726
  %v1905 = vadd.f32 %v1397, %v1731
  %v1906 = vadd.f32 %v1398, %v1736
  %v1907 = vadd.f32 %v1399, %v1741
  %v1908 = vadd.f32 %v1400, %v1746
  %v1909 = vadd.f32 %v1401, %v1751
  %v1910 = vadd.f32 %v1402, %v1756
  %v1911 = vadd.f32 %v1403, %v1761
  %v1912 = vadd.f32 %v1404, %v1766
  %v1913 = vadd.f32 %v1405, %v1771
  %v1914 = vadd.f32 %v1406, %v1776
  %v1915 = vadd.f32 %v1407, %v1781
  %v1916 = vadd.f32 %v1408, %v1786
  %v1917 = vadd.f32 %v1409, %v1791
  %v1918 = vadd.f32 %v1410, %v1796
  %v1919 = vadd.f32 %v1411, %v1801
  %v1920 = vadd.f32 %v1412, %v1806
  %v1921 = vadd.f32 %v1413, %v1811
  %v1922 = vadd.f32 %v1414, %v1816
  %v1923 = vadd.f32 %v1415, %v1821
  %v1924 = vadd.f32 %v1416, %v1826
  %v1925 = vadd.f32 %v1417, %v1831
  %v1926 = vadd.f32 %v1418, %v1836
  %v1927 = vadd.f32 %v1419, %v1841
  %v1928 = vadd.f32 %v1420, %v1846
  %v1929 = vadd.f32 %v1421, %v1851
  %v1930 = vadd.f32 %v1422, %v1856
  %v1931 = vadd.f32 %v1423, %v1861
  %v1932 = vadd.f32 %v1424, %v1866
  %v1933 = vadd.f32 %v1425, %v1871
  %v1934 = vadd.f32 %v1426, %v1876
  %v1935 = vadd.f32 %v1427, %v1881
  %v1936 = vadd.f32 %v1428, %v1886
  %v1937 = vadd.f32 %v1429, %v1891
  %v1938 = vadd.f32 %v1430, %v1896
  %v1939 = vrot.slane %v26, 4
  %v1940 = vrot.slane %v27, 4
  %v1941 = vrot.slane %v28, 4
  %v1942 = vrot.slane %v29, 4
  %v1943 = vrot.slane %v30, 4
  %v1944 = vrot.slane %v31, 4
  %v1945 = vrot.slane %v32, 4
  %v1946 = vrot.slane %v33, 4
  %v1947 = vrot.slane %v34, 4
  %v1948 = vrot.slane %v35, 4
  %v1949 = vrot.slane %v36, 4
  %v1950 = vrot.slane %v37, 4
  %v1951 = vrot.slane %v38, 4
  %v1952 = vrot.slane %v39, 4
  %v1953 = vrot.slane %v40, 4
  %v1954 = vrot.slane %v41, 4
  %v1955 = vrot.slane %v42, 4
  %v1956 = vrot.slane %v43, 4
  %v1957 = vrot.slane %v44, 4
  %v1958 = vrot.slane %v45, 4
  %v1959 = vrot.slane %v46, 4
  %v1960 = vrot.slane %v47, 4
  %v1961 = vrot.slane %v48, 4
  %v1962 = vrot.slane %v49, 4
  %v1963 = vrot.slane %v50, 4
  %v1964 = vrot.slane %v51, 4
  %v1965 = vrot.slane %v52, 4
  %v1966 = vrot.slane %v53, 4
  %v1967 = vrot.slane %v54, 4
  %v1968 = vrot.slane %v55, 4
  %v1969 = vrot.slane %v56, 4
  %v1970 = vrot.slane %v57, 4
  %v1971 = vrot.slane %v58, 4
  %v1972 = vrot.slane %v59, 4
  %v1973 = vrot.slane %v60, 4
  %v1974 = vrot.slane %v61, 4
  %v1975 = vrot.slane %v62, 4
  %v1976 = vrot.slane %v63, 4
  %v1977 = vrot.slane %v64, 4
  %v1978 = vrot.slane %v65, 4
  %vm1979 = vcmp.lt.s32.totalorder %v108, 4
  %v1980 = vsel %vm1979, %v1977, %v1978
  %v1981 = vsel %vm1979, %v1976, %v1977
  %v1982 = vsel %vm1979, %v1975, %v1976
  %v1983 = vsel %vm1979, %v1974, %v1975
  %v1984 = vsel %vm1979, %v1973, %v1974
  %v1985 = vsel %vm1979, %v1972, %v1973
  %v1986 = vsel %vm1979, %v1971, %v1972
  %v1987 = vsel %vm1979, %v1970, %v1971
  %v1988 = vsel %vm1979, %v1969, %v1970
  %v1989 = vsel %vm1979, %v1968, %v1969
  %v1990 = vsel %vm1979, %v1967, %v1968
  %v1991 = vsel %vm1979, %v1966, %v1967
  %v1992 = vsel %vm1979, %v1965, %v1966
  %v1993 = vsel %vm1979, %v1964, %v1965
  %v1994 = vsel %vm1979, %v1963, %v1964
  %v1995 = vsel %vm1979, %v1962, %v1963
  %v1996 = vsel %vm1979, %v1961, %v1962
  %v1997 = vsel %vm1979, %v1960, %v1961
  %v1998 = vsel %vm1979, %v1959, %v1960
  %v1999 = vsel %vm1979, %v1958, %v1959
  %v2000 = vsel %vm1979, %v1957, %v1958
  %v2001 = vsel %vm1979, %v1956, %v1957
  %v2002 = vsel %vm1979, %v1955, %v1956
  %v2003 = vsel %vm1979, %v1954, %v1955
  %v2004 = vsel %vm1979, %v1953, %v1954
  %v2005 = vsel %vm1979, %v1952, %v1953
  %v2006 = vsel %vm1979, %v1951, %v1952
  %v2007 = vsel %vm1979, %v1950, %v1951
  %v2008 = vsel %vm1979, %v1949, %v1950
  %v2009 = vsel %vm1979, %v1948, %v1949
  %v2010 = vsel %vm1979, %v1947, %v1948
  %v2011 = vsel %vm1979, %v1946, %v1947
  %v2012 = vsel %vm1979, %v1945, %v1946
  %v2013 = vsel %vm1979, %v1944, %v1945
  %v2014 = vsel %vm1979, %v1943, %v1944
  %v2015 = vsel %vm1979, %v1942, %v1943
  %v2016 = vsel %vm1979, %v1941, %v1942
  %v2017 = vsel %vm1979, %v1940, %v1941
  %v2018 = vsel %vm1979, %v1939, %v1940
  %v2019 = vsel %vm1979, %v1978, %v1939
  %s2020 = scalar_lea.vmem %s1, 32
  %v2021 = vld [vmem:[%s2020] sm:$0xff]
  %v2023 = vsel %vm152, %v2018, 0
  %v2026 = vsel %vm152, %v2017, 0
  %v2029 = vsel %vm152, %v2016, 0
  %v2032 = vsel %vm152, %v2015, 0
  %v2035 = vsel %vm152, %v2014, 0
  %v2038 = vsel %vm152, %v2013, 0
  %v2041 = vsel %vm152, %v2012, 0
  %v2044 = vsel %vm152, %v2011, 0
  %v2047 = vsel %vm152, %v2010, 0
  %v2050 = vsel %vm152, %v2009, 0
  %v2053 = vsel %vm152, %v2008, 0
  %v2056 = vsel %vm152, %v2007, 0
  %v2059 = vsel %vm152, %v2006, 0
  %v2062 = vsel %vm152, %v2005, 0
  %v2065 = vsel %vm152, %v2004, 0
  %v2068 = vsel %vm152, %v2003, 0
  %v2071 = vsel %vm152, %v2002, 0
  %v2074 = vsel %vm152, %v2001, 0
  %v2077 = vsel %vm152, %v2000, 0
  %v2080 = vsel %vm152, %v1999, 0
  %v2083 = vsel %vm152, %v1998, 0
  %v2086 = vsel %vm152, %v1997, 0
  %v2089 = vsel %vm152, %v1996, 0
  %v2092 = vsel %vm152, %v1995, 0
  %v2095 = vsel %vm152, %v1994, 0
  %v2098 = vsel %vm152, %v1993, 0
  %v2101 = vsel %vm152, %v1992, 0
  %v2104 = vsel %vm152, %v1991, 0
  %v2107 = vsel %vm152, %v1990, 0
  %v2110 = vsel %vm152, %v1989, 0
  %v2113 = vsel %vm152, %v1988, 0
  %v2116 = vsel %vm152, %v1987, 0
  %v2119 = vsel %vm152, %v1986, 0
  %v2122 = vsel %vm152, %v1985, 0
  %v2125 = vsel %vm152, %v1984, 0
  %v2128 = vsel %vm152, %v1983, 0
  %v2131 = vsel %vm152, %v1982, 0
  %v2134 = vsel %vm152, %v1981, 0
  %v2137 = vsel %vm152, %v1980, 0
  %v2140 = vsel %vm152, %v2019, 0
  %2142 = vmatprep.subr.mxu0 0.0
  %2143 = vmatpush1.msra.mxu0 0.0
  %2144 = vmatprep.subr.mxu0 0.0
  %2145 = vmatpush1.msra.mxu0 0.0
  %2146 = vmatprep.subr.mxu0 0.0
  %2147 = vmatpush1.msra.mxu0 0.0
  %2148 = vmatprep.subr.mxu0 0.0
  %2149 = vmatpush1.msra.mxu0 0.0
  %2150 = vmatprep.subr.mxu0 0.0
  %2151 = vmatpush1.msra.mxu0 0.0
  %2152 = vmatprep.subr.mxu0 0.0
  %2153 = vmatpush1.msra.mxu0 0.0
  %2154 = vmatprep.subr.mxu0 0.0
  %2155 = vmatpush1.msra.mxu0 0.0
  %2156 = vmatprep.subr.mxu0 0.0
  %2157 = vmatpush1.msra.mxu0 0.0
  %2158 = vmatprep.subr.mxu0 0.0
  %2159 = vmatpush1.msra.mxu0 0.0
  %2160 = vmatprep.subr.mxu0 0.0
  %2161 = vmatpush1.msra.mxu0 0.0
  %2162 = vmatprep.subr.mxu0 0.0
  %2163 = vmatpush1.msra.mxu0 0.0
  %2164 = vmatprep.subr.mxu0 0.0
  %2165 = vmatpush1.msra.mxu0 0.0
  %2166 = vmatprep.subr.mxu0 0.0
  %2167 = vmatpush1.msra.mxu0 0.0
  %2168 = vmatprep.subr.mxu0 0.0
  %2169 = vmatpush1.msra.mxu0 0.0
  %2170 = vmatprep.subr.mxu0 0.0
  %2171 = vmatpush1.msra.mxu0 0.0
  %2172 = vmatprep.subr.mxu0 0.0
  %2173 = vmatpush1.msra.mxu0 %v2021
  %2174 = vmatprep.subr.mxu0 0.0
  %2175 = vmatpush2.msra.mxu0 0.0
  %2176 = vmatprep.subr.mxu0 0.0
  %2177 = vmatpush2.msra.mxu0 0.0
  %2178 = vmatprep.subr.mxu0 0.0
  %2179 = vmatpush2.msra.mxu0 0.0
  %2180 = vmatprep.subr.mxu0 0.0
  %2181 = vmatpush2.msra.mxu0 0.0
  %2182 = vmatprep.subr.mxu0 0.0
  %2183 = vmatpush2.msra.mxu0 0.0
  %2184 = vmatprep.subr.mxu0 0.0
  %2185 = vmatpush2.msra.mxu0 0.0
  %2186 = vmatprep.subr.mxu0 0.0
  %2187 = vmatpush2.msra.mxu0 0.0
  %2188 = vmatprep.subr.mxu0 0.0
  %2189 = vmatpush2.msra.mxu0 0.0
  %2190 = vmatprep.subr.mxu0 0.0
  %2191 = vmatpush2.msra.mxu0 0.0
  %2192 = vmatprep.subr.mxu0 0.0
  %2193 = vmatpush2.msra.mxu0 0.0
  %2194 = vmatprep.subr.mxu0 0.0
  %2195 = vmatpush2.msra.mxu0 0.0
  %2196 = vmatprep.subr.mxu0 0.0
  %2197 = vmatpush2.msra.mxu0 0.0
  %2198 = vmatprep.subr.mxu0 0.0
  %2199 = vmatpush2.msra.mxu0 0.0
  %2200 = vmatprep.subr.mxu0 0.0
  %2201 = vmatpush2.msra.mxu0 0.0
  %2202 = vmatprep.subr.mxu0 0.0
  %2203 = vmatpush2.msra.mxu0 0.0
  %2204 = vmatprep.subr.mxu0 0.0
  %2205 = vmatpush2.msra.mxu0 0.0
  %2206 = vmatprep.mubr.f32.mxu0 0.0
  %2207 = vmatmul.mubr.f32.gmra.mxu0 %v2023
  %v2208 = vpop.f32.mrf.mxu0
  %v2209 = vadd.f32 0.0, %v2208
  %v2210 = vpop.f32.mrf.mxu0
  %2211 = vmatprep.mubr.f32.mxu0 0.0
  %2212 = vmatmul.mubr.f32.gmra.mxu0 %v2026
  %v2213 = vpop.f32.mrf.mxu0
  %v2214 = vadd.f32 0.0, %v2213
  %v2215 = vpop.f32.mrf.mxu0
  %2216 = vmatprep.mubr.f32.mxu0 0.0
  %2217 = vmatmul.mubr.f32.gmra.mxu0 %v2029
  %v2218 = vpop.f32.mrf.mxu0
  %v2219 = vadd.f32 0.0, %v2218
  %v2220 = vpop.f32.mrf.mxu0
  %2221 = vmatprep.mubr.f32.mxu0 0.0
  %2222 = vmatmul.mubr.f32.gmra.mxu0 %v2032
  %v2223 = vpop.f32.mrf.mxu0
  %v2224 = vadd.f32 0.0, %v2223
  %v2225 = vpop.f32.mrf.mxu0
  %2226 = vmatprep.mubr.f32.mxu0 0.0
  %2227 = vmatmul.mubr.f32.gmra.mxu0 %v2035
  %v2228 = vpop.f32.mrf.mxu0
  %v2229 = vadd.f32 0.0, %v2228
  %v2230 = vpop.f32.mrf.mxu0
  %2231 = vmatprep.mubr.f32.mxu0 0.0
  %2232 = vmatmul.mubr.f32.gmra.mxu0 %v2038
  %v2233 = vpop.f32.mrf.mxu0
  %v2234 = vadd.f32 0.0, %v2233
  %v2235 = vpop.f32.mrf.mxu0
  %2236 = vmatprep.mubr.f32.mxu0 0.0
  %2237 = vmatmul.mubr.f32.gmra.mxu0 %v2041
  %v2238 = vpop.f32.mrf.mxu0
  %v2239 = vadd.f32 0.0, %v2238
  %v2240 = vpop.f32.mrf.mxu0
  %2241 = vmatprep.mubr.f32.mxu0 0.0
  %2242 = vmatmul.mubr.f32.gmra.mxu0 %v2044
  %v2243 = vpop.f32.mrf.mxu0
  %v2244 = vadd.f32 0.0, %v2243
  %v2245 = vpop.f32.mrf.mxu0
  %2246 = vmatprep.mubr.f32.mxu0 0.0
  %2247 = vmatmul.mubr.f32.gmra.mxu0 %v2047
  %v2248 = vpop.f32.mrf.mxu0
  %v2249 = vadd.f32 0.0, %v2248
  %v2250 = vpop.f32.mrf.mxu0
  %2251 = vmatprep.mubr.f32.mxu0 0.0
  %2252 = vmatmul.mubr.f32.gmra.mxu0 %v2050
  %v2253 = vpop.f32.mrf.mxu0
  %v2254 = vadd.f32 0.0, %v2253
  %v2255 = vpop.f32.mrf.mxu0
  %2256 = vmatprep.mubr.f32.mxu0 0.0
  %2257 = vmatmul.mubr.f32.gmra.mxu0 %v2053
  %v2258 = vpop.f32.mrf.mxu0
  %v2259 = vadd.f32 0.0, %v2258
  %v2260 = vpop.f32.mrf.mxu0
  %2261 = vmatprep.mubr.f32.mxu0 0.0
  %2262 = vmatmul.mubr.f32.gmra.mxu0 %v2056
  %v2263 = vpop.f32.mrf.mxu0
  %v2264 = vadd.f32 0.0, %v2263
  %v2265 = vpop.f32.mrf.mxu0
  %2266 = vmatprep.mubr.f32.mxu0 0.0
  %2267 = vmatmul.mubr.f32.gmra.mxu0 %v2059
  %v2268 = vpop.f32.mrf.mxu0
  %v2269 = vadd.f32 0.0, %v2268
  %v2270 = vpop.f32.mrf.mxu0
  %2271 = vmatprep.mubr.f32.mxu0 0.0
  %2272 = vmatmul.mubr.f32.gmra.mxu0 %v2062
  %v2273 = vpop.f32.mrf.mxu0
  %v2274 = vadd.f32 0.0, %v2273
  %v2275 = vpop.f32.mrf.mxu0
  %2276 = vmatprep.mubr.f32.mxu0 0.0
  %2277 = vmatmul.mubr.f32.gmra.mxu0 %v2065
  %v2278 = vpop.f32.mrf.mxu0
  %v2279 = vadd.f32 0.0, %v2278
  %v2280 = vpop.f32.mrf.mxu0
  %2281 = vmatprep.mubr.f32.mxu0 0.0
  %2282 = vmatmul.mubr.f32.gmra.mxu0 %v2068
  %v2283 = vpop.f32.mrf.mxu0
  %v2284 = vadd.f32 0.0, %v2283
  %v2285 = vpop.f32.mrf.mxu0
  %2286 = vmatprep.mubr.f32.mxu0 0.0
  %2287 = vmatmul.mubr.f32.gmra.mxu0 %v2071
  %v2288 = vpop.f32.mrf.mxu0
  %v2289 = vadd.f32 0.0, %v2288
  %v2290 = vpop.f32.mrf.mxu0
  %2291 = vmatprep.mubr.f32.mxu0 0.0
  %2292 = vmatmul.mubr.f32.gmra.mxu0 %v2074
  %v2293 = vpop.f32.mrf.mxu0
  %v2294 = vadd.f32 0.0, %v2293
  %v2295 = vpop.f32.mrf.mxu0
  %2296 = vmatprep.mubr.f32.mxu0 0.0
  %2297 = vmatmul.mubr.f32.gmra.mxu0 %v2077
  %v2298 = vpop.f32.mrf.mxu0
  %v2299 = vadd.f32 0.0, %v2298
  %v2300 = vpop.f32.mrf.mxu0
  %2301 = vmatprep.mubr.f32.mxu0 0.0
  %2302 = vmatmul.mubr.f32.gmra.mxu0 %v2080
  %v2303 = vpop.f32.mrf.mxu0
  %v2304 = vadd.f32 0.0, %v2303
  %v2305 = vpop.f32.mrf.mxu0
  %2306 = vmatprep.mubr.f32.mxu0 0.0
  %2307 = vmatmul.mubr.f32.gmra.mxu0 %v2083
  %v2308 = vpop.f32.mrf.mxu0
  %v2309 = vadd.f32 0.0, %v2308
  %v2310 = vpop.f32.mrf.mxu0
  %2311 = vmatprep.mubr.f32.mxu0 0.0
  %2312 = vmatmul.mubr.f32.gmra.mxu0 %v2086
  %v2313 = vpop.f32.mrf.mxu0
  %v2314 = vadd.f32 0.0, %v2313
  %v2315 = vpop.f32.mrf.mxu0
  %2316 = vmatprep.mubr.f32.mxu0 0.0
  %2317 = vmatmul.mubr.f32.gmra.mxu0 %v2089
  %v2318 = vpop.f32.mrf.mxu0
  %v2319 = vadd.f32 0.0, %v2318
  %v2320 = vpop.f32.mrf.mxu0
  %2321 = vmatprep.mubr.f32.mxu0 0.0
  %2322 = vmatmul.mubr.f32.gmra.mxu0 %v2092
  %v2323 = vpop.f32.mrf.mxu0
  %v2324 = vadd.f32 0.0, %v2323
  %v2325 = vpop.f32.mrf.mxu0
  %2326 = vmatprep.mubr.f32.mxu0 0.0
  %2327 = vmatmul.mubr.f32.gmra.mxu0 %v2095
  %v2328 = vpop.f32.mrf.mxu0
  %v2329 = vadd.f32 0.0, %v2328
  %v2330 = vpop.f32.mrf.mxu0
  %2331 = vmatprep.mubr.f32.mxu0 0.0
  %2332 = vmatmul.mubr.f32.gmra.mxu0 %v2098
  %v2333 = vpop.f32.mrf.mxu0
  %v2334 = vadd.f32 0.0, %v2333
  %v2335 = vpop.f32.mrf.mxu0
  %2336 = vmatprep.mubr.f32.mxu0 0.0
  %2337 = vmatmul.mubr.f32.gmra.mxu0 %v2101
  %v2338 = vpop.f32.mrf.mxu0
  %v2339 = vadd.f32 0.0, %v2338
  %v2340 = vpop.f32.mrf.mxu0
  %2341 = vmatprep.mubr.f32.mxu0 0.0
  %2342 = vmatmul.mubr.f32.gmra.mxu0 %v2104
  %v2343 = vpop.f32.mrf.mxu0
  %v2344 = vadd.f32 0.0, %v2343
  %v2345 = vpop.f32.mrf.mxu0
  %2346 = vmatprep.mubr.f32.mxu0 0.0
  %2347 = vmatmul.mubr.f32.gmra.mxu0 %v2107
  %v2348 = vpop.f32.mrf.mxu0
  %v2349 = vadd.f32 0.0, %v2348
  %v2350 = vpop.f32.mrf.mxu0
  %2351 = vmatprep.mubr.f32.mxu0 0.0
  %2352 = vmatmul.mubr.f32.gmra.mxu0 %v2110
  %v2353 = vpop.f32.mrf.mxu0
  %v2354 = vadd.f32 0.0, %v2353
  %v2355 = vpop.f32.mrf.mxu0
  %2356 = vmatprep.mubr.f32.mxu0 0.0
  %2357 = vmatmul.mubr.f32.gmra.mxu0 %v2113
  %v2358 = vpop.f32.mrf.mxu0
  %v2359 = vadd.f32 0.0, %v2358
  %v2360 = vpop.f32.mrf.mxu0
  %2361 = vmatprep.mubr.f32.mxu0 0.0
  %2362 = vmatmul.mubr.f32.gmra.mxu0 %v2116
  %v2363 = vpop.f32.mrf.mxu0
  %v2364 = vadd.f32 0.0, %v2363
  %v2365 = vpop.f32.mrf.mxu0
  %2366 = vmatprep.mubr.f32.mxu0 0.0
  %2367 = vmatmul.mubr.f32.gmra.mxu0 %v2119
  %v2368 = vpop.f32.mrf.mxu0
  %v2369 = vadd.f32 0.0, %v2368
  %v2370 = vpop.f32.mrf.mxu0
  %2371 = vmatprep.mubr.f32.mxu0 0.0
  %2372 = vmatmul.mubr.f32.gmra.mxu0 %v2122
  %v2373 = vpop.f32.mrf.mxu0
  %v2374 = vadd.f32 0.0, %v2373
  %v2375 = vpop.f32.mrf.mxu0
  %2376 = vmatprep.mubr.f32.mxu0 0.0
  %2377 = vmatmul.mubr.f32.gmra.mxu0 %v2125
  %v2378 = vpop.f32.mrf.mxu0
  %v2379 = vadd.f32 0.0, %v2378
  %v2380 = vpop.f32.mrf.mxu0
  %2381 = vmatprep.mubr.f32.mxu0 0.0
  %2382 = vmatmul.mubr.f32.gmra.mxu0 %v2128
  %v2383 = vpop.f32.mrf.mxu0
  %v2384 = vadd.f32 0.0, %v2383
  %v2385 = vpop.f32.mrf.mxu0
  %2386 = vmatprep.mubr.f32.mxu0 0.0
  %2387 = vmatmul.mubr.f32.gmra.mxu0 %v2131
  %v2388 = vpop.f32.mrf.mxu0
  %v2389 = vadd.f32 0.0, %v2388
  %v2390 = vpop.f32.mrf.mxu0
  %2391 = vmatprep.mubr.f32.mxu0 0.0
  %2392 = vmatmul.mubr.f32.gmra.mxu0 %v2134
  %v2393 = vpop.f32.mrf.mxu0
  %v2394 = vadd.f32 0.0, %v2393
  %v2395 = vpop.f32.mrf.mxu0
  %2396 = vmatprep.mubr.f32.mxu0 0.0
  %2397 = vmatmul.mubr.f32.gmra.mxu0 %v2137
  %v2398 = vpop.f32.mrf.mxu0
  %v2399 = vadd.f32 0.0, %v2398
  %v2400 = vpop.f32.mrf.mxu0
  %2401 = vmatprep.mubr.f32.mxu0 0.0
  %2402 = vmatmul.mubr.f32.gmra.mxu0 %v2140
  %v2403 = vpop.f32.mrf.mxu0
  %v2404 = vadd.f32 0.0, %v2403
  %v2405 = vpop.f32.mrf.mxu0
  %2406 = vdwg.mxu0
  %v2407 = vadd.f32 %v1899, %v2209
  %v2408 = vadd.f32 %v1900, %v2214
  %v2409 = vadd.f32 %v1901, %v2219
  %v2410 = vadd.f32 %v1902, %v2224
  %v2411 = vadd.f32 %v1903, %v2229
  %v2412 = vadd.f32 %v1904, %v2234
  %v2413 = vadd.f32 %v1905, %v2239
  %v2414 = vadd.f32 %v1906, %v2244
  %v2415 = vadd.f32 %v1907, %v2249
  %v2416 = vadd.f32 %v1908, %v2254
  %v2417 = vadd.f32 %v1909, %v2259
  %v2418 = vadd.f32 %v1910, %v2264
  %v2419 = vadd.f32 %v1911, %v2269
  %v2420 = vadd.f32 %v1912, %v2274
  %v2421 = vadd.f32 %v1913, %v2279
  %v2422 = vadd.f32 %v1914, %v2284
  %v2423 = vadd.f32 %v1915, %v2289
  %v2424 = vadd.f32 %v1916, %v2294
  %v2425 = vadd.f32 %v1917, %v2299
  %v2426 = vadd.f32 %v1918, %v2304
  %v2427 = vadd.f32 %v1919, %v2309
  %v2428 = vadd.f32 %v1920, %v2314
  %v2429 = vadd.f32 %v1921, %v2319
  %v2430 = vadd.f32 %v1922, %v2324
  %v2431 = vadd.f32 %v1923, %v2329
  %v2432 = vadd.f32 %v1924, %v2334
  %v2433 = vadd.f32 %v1925, %v2339
  %v2434 = vadd.f32 %v1926, %v2344
  %v2435 = vadd.f32 %v1927, %v2349
  %v2436 = vadd.f32 %v1928, %v2354
  %v2437 = vadd.f32 %v1929, %v2359
  %v2438 = vadd.f32 %v1930, %v2364
  %v2439 = vadd.f32 %v1931, %v2369
  %v2440 = vadd.f32 %v1932, %v2374
  %v2441 = vadd.f32 %v1933, %v2379
  %v2442 = vadd.f32 %v1934, %v2384
  %v2443 = vadd.f32 %v1935, %v2389
  %v2444 = vadd.f32 %v1936, %v2394
  %v2445 = vadd.f32 %v1937, %v2399
  %v2446 = vadd.f32 %v1938, %v2404
  %v2447 = vrot.slane %v26, 5
  %v2448 = vrot.slane %v27, 5
  %v2449 = vrot.slane %v28, 5
  %v2450 = vrot.slane %v29, 5
  %v2451 = vrot.slane %v30, 5
  %v2452 = vrot.slane %v31, 5
  %v2453 = vrot.slane %v32, 5
  %v2454 = vrot.slane %v33, 5
  %v2455 = vrot.slane %v34, 5
  %v2456 = vrot.slane %v35, 5
  %v2457 = vrot.slane %v36, 5
  %v2458 = vrot.slane %v37, 5
  %v2459 = vrot.slane %v38, 5
  %v2460 = vrot.slane %v39, 5
  %v2461 = vrot.slane %v40, 5
  %v2462 = vrot.slane %v41, 5
  %v2463 = vrot.slane %v42, 5
  %v2464 = vrot.slane %v43, 5
  %v2465 = vrot.slane %v44, 5
  %v2466 = vrot.slane %v45, 5
  %v2467 = vrot.slane %v46, 5
  %v2468 = vrot.slane %v47, 5
  %v2469 = vrot.slane %v48, 5
  %v2470 = vrot.slane %v49, 5
  %v2471 = vrot.slane %v50, 5
  %v2472 = vrot.slane %v51, 5
  %v2473 = vrot.slane %v52, 5
  %v2474 = vrot.slane %v53, 5
  %v2475 = vrot.slane %v54, 5
  %v2476 = vrot.slane %v55, 5
  %v2477 = vrot.slane %v56, 5
  %v2478 = vrot.slane %v57, 5
  %v2479 = vrot.slane %v58, 5
  %v2480 = vrot.slane %v59, 5
  %v2481 = vrot.slane %v60, 5
  %v2482 = vrot.slane %v61, 5
  %v2483 = vrot.slane %v62, 5
  %v2484 = vrot.slane %v63, 5
  %v2485 = vrot.slane %v64, 5
  %v2486 = vrot.slane %v65, 5
  %vm2487 = vcmp.lt.s32.totalorder %v108, 3
  %v2488 = vsel %vm2487, %v2485, %v2486
  %v2489 = vsel %vm2487, %v2484, %v2485
  %v2490 = vsel %vm2487, %v2483, %v2484
  %v2491 = vsel %vm2487, %v2482, %v2483
  %v2492 = vsel %vm2487, %v2481, %v2482
  %v2493 = vsel %vm2487, %v2480, %v2481
  %v2494 = vsel %vm2487, %v2479, %v2480
  %v2495 = vsel %vm2487, %v2478, %v2479
  %v2496 = vsel %vm2487, %v2477, %v2478
  %v2497 = vsel %vm2487, %v2476, %v2477
  %v2498 = vsel %vm2487, %v2475, %v2476
  %v2499 = vsel %vm2487, %v2474, %v2475
  %v2500 = vsel %vm2487, %v2473, %v2474
  %v2501 = vsel %vm2487, %v2472, %v2473
  %v2502 = vsel %vm2487, %v2471, %v2472
  %v2503 = vsel %vm2487, %v2470, %v2471
  %v2504 = vsel %vm2487, %v2469, %v2470
  %v2505 = vsel %vm2487, %v2468, %v2469
  %v2506 = vsel %vm2487, %v2467, %v2468
  %v2507 = vsel %vm2487, %v2466, %v2467
  %v2508 = vsel %vm2487, %v2465, %v2466
  %v2509 = vsel %vm2487, %v2464, %v2465
  %v2510 = vsel %vm2487, %v2463, %v2464
  %v2511 = vsel %vm2487, %v2462, %v2463
  %v2512 = vsel %vm2487, %v2461, %v2462
  %v2513 = vsel %vm2487, %v2460, %v2461
  %v2514 = vsel %vm2487, %v2459, %v2460
  %v2515 = vsel %vm2487, %v2458, %v2459
  %v2516 = vsel %vm2487, %v2457, %v2458
  %v2517 = vsel %vm2487, %v2456, %v2457
  %v2518 = vsel %vm2487, %v2455, %v2456
  %v2519 = vsel %vm2487, %v2454, %v2455
  %v2520 = vsel %vm2487, %v2453, %v2454
  %v2521 = vsel %vm2487, %v2452, %v2453
  %v2522 = vsel %vm2487, %v2451, %v2452
  %v2523 = vsel %vm2487, %v2450, %v2451
  %v2524 = vsel %vm2487, %v2449, %v2450
  %v2525 = vsel %vm2487, %v2448, %v2449
  %v2526 = vsel %vm2487, %v2447, %v2448
  %v2527 = vsel %vm2487, %v2486, %v2447
  %s2528 = scalar_lea.vmem %s1, 40
  %v2529 = vld [vmem:[%s2528] sm:$0xff]
  %v2531 = vsel %vm152, %v2526, 0
  %v2534 = vsel %vm152, %v2525, 0
  %v2537 = vsel %vm152, %v2524, 0
  %v2540 = vsel %vm152, %v2523, 0
  %v2543 = vsel %vm152, %v2522, 0
  %v2546 = vsel %vm152, %v2521, 0
  %v2549 = vsel %vm152, %v2520, 0
  %v2552 = vsel %vm152, %v2519, 0
  %v2555 = vsel %vm152, %v2518, 0
  %v2558 = vsel %vm152, %v2517, 0
  %v2561 = vsel %vm152, %v2516, 0
  %v2564 = vsel %vm152, %v2515, 0
  %v2567 = vsel %vm152, %v2514, 0
  %v2570 = vsel %vm152, %v2513, 0
  %v2573 = vsel %vm152, %v2512, 0
  %v2576 = vsel %vm152, %v2511, 0
  %v2579 = vsel %vm152, %v2510, 0
  %v2582 = vsel %vm152, %v2509, 0
  %v2585 = vsel %vm152, %v2508, 0
  %v2588 = vsel %vm152, %v2507, 0
  %v2591 = vsel %vm152, %v2506, 0
  %v2594 = vsel %vm152, %v2505, 0
  %v2597 = vsel %vm152, %v2504, 0
  %v2600 = vsel %vm152, %v2503, 0
  %v2603 = vsel %vm152, %v2502, 0
  %v2606 = vsel %vm152, %v2501, 0
  %v2609 = vsel %vm152, %v2500, 0
  %v2612 = vsel %vm152, %v2499, 0
  %v2615 = vsel %vm152, %v2498, 0
  %v2618 = vsel %vm152, %v2497, 0
  %v2621 = vsel %vm152, %v2496, 0
  %v2624 = vsel %vm152, %v2495, 0
  %v2627 = vsel %vm152, %v2494, 0
  %v2630 = vsel %vm152, %v2493, 0
  %v2633 = vsel %vm152, %v2492, 0
  %v2636 = vsel %vm152, %v2491, 0
  %v2639 = vsel %vm152, %v2490, 0
  %v2642 = vsel %vm152, %v2489, 0
  %v2645 = vsel %vm152, %v2488, 0
  %v2648 = vsel %vm152, %v2527, 0
  %2650 = vmatprep.subr.mxu0 0.0
  %2651 = vmatpush1.msra.mxu0 0.0
  %2652 = vmatprep.subr.mxu0 0.0
  %2653 = vmatpush1.msra.mxu0 0.0
  %2654 = vmatprep.subr.mxu0 0.0
  %2655 = vmatpush1.msra.mxu0 0.0
  %2656 = vmatprep.subr.mxu0 0.0
  %2657 = vmatpush1.msra.mxu0 0.0
  %2658 = vmatprep.subr.mxu0 0.0
  %2659 = vmatpush1.msra.mxu0 0.0
  %2660 = vmatprep.subr.mxu0 0.0
  %2661 = vmatpush1.msra.mxu0 0.0
  %2662 = vmatprep.subr.mxu0 0.0
  %2663 = vmatpush1.msra.mxu0 0.0
  %2664 = vmatprep.subr.mxu0 0.0
  %2665 = vmatpush1.msra.mxu0 0.0
  %2666 = vmatprep.subr.mxu0 0.0
  %2667 = vmatpush1.msra.mxu0 0.0
  %2668 = vmatprep.subr.mxu0 0.0
  %2669 = vmatpush1.msra.mxu0 0.0
  %2670 = vmatprep.subr.mxu0 0.0
  %2671 = vmatpush1.msra.mxu0 0.0
  %2672 = vmatprep.subr.mxu0 0.0
  %2673 = vmatpush1.msra.mxu0 0.0
  %2674 = vmatprep.subr.mxu0 0.0
  %2675 = vmatpush1.msra.mxu0 0.0
  %2676 = vmatprep.subr.mxu0 0.0
  %2677 = vmatpush1.msra.mxu0 0.0
  %2678 = vmatprep.subr.mxu0 0.0
  %2679 = vmatpush1.msra.mxu0 0.0
  %2680 = vmatprep.subr.mxu0 0.0
  %2681 = vmatpush1.msra.mxu0 %v2529
  %2682 = vmatprep.subr.mxu0 0.0
  %2683 = vmatpush2.msra.mxu0 0.0
  %2684 = vmatprep.subr.mxu0 0.0
  %2685 = vmatpush2.msra.mxu0 0.0
  %2686 = vmatprep.subr.mxu0 0.0
  %2687 = vmatpush2.msra.mxu0 0.0
  %2688 = vmatprep.subr.mxu0 0.0
  %2689 = vmatpush2.msra.mxu0 0.0
  %2690 = vmatprep.subr.mxu0 0.0
  %2691 = vmatpush2.msra.mxu0 0.0
  %2692 = vmatprep.subr.mxu0 0.0
  %2693 = vmatpush2.msra.mxu0 0.0
  %2694 = vmatprep.subr.mxu0 0.0
  %2695 = vmatpush2.msra.mxu0 0.0
  %2696 = vmatprep.subr.mxu0 0.0
  %2697 = vmatpush2.msra.mxu0 0.0
  %2698 = vmatprep.subr.mxu0 0.0
  %2699 = vmatpush2.msra.mxu0 0.0
  %2700 = vmatprep.subr.mxu0 0.0
  %2701 = vmatpush2.msra.mxu0 0.0
  %2702 = vmatprep.subr.mxu0 0.0
  %2703 = vmatpush2.msra.mxu0 0.0
  %2704 = vmatprep.subr.mxu0 0.0
  %2705 = vmatpush2.msra.mxu0 0.0
  %2706 = vmatprep.subr.mxu0 0.0
  %2707 = vmatpush2.msra.mxu0 0.0
  %2708 = vmatprep.subr.mxu0 0.0
  %2709 = vmatpush2.msra.mxu0 0.0
  %2710 = vmatprep.subr.mxu0 0.0
  %2711 = vmatpush2.msra.mxu0 0.0
  %2712 = vmatprep.subr.mxu0 0.0
  %2713 = vmatpush2.msra.mxu0 0.0
  %2714 = vmatprep.mubr.f32.mxu0 0.0
  %2715 = vmatmul.mubr.f32.gmra.mxu0 %v2531
  %v2716 = vpop.f32.mrf.mxu0
  %v2717 = vadd.f32 0.0, %v2716
  %v2718 = vpop.f32.mrf.mxu0
  %2719 = vmatprep.mubr.f32.mxu0 0.0
  %2720 = vmatmul.mubr.f32.gmra.mxu0 %v2534
  %v2721 = vpop.f32.mrf.mxu0
  %v2722 = vadd.f32 0.0, %v2721
  %v2723 = vpop.f32.mrf.mxu0
  %2724 = vmatprep.mubr.f32.mxu0 0.0
  %2725 = vmatmul.mubr.f32.gmra.mxu0 %v2537
  %v2726 = vpop.f32.mrf.mxu0
  %v2727 = vadd.f32 0.0, %v2726
  %v2728 = vpop.f32.mrf.mxu0
  %2729 = vmatprep.mubr.f32.mxu0 0.0
  %2730 = vmatmul.mubr.f32.gmra.mxu0 %v2540
  %v2731 = vpop.f32.mrf.mxu0
  %v2732 = vadd.f32 0.0, %v2731
  %v2733 = vpop.f32.mrf.mxu0
  %2734 = vmatprep.mubr.f32.mxu0 0.0
  %2735 = vmatmul.mubr.f32.gmra.mxu0 %v2543
  %v2736 = vpop.f32.mrf.mxu0
  %v2737 = vadd.f32 0.0, %v2736
  %v2738 = vpop.f32.mrf.mxu0
  %2739 = vmatprep.mubr.f32.mxu0 0.0
  %2740 = vmatmul.mubr.f32.gmra.mxu0 %v2546
  %v2741 = vpop.f32.mrf.mxu0
  %v2742 = vadd.f32 0.0, %v2741
  %v2743 = vpop.f32.mrf.mxu0
  %2744 = vmatprep.mubr.f32.mxu0 0.0
  %2745 = vmatmul.mubr.f32.gmra.mxu0 %v2549
  %v2746 = vpop.f32.mrf.mxu0
  %v2747 = vadd.f32 0.0, %v2746
  %v2748 = vpop.f32.mrf.mxu0
  %2749 = vmatprep.mubr.f32.mxu0 0.0
  %2750 = vmatmul.mubr.f32.gmra.mxu0 %v2552
  %v2751 = vpop.f32.mrf.mxu0
  %v2752 = vadd.f32 0.0, %v2751
  %v2753 = vpop.f32.mrf.mxu0
  %2754 = vmatprep.mubr.f32.mxu0 0.0
  %2755 = vmatmul.mubr.f32.gmra.mxu0 %v2555
  %v2756 = vpop.f32.mrf.mxu0
  %v2757 = vadd.f32 0.0, %v2756
  %v2758 = vpop.f32.mrf.mxu0
  %2759 = vmatprep.mubr.f32.mxu0 0.0
  %2760 = vmatmul.mubr.f32.gmra.mxu0 %v2558
  %v2761 = vpop.f32.mrf.mxu0
  %v2762 = vadd.f32 0.0, %v2761
  %v2763 = vpop.f32.mrf.mxu0
  %2764 = vmatprep.mubr.f32.mxu0 0.0
  %2765 = vmatmul.mubr.f32.gmra.mxu0 %v2561
  %v2766 = vpop.f32.mrf.mxu0
  %v2767 = vadd.f32 0.0, %v2766
  %v2768 = vpop.f32.mrf.mxu0
  %2769 = vmatprep.mubr.f32.mxu0 0.0
  %2770 = vmatmul.mubr.f32.gmra.mxu0 %v2564
  %v2771 = vpop.f32.mrf.mxu0
  %v2772 = vadd.f32 0.0, %v2771
  %v2773 = vpop.f32.mrf.mxu0
  %2774 = vmatprep.mubr.f32.mxu0 0.0
  %2775 = vmatmul.mubr.f32.gmra.mxu0 %v2567
  %v2776 = vpop.f32.mrf.mxu0
  %v2777 = vadd.f32 0.0, %v2776
  %v2778 = vpop.f32.mrf.mxu0
  %2779 = vmatprep.mubr.f32.mxu0 0.0
  %2780 = vmatmul.mubr.f32.gmra.mxu0 %v2570
  %v2781 = vpop.f32.mrf.mxu0
  %v2782 = vadd.f32 0.0, %v2781
  %v2783 = vpop.f32.mrf.mxu0
  %2784 = vmatprep.mubr.f32.mxu0 0.0
  %2785 = vmatmul.mubr.f32.gmra.mxu0 %v2573
  %v2786 = vpop.f32.mrf.mxu0
  %v2787 = vadd.f32 0.0, %v2786
  %v2788 = vpop.f32.mrf.mxu0
  %2789 = vmatprep.mubr.f32.mxu0 0.0
  %2790 = vmatmul.mubr.f32.gmra.mxu0 %v2576
  %v2791 = vpop.f32.mrf.mxu0
  %v2792 = vadd.f32 0.0, %v2791
  %v2793 = vpop.f32.mrf.mxu0
  %2794 = vmatprep.mubr.f32.mxu0 0.0
  %2795 = vmatmul.mubr.f32.gmra.mxu0 %v2579
  %v2796 = vpop.f32.mrf.mxu0
  %v2797 = vadd.f32 0.0, %v2796
  %v2798 = vpop.f32.mrf.mxu0
  %2799 = vmatprep.mubr.f32.mxu0 0.0
  %2800 = vmatmul.mubr.f32.gmra.mxu0 %v2582
  %v2801 = vpop.f32.mrf.mxu0
  %v2802 = vadd.f32 0.0, %v2801
  %v2803 = vpop.f32.mrf.mxu0
  %2804 = vmatprep.mubr.f32.mxu0 0.0
  %2805 = vmatmul.mubr.f32.gmra.mxu0 %v2585
  %v2806 = vpop.f32.mrf.mxu0
  %v2807 = vadd.f32 0.0, %v2806
  %v2808 = vpop.f32.mrf.mxu0
  %2809 = vmatprep.mubr.f32.mxu0 0.0
  %2810 = vmatmul.mubr.f32.gmra.mxu0 %v2588
  %v2811 = vpop.f32.mrf.mxu0
  %v2812 = vadd.f32 0.0, %v2811
  %v2813 = vpop.f32.mrf.mxu0
  %2814 = vmatprep.mubr.f32.mxu0 0.0
  %2815 = vmatmul.mubr.f32.gmra.mxu0 %v2591
  %v2816 = vpop.f32.mrf.mxu0
  %v2817 = vadd.f32 0.0, %v2816
  %v2818 = vpop.f32.mrf.mxu0
  %2819 = vmatprep.mubr.f32.mxu0 0.0
  %2820 = vmatmul.mubr.f32.gmra.mxu0 %v2594
  %v2821 = vpop.f32.mrf.mxu0
  %v2822 = vadd.f32 0.0, %v2821
  %v2823 = vpop.f32.mrf.mxu0
  %2824 = vmatprep.mubr.f32.mxu0 0.0
  %2825 = vmatmul.mubr.f32.gmra.mxu0 %v2597
  %v2826 = vpop.f32.mrf.mxu0
  %v2827 = vadd.f32 0.0, %v2826
  %v2828 = vpop.f32.mrf.mxu0
  %2829 = vmatprep.mubr.f32.mxu0 0.0
  %2830 = vmatmul.mubr.f32.gmra.mxu0 %v2600
  %v2831 = vpop.f32.mrf.mxu0
  %v2832 = vadd.f32 0.0, %v2831
  %v2833 = vpop.f32.mrf.mxu0
  %2834 = vmatprep.mubr.f32.mxu0 0.0
  %2835 = vmatmul.mubr.f32.gmra.mxu0 %v2603
  %v2836 = vpop.f32.mrf.mxu0
  %v2837 = vadd.f32 0.0, %v2836
  %v2838 = vpop.f32.mrf.mxu0
  %2839 = vmatprep.mubr.f32.mxu0 0.0
  %2840 = vmatmul.mubr.f32.gmra.mxu0 %v2606
  %v2841 = vpop.f32.mrf.mxu0
  %v2842 = vadd.f32 0.0, %v2841
  %v2843 = vpop.f32.mrf.mxu0
  %2844 = vmatprep.mubr.f32.mxu0 0.0
  %2845 = vmatmul.mubr.f32.gmra.mxu0 %v2609
  %v2846 = vpop.f32.mrf.mxu0
  %v2847 = vadd.f32 0.0, %v2846
  %v2848 = vpop.f32.mrf.mxu0
  %2849 = vmatprep.mubr.f32.mxu0 0.0
  %2850 = vmatmul.mubr.f32.gmra.mxu0 %v2612
  %v2851 = vpop.f32.mrf.mxu0
  %v2852 = vadd.f32 0.0, %v2851
  %v2853 = vpop.f32.mrf.mxu0
  %2854 = vmatprep.mubr.f32.mxu0 0.0
  %2855 = vmatmul.mubr.f32.gmra.mxu0 %v2615
  %v2856 = vpop.f32.mrf.mxu0
  %v2857 = vadd.f32 0.0, %v2856
  %v2858 = vpop.f32.mrf.mxu0
  %2859 = vmatprep.mubr.f32.mxu0 0.0
  %2860 = vmatmul.mubr.f32.gmra.mxu0 %v2618
  %v2861 = vpop.f32.mrf.mxu0
  %v2862 = vadd.f32 0.0, %v2861
  %v2863 = vpop.f32.mrf.mxu0
  %2864 = vmatprep.mubr.f32.mxu0 0.0
  %2865 = vmatmul.mubr.f32.gmra.mxu0 %v2621
  %v2866 = vpop.f32.mrf.mxu0
  %v2867 = vadd.f32 0.0, %v2866
  %v2868 = vpop.f32.mrf.mxu0
  %2869 = vmatprep.mubr.f32.mxu0 0.0
  %2870 = vmatmul.mubr.f32.gmra.mxu0 %v2624
  %v2871 = vpop.f32.mrf.mxu0
  %v2872 = vadd.f32 0.0, %v2871
  %v2873 = vpop.f32.mrf.mxu0
  %2874 = vmatprep.mubr.f32.mxu0 0.0
  %2875 = vmatmul.mubr.f32.gmra.mxu0 %v2627
  %v2876 = vpop.f32.mrf.mxu0
  %v2877 = vadd.f32 0.0, %v2876
  %v2878 = vpop.f32.mrf.mxu0
  %2879 = vmatprep.mubr.f32.mxu0 0.0
  %2880 = vmatmul.mubr.f32.gmra.mxu0 %v2630
  %v2881 = vpop.f32.mrf.mxu0
  %v2882 = vadd.f32 0.0, %v2881
  %v2883 = vpop.f32.mrf.mxu0
  %2884 = vmatprep.mubr.f32.mxu0 0.0
  %2885 = vmatmul.mubr.f32.gmra.mxu0 %v2633
  %v2886 = vpop.f32.mrf.mxu0
  %v2887 = vadd.f32 0.0, %v2886
  %v2888 = vpop.f32.mrf.mxu0
  %2889 = vmatprep.mubr.f32.mxu0 0.0
  %2890 = vmatmul.mubr.f32.gmra.mxu0 %v2636
  %v2891 = vpop.f32.mrf.mxu0
  %v2892 = vadd.f32 0.0, %v2891
  %v2893 = vpop.f32.mrf.mxu0
  %2894 = vmatprep.mubr.f32.mxu0 0.0
  %2895 = vmatmul.mubr.f32.gmra.mxu0 %v2639
  %v2896 = vpop.f32.mrf.mxu0
  %v2897 = vadd.f32 0.0, %v2896
  %v2898 = vpop.f32.mrf.mxu0
  %2899 = vmatprep.mubr.f32.mxu0 0.0
  %2900 = vmatmul.mubr.f32.gmra.mxu0 %v2642
  %v2901 = vpop.f32.mrf.mxu0
  %v2902 = vadd.f32 0.0, %v2901
  %v2903 = vpop.f32.mrf.mxu0
  %2904 = vmatprep.mubr.f32.mxu0 0.0
  %2905 = vmatmul.mubr.f32.gmra.mxu0 %v2645
  %v2906 = vpop.f32.mrf.mxu0
  %v2907 = vadd.f32 0.0, %v2906
  %v2908 = vpop.f32.mrf.mxu0
  %2909 = vmatprep.mubr.f32.mxu0 0.0
  %2910 = vmatmul.mubr.f32.gmra.mxu0 %v2648
  %v2911 = vpop.f32.mrf.mxu0
  %v2912 = vadd.f32 0.0, %v2911
  %v2913 = vpop.f32.mrf.mxu0
  %2914 = vdwg.mxu0
  %v2915 = vadd.f32 %v2407, %v2717
  %v2916 = vadd.f32 %v2408, %v2722
  %v2917 = vadd.f32 %v2409, %v2727
  %v2918 = vadd.f32 %v2410, %v2732
  %v2919 = vadd.f32 %v2411, %v2737
  %v2920 = vadd.f32 %v2412, %v2742
  %v2921 = vadd.f32 %v2413, %v2747
  %v2922 = vadd.f32 %v2414, %v2752
  %v2923 = vadd.f32 %v2415, %v2757
  %v2924 = vadd.f32 %v2416, %v2762
  %v2925 = vadd.f32 %v2417, %v2767
  %v2926 = vadd.f32 %v2418, %v2772
  %v2927 = vadd.f32 %v2419, %v2777
  %v2928 = vadd.f32 %v2420, %v2782
  %v2929 = vadd.f32 %v2421, %v2787
  %v2930 = vadd.f32 %v2422, %v2792
  %v2931 = vadd.f32 %v2423, %v2797
  %v2932 = vadd.f32 %v2424, %v2802
  %v2933 = vadd.f32 %v2425, %v2807
  %v2934 = vadd.f32 %v2426, %v2812
  %v2935 = vadd.f32 %v2427, %v2817
  %v2936 = vadd.f32 %v2428, %v2822
  %v2937 = vadd.f32 %v2429, %v2827
  %v2938 = vadd.f32 %v2430, %v2832
  %v2939 = vadd.f32 %v2431, %v2837
  %v2940 = vadd.f32 %v2432, %v2842
  %v2941 = vadd.f32 %v2433, %v2847
  %v2942 = vadd.f32 %v2434, %v2852
  %v2943 = vadd.f32 %v2435, %v2857
  %v2944 = vadd.f32 %v2436, %v2862
  %v2945 = vadd.f32 %v2437, %v2867
  %v2946 = vadd.f32 %v2438, %v2872
  %v2947 = vadd.f32 %v2439, %v2877
  %v2948 = vadd.f32 %v2440, %v2882
  %v2949 = vadd.f32 %v2441, %v2887
  %v2950 = vadd.f32 %v2442, %v2892
  %v2951 = vadd.f32 %v2443, %v2897
  %v2952 = vadd.f32 %v2444, %v2902
  %v2953 = vadd.f32 %v2445, %v2907
  %v2954 = vadd.f32 %v2446, %v2912
  %v2955 = vrot.slane %v26, 6
  %v2956 = vrot.slane %v27, 6
  %v2957 = vrot.slane %v28, 6
  %v2958 = vrot.slane %v29, 6
  %v2959 = vrot.slane %v30, 6
  %v2960 = vrot.slane %v31, 6
  %v2961 = vrot.slane %v32, 6
  %v2962 = vrot.slane %v33, 6
  %v2963 = vrot.slane %v34, 6
  %v2964 = vrot.slane %v35, 6
  %v2965 = vrot.slane %v36, 6
  %v2966 = vrot.slane %v37, 6
  %v2967 = vrot.slane %v38, 6
  %v2968 = vrot.slane %v39, 6
  %v2969 = vrot.slane %v40, 6
  %v2970 = vrot.slane %v41, 6
  %v2971 = vrot.slane %v42, 6
  %v2972 = vrot.slane %v43, 6
  %v2973 = vrot.slane %v44, 6
  %v2974 = vrot.slane %v45, 6
  %v2975 = vrot.slane %v46, 6
  %v2976 = vrot.slane %v47, 6
  %v2977 = vrot.slane %v48, 6
  %v2978 = vrot.slane %v49, 6
  %v2979 = vrot.slane %v50, 6
  %v2980 = vrot.slane %v51, 6
  %v2981 = vrot.slane %v52, 6
  %v2982 = vrot.slane %v53, 6
  %v2983 = vrot.slane %v54, 6
  %v2984 = vrot.slane %v55, 6
  %v2985 = vrot.slane %v56, 6
  %v2986 = vrot.slane %v57, 6
  %v2987 = vrot.slane %v58, 6
  %v2988 = vrot.slane %v59, 6
  %v2989 = vrot.slane %v60, 6
  %v2990 = vrot.slane %v61, 6
  %v2991 = vrot.slane %v62, 6
  %v2992 = vrot.slane %v63, 6
  %v2993 = vrot.slane %v64, 6
  %v2994 = vrot.slane %v65, 6
  %vm2995 = vcmp.lt.s32.totalorder %v108, 2
  %v2996 = vsel %vm2995, %v2993, %v2994
  %v2997 = vsel %vm2995, %v2992, %v2993
  %v2998 = vsel %vm2995, %v2991, %v2992
  %v2999 = vsel %vm2995, %v2990, %v2991
  %v3000 = vsel %vm2995, %v2989, %v2990
  %v3001 = vsel %vm2995, %v2988, %v2989
  %v3002 = vsel %vm2995, %v2987, %v2988
  %v3003 = vsel %vm2995, %v2986, %v2987
  %v3004 = vsel %vm2995, %v2985, %v2986
  %v3005 = vsel %vm2995, %v2984, %v2985
  %v3006 = vsel %vm2995, %v2983, %v2984
  %v3007 = vsel %vm2995, %v2982, %v2983
  %v3008 = vsel %vm2995, %v2981, %v2982
  %v3009 = vsel %vm2995, %v2980, %v2981
  %v3010 = vsel %vm2995, %v2979, %v2980
  %v3011 = vsel %vm2995, %v2978, %v2979
  %v3012 = vsel %vm2995, %v2977, %v2978
  %v3013 = vsel %vm2995, %v2976, %v2977
  %v3014 = vsel %vm2995, %v2975, %v2976
  %v3015 = vsel %vm2995, %v2974, %v2975
  %v3016 = vsel %vm2995, %v2973, %v2974
  %v3017 = vsel %vm2995, %v2972, %v2973
  %v3018 = vsel %vm2995, %v2971, %v2972
  %v3019 = vsel %vm2995, %v2970, %v2971
  %v3020 = vsel %vm2995, %v2969, %v2970
  %v3021 = vsel %vm2995, %v2968, %v2969
  %v3022 = vsel %vm2995, %v2967, %v2968
  %v3023 = vsel %vm2995, %v2966, %v2967
  %v3024 = vsel %vm2995, %v2965, %v2966
  %v3025 = vsel %vm2995, %v2964, %v2965
  %v3026 = vsel %vm2995, %v2963, %v2964
  %v3027 = vsel %vm2995, %v2962, %v2963
  %v3028 = vsel %vm2995, %v2961, %v2962
  %v3029 = vsel %vm2995, %v2960, %v2961
  %v3030 = vsel %vm2995, %v2959, %v2960
  %v3031 = vsel %vm2995, %v2958, %v2959
  %v3032 = vsel %vm2995, %v2957, %v2958
  %v3033 = vsel %vm2995, %v2956, %v2957
  %v3034 = vsel %vm2995, %v2955, %v2956
  %v3035 = vsel %vm2995, %v2994, %v2955
  %s3036 = scalar_lea.vmem %s1, 48
  %v3037 = vld [vmem:[%s3036] sm:$0xff]
  %v3039 = vsel %vm152, %v3034, 0
  %v3042 = vsel %vm152, %v3033, 0
  %v3045 = vsel %vm152, %v3032, 0
  %v3048 = vsel %vm152, %v3031, 0
  %v3051 = vsel %vm152, %v3030, 0
  %v3054 = vsel %vm152, %v3029, 0
  %v3057 = vsel %vm152, %v3028, 0
  %v3060 = vsel %vm152, %v3027, 0
  %v3063 = vsel %vm152, %v3026, 0
  %v3066 = vsel %vm152, %v3025, 0
  %v3069 = vsel %vm152, %v3024, 0
  %v3072 = vsel %vm152, %v3023, 0
  %v3075 = vsel %vm152, %v3022, 0
  %v3078 = vsel %vm152, %v3021, 0
  %v3081 = vsel %vm152, %v3020, 0
  %v3084 = vsel %vm152, %v3019, 0
  %v3087 = vsel %vm152, %v3018, 0
  %v3090 = vsel %vm152, %v3017, 0
  %v3093 = vsel %vm152, %v3016, 0
  %v3096 = vsel %vm152, %v3015, 0
  %v3099 = vsel %vm152, %v3014, 0
  %v3102 = vsel %vm152, %v3013, 0
  %v3105 = vsel %vm152, %v3012, 0
  %v3108 = vsel %vm152, %v3011, 0
  %v3111 = vsel %vm152, %v3010, 0
  %v3114 = vsel %vm152, %v3009, 0
  %v3117 = vsel %vm152, %v3008, 0
  %v3120 = vsel %vm152, %v3007, 0
  %v3123 = vsel %vm152, %v3006, 0
  %v3126 = vsel %vm152, %v3005, 0
  %v3129 = vsel %vm152, %v3004, 0
  %v3132 = vsel %vm152, %v3003, 0
  %v3135 = vsel %vm152, %v3002, 0
  %v3138 = vsel %vm152, %v3001, 0
  %v3141 = vsel %vm152, %v3000, 0
  %v3144 = vsel %vm152, %v2999, 0
  %v3147 = vsel %vm152, %v2998, 0
  %v3150 = vsel %vm152, %v2997, 0
  %v3153 = vsel %vm152, %v2996, 0
  %v3156 = vsel %vm152, %v3035, 0
  %3158 = vmatprep.subr.mxu0 0.0
  %3159 = vmatpush1.msra.mxu0 0.0
  %3160 = vmatprep.subr.mxu0 0.0
  %3161 = vmatpush1.msra.mxu0 0.0
  %3162 = vmatprep.subr.mxu0 0.0
  %3163 = vmatpush1.msra.mxu0 0.0
  %3164 = vmatprep.subr.mxu0 0.0
  %3165 = vmatpush1.msra.mxu0 0.0
  %3166 = vmatprep.subr.mxu0 0.0
  %3167 = vmatpush1.msra.mxu0 0.0
  %3168 = vmatprep.subr.mxu0 0.0
  %3169 = vmatpush1.msra.mxu0 0.0
  %3170 = vmatprep.subr.mxu0 0.0
  %3171 = vmatpush1.msra.mxu0 0.0
  %3172 = vmatprep.subr.mxu0 0.0
  %3173 = vmatpush1.msra.mxu0 0.0
  %3174 = vmatprep.subr.mxu0 0.0
  %3175 = vmatpush1.msra.mxu0 0.0
  %3176 = vmatprep.subr.mxu0 0.0
  %3177 = vmatpush1.msra.mxu0 0.0
  %3178 = vmatprep.subr.mxu0 0.0
  %3179 = vmatpush1.msra.mxu0 0.0
  %3180 = vmatprep.subr.mxu0 0.0
  %3181 = vmatpush1.msra.mxu0 0.0
  %3182 = vmatprep.subr.mxu0 0.0
  %3183 = vmatpush1.msra.mxu0 0.0
  %3184 = vmatprep.subr.mxu0 0.0
  %3185 = vmatpush1.msra.mxu0 0.0
  %3186 = vmatprep.subr.mxu0 0.0
  %3187 = vmatpush1.msra.mxu0 0.0
  %3188 = vmatprep.subr.mxu0 0.0
  %3189 = vmatpush1.msra.mxu0 %v3037
  %3190 = vmatprep.subr.mxu0 0.0
  %3191 = vmatpush2.msra.mxu0 0.0
  %3192 = vmatprep.subr.mxu0 0.0
  %3193 = vmatpush2.msra.mxu0 0.0
  %3194 = vmatprep.subr.mxu0 0.0
  %3195 = vmatpush2.msra.mxu0 0.0
  %3196 = vmatprep.subr.mxu0 0.0
  %3197 = vmatpush2.msra.mxu0 0.0
  %3198 = vmatprep.subr.mxu0 0.0
  %3199 = vmatpush2.msra.mxu0 0.0
  %3200 = vmatprep.subr.mxu0 0.0
  %3201 = vmatpush2.msra.mxu0 0.0
  %3202 = vmatprep.subr.mxu0 0.0
  %3203 = vmatpush2.msra.mxu0 0.0
  %3204 = vmatprep.subr.mxu0 0.0
  %3205 = vmatpush2.msra.mxu0 0.0
  %3206 = vmatprep.subr.mxu0 0.0
  %3207 = vmatpush2.msra.mxu0 0.0
  %3208 = vmatprep.subr.mxu0 0.0
  %3209 = vmatpush2.msra.mxu0 0.0
  %3210 = vmatprep.subr.mxu0 0.0
  %3211 = vmatpush2.msra.mxu0 0.0
  %3212 = vmatprep.subr.mxu0 0.0
  %3213 = vmatpush2.msra.mxu0 0.0
  %3214 = vmatprep.subr.mxu0 0.0
  %3215 = vmatpush2.msra.mxu0 0.0
  %3216 = vmatprep.subr.mxu0 0.0
  %3217 = vmatpush2.msra.mxu0 0.0
  %3218 = vmatprep.subr.mxu0 0.0
  %3219 = vmatpush2.msra.mxu0 0.0
  %3220 = vmatprep.subr.mxu0 0.0
  %3221 = vmatpush2.msra.mxu0 0.0
  %3222 = vmatprep.mubr.f32.mxu0 0.0
  %3223 = vmatmul.mubr.f32.gmra.mxu0 %v3039
  %v3224 = vpop.f32.mrf.mxu0
  %v3225 = vadd.f32 0.0, %v3224
  %v3226 = vpop.f32.mrf.mxu0
  %3227 = vmatprep.mubr.f32.mxu0 0.0
  %3228 = vmatmul.mubr.f32.gmra.mxu0 %v3042
  %v3229 = vpop.f32.mrf.mxu0
  %v3230 = vadd.f32 0.0, %v3229
  %v3231 = vpop.f32.mrf.mxu0
  %3232 = vmatprep.mubr.f32.mxu0 0.0
  %3233 = vmatmul.mubr.f32.gmra.mxu0 %v3045
  %v3234 = vpop.f32.mrf.mxu0
  %v3235 = vadd.f32 0.0, %v3234
  %v3236 = vpop.f32.mrf.mxu0
  %3237 = vmatprep.mubr.f32.mxu0 0.0
  %3238 = vmatmul.mubr.f32.gmra.mxu0 %v3048
  %v3239 = vpop.f32.mrf.mxu0
  %v3240 = vadd.f32 0.0, %v3239
  %v3241 = vpop.f32.mrf.mxu0
  %3242 = vmatprep.mubr.f32.mxu0 0.0
  %3243 = vmatmul.mubr.f32.gmra.mxu0 %v3051
  %v3244 = vpop.f32.mrf.mxu0
  %v3245 = vadd.f32 0.0, %v3244
  %v3246 = vpop.f32.mrf.mxu0
  %3247 = vmatprep.mubr.f32.mxu0 0.0
  %3248 = vmatmul.mubr.f32.gmra.mxu0 %v3054
  %v3249 = vpop.f32.mrf.mxu0
  %v3250 = vadd.f32 0.0, %v3249
  %v3251 = vpop.f32.mrf.mxu0
  %3252 = vmatprep.mubr.f32.mxu0 0.0
  %3253 = vmatmul.mubr.f32.gmra.mxu0 %v3057
  %v3254 = vpop.f32.mrf.mxu0
  %v3255 = vadd.f32 0.0, %v3254
  %v3256 = vpop.f32.mrf.mxu0
  %3257 = vmatprep.mubr.f32.mxu0 0.0
  %3258 = vmatmul.mubr.f32.gmra.mxu0 %v3060
  %v3259 = vpop.f32.mrf.mxu0
  %v3260 = vadd.f32 0.0, %v3259
  %v3261 = vpop.f32.mrf.mxu0
  %3262 = vmatprep.mubr.f32.mxu0 0.0
  %3263 = vmatmul.mubr.f32.gmra.mxu0 %v3063
  %v3264 = vpop.f32.mrf.mxu0
  %v3265 = vadd.f32 0.0, %v3264
  %v3266 = vpop.f32.mrf.mxu0
  %3267 = vmatprep.mubr.f32.mxu0 0.0
  %3268 = vmatmul.mubr.f32.gmra.mxu0 %v3066
  %v3269 = vpop.f32.mrf.mxu0
  %v3270 = vadd.f32 0.0, %v3269
  %v3271 = vpop.f32.mrf.mxu0
  %3272 = vmatprep.mubr.f32.mxu0 0.0
  %3273 = vmatmul.mubr.f32.gmra.mxu0 %v3069
  %v3274 = vpop.f32.mrf.mxu0
  %v3275 = vadd.f32 0.0, %v3274
  %v3276 = vpop.f32.mrf.mxu0
  %3277 = vmatprep.mubr.f32.mxu0 0.0
  %3278 = vmatmul.mubr.f32.gmra.mxu0 %v3072
  %v3279 = vpop.f32.mrf.mxu0
  %v3280 = vadd.f32 0.0, %v3279
  %v3281 = vpop.f32.mrf.mxu0
  %3282 = vmatprep.mubr.f32.mxu0 0.0
  %3283 = vmatmul.mubr.f32.gmra.mxu0 %v3075
  %v3284 = vpop.f32.mrf.mxu0
  %v3285 = vadd.f32 0.0, %v3284
  %v3286 = vpop.f32.mrf.mxu0
  %3287 = vmatprep.mubr.f32.mxu0 0.0
  %3288 = vmatmul.mubr.f32.gmra.mxu0 %v3078
  %v3289 = vpop.f32.mrf.mxu0
  %v3290 = vadd.f32 0.0, %v3289
  %v3291 = vpop.f32.mrf.mxu0
  %3292 = vmatprep.mubr.f32.mxu0 0.0
  %3293 = vmatmul.mubr.f32.gmra.mxu0 %v3081
  %v3294 = vpop.f32.mrf.mxu0
  %v3295 = vadd.f32 0.0, %v3294
  %v3296 = vpop.f32.mrf.mxu0
  %3297 = vmatprep.mubr.f32.mxu0 0.0
  %3298 = vmatmul.mubr.f32.gmra.mxu0 %v3084
  %v3299 = vpop.f32.mrf.mxu0
  %v3300 = vadd.f32 0.0, %v3299
  %v3301 = vpop.f32.mrf.mxu0
  %3302 = vmatprep.mubr.f32.mxu0 0.0
  %3303 = vmatmul.mubr.f32.gmra.mxu0 %v3087
  %v3304 = vpop.f32.mrf.mxu0
  %v3305 = vadd.f32 0.0, %v3304
  %v3306 = vpop.f32.mrf.mxu0
  %3307 = vmatprep.mubr.f32.mxu0 0.0
  %3308 = vmatmul.mubr.f32.gmra.mxu0 %v3090
  %v3309 = vpop.f32.mrf.mxu0
  %v3310 = vadd.f32 0.0, %v3309
  %v3311 = vpop.f32.mrf.mxu0
  %3312 = vmatprep.mubr.f32.mxu0 0.0
  %3313 = vmatmul.mubr.f32.gmra.mxu0 %v3093
  %v3314 = vpop.f32.mrf.mxu0
  %v3315 = vadd.f32 0.0, %v3314
  %v3316 = vpop.f32.mrf.mxu0
  %3317 = vmatprep.mubr.f32.mxu0 0.0
  %3318 = vmatmul.mubr.f32.gmra.mxu0 %v3096
  %v3319 = vpop.f32.mrf.mxu0
  %v3320 = vadd.f32 0.0, %v3319
  %v3321 = vpop.f32.mrf.mxu0
  %3322 = vmatprep.mubr.f32.mxu0 0.0
  %3323 = vmatmul.mubr.f32.gmra.mxu0 %v3099
  %v3324 = vpop.f32.mrf.mxu0
  %v3325 = vadd.f32 0.0, %v3324
  %v3326 = vpop.f32.mrf.mxu0
  %3327 = vmatprep.mubr.f32.mxu0 0.0
  %3328 = vmatmul.mubr.f32.gmra.mxu0 %v3102
  %v3329 = vpop.f32.mrf.mxu0
  %v3330 = vadd.f32 0.0, %v3329
  %v3331 = vpop.f32.mrf.mxu0
  %3332 = vmatprep.mubr.f32.mxu0 0.0
  %3333 = vmatmul.mubr.f32.gmra.mxu0 %v3105
  %v3334 = vpop.f32.mrf.mxu0
  %v3335 = vadd.f32 0.0, %v3334
  %v3336 = vpop.f32.mrf.mxu0
  %3337 = vmatprep.mubr.f32.mxu0 0.0
  %3338 = vmatmul.mubr.f32.gmra.mxu0 %v3108
  %v3339 = vpop.f32.mrf.mxu0
  %v3340 = vadd.f32 0.0, %v3339
  %v3341 = vpop.f32.mrf.mxu0
  %3342 = vmatprep.mubr.f32.mxu0 0.0
  %3343 = vmatmul.mubr.f32.gmra.mxu0 %v3111
  %v3344 = vpop.f32.mrf.mxu0
  %v3345 = vadd.f32 0.0, %v3344
  %v3346 = vpop.f32.mrf.mxu0
  %3347 = vmatprep.mubr.f32.mxu0 0.0
  %3348 = vmatmul.mubr.f32.gmra.mxu0 %v3114
  %v3349 = vpop.f32.mrf.mxu0
  %v3350 = vadd.f32 0.0, %v3349
  %v3351 = vpop.f32.mrf.mxu0
  %3352 = vmatprep.mubr.f32.mxu0 0.0
  %3353 = vmatmul.mubr.f32.gmra.mxu0 %v3117
  %v3354 = vpop.f32.mrf.mxu0
  %v3355 = vadd.f32 0.0, %v3354
  %v3356 = vpop.f32.mrf.mxu0
  %3357 = vmatprep.mubr.f32.mxu0 0.0
  %3358 = vmatmul.mubr.f32.gmra.mxu0 %v3120
  %v3359 = vpop.f32.mrf.mxu0
  %v3360 = vadd.f32 0.0, %v3359
  %v3361 = vpop.f32.mrf.mxu0
  %3362 = vmatprep.mubr.f32.mxu0 0.0
  %3363 = vmatmul.mubr.f32.gmra.mxu0 %v3123
  %v3364 = vpop.f32.mrf.mxu0
  %v3365 = vadd.f32 0.0, %v3364
  %v3366 = vpop.f32.mrf.mxu0
  %3367 = vmatprep.mubr.f32.mxu0 0.0
  %3368 = vmatmul.mubr.f32.gmra.mxu0 %v3126
  %v3369 = vpop.f32.mrf.mxu0
  %v3370 = vadd.f32 0.0, %v3369
  %v3371 = vpop.f32.mrf.mxu0
  %3372 = vmatprep.mubr.f32.mxu0 0.0
  %3373 = vmatmul.mubr.f32.gmra.mxu0 %v3129
  %v3374 = vpop.f32.mrf.mxu0
  %v3375 = vadd.f32 0.0, %v3374
  %v3376 = vpop.f32.mrf.mxu0
  %3377 = vmatprep.mubr.f32.mxu0 0.0
  %3378 = vmatmul.mubr.f32.gmra.mxu0 %v3132
  %v3379 = vpop.f32.mrf.mxu0
  %v3380 = vadd.f32 0.0, %v3379
  %v3381 = vpop.f32.mrf.mxu0
  %3382 = vmatprep.mubr.f32.mxu0 0.0
  %3383 = vmatmul.mubr.f32.gmra.mxu0 %v3135
  %v3384 = vpop.f32.mrf.mxu0
  %v3385 = vadd.f32 0.0, %v3384
  %v3386 = vpop.f32.mrf.mxu0
  %3387 = vmatprep.mubr.f32.mxu0 0.0
  %3388 = vmatmul.mubr.f32.gmra.mxu0 %v3138
  %v3389 = vpop.f32.mrf.mxu0
  %v3390 = vadd.f32 0.0, %v3389
  %v3391 = vpop.f32.mrf.mxu0
  %3392 = vmatprep.mubr.f32.mxu0 0.0
  %3393 = vmatmul.mubr.f32.gmra.mxu0 %v3141
  %v3394 = vpop.f32.mrf.mxu0
  %v3395 = vadd.f32 0.0, %v3394
  %v3396 = vpop.f32.mrf.mxu0
  %3397 = vmatprep.mubr.f32.mxu0 0.0
  %3398 = vmatmul.mubr.f32.gmra.mxu0 %v3144
  %v3399 = vpop.f32.mrf.mxu0
  %v3400 = vadd.f32 0.0, %v3399
  %v3401 = vpop.f32.mrf.mxu0
  %3402 = vmatprep.mubr.f32.mxu0 0.0
  %3403 = vmatmul.mubr.f32.gmra.mxu0 %v3147
  %v3404 = vpop.f32.mrf.mxu0
  %v3405 = vadd.f32 0.0, %v3404
  %v3406 = vpop.f32.mrf.mxu0
  %3407 = vmatprep.mubr.f32.mxu0 0.0
  %3408 = vmatmul.mubr.f32.gmra.mxu0 %v3150
  %v3409 = vpop.f32.mrf.mxu0
  %v3410 = vadd.f32 0.0, %v3409
  %v3411 = vpop.f32.mrf.mxu0
  %3412 = vmatprep.mubr.f32.mxu0 0.0
  %3413 = vmatmul.mubr.f32.gmra.mxu0 %v3153
  %v3414 = vpop.f32.mrf.mxu0
  %v3415 = vadd.f32 0.0, %v3414
  %v3416 = vpop.f32.mrf.mxu0
  %3417 = vmatprep.mubr.f32.mxu0 0.0
  %3418 = vmatmul.mubr.f32.gmra.mxu0 %v3156
  %v3419 = vpop.f32.mrf.mxu0
  %v3420 = vadd.f32 0.0, %v3419
  %v3421 = vpop.f32.mrf.mxu0
  %3422 = vdwg.mxu0
  %v3423 = vadd.f32 %v2915, %v3225
  %v3424 = vadd.f32 %v2916, %v3230
  %v3425 = vadd.f32 %v2917, %v3235
  %v3426 = vadd.f32 %v2918, %v3240
  %v3427 = vadd.f32 %v2919, %v3245
  %v3428 = vadd.f32 %v2920, %v3250
  %v3429 = vadd.f32 %v2921, %v3255
  %v3430 = vadd.f32 %v2922, %v3260
  %v3431 = vadd.f32 %v2923, %v3265
  %v3432 = vadd.f32 %v2924, %v3270
  %v3433 = vadd.f32 %v2925, %v3275
  %v3434 = vadd.f32 %v2926, %v3280
  %v3435 = vadd.f32 %v2927, %v3285
  %v3436 = vadd.f32 %v2928, %v3290
  %v3437 = vadd.f32 %v2929, %v3295
  %v3438 = vadd.f32 %v2930, %v3300
  %v3439 = vadd.f32 %v2931, %v3305
  %v3440 = vadd.f32 %v2932, %v3310
  %v3441 = vadd.f32 %v2933, %v3315
  %v3442 = vadd.f32 %v2934, %v3320
  %v3443 = vadd.f32 %v2935, %v3325
  %v3444 = vadd.f32 %v2936, %v3330
  %v3445 = vadd.f32 %v2937, %v3335
  %v3446 = vadd.f32 %v2938, %v3340
  %v3447 = vadd.f32 %v2939, %v3345
  %v3448 = vadd.f32 %v2940, %v3350
  %v3449 = vadd.f32 %v2941, %v3355
  %v3450 = vadd.f32 %v2942, %v3360
  %v3451 = vadd.f32 %v2943, %v3365
  %v3452 = vadd.f32 %v2944, %v3370
  %v3453 = vadd.f32 %v2945, %v3375
  %v3454 = vadd.f32 %v2946, %v3380
  %v3455 = vadd.f32 %v2947, %v3385
  %v3456 = vadd.f32 %v2948, %v3390
  %v3457 = vadd.f32 %v2949, %v3395
  %v3458 = vadd.f32 %v2950, %v3400
  %v3459 = vadd.f32 %v2951, %v3405
  %v3460 = vadd.f32 %v2952, %v3410
  %v3461 = vadd.f32 %v2953, %v3415
  %v3462 = vadd.f32 %v2954, %v3420
  %v3463 = vrot.slane %v26, 7
  %v3464 = vrot.slane %v27, 7
  %v3465 = vrot.slane %v28, 7
  %v3466 = vrot.slane %v29, 7
  %v3467 = vrot.slane %v30, 7
  %v3468 = vrot.slane %v31, 7
  %v3469 = vrot.slane %v32, 7
  %v3470 = vrot.slane %v33, 7
  %v3471 = vrot.slane %v34, 7
  %v3472 = vrot.slane %v35, 7
  %v3473 = vrot.slane %v36, 7
  %v3474 = vrot.slane %v37, 7
  %v3475 = vrot.slane %v38, 7
  %v3476 = vrot.slane %v39, 7
  %v3477 = vrot.slane %v40, 7
  %v3478 = vrot.slane %v41, 7
  %v3479 = vrot.slane %v42, 7
  %v3480 = vrot.slane %v43, 7
  %v3481 = vrot.slane %v44, 7
  %v3482 = vrot.slane %v45, 7
  %v3483 = vrot.slane %v46, 7
  %v3484 = vrot.slane %v47, 7
  %v3485 = vrot.slane %v48, 7
  %v3486 = vrot.slane %v49, 7
  %v3487 = vrot.slane %v50, 7
  %v3488 = vrot.slane %v51, 7
  %v3489 = vrot.slane %v52, 7
  %v3490 = vrot.slane %v53, 7
  %v3491 = vrot.slane %v54, 7
  %v3492 = vrot.slane %v55, 7
  %v3493 = vrot.slane %v56, 7
  %v3494 = vrot.slane %v57, 7
  %v3495 = vrot.slane %v58, 7
  %v3496 = vrot.slane %v59, 7
  %v3497 = vrot.slane %v60, 7
  %v3498 = vrot.slane %v61, 7
  %v3499 = vrot.slane %v62, 7
  %v3500 = vrot.slane %v63, 7
  %v3501 = vrot.slane %v64, 7
  %v3502 = vrot.slane %v65, 7
  %vm3503 = vcmp.lt.s32.totalorder %v108, 1
  %v3504 = vsel %vm3503, %v3501, %v3502
  %v3505 = vsel %vm3503, %v3500, %v3501
  %v3506 = vsel %vm3503, %v3499, %v3500
  %v3507 = vsel %vm3503, %v3498, %v3499
  %v3508 = vsel %vm3503, %v3497, %v3498
  %v3509 = vsel %vm3503, %v3496, %v3497
  %v3510 = vsel %vm3503, %v3495, %v3496
  %v3511 = vsel %vm3503, %v3494, %v3495
  %v3512 = vsel %vm3503, %v3493, %v3494
  %v3513 = vsel %vm3503, %v3492, %v3493
  %v3514 = vsel %vm3503, %v3491, %v3492
  %v3515 = vsel %vm3503, %v3490, %v3491
  %v3516 = vsel %vm3503, %v3489, %v3490
  %v3517 = vsel %vm3503, %v3488, %v3489
  %v3518 = vsel %vm3503, %v3487, %v3488
  %v3519 = vsel %vm3503, %v3486, %v3487
  %v3520 = vsel %vm3503, %v3485, %v3486
  %v3521 = vsel %vm3503, %v3484, %v3485
  %v3522 = vsel %vm3503, %v3483, %v3484
  %v3523 = vsel %vm3503, %v3482, %v3483
  %v3524 = vsel %vm3503, %v3481, %v3482
  %v3525 = vsel %vm3503, %v3480, %v3481
  %v3526 = vsel %vm3503, %v3479, %v3480
  %v3527 = vsel %vm3503, %v3478, %v3479
  %v3528 = vsel %vm3503, %v3477, %v3478
  %v3529 = vsel %vm3503, %v3476, %v3477
  %v3530 = vsel %vm3503, %v3475, %v3476
  %v3531 = vsel %vm3503, %v3474, %v3475
  %v3532 = vsel %vm3503, %v3473, %v3474
  %v3533 = vsel %vm3503, %v3472, %v3473
  %v3534 = vsel %vm3503, %v3471, %v3472
  %v3535 = vsel %vm3503, %v3470, %v3471
  %v3536 = vsel %vm3503, %v3469, %v3470
  %v3537 = vsel %vm3503, %v3468, %v3469
  %v3538 = vsel %vm3503, %v3467, %v3468
  %v3539 = vsel %vm3503, %v3466, %v3467
  %v3540 = vsel %vm3503, %v3465, %v3466
  %v3541 = vsel %vm3503, %v3464, %v3465
  %v3542 = vsel %vm3503, %v3463, %v3464
  %v3543 = vsel %vm3503, %v3502, %v3463
  %s3544 = scalar_lea.vmem %s1, 56
  %v3545 = vld [vmem:[%s3544] sm:$0xff]
  %v3547 = vsel %vm152, %v3542, 0
  %v3550 = vsel %vm152, %v3541, 0
  %v3553 = vsel %vm152, %v3540, 0
  %v3556 = vsel %vm152, %v3539, 0
  %v3559 = vsel %vm152, %v3538, 0
  %v3562 = vsel %vm152, %v3537, 0
  %v3565 = vsel %vm152, %v3536, 0
  %v3568 = vsel %vm152, %v3535, 0
  %v3571 = vsel %vm152, %v3534, 0
  %v3574 = vsel %vm152, %v3533, 0
  %v3577 = vsel %vm152, %v3532, 0
  %v3580 = vsel %vm152, %v3531, 0
  %v3583 = vsel %vm152, %v3530, 0
  %v3586 = vsel %vm152, %v3529, 0
  %v3589 = vsel %vm152, %v3528, 0
  %v3592 = vsel %vm152, %v3527, 0
  %v3595 = vsel %vm152, %v3526, 0
  %v3598 = vsel %vm152, %v3525, 0
  %v3601 = vsel %vm152, %v3524, 0
  %v3604 = vsel %vm152, %v3523, 0
  %v3607 = vsel %vm152, %v3522, 0
  %v3610 = vsel %vm152, %v3521, 0
  %v3613 = vsel %vm152, %v3520, 0
  %v3616 = vsel %vm152, %v3519, 0
  %v3619 = vsel %vm152, %v3518, 0
  %v3622 = vsel %vm152, %v3517, 0
  %v3625 = vsel %vm152, %v3516, 0
  %v3628 = vsel %vm152, %v3515, 0
  %v3631 = vsel %vm152, %v3514, 0
  %v3634 = vsel %vm152, %v3513, 0
  %v3637 = vsel %vm152, %v3512, 0
  %v3640 = vsel %vm152, %v3511, 0
  %v3643 = vsel %vm152, %v3510, 0
  %v3646 = vsel %vm152, %v3509, 0
  %v3649 = vsel %vm152, %v3508, 0
  %v3652 = vsel %vm152, %v3507, 0
  %v3655 = vsel %vm152, %v3506, 0
  %v3658 = vsel %vm152, %v3505, 0
  %v3661 = vsel %vm152, %v3504, 0
  %v3664 = vsel %vm152, %v3543, 0
  %3666 = vmatprep.subr.mxu0 0.0
  %3667 = vmatpush1.msra.mxu0 0.0
  %3668 = vmatprep.subr.mxu0 0.0
  %3669 = vmatpush1.msra.mxu0 0.0
  %3670 = vmatprep.subr.mxu0 0.0
  %3671 = vmatpush1.msra.mxu0 0.0
  %3672 = vmatprep.subr.mxu0 0.0
  %3673 = vmatpush1.msra.mxu0 0.0
  %3674 = vmatprep.subr.mxu0 0.0
  %3675 = vmatpush1.msra.mxu0 0.0
  %3676 = vmatprep.subr.mxu0 0.0
  %3677 = vmatpush1.msra.mxu0 0.0
  %3678 = vmatprep.subr.mxu0 0.0
  %3679 = vmatpush1.msra.mxu0 0.0
  %3680 = vmatprep.subr.mxu0 0.0
  %3681 = vmatpush1.msra.mxu0 0.0
  %3682 = vmatprep.subr.mxu0 0.0
  %3683 = vmatpush1.msra.mxu0 0.0
  %3684 = vmatprep.subr.mxu0 0.0
  %3685 = vmatpush1.msra.mxu0 0.0
  %3686 = vmatprep.subr.mxu0 0.0
  %3687 = vmatpush1.msra.mxu0 0.0
  %3688 = vmatprep.subr.mxu0 0.0
  %3689 = vmatpush1.msra.mxu0 0.0
  %3690 = vmatprep.subr.mxu0 0.0
  %3691 = vmatpush1.msra.mxu0 0.0
  %3692 = vmatprep.subr.mxu0 0.0
  %3693 = vmatpush1.msra.mxu0 0.0
  %3694 = vmatprep.subr.mxu0 0.0
  %3695 = vmatpush1.msra.mxu0 0.0
  %3696 = vmatprep.subr.mxu0 0.0
  %3697 = vmatpush1.msra.mxu0 %v3545
  %3698 = vmatprep.subr.mxu0 0.0
  %3699 = vmatpush2.msra.mxu0 0.0
  %3700 = vmatprep.subr.mxu0 0.0
  %3701 = vmatpush2.msra.mxu0 0.0
  %3702 = vmatprep.subr.mxu0 0.0
  %3703 = vmatpush2.msra.mxu0 0.0
  %3704 = vmatprep.subr.mxu0 0.0
  %3705 = vmatpush2.msra.mxu0 0.0
  %3706 = vmatprep.subr.mxu0 0.0
  %3707 = vmatpush2.msra.mxu0 0.0
  %3708 = vmatprep.subr.mxu0 0.0
  %3709 = vmatpush2.msra.mxu0 0.0
  %3710 = vmatprep.subr.mxu0 0.0
  %3711 = vmatpush2.msra.mxu0 0.0
  %3712 = vmatprep.subr.mxu0 0.0
  %3713 = vmatpush2.msra.mxu0 0.0
  %3714 = vmatprep.subr.mxu0 0.0
  %3715 = vmatpush2.msra.mxu0 0.0
  %3716 = vmatprep.subr.mxu0 0.0
  %3717 = vmatpush2.msra.mxu0 0.0
  %3718 = vmatprep.subr.mxu0 0.0
  %3719 = vmatpush2.msra.mxu0 0.0
  %3720 = vmatprep.subr.mxu0 0.0
  %3721 = vmatpush2.msra.mxu0 0.0
  %3722 = vmatprep.subr.mxu0 0.0
  %3723 = vmatpush2.msra.mxu0 0.0
  %3724 = vmatprep.subr.mxu0 0.0
  %3725 = vmatpush2.msra.mxu0 0.0
  %3726 = vmatprep.subr.mxu0 0.0
  %3727 = vmatpush2.msra.mxu0 0.0
  %3728 = vmatprep.subr.mxu0 0.0
  %3729 = vmatpush2.msra.mxu0 0.0
  %3730 = vmatprep.mubr.f32.mxu0 0.0
  %3731 = vmatmul.mubr.f32.gmra.mxu0 %v3547
  %v3732 = vpop.f32.mrf.mxu0
  %v3733 = vadd.f32 0.0, %v3732
  %v3734 = vpop.f32.mrf.mxu0
  %3735 = vmatprep.mubr.f32.mxu0 0.0
  %3736 = vmatmul.mubr.f32.gmra.mxu0 %v3550
  %v3737 = vpop.f32.mrf.mxu0
  %v3738 = vadd.f32 0.0, %v3737
  %v3739 = vpop.f32.mrf.mxu0
  %3740 = vmatprep.mubr.f32.mxu0 0.0
  %3741 = vmatmul.mubr.f32.gmra.mxu0 %v3553
  %v3742 = vpop.f32.mrf.mxu0
  %v3743 = vadd.f32 0.0, %v3742
  %v3744 = vpop.f32.mrf.mxu0
  %3745 = vmatprep.mubr.f32.mxu0 0.0
  %3746 = vmatmul.mubr.f32.gmra.mxu0 %v3556
  %v3747 = vpop.f32.mrf.mxu0
  %v3748 = vadd.f32 0.0, %v3747
  %v3749 = vpop.f32.mrf.mxu0
  %3750 = vmatprep.mubr.f32.mxu0 0.0
  %3751 = vmatmul.mubr.f32.gmra.mxu0 %v3559
  %v3752 = vpop.f32.mrf.mxu0
  %v3753 = vadd.f32 0.0, %v3752
  %v3754 = vpop.f32.mrf.mxu0
  %3755 = vmatprep.mubr.f32.mxu0 0.0
  %3756 = vmatmul.mubr.f32.gmra.mxu0 %v3562
  %v3757 = vpop.f32.mrf.mxu0
  %v3758 = vadd.f32 0.0, %v3757
  %v3759 = vpop.f32.mrf.mxu0
  %3760 = vmatprep.mubr.f32.mxu0 0.0
  %3761 = vmatmul.mubr.f32.gmra.mxu0 %v3565
  %v3762 = vpop.f32.mrf.mxu0
  %v3763 = vadd.f32 0.0, %v3762
  %v3764 = vpop.f32.mrf.mxu0
  %3765 = vmatprep.mubr.f32.mxu0 0.0
  %3766 = vmatmul.mubr.f32.gmra.mxu0 %v3568
  %v3767 = vpop.f32.mrf.mxu0
  %v3768 = vadd.f32 0.0, %v3767
  %v3769 = vpop.f32.mrf.mxu0
  %3770 = vmatprep.mubr.f32.mxu0 0.0
  %3771 = vmatmul.mubr.f32.gmra.mxu0 %v3571
  %v3772 = vpop.f32.mrf.mxu0
  %v3773 = vadd.f32 0.0, %v3772
  %v3774 = vpop.f32.mrf.mxu0
  %3775 = vmatprep.mubr.f32.mxu0 0.0
  %3776 = vmatmul.mubr.f32.gmra.mxu0 %v3574
  %v3777 = vpop.f32.mrf.mxu0
  %v3778 = vadd.f32 0.0, %v3777
  %v3779 = vpop.f32.mrf.mxu0
  %3780 = vmatprep.mubr.f32.mxu0 0.0
  %3781 = vmatmul.mubr.f32.gmra.mxu0 %v3577
  %v3782 = vpop.f32.mrf.mxu0
  %v3783 = vadd.f32 0.0, %v3782
  %v3784 = vpop.f32.mrf.mxu0
  %3785 = vmatprep.mubr.f32.mxu0 0.0
  %3786 = vmatmul.mubr.f32.gmra.mxu0 %v3580
  %v3787 = vpop.f32.mrf.mxu0
  %v3788 = vadd.f32 0.0, %v3787
  %v3789 = vpop.f32.mrf.mxu0
  %3790 = vmatprep.mubr.f32.mxu0 0.0
  %3791 = vmatmul.mubr.f32.gmra.mxu0 %v3583
  %v3792 = vpop.f32.mrf.mxu0
  %v3793 = vadd.f32 0.0, %v3792
  %v3794 = vpop.f32.mrf.mxu0
  %3795 = vmatprep.mubr.f32.mxu0 0.0
  %3796 = vmatmul.mubr.f32.gmra.mxu0 %v3586
  %v3797 = vpop.f32.mrf.mxu0
  %v3798 = vadd.f32 0.0, %v3797
  %v3799 = vpop.f32.mrf.mxu0
  %3800 = vmatprep.mubr.f32.mxu0 0.0
  %3801 = vmatmul.mubr.f32.gmra.mxu0 %v3589
  %v3802 = vpop.f32.mrf.mxu0
  %v3803 = vadd.f32 0.0, %v3802
  %v3804 = vpop.f32.mrf.mxu0
  %3805 = vmatprep.mubr.f32.mxu0 0.0
  %3806 = vmatmul.mubr.f32.gmra.mxu0 %v3592
  %v3807 = vpop.f32.mrf.mxu0
  %v3808 = vadd.f32 0.0, %v3807
  %v3809 = vpop.f32.mrf.mxu0
  %3810 = vmatprep.mubr.f32.mxu0 0.0
  %3811 = vmatmul.mubr.f32.gmra.mxu0 %v3595
  %v3812 = vpop.f32.mrf.mxu0
  %v3813 = vadd.f32 0.0, %v3812
  %v3814 = vpop.f32.mrf.mxu0
  %3815 = vmatprep.mubr.f32.mxu0 0.0
  %3816 = vmatmul.mubr.f32.gmra.mxu0 %v3598
  %v3817 = vpop.f32.mrf.mxu0
  %v3818 = vadd.f32 0.0, %v3817
  %v3819 = vpop.f32.mrf.mxu0
  %3820 = vmatprep.mubr.f32.mxu0 0.0
  %3821 = vmatmul.mubr.f32.gmra.mxu0 %v3601
  %v3822 = vpop.f32.mrf.mxu0
  %v3823 = vadd.f32 0.0, %v3822
  %v3824 = vpop.f32.mrf.mxu0
  %3825 = vmatprep.mubr.f32.mxu0 0.0
  %3826 = vmatmul.mubr.f32.gmra.mxu0 %v3604
  %v3827 = vpop.f32.mrf.mxu0
  %v3828 = vadd.f32 0.0, %v3827
  %v3829 = vpop.f32.mrf.mxu0
  %3830 = vmatprep.mubr.f32.mxu0 0.0
  %3831 = vmatmul.mubr.f32.gmra.mxu0 %v3607
  %v3832 = vpop.f32.mrf.mxu0
  %v3833 = vadd.f32 0.0, %v3832
  %v3834 = vpop.f32.mrf.mxu0
  %3835 = vmatprep.mubr.f32.mxu0 0.0
  %3836 = vmatmul.mubr.f32.gmra.mxu0 %v3610
  %v3837 = vpop.f32.mrf.mxu0
  %v3838 = vadd.f32 0.0, %v3837
  %v3839 = vpop.f32.mrf.mxu0
  %3840 = vmatprep.mubr.f32.mxu0 0.0
  %3841 = vmatmul.mubr.f32.gmra.mxu0 %v3613
  %v3842 = vpop.f32.mrf.mxu0
  %v3843 = vadd.f32 0.0, %v3842
  %v3844 = vpop.f32.mrf.mxu0
  %3845 = vmatprep.mubr.f32.mxu0 0.0
  %3846 = vmatmul.mubr.f32.gmra.mxu0 %v3616
  %v3847 = vpop.f32.mrf.mxu0
  %v3848 = vadd.f32 0.0, %v3847
  %v3849 = vpop.f32.mrf.mxu0
  %3850 = vmatprep.mubr.f32.mxu0 0.0
  %3851 = vmatmul.mubr.f32.gmra.mxu0 %v3619
  %v3852 = vpop.f32.mrf.mxu0
  %v3853 = vadd.f32 0.0, %v3852
  %v3854 = vpop.f32.mrf.mxu0
  %3855 = vmatprep.mubr.f32.mxu0 0.0
  %3856 = vmatmul.mubr.f32.gmra.mxu0 %v3622
  %v3857 = vpop.f32.mrf.mxu0
  %v3858 = vadd.f32 0.0, %v3857
  %v3859 = vpop.f32.mrf.mxu0
  %3860 = vmatprep.mubr.f32.mxu0 0.0
  %3861 = vmatmul.mubr.f32.gmra.mxu0 %v3625
  %v3862 = vpop.f32.mrf.mxu0
  %v3863 = vadd.f32 0.0, %v3862
  %v3864 = vpop.f32.mrf.mxu0
  %3865 = vmatprep.mubr.f32.mxu0 0.0
  %3866 = vmatmul.mubr.f32.gmra.mxu0 %v3628
  %v3867 = vpop.f32.mrf.mxu0
  %v3868 = vadd.f32 0.0, %v3867
  %v3869 = vpop.f32.mrf.mxu0
  %3870 = vmatprep.mubr.f32.mxu0 0.0
  %3871 = vmatmul.mubr.f32.gmra.mxu0 %v3631
  %v3872 = vpop.f32.mrf.mxu0
  %v3873 = vadd.f32 0.0, %v3872
  %v3874 = vpop.f32.mrf.mxu0
  %3875 = vmatprep.mubr.f32.mxu0 0.0
  %3876 = vmatmul.mubr.f32.gmra.mxu0 %v3634
  %v3877 = vpop.f32.mrf.mxu0
  %v3878 = vadd.f32 0.0, %v3877
  %v3879 = vpop.f32.mrf.mxu0
  %3880 = vmatprep.mubr.f32.mxu0 0.0
  %3881 = vmatmul.mubr.f32.gmra.mxu0 %v3637
  %v3882 = vpop.f32.mrf.mxu0
  %v3883 = vadd.f32 0.0, %v3882
  %v3884 = vpop.f32.mrf.mxu0
  %3885 = vmatprep.mubr.f32.mxu0 0.0
  %3886 = vmatmul.mubr.f32.gmra.mxu0 %v3640
  %v3887 = vpop.f32.mrf.mxu0
  %v3888 = vadd.f32 0.0, %v3887
  %v3889 = vpop.f32.mrf.mxu0
  %3890 = vmatprep.mubr.f32.mxu0 0.0
  %3891 = vmatmul.mubr.f32.gmra.mxu0 %v3643
  %v3892 = vpop.f32.mrf.mxu0
  %v3893 = vadd.f32 0.0, %v3892
  %v3894 = vpop.f32.mrf.mxu0
  %3895 = vmatprep.mubr.f32.mxu0 0.0
  %3896 = vmatmul.mubr.f32.gmra.mxu0 %v3646
  %v3897 = vpop.f32.mrf.mxu0
  %v3898 = vadd.f32 0.0, %v3897
  %v3899 = vpop.f32.mrf.mxu0
  %3900 = vmatprep.mubr.f32.mxu0 0.0
  %3901 = vmatmul.mubr.f32.gmra.mxu0 %v3649
  %v3902 = vpop.f32.mrf.mxu0
  %v3903 = vadd.f32 0.0, %v3902
  %v3904 = vpop.f32.mrf.mxu0
  %3905 = vmatprep.mubr.f32.mxu0 0.0
  %3906 = vmatmul.mubr.f32.gmra.mxu0 %v3652
  %v3907 = vpop.f32.mrf.mxu0
  %v3908 = vadd.f32 0.0, %v3907
  %v3909 = vpop.f32.mrf.mxu0
  %3910 = vmatprep.mubr.f32.mxu0 0.0
  %3911 = vmatmul.mubr.f32.gmra.mxu0 %v3655
  %v3912 = vpop.f32.mrf.mxu0
  %v3913 = vadd.f32 0.0, %v3912
  %v3914 = vpop.f32.mrf.mxu0
  %3915 = vmatprep.mubr.f32.mxu0 0.0
  %3916 = vmatmul.mubr.f32.gmra.mxu0 %v3658
  %v3917 = vpop.f32.mrf.mxu0
  %v3918 = vadd.f32 0.0, %v3917
  %v3919 = vpop.f32.mrf.mxu0
  %3920 = vmatprep.mubr.f32.mxu0 0.0
  %3921 = vmatmul.mubr.f32.gmra.mxu0 %v3661
  %v3922 = vpop.f32.mrf.mxu0
  %v3923 = vadd.f32 0.0, %v3922
  %v3924 = vpop.f32.mrf.mxu0
  %3925 = vmatprep.mubr.f32.mxu0 0.0
  %3926 = vmatmul.mubr.f32.gmra.mxu0 %v3664
  %v3927 = vpop.f32.mrf.mxu0
  %v3928 = vadd.f32 0.0, %v3927
  %v3929 = vpop.f32.mrf.mxu0
  %3930 = vdwg.mxu0
  %v3931 = vadd.f32 %v3423, %v3733
  %v3932 = vadd.f32 %v3424, %v3738
  %v3933 = vadd.f32 %v3425, %v3743
  %v3934 = vadd.f32 %v3426, %v3748
  %v3935 = vadd.f32 %v3427, %v3753
  %v3936 = vadd.f32 %v3428, %v3758
  %v3937 = vadd.f32 %v3429, %v3763
  %v3938 = vadd.f32 %v3430, %v3768
  %v3939 = vadd.f32 %v3431, %v3773
  %v3940 = vadd.f32 %v3432, %v3778
  %v3941 = vadd.f32 %v3433, %v3783
  %v3942 = vadd.f32 %v3434, %v3788
  %v3943 = vadd.f32 %v3435, %v3793
  %v3944 = vadd.f32 %v3436, %v3798
  %v3945 = vadd.f32 %v3437, %v3803
  %v3946 = vadd.f32 %v3438, %v3808
  %v3947 = vadd.f32 %v3439, %v3813
  %v3948 = vadd.f32 %v3440, %v3818
  %v3949 = vadd.f32 %v3441, %v3823
  %v3950 = vadd.f32 %v3442, %v3828
  %v3951 = vadd.f32 %v3443, %v3833
  %v3952 = vadd.f32 %v3444, %v3838
  %v3953 = vadd.f32 %v3445, %v3843
  %v3954 = vadd.f32 %v3446, %v3848
  %v3955 = vadd.f32 %v3447, %v3853
  %v3956 = vadd.f32 %v3448, %v3858
  %v3957 = vadd.f32 %v3449, %v3863
  %v3958 = vadd.f32 %v3450, %v3868
  %v3959 = vadd.f32 %v3451, %v3873
  %v3960 = vadd.f32 %v3452, %v3878
  %v3961 = vadd.f32 %v3453, %v3883
  %v3962 = vadd.f32 %v3454, %v3888
  %v3963 = vadd.f32 %v3455, %v3893
  %v3964 = vadd.f32 %v3456, %v3898
  %v3965 = vadd.f32 %v3457, %v3903
  %v3966 = vadd.f32 %v3458, %v3908
  %v3967 = vadd.f32 %v3459, %v3913
  %v3968 = vadd.f32 %v3460, %v3918
  %v3969 = vadd.f32 %v3461, %v3923
  %v3970 = vadd.f32 %v3462, %v3928
  %s3971 = scalar_lea.vmem %s1, 64
  %v3972 = vld [vmem:[%s3971] sm:$0xff]
  %3973 = vmatprep.subr.mxu0 0.0
  %3974 = vmatpush1.msra.mxu0 0.0
  %3975 = vmatprep.subr.mxu0 0.0
  %3976 = vmatpush1.msra.mxu0 0.0
  %3977 = vmatprep.subr.mxu0 0.0
  %3978 = vmatpush1.msra.mxu0 0.0
  %3979 = vmatprep.subr.mxu0 0.0
  %3980 = vmatpush1.msra.mxu0 0.0
  %3981 = vmatprep.subr.mxu0 0.0
  %3982 = vmatpush1.msra.mxu0 0.0
  %3983 = vmatprep.subr.mxu0 0.0
  %3984 = vmatpush1.msra.mxu0 0.0
  %3985 = vmatprep.subr.mxu0 0.0
  %3986 = vmatpush1.msra.mxu0 0.0
  %3987 = vmatprep.subr.mxu0 0.0
  %3988 = vmatpush1.msra.mxu0 0.0
  %3989 = vmatprep.subr.mxu0 0.0
  %3990 = vmatpush1.msra.mxu0 0.0
  %3991 = vmatprep.subr.mxu0 0.0
  %3992 = vmatpush1.msra.mxu0 0.0
  %3993 = vmatprep.subr.mxu0 0.0
  %3994 = vmatpush1.msra.mxu0 0.0
  %3995 = vmatprep.subr.mxu0 0.0
  %3996 = vmatpush1.msra.mxu0 0.0
  %3997 = vmatprep.subr.mxu0 0.0
  %3998 = vmatpush1.msra.mxu0 0.0
  %3999 = vmatprep.subr.mxu0 0.0
  %4000 = vmatpush1.msra.mxu0 0.0
  %4001 = vmatprep.subr.mxu0 0.0
  %4002 = vmatpush1.msra.mxu0 0.0
  %4003 = vmatprep.subr.mxu0 0.0
  %4004 = vmatpush1.msra.mxu0 %v3972
  %4005 = vmatprep.subr.mxu0 0.0
  %4006 = vmatpush2.msra.mxu0 0.0
  %4007 = vmatprep.subr.mxu0 0.0
  %4008 = vmatpush2.msra.mxu0 0.0
  %4009 = vmatprep.subr.mxu0 0.0
  %4010 = vmatpush2.msra.mxu0 0.0
  %4011 = vmatprep.subr.mxu0 0.0
  %4012 = vmatpush2.msra.mxu0 0.0
  %4013 = vmatprep.subr.mxu0 0.0
  %4014 = vmatpush2.msra.mxu0 0.0
  %4015 = vmatprep.subr.mxu0 0.0
  %4016 = vmatpush2.msra.mxu0 0.0
  %4017 = vmatprep.subr.mxu0 0.0
  %4018 = vmatpush2.msra.mxu0 0.0
  %4019 = vmatprep.subr.mxu0 0.0
  %4020 = vmatpush2.msra.mxu0 0.0
  %4021 = vmatprep.subr.mxu0 0.0
  %4022 = vmatpush2.msra.mxu0 0.0
  %4023 = vmatprep.subr.mxu0 0.0
  %4024 = vmatpush2.msra.mxu0 0.0
  %4025 = vmatprep.subr.mxu0 0.0
  %4026 = vmatpush2.msra.mxu0 0.0
  %4027 = vmatprep.subr.mxu0 0.0
  %4028 = vmatpush2.msra.mxu0 0.0
  %4029 = vmatprep.subr.mxu0 0.0
  %4030 = vmatpush2.msra.mxu0 0.0
  %4031 = vmatprep.subr.mxu0 0.0
  %4032 = vmatpush2.msra.mxu0 0.0
  %4033 = vmatprep.subr.mxu0 0.0
  %4034 = vmatpush2.msra.mxu0 0.0
  %4035 = vmatprep.subr.mxu0 0.0
  %4036 = vmatpush2.msra.mxu0 0.0
  %4037 = vmatprep.mubr.f32.mxu0 0.0
  %4038 = vmatmul.mubr.f32.gmra.mxu0 %v542
  %v4039 = vpop.f32.mrf.mxu0
  %v4040 = vadd.f32 0.0, %v4039
  %v4041 = vpop.f32.mrf.mxu0
  %4042 = vmatprep.mubr.f32.mxu0 0.0
  %4043 = vmatmul.mubr.f32.gmra.mxu0 %v545
  %v4044 = vpop.f32.mrf.mxu0
  %v4045 = vadd.f32 0.0, %v4044
  %v4046 = vpop.f32.mrf.mxu0
  %4047 = vmatprep.mubr.f32.mxu0 0.0
  %4048 = vmatmul.mubr.f32.gmra.mxu0 %v548
  %v4049 = vpop.f32.mrf.mxu0
  %v4050 = vadd.f32 0.0, %v4049
  %v4051 = vpop.f32.mrf.mxu0
  %4052 = vmatprep.mubr.f32.mxu0 0.0
  %4053 = vmatmul.mubr.f32.gmra.mxu0 %v551
  %v4054 = vpop.f32.mrf.mxu0
  %v4055 = vadd.f32 0.0, %v4054
  %v4056 = vpop.f32.mrf.mxu0
  %4057 = vmatprep.mubr.f32.mxu0 0.0
  %4058 = vmatmul.mubr.f32.gmra.mxu0 %v554
  %v4059 = vpop.f32.mrf.mxu0
  %v4060 = vadd.f32 0.0, %v4059
  %v4061 = vpop.f32.mrf.mxu0
  %4062 = vmatprep.mubr.f32.mxu0 0.0
  %4063 = vmatmul.mubr.f32.gmra.mxu0 %v557
  %v4064 = vpop.f32.mrf.mxu0
  %v4065 = vadd.f32 0.0, %v4064
  %v4066 = vpop.f32.mrf.mxu0
  %4067 = vmatprep.mubr.f32.mxu0 0.0
  %4068 = vmatmul.mubr.f32.gmra.mxu0 %v560
  %v4069 = vpop.f32.mrf.mxu0
  %v4070 = vadd.f32 0.0, %v4069
  %v4071 = vpop.f32.mrf.mxu0
  %4072 = vmatprep.mubr.f32.mxu0 0.0
  %4073 = vmatmul.mubr.f32.gmra.mxu0 %v563
  %v4074 = vpop.f32.mrf.mxu0
  %v4075 = vadd.f32 0.0, %v4074
  %v4076 = vpop.f32.mrf.mxu0
  %4077 = vmatprep.mubr.f32.mxu0 0.0
  %4078 = vmatmul.mubr.f32.gmra.mxu0 %v566
  %v4079 = vpop.f32.mrf.mxu0
  %v4080 = vadd.f32 0.0, %v4079
  %v4081 = vpop.f32.mrf.mxu0
  %4082 = vmatprep.mubr.f32.mxu0 0.0
  %4083 = vmatmul.mubr.f32.gmra.mxu0 %v569
  %v4084 = vpop.f32.mrf.mxu0
  %v4085 = vadd.f32 0.0, %v4084
  %v4086 = vpop.f32.mrf.mxu0
  %4087 = vmatprep.mubr.f32.mxu0 0.0
  %4088 = vmatmul.mubr.f32.gmra.mxu0 %v572
  %v4089 = vpop.f32.mrf.mxu0
  %v4090 = vadd.f32 0.0, %v4089
  %v4091 = vpop.f32.mrf.mxu0
  %4092 = vmatprep.mubr.f32.mxu0 0.0
  %4093 = vmatmul.mubr.f32.gmra.mxu0 %v575
  %v4094 = vpop.f32.mrf.mxu0
  %v4095 = vadd.f32 0.0, %v4094
  %v4096 = vpop.f32.mrf.mxu0
  %4097 = vmatprep.mubr.f32.mxu0 0.0
  %4098 = vmatmul.mubr.f32.gmra.mxu0 %v578
  %v4099 = vpop.f32.mrf.mxu0
  %v4100 = vadd.f32 0.0, %v4099
  %v4101 = vpop.f32.mrf.mxu0
  %4102 = vmatprep.mubr.f32.mxu0 0.0
  %4103 = vmatmul.mubr.f32.gmra.mxu0 %v581
  %v4104 = vpop.f32.mrf.mxu0
  %v4105 = vadd.f32 0.0, %v4104
  %v4106 = vpop.f32.mrf.mxu0
  %4107 = vmatprep.mubr.f32.mxu0 0.0
  %4108 = vmatmul.mubr.f32.gmra.mxu0 %v584
  %v4109 = vpop.f32.mrf.mxu0
  %v4110 = vadd.f32 0.0, %v4109
  %v4111 = vpop.f32.mrf.mxu0
  %4112 = vmatprep.mubr.f32.mxu0 0.0
  %4113 = vmatmul.mubr.f32.gmra.mxu0 %v587
  %v4114 = vpop.f32.mrf.mxu0
  %v4115 = vadd.f32 0.0, %v4114
  %v4116 = vpop.f32.mrf.mxu0
  %4117 = vmatprep.mubr.f32.mxu0 0.0
  %4118 = vmatmul.mubr.f32.gmra.mxu0 %v590
  %v4119 = vpop.f32.mrf.mxu0
  %v4120 = vadd.f32 0.0, %v4119
  %v4121 = vpop.f32.mrf.mxu0
  %4122 = vmatprep.mubr.f32.mxu0 0.0
  %4123 = vmatmul.mubr.f32.gmra.mxu0 %v593
  %v4124 = vpop.f32.mrf.mxu0
  %v4125 = vadd.f32 0.0, %v4124
  %v4126 = vpop.f32.mrf.mxu0
  %4127 = vmatprep.mubr.f32.mxu0 0.0
  %4128 = vmatmul.mubr.f32.gmra.mxu0 %v596
  %v4129 = vpop.f32.mrf.mxu0
  %v4130 = vadd.f32 0.0, %v4129
  %v4131 = vpop.f32.mrf.mxu0
  %4132 = vmatprep.mubr.f32.mxu0 0.0
  %4133 = vmatmul.mubr.f32.gmra.mxu0 %v599
  %v4134 = vpop.f32.mrf.mxu0
  %v4135 = vadd.f32 0.0, %v4134
  %v4136 = vpop.f32.mrf.mxu0
  %4137 = vmatprep.mubr.f32.mxu0 0.0
  %4138 = vmatmul.mubr.f32.gmra.mxu0 %v602
  %v4139 = vpop.f32.mrf.mxu0
  %v4140 = vadd.f32 0.0, %v4139
  %v4141 = vpop.f32.mrf.mxu0
  %4142 = vmatprep.mubr.f32.mxu0 0.0
  %4143 = vmatmul.mubr.f32.gmra.mxu0 %v605
  %v4144 = vpop.f32.mrf.mxu0
  %v4145 = vadd.f32 0.0, %v4144
  %v4146 = vpop.f32.mrf.mxu0
  %4147 = vmatprep.mubr.f32.mxu0 0.0
  %4148 = vmatmul.mubr.f32.gmra.mxu0 %v608
  %v4149 = vpop.f32.mrf.mxu0
  %v4150 = vadd.f32 0.0, %v4149
  %v4151 = vpop.f32.mrf.mxu0
  %4152 = vmatprep.mubr.f32.mxu0 0.0
  %4153 = vmatmul.mubr.f32.gmra.mxu0 %v611
  %v4154 = vpop.f32.mrf.mxu0
  %v4155 = vadd.f32 0.0, %v4154
  %v4156 = vpop.f32.mrf.mxu0
  %4157 = vmatprep.mubr.f32.mxu0 0.0
  %4158 = vmatmul.mubr.f32.gmra.mxu0 %v614
  %v4159 = vpop.f32.mrf.mxu0
  %v4160 = vadd.f32 0.0, %v4159
  %v4161 = vpop.f32.mrf.mxu0
  %4162 = vmatprep.mubr.f32.mxu0 0.0
  %4163 = vmatmul.mubr.f32.gmra.mxu0 %v617
  %v4164 = vpop.f32.mrf.mxu0
  %v4165 = vadd.f32 0.0, %v4164
  %v4166 = vpop.f32.mrf.mxu0
  %4167 = vmatprep.mubr.f32.mxu0 0.0
  %4168 = vmatmul.mubr.f32.gmra.mxu0 %v620
  %v4169 = vpop.f32.mrf.mxu0
  %v4170 = vadd.f32 0.0, %v4169
  %v4171 = vpop.f32.mrf.mxu0
  %4172 = vmatprep.mubr.f32.mxu0 0.0
  %4173 = vmatmul.mubr.f32.gmra.mxu0 %v623
  %v4174 = vpop.f32.mrf.mxu0
  %v4175 = vadd.f32 0.0, %v4174
  %v4176 = vpop.f32.mrf.mxu0
  %4177 = vmatprep.mubr.f32.mxu0 0.0
  %4178 = vmatmul.mubr.f32.gmra.mxu0 %v626
  %v4179 = vpop.f32.mrf.mxu0
  %v4180 = vadd.f32 0.0, %v4179
  %v4181 = vpop.f32.mrf.mxu0
  %4182 = vmatprep.mubr.f32.mxu0 0.0
  %4183 = vmatmul.mubr.f32.gmra.mxu0 %v629
  %v4184 = vpop.f32.mrf.mxu0
  %v4185 = vadd.f32 0.0, %v4184
  %v4186 = vpop.f32.mrf.mxu0
  %4187 = vmatprep.mubr.f32.mxu0 0.0
  %4188 = vmatmul.mubr.f32.gmra.mxu0 %v632
  %v4189 = vpop.f32.mrf.mxu0
  %v4190 = vadd.f32 0.0, %v4189
  %v4191 = vpop.f32.mrf.mxu0
  %4192 = vmatprep.mubr.f32.mxu0 0.0
  %4193 = vmatmul.mubr.f32.gmra.mxu0 %v635
  %v4194 = vpop.f32.mrf.mxu0
  %v4195 = vadd.f32 0.0, %v4194
  %v4196 = vpop.f32.mrf.mxu0
  %4197 = vmatprep.mubr.f32.mxu0 0.0
  %4198 = vmatmul.mubr.f32.gmra.mxu0 %v638
  %v4199 = vpop.f32.mrf.mxu0
  %v4200 = vadd.f32 0.0, %v4199
  %v4201 = vpop.f32.mrf.mxu0
  %4202 = vmatprep.mubr.f32.mxu0 0.0
  %4203 = vmatmul.mubr.f32.gmra.mxu0 %v641
  %v4204 = vpop.f32.mrf.mxu0
  %v4205 = vadd.f32 0.0, %v4204
  %v4206 = vpop.f32.mrf.mxu0
  %4207 = vmatprep.mubr.f32.mxu0 0.0
  %4208 = vmatmul.mubr.f32.gmra.mxu0 %v644
  %v4209 = vpop.f32.mrf.mxu0
  %v4210 = vadd.f32 0.0, %v4209
  %v4211 = vpop.f32.mrf.mxu0
  %4212 = vmatprep.mubr.f32.mxu0 0.0
  %4213 = vmatmul.mubr.f32.gmra.mxu0 %v647
  %v4214 = vpop.f32.mrf.mxu0
  %v4215 = vadd.f32 0.0, %v4214
  %v4216 = vpop.f32.mrf.mxu0
  %4217 = vmatprep.mubr.f32.mxu0 0.0
  %4218 = vmatmul.mubr.f32.gmra.mxu0 %v650
  %v4219 = vpop.f32.mrf.mxu0
  %v4220 = vadd.f32 0.0, %v4219
  %v4221 = vpop.f32.mrf.mxu0
  %4222 = vmatprep.mubr.f32.mxu0 0.0
  %4223 = vmatmul.mubr.f32.gmra.mxu0 %v653
  %v4224 = vpop.f32.mrf.mxu0
  %v4225 = vadd.f32 0.0, %v4224
  %v4226 = vpop.f32.mrf.mxu0
  %4227 = vmatprep.mubr.f32.mxu0 0.0
  %4228 = vmatmul.mubr.f32.gmra.mxu0 %v656
  %v4229 = vpop.f32.mrf.mxu0
  %v4230 = vadd.f32 0.0, %v4229
  %v4231 = vpop.f32.mrf.mxu0
  %4232 = vmatprep.mubr.f32.mxu0 0.0
  %4233 = vmatmul.mubr.f32.gmra.mxu0 %v539
  %v4234 = vpop.f32.mrf.mxu0
  %v4235 = vadd.f32 0.0, %v4234
  %v4236 = vpop.f32.mrf.mxu0
  %4237 = vdwg.mxu0
  %v4238 = vadd.f32 %v3931, %v4040
  %v4239 = vadd.f32 %v3932, %v4045
  %v4240 = vadd.f32 %v3933, %v4050
  %v4241 = vadd.f32 %v3934, %v4055
  %v4242 = vadd.f32 %v3935, %v4060
  %v4243 = vadd.f32 %v3936, %v4065
  %v4244 = vadd.f32 %v3937, %v4070
  %v4245 = vadd.f32 %v3938, %v4075
  %v4246 = vadd.f32 %v3939, %v4080
  %v4247 = vadd.f32 %v3940, %v4085
  %v4248 = vadd.f32 %v3941, %v4090
  %v4249 = vadd.f32 %v3942, %v4095
  %v4250 = vadd.f32 %v3943, %v4100
  %v4251 = vadd.f32 %v3944, %v4105
  %v4252 = vadd.f32 %v3945, %v4110
  %v4253 = vadd.f32 %v3946, %v4115
  %v4254 = vadd.f32 %v3947, %v4120
  %v4255 = vadd.f32 %v3948, %v4125
  %v4256 = vadd.f32 %v3949, %v4130
  %v4257 = vadd.f32 %v3950, %v4135
  %v4258 = vadd.f32 %v3951, %v4140
  %v4259 = vadd.f32 %v3952, %v4145
  %v4260 = vadd.f32 %v3953, %v4150
  %v4261 = vadd.f32 %v3954, %v4155
  %v4262 = vadd.f32 %v3955, %v4160
  %v4263 = vadd.f32 %v3956, %v4165
  %v4264 = vadd.f32 %v3957, %v4170
  %v4265 = vadd.f32 %v3958, %v4175
  %v4266 = vadd.f32 %v3959, %v4180
  %v4267 = vadd.f32 %v3960, %v4185
  %v4268 = vadd.f32 %v3961, %v4190
  %v4269 = vadd.f32 %v3962, %v4195
  %v4270 = vadd.f32 %v3963, %v4200
  %v4271 = vadd.f32 %v3964, %v4205
  %v4272 = vadd.f32 %v3965, %v4210
  %v4273 = vadd.f32 %v3966, %v4215
  %v4274 = vadd.f32 %v3967, %v4220
  %v4275 = vadd.f32 %v3968, %v4225
  %v4276 = vadd.f32 %v3969, %v4230
  %v4277 = vadd.f32 %v3970, %v4235
  %v4278 = vld [vmem:[%s2] sm:$0x1]
  %v4280 = vlaneseq
  %v4281 = vshrl.u32 %v4280, 7
  %v4282 = vsub.s32 0, %v4281
  %v4283 = vrot.slane %v4278, %v4282
  %v4285 = vadd.f32 %v4238, %v4283
  %v4286 = vadd.f32 %v4239, %v4283
  %v4287 = vadd.f32 %v4240, %v4283
  %v4288 = vadd.f32 %v4241, %v4283
  %v4289 = vadd.f32 %v4242, %v4283
  %v4290 = vadd.f32 %v4243, %v4283
  %v4291 = vadd.f32 %v4244, %v4283
  %v4292 = vadd.f32 %v4245, %v4283
  %v4293 = vadd.f32 %v4246, %v4283
  %v4294 = vadd.f32 %v4247, %v4283
  %v4295 = vadd.f32 %v4248, %v4283
  %v4296 = vadd.f32 %v4249, %v4283
  %v4297 = vadd.f32 %v4250, %v4283
  %v4298 = vadd.f32 %v4251, %v4283
  %v4299 = vadd.f32 %v4252, %v4283
  %v4300 = vadd.f32 %v4253, %v4283
  %v4301 = vadd.f32 %v4254, %v4283
  %v4302 = vadd.f32 %v4255, %v4283
  %v4303 = vadd.f32 %v4256, %v4283
  %v4304 = vadd.f32 %v4257, %v4283
  %v4305 = vadd.f32 %v4258, %v4283
  %v4306 = vadd.f32 %v4259, %v4283
  %v4307 = vadd.f32 %v4260, %v4283
  %v4308 = vadd.f32 %v4261, %v4283
  %v4309 = vadd.f32 %v4262, %v4283
  %v4310 = vadd.f32 %v4263, %v4283
  %v4311 = vadd.f32 %v4264, %v4283
  %v4312 = vadd.f32 %v4265, %v4283
  %v4313 = vadd.f32 %v4266, %v4283
  %v4314 = vadd.f32 %v4267, %v4283
  %v4315 = vadd.f32 %v4268, %v4283
  %v4316 = vadd.f32 %v4269, %v4283
  %v4317 = vadd.f32 %v4270, %v4283
  %v4318 = vadd.f32 %v4271, %v4283
  %v4319 = vadd.f32 %v4272, %v4283
  %v4320 = vadd.f32 %v4273, %v4283
  %v4321 = vadd.f32 %v4274, %v4283
  %v4322 = vadd.f32 %v4275, %v4283
  %v4323 = vadd.f32 %v4276, %v4283
  %v4324 = vadd.f32 %v4277, %v4283
  %v4325 = vmax.f32 %v4285, 0.0
  %v4326 = vmax.f32 %v4286, 0.0
  %v4327 = vmax.f32 %v4287, 0.0
  %v4328 = vmax.f32 %v4288, 0.0
  %v4329 = vmax.f32 %v4289, 0.0
  %v4330 = vmax.f32 %v4290, 0.0
  %v4331 = vmax.f32 %v4291, 0.0
  %v4332 = vmax.f32 %v4292, 0.0
  %v4333 = vmax.f32 %v4293, 0.0
  %v4334 = vmax.f32 %v4294, 0.0
  %v4335 = vmax.f32 %v4295, 0.0
  %v4336 = vmax.f32 %v4296, 0.0
  %v4337 = vmax.f32 %v4297, 0.0
  %v4338 = vmax.f32 %v4298, 0.0
  %v4339 = vmax.f32 %v4299, 0.0
  %v4340 = vmax.f32 %v4300, 0.0
  %v4341 = vmax.f32 %v4301, 0.0
  %v4342 = vmax.f32 %v4302, 0.0
  %v4343 = vmax.f32 %v4303, 0.0
  %v4344 = vmax.f32 %v4304, 0.0
  %v4345 = vmax.f32 %v4305, 0.0
  %v4346 = vmax.f32 %v4306, 0.0
  %v4347 = vmax.f32 %v4307, 0.0
  %v4348 = vmax.f32 %v4308, 0.0
  %v4349 = vmax.f32 %v4309, 0.0
  %v4350 = vmax.f32 %v4310, 0.0
  %v4351 = vmax.f32 %v4311, 0.0
  %v4352 = vmax.f32 %v4312, 0.0
  %v4353 = vmax.f32 %v4313, 0.0
  %v4354 = vmax.f32 %v4314, 0.0
  %v4355 = vmax.f32 %v4315, 0.0
  %v4356 = vmax.f32 %v4316, 0.0
  %v4357 = vmax.f32 %v4317, 0.0
  %v4358 = vmax.f32 %v4318, 0.0
  %v4359 = vmax.f32 %v4319, 0.0
  %v4360 = vmax.f32 %v4320, 0.0
  %v4361 = vmax.f32 %v4321, 0.0
  %v4362 = vmax.f32 %v4322, 0.0
  %v4363 = vmax.f32 %v4323, 0.0
  %v4364 = vmax.f32 %v4324, 0.0
  %v4365 = vld [vmem:[%s3] sm:$0xff]
  %v4366 = vld [vmem:[%s3 + $0x8] sm:$0x1]
  %v4367 = vrot.slane %v4325, 1
  %v4368 = vrot.slane %v4326, 1
  %v4369 = vrot.slane %v4327, 1
  %v4370 = vrot.slane %v4328, 1
  %v4371 = vrot.slane %v4329, 1
  %v4372 = vrot.slane %v4330, 1
  %v4373 = vrot.slane %v4331, 1
  %v4374 = vrot.slane %v4332, 1
  %v4375 = vrot.slane %v4333, 1
  %v4376 = vrot.slane %v4334, 1
  %v4377 = vrot.slane %v4335, 1
  %v4378 = vrot.slane %v4336, 1
  %v4379 = vrot.slane %v4337, 1
  %v4380 = vrot.slane %v4338, 1
  %v4381 = vrot.slane %v4339, 1
  %v4382 = vrot.slane %v4340, 1
  %v4383 = vrot.slane %v4341, 1
  %v4384 = vrot.slane %v4342, 1
  %v4385 = vrot.slane %v4343, 1
  %v4386 = vrot.slane %v4344, 1
  %v4387 = vrot.slane %v4345, 1
  %v4388 = vrot.slane %v4346, 1
  %v4389 = vrot.slane %v4347, 1
  %v4390 = vrot.slane %v4348, 1
  %v4391 = vrot.slane %v4349, 1
  %v4392 = vrot.slane %v4350, 1
  %v4393 = vrot.slane %v4351, 1
  %v4394 = vrot.slane %v4352, 1
  %v4395 = vrot.slane %v4353, 1
  %v4396 = vrot.slane %v4354, 1
  %v4397 = vrot.slane %v4355, 1
  %v4398 = vrot.slane %v4356, 1
  %v4399 = vrot.slane %v4357, 1
  %v4400 = vrot.slane %v4358, 1
  %v4401 = vrot.slane %v4359, 1
  %v4402 = vrot.slane %v4360, 1
  %v4403 = vrot.slane %v4361, 1
  %v4404 = vrot.slane %v4362, 1
  %v4405 = vrot.slane %v4363, 1
  %v4406 = vrot.slane %v4364, 1
  %v4407 = vsel %vm109, %v4405, %v4406
  %v4408 = vsel %vm109, %v4404, %v4405
  %v4409 = vsel %vm109, %v4403, %v4404
  %v4410 = vsel %vm109, %v4402, %v4403
  %v4411 = vsel %vm109, %v4401, %v4402
  %v4412 = vsel %vm109, %v4400, %v4401
  %v4413 = vsel %vm109, %v4399, %v4400
  %v4414 = vsel %vm109, %v4398, %v4399
  %v4415 = vsel %vm109, %v4397, %v4398
  %v4416 = vsel %vm109, %v4396, %v4397
  %v4417 = vsel %vm109, %v4395, %v4396
  %v4418 = vsel %vm109, %v4394, %v4395
  %v4419 = vsel %vm109, %v4393, %v4394
  %v4420 = vsel %vm109, %v4392, %v4393
  %v4421 = vsel %vm109, %v4391, %v4392
  %v4422 = vsel %vm109, %v4390, %v4391
  %v4423 = vsel %vm109, %v4389, %v4390
  %v4424 = vsel %vm109, %v4388, %v4389
  %v4425 = vsel %vm109, %v4387, %v4388
  %v4426 = vsel %vm109, %v4386, %v4387
  %v4427 = vsel %vm109, %v4385, %v4386
  %v4428 = vsel %vm109, %v4384, %v4385
  %v4429 = vsel %vm109, %v4383, %v4384
  %v4430 = vsel %vm109, %v4382, %v4383
  %v4431 = vsel %vm109, %v4381, %v4382
  %v4432 = vsel %vm109, %v4380, %v4381
  %v4433 = vsel %vm109, %v4379, %v4380
  %v4434 = vsel %vm109, %v4378, %v4379
  %v4435 = vsel %vm109, %v4377, %v4378
  %v4436 = vsel %vm109, %v4376, %v4377
  %v4437 = vsel %vm109, %v4375, %v4376
  %v4438 = vsel %vm109, %v4374, %v4375
  %v4439 = vsel %vm109, %v4373, %v4374
  %v4440 = vsel %vm109, %v4372, %v4373
  %v4441 = vsel %vm109, %v4371, %v4372
  %v4442 = vsel %vm109, %v4370, %v4371
  %v4443 = vsel %vm109, %v4369, %v4370
  %v4444 = vsel %vm109, %v4368, %v4369
  %v4445 = vsel %vm109, %v4367, %v4368
  %v4446 = vsel %vm109, %v4406, %v4367
  %s4447 = scalar_lea.vmem %s3, 16
  %v4448 = vld [vmem:[%s4447] sm:$0xff]
  %v4449 = vld [vmem:[%s4447 + $0x8] sm:$0x1]
  %vm4450 = vcmask 72704
  %v4452 = vsel %vm4450, %v4445, 0
  %v4455 = vsel %vm4450, %v4444, 0
  %v4458 = vsel %vm4450, %v4443, 0
  %v4461 = vsel %vm4450, %v4442, 0
  %v4464 = vsel %vm4450, %v4441, 0
  %v4467 = vsel %vm4450, %v4440, 0
  %v4470 = vsel %vm4450, %v4439, 0
  %v4473 = vsel %vm4450, %v4438, 0
  %v4476 = vsel %vm4450, %v4437, 0
  %v4479 = vsel %vm4450, %v4436, 0
  %v4482 = vsel %vm4450, %v4435, 0
  %v4485 = vsel %vm4450, %v4434, 0
  %v4488 = vsel %vm4450, %v4433, 0
  %v4491 = vsel %vm4450, %v4432, 0
  %v4494 = vsel %vm4450, %v4431, 0
  %v4497 = vsel %vm4450, %v4430, 0
  %v4500 = vsel %vm4450, %v4429, 0
  %v4503 = vsel %vm4450, %v4428, 0
  %v4506 = vsel %vm4450, %v4427, 0
  %v4509 = vsel %vm4450, %v4426, 0
  %v4512 = vsel %vm4450, %v4425, 0
  %v4515 = vsel %vm4450, %v4424, 0
  %v4518 = vsel %vm4450, %v4423, 0
  %v4521 = vsel %vm4450, %v4422, 0
  %v4524 = vsel %vm4450, %v4421, 0
  %v4527 = vsel %vm4450, %v4420, 0
  %v4530 = vsel %vm4450, %v4419, 0
  %v4533 = vsel %vm4450, %v4418, 0
  %v4536 = vsel %vm4450, %v4417, 0
  %v4539 = vsel %vm4450, %v4416, 0
  %v4542 = vsel %vm4450, %v4415, 0
  %v4545 = vsel %vm4450, %v4414, 0
  %v4548 = vsel %vm4450, %v4413, 0
  %v4551 = vsel %vm4450, %v4412, 0
  %v4554 = vsel %vm4450, %v4411, 0
  %v4557 = vsel %vm4450, %v4410, 0
  %v4560 = vsel %vm4450, %v4409, 0
  %v4563 = vsel %vm4450, %v4408, 0
  %v4566 = vsel %vm4450, %v4407, 0
  %v4569 = vsel %vm4450, %v4446, 0
  %vm4571 = vcmask 1040384
  %v4573 = vsel %vm4571, %v4449, 0
  %4575 = vmatprep.subr.mxu0 0.0
  %4576 = vmatpush1.msra.mxu0 0.0
  %4577 = vmatprep.subr.mxu0 0.0
  %4578 = vmatpush1.msra.mxu0 0.0
  %4579 = vmatprep.subr.mxu0 0.0
  %4580 = vmatpush1.msra.mxu0 0.0
  %4581 = vmatprep.subr.mxu0 0.0
  %4582 = vmatpush1.msra.mxu0 0.0
  %4583 = vmatprep.subr.mxu0 0.0
  %4584 = vmatpush1.msra.mxu0 0.0
  %4585 = vmatprep.subr.mxu0 0.0
  %4586 = vmatpush1.msra.mxu0 0.0
  %4587 = vmatprep.subr.mxu0 0.0
  %4588 = vmatpush1.msra.mxu0 0.0
  %4589 = vmatprep.subr.mxu0 0.0
  %4590 = vmatpush1.msra.mxu0 0.0
  %4591 = vmatprep.subr.mxu0 0.0
  %4592 = vmatpush1.msra.mxu0 0.0
  %4593 = vmatprep.subr.mxu0 0.0
  %4594 = vmatpush1.msra.mxu0 0.0
  %4595 = vmatprep.subr.mxu0 0.0
  %4596 = vmatpush1.msra.mxu0 0.0
  %4597 = vmatprep.subr.mxu0 0.0
  %4598 = vmatpush1.msra.mxu0 0.0
  %4599 = vmatprep.subr.mxu0 0.0
  %4600 = vmatpush1.msra.mxu0 0.0
  %4601 = vmatprep.subr.mxu0 0.0
  %4602 = vmatpush1.msra.mxu0 0.0
  %4603 = vmatprep.subr.mxu0 0.0
  %4604 = vmatpush1.msra.mxu0 %v4573
  %4605 = vmatprep.subr.mxu0 0.0
  %4606 = vmatpush1.msra.mxu0 %v4448
  %4607 = vmatprep.subr.mxu0 0.0
  %4608 = vmatpush2.msra.mxu0 0.0
  %4609 = vmatprep.subr.mxu0 0.0
  %4610 = vmatpush2.msra.mxu0 0.0
  %4611 = vmatprep.subr.mxu0 0.0
  %4612 = vmatpush2.msra.mxu0 0.0
  %4613 = vmatprep.subr.mxu0 0.0
  %4614 = vmatpush2.msra.mxu0 0.0
  %4615 = vmatprep.subr.mxu0 0.0
  %4616 = vmatpush2.msra.mxu0 0.0
  %4617 = vmatprep.subr.mxu0 0.0
  %4618 = vmatpush2.msra.mxu0 0.0
  %4619 = vmatprep.subr.mxu0 0.0
  %4620 = vmatpush2.msra.mxu0 0.0
  %4621 = vmatprep.subr.mxu0 0.0
  %4622 = vmatpush2.msra.mxu0 0.0
  %4623 = vmatprep.subr.mxu0 0.0
  %4624 = vmatpush2.msra.mxu0 0.0
  %4625 = vmatprep.subr.mxu0 0.0
  %4626 = vmatpush2.msra.mxu0 0.0
  %4627 = vmatprep.subr.mxu0 0.0
  %4628 = vmatpush2.msra.mxu0 0.0
  %4629 = vmatprep.subr.mxu0 0.0
  %4630 = vmatpush2.msra.mxu0 0.0
  %4631 = vmatprep.subr.mxu0 0.0
  %4632 = vmatpush2.msra.mxu0 0.0
  %4633 = vmatprep.subr.mxu0 0.0
  %4634 = vmatpush2.msra.mxu0 0.0
  %4635 = vmatprep.subr.mxu0 0.0
  %4636 = vmatpush2.msra.mxu0 0.0
  %4637 = vmatprep.subr.mxu0 0.0
  %4638 = vmatpush2.msra.mxu0 0.0
  %4639 = vmatprep.mubr.f32.mxu0 0.0
  %4640 = vmatmul.mubr.f32.gmra.mxu0 %v4452
  %v4641 = vpop.f32.mrf.mxu0
  %v4642 = vadd.f32 0.0, %v4641
  %v4643 = vpop.f32.mrf.mxu0
  %4644 = vmatprep.mubr.f32.mxu0 0.0
  %4645 = vmatmul.mubr.f32.gmra.mxu0 %v4455
  %v4646 = vpop.f32.mrf.mxu0
  %v4647 = vadd.f32 0.0, %v4646
  %v4648 = vpop.f32.mrf.mxu0
  %4649 = vmatprep.mubr.f32.mxu0 0.0
  %4650 = vmatmul.mubr.f32.gmra.mxu0 %v4458
  %v4651 = vpop.f32.mrf.mxu0
  %v4652 = vadd.f32 0.0, %v4651
  %v4653 = vpop.f32.mrf.mxu0
  %4654 = vmatprep.mubr.f32.mxu0 0.0
  %4655 = vmatmul.mubr.f32.gmra.mxu0 %v4461
  %v4656 = vpop.f32.mrf.mxu0
  %v4657 = vadd.f32 0.0, %v4656
  %v4658 = vpop.f32.mrf.mxu0
  %4659 = vmatprep.mubr.f32.mxu0 0.0
  %4660 = vmatmul.mubr.f32.gmra.mxu0 %v4464
  %v4661 = vpop.f32.mrf.mxu0
  %v4662 = vadd.f32 0.0, %v4661
  %v4663 = vpop.f32.mrf.mxu0
  %4664 = vmatprep.mubr.f32.mxu0 0.0
  %4665 = vmatmul.mubr.f32.gmra.mxu0 %v4467
  %v4666 = vpop.f32.mrf.mxu0
  %v4667 = vadd.f32 0.0, %v4666
  %v4668 = vpop.f32.mrf.mxu0
  %4669 = vmatprep.mubr.f32.mxu0 0.0
  %4670 = vmatmul.mubr.f32.gmra.mxu0 %v4470
  %v4671 = vpop.f32.mrf.mxu0
  %v4672 = vadd.f32 0.0, %v4671
  %v4673 = vpop.f32.mrf.mxu0
  %4674 = vmatprep.mubr.f32.mxu0 0.0
  %4675 = vmatmul.mubr.f32.gmra.mxu0 %v4473
  %v4676 = vpop.f32.mrf.mxu0
  %v4677 = vadd.f32 0.0, %v4676
  %v4678 = vpop.f32.mrf.mxu0
  %4679 = vmatprep.mubr.f32.mxu0 0.0
  %4680 = vmatmul.mubr.f32.gmra.mxu0 %v4476
  %v4681 = vpop.f32.mrf.mxu0
  %v4682 = vadd.f32 0.0, %v4681
  %v4683 = vpop.f32.mrf.mxu0
  %4684 = vmatprep.mubr.f32.mxu0 0.0
  %4685 = vmatmul.mubr.f32.gmra.mxu0 %v4479
  %v4686 = vpop.f32.mrf.mxu0
  %v4687 = vadd.f32 0.0, %v4686
  %v4688 = vpop.f32.mrf.mxu0
  %4689 = vmatprep.mubr.f32.mxu0 0.0
  %4690 = vmatmul.mubr.f32.gmra.mxu0 %v4482
  %v4691 = vpop.f32.mrf.mxu0
  %v4692 = vadd.f32 0.0, %v4691
  %v4693 = vpop.f32.mrf.mxu0
  %4694 = vmatprep.mubr.f32.mxu0 0.0
  %4695 = vmatmul.mubr.f32.gmra.mxu0 %v4485
  %v4696 = vpop.f32.mrf.mxu0
  %v4697 = vadd.f32 0.0, %v4696
  %v4698 = vpop.f32.mrf.mxu0
  %4699 = vmatprep.mubr.f32.mxu0 0.0
  %4700 = vmatmul.mubr.f32.gmra.mxu0 %v4488
  %v4701 = vpop.f32.mrf.mxu0
  %v4702 = vadd.f32 0.0, %v4701
  %v4703 = vpop.f32.mrf.mxu0
  %4704 = vmatprep.mubr.f32.mxu0 0.0
  %4705 = vmatmul.mubr.f32.gmra.mxu0 %v4491
  %v4706 = vpop.f32.mrf.mxu0
  %v4707 = vadd.f32 0.0, %v4706
  %v4708 = vpop.f32.mrf.mxu0
  %4709 = vmatprep.mubr.f32.mxu0 0.0
  %4710 = vmatmul.mubr.f32.gmra.mxu0 %v4494
  %v4711 = vpop.f32.mrf.mxu0
  %v4712 = vadd.f32 0.0, %v4711
  %v4713 = vpop.f32.mrf.mxu0
  %4714 = vmatprep.mubr.f32.mxu0 0.0
  %4715 = vmatmul.mubr.f32.gmra.mxu0 %v4497
  %v4716 = vpop.f32.mrf.mxu0
  %v4717 = vadd.f32 0.0, %v4716
  %v4718 = vpop.f32.mrf.mxu0
  %4719 = vmatprep.mubr.f32.mxu0 0.0
  %4720 = vmatmul.mubr.f32.gmra.mxu0 %v4500
  %v4721 = vpop.f32.mrf.mxu0
  %v4722 = vadd.f32 0.0, %v4721
  %v4723 = vpop.f32.mrf.mxu0
  %4724 = vmatprep.mubr.f32.mxu0 0.0
  %4725 = vmatmul.mubr.f32.gmra.mxu0 %v4503
  %v4726 = vpop.f32.mrf.mxu0
  %v4727 = vadd.f32 0.0, %v4726
  %v4728 = vpop.f32.mrf.mxu0
  %4729 = vmatprep.mubr.f32.mxu0 0.0
  %4730 = vmatmul.mubr.f32.gmra.mxu0 %v4506
  %v4731 = vpop.f32.mrf.mxu0
  %v4732 = vadd.f32 0.0, %v4731
  %v4733 = vpop.f32.mrf.mxu0
  %4734 = vmatprep.mubr.f32.mxu0 0.0
  %4735 = vmatmul.mubr.f32.gmra.mxu0 %v4509
  %v4736 = vpop.f32.mrf.mxu0
  %v4737 = vadd.f32 0.0, %v4736
  %v4738 = vpop.f32.mrf.mxu0
  %4739 = vmatprep.mubr.f32.mxu0 0.0
  %4740 = vmatmul.mubr.f32.gmra.mxu0 %v4512
  %v4741 = vpop.f32.mrf.mxu0
  %v4742 = vadd.f32 0.0, %v4741
  %v4743 = vpop.f32.mrf.mxu0
  %4744 = vmatprep.mubr.f32.mxu0 0.0
  %4745 = vmatmul.mubr.f32.gmra.mxu0 %v4515
  %v4746 = vpop.f32.mrf.mxu0
  %v4747 = vadd.f32 0.0, %v4746
  %v4748 = vpop.f32.mrf.mxu0
  %4749 = vmatprep.mubr.f32.mxu0 0.0
  %4750 = vmatmul.mubr.f32.gmra.mxu0 %v4518
  %v4751 = vpop.f32.mrf.mxu0
  %v4752 = vadd.f32 0.0, %v4751
  %v4753 = vpop.f32.mrf.mxu0
  %4754 = vmatprep.mubr.f32.mxu0 0.0
  %4755 = vmatmul.mubr.f32.gmra.mxu0 %v4521
  %v4756 = vpop.f32.mrf.mxu0
  %v4757 = vadd.f32 0.0, %v4756
  %v4758 = vpop.f32.mrf.mxu0
  %4759 = vmatprep.mubr.f32.mxu0 0.0
  %4760 = vmatmul.mubr.f32.gmra.mxu0 %v4524
  %v4761 = vpop.f32.mrf.mxu0
  %v4762 = vadd.f32 0.0, %v4761
  %v4763 = vpop.f32.mrf.mxu0
  %4764 = vmatprep.mubr.f32.mxu0 0.0
  %4765 = vmatmul.mubr.f32.gmra.mxu0 %v4527
  %v4766 = vpop.f32.mrf.mxu0
  %v4767 = vadd.f32 0.0, %v4766
  %v4768 = vpop.f32.mrf.mxu0
  %4769 = vmatprep.mubr.f32.mxu0 0.0
  %4770 = vmatmul.mubr.f32.gmra.mxu0 %v4530
  %v4771 = vpop.f32.mrf.mxu0
  %v4772 = vadd.f32 0.0, %v4771
  %v4773 = vpop.f32.mrf.mxu0
  %4774 = vmatprep.mubr.f32.mxu0 0.0
  %4775 = vmatmul.mubr.f32.gmra.mxu0 %v4533
  %v4776 = vpop.f32.mrf.mxu0
  %v4777 = vadd.f32 0.0, %v4776
  %v4778 = vpop.f32.mrf.mxu0
  %4779 = vmatprep.mubr.f32.mxu0 0.0
  %4780 = vmatmul.mubr.f32.gmra.mxu0 %v4536
  %v4781 = vpop.f32.mrf.mxu0
  %v4782 = vadd.f32 0.0, %v4781
  %v4783 = vpop.f32.mrf.mxu0
  %4784 = vmatprep.mubr.f32.mxu0 0.0
  %4785 = vmatmul.mubr.f32.gmra.mxu0 %v4539
  %v4786 = vpop.f32.mrf.mxu0
  %v4787 = vadd.f32 0.0, %v4786
  %v4788 = vpop.f32.mrf.mxu0
  %4789 = vmatprep.mubr.f32.mxu0 0.0
  %4790 = vmatmul.mubr.f32.gmra.mxu0 %v4542
  %v4791 = vpop.f32.mrf.mxu0
  %v4792 = vadd.f32 0.0, %v4791
  %v4793 = vpop.f32.mrf.mxu0
  %4794 = vmatprep.mubr.f32.mxu0 0.0
  %4795 = vmatmul.mubr.f32.gmra.mxu0 %v4545
  %v4796 = vpop.f32.mrf.mxu0
  %v4797 = vadd.f32 0.0, %v4796
  %v4798 = vpop.f32.mrf.mxu0
  %4799 = vmatprep.mubr.f32.mxu0 0.0
  %4800 = vmatmul.mubr.f32.gmra.mxu0 %v4548
  %v4801 = vpop.f32.mrf.mxu0
  %v4802 = vadd.f32 0.0, %v4801
  %v4803 = vpop.f32.mrf.mxu0
  %4804 = vmatprep.mubr.f32.mxu0 0.0
  %4805 = vmatmul.mubr.f32.gmra.mxu0 %v4551
  %v4806 = vpop.f32.mrf.mxu0
  %v4807 = vadd.f32 0.0, %v4806
  %v4808 = vpop.f32.mrf.mxu0
  %4809 = vmatprep.mubr.f32.mxu0 0.0
  %4810 = vmatmul.mubr.f32.gmra.mxu0 %v4554
  %v4811 = vpop.f32.mrf.mxu0
  %v4812 = vadd.f32 0.0, %v4811
  %v4813 = vpop.f32.mrf.mxu0
  %4814 = vmatprep.mubr.f32.mxu0 0.0
  %4815 = vmatmul.mubr.f32.gmra.mxu0 %v4557
  %v4816 = vpop.f32.mrf.mxu0
  %v4817 = vadd.f32 0.0, %v4816
  %v4818 = vpop.f32.mrf.mxu0
  %4819 = vmatprep.mubr.f32.mxu0 0.0
  %4820 = vmatmul.mubr.f32.gmra.mxu0 %v4560
  %v4821 = vpop.f32.mrf.mxu0
  %v4822 = vadd.f32 0.0, %v4821
  %v4823 = vpop.f32.mrf.mxu0
  %4824 = vmatprep.mubr.f32.mxu0 0.0
  %4825 = vmatmul.mubr.f32.gmra.mxu0 %v4563
  %v4826 = vpop.f32.mrf.mxu0
  %v4827 = vadd.f32 0.0, %v4826
  %v4828 = vpop.f32.mrf.mxu0
  %4829 = vmatprep.mubr.f32.mxu0 0.0
  %4830 = vmatmul.mubr.f32.gmra.mxu0 %v4566
  %v4831 = vpop.f32.mrf.mxu0
  %v4832 = vadd.f32 0.0, %v4831
  %v4833 = vpop.f32.mrf.mxu0
  %4834 = vmatprep.mubr.f32.mxu0 0.0
  %4835 = vmatmul.mubr.f32.gmra.mxu0 %v4569
  %v4836 = vpop.f32.mrf.mxu0
  %v4837 = vadd.f32 0.0, %v4836
  %v4838 = vpop.f32.mrf.mxu0
  %4839 = vdwg.mxu0
  %v4841 = vsel %vm4450, %v4325, 0
  %v4844 = vsel %vm4450, %v4326, 0
  %v4847 = vsel %vm4450, %v4327, 0
  %v4850 = vsel %vm4450, %v4328, 0
  %v4853 = vsel %vm4450, %v4329, 0
  %v4856 = vsel %vm4450, %v4330, 0
  %v4859 = vsel %vm4450, %v4331, 0
  %v4862 = vsel %vm4450, %v4332, 0
  %v4865 = vsel %vm4450, %v4333, 0
  %v4868 = vsel %vm4450, %v4334, 0
  %v4871 = vsel %vm4450, %v4335, 0
  %v4874 = vsel %vm4450, %v4336, 0
  %v4877 = vsel %vm4450, %v4337, 0
  %v4880 = vsel %vm4450, %v4338, 0
  %v4883 = vsel %vm4450, %v4339, 0
  %v4886 = vsel %vm4450, %v4340, 0
  %v4889 = vsel %vm4450, %v4341, 0
  %v4892 = vsel %vm4450, %v4342, 0
  %v4895 = vsel %vm4450, %v4343, 0
  %v4898 = vsel %vm4450, %v4344, 0
  %v4901 = vsel %vm4450, %v4345, 0
  %v4904 = vsel %vm4450, %v4346, 0
  %v4907 = vsel %vm4450, %v4347, 0
  %v4910 = vsel %vm4450, %v4348, 0
  %v4913 = vsel %vm4450, %v4349, 0
  %v4916 = vsel %vm4450, %v4350, 0
  %v4919 = vsel %vm4450, %v4351, 0
  %v4922 = vsel %vm4450, %v4352, 0
  %v4925 = vsel %vm4450, %v4353, 0
  %v4928 = vsel %vm4450, %v4354, 0
  %v4931 = vsel %vm4450, %v4355, 0
  %v4934 = vsel %vm4450, %v4356, 0
  %v4937 = vsel %vm4450, %v4357, 0
  %v4940 = vsel %vm4450, %v4358, 0
  %v4943 = vsel %vm4450, %v4359, 0
  %v4946 = vsel %vm4450, %v4360, 0
  %v4949 = vsel %vm4450, %v4361, 0
  %v4952 = vsel %vm4450, %v4362, 0
  %v4955 = vsel %vm4450, %v4363, 0
  %v4958 = vsel %vm4450, %v4364, 0
  %v4961 = vsel %vm4571, %v4366, 0
  %4963 = vmatprep.subr.mxu0 0.0
  %4964 = vmatpush1.msra.mxu0 0.0
  %4965 = vmatprep.subr.mxu0 0.0
  %4966 = vmatpush1.msra.mxu0 0.0
  %4967 = vmatprep.subr.mxu0 0.0
  %4968 = vmatpush1.msra.mxu0 0.0
  %4969 = vmatprep.subr.mxu0 0.0
  %4970 = vmatpush1.msra.mxu0 0.0
  %4971 = vmatprep.subr.mxu0 0.0
  %4972 = vmatpush1.msra.mxu0 0.0
  %4973 = vmatprep.subr.mxu0 0.0
  %4974 = vmatpush1.msra.mxu0 0.0
  %4975 = vmatprep.subr.mxu0 0.0
  %4976 = vmatpush1.msra.mxu0 0.0
  %4977 = vmatprep.subr.mxu0 0.0
  %4978 = vmatpush1.msra.mxu0 0.0
  %4979 = vmatprep.subr.mxu0 0.0
  %4980 = vmatpush1.msra.mxu0 0.0
  %4981 = vmatprep.subr.mxu0 0.0
  %4982 = vmatpush1.msra.mxu0 0.0
  %4983 = vmatprep.subr.mxu0 0.0
  %4984 = vmatpush1.msra.mxu0 0.0
  %4985 = vmatprep.subr.mxu0 0.0
  %4986 = vmatpush1.msra.mxu0 0.0
  %4987 = vmatprep.subr.mxu0 0.0
  %4988 = vmatpush1.msra.mxu0 0.0
  %4989 = vmatprep.subr.mxu0 0.0
  %4990 = vmatpush1.msra.mxu0 0.0
  %4991 = vmatprep.subr.mxu0 0.0
  %4992 = vmatpush1.msra.mxu0 %v4961
  %4993 = vmatprep.subr.mxu0 0.0
  %4994 = vmatpush1.msra.mxu0 %v4365
  %4995 = vmatprep.subr.mxu0 0.0
  %4996 = vmatpush2.msra.mxu0 0.0
  %4997 = vmatprep.subr.mxu0 0.0
  %4998 = vmatpush2.msra.mxu0 0.0
  %4999 = vmatprep.subr.mxu0 0.0
  %5000 = vmatpush2.msra.mxu0 0.0
  %5001 = vmatprep.subr.mxu0 0.0
  %5002 = vmatpush2.msra.mxu0 0.0
  %5003 = vmatprep.subr.mxu0 0.0
  %5004 = vmatpush2.msra.mxu0 0.0
  %5005 = vmatprep.subr.mxu0 0.0
  %5006 = vmatpush2.msra.mxu0 0.0
  %5007 = vmatprep.subr.mxu0 0.0
  %5008 = vmatpush2.msra.mxu0 0.0
  %5009 = vmatprep.subr.mxu0 0.0
  %5010 = vmatpush2.msra.mxu0 0.0
  %5011 = vmatprep.subr.mxu0 0.0
  %5012 = vmatpush2.msra.mxu0 0.0
  %5013 = vmatprep.subr.mxu0 0.0
  %5014 = vmatpush2.msra.mxu0 0.0
  %5015 = vmatprep.subr.mxu0 0.0
  %5016 = vmatpush2.msra.mxu0 0.0
  %5017 = vmatprep.subr.mxu0 0.0
  %5018 = vmatpush2.msra.mxu0 0.0
  %5019 = vmatprep.subr.mxu0 0.0
  %5020 = vmatpush2.msra.mxu0 0.0
  %5021 = vmatprep.subr.mxu0 0.0
  %5022 = vmatpush2.msra.mxu0 0.0
  %5023 = vmatprep.subr.mxu0 0.0
  %5024 = vmatpush2.msra.mxu0 0.0
  %5025 = vmatprep.subr.mxu0 0.0
  %5026 = vmatpush2.msra.mxu0 0.0
  %5027 = vmatprep.mubr.f32.mxu0 0.0
  %5028 = vmatmul.mubr.f32.gmra.mxu0 %v4841
  %v5029 = vpop.f32.mrf.mxu0
  %v5030 = vadd.f32 %v4642, %v5029
  %v5031 = vpop.f32.mrf.mxu0
  %5032 = vmatprep.mubr.f32.mxu0 0.0
  %5033 = vmatmul.mubr.f32.gmra.mxu0 %v4844
  %v5034 = vpop.f32.mrf.mxu0
  %v5035 = vadd.f32 %v4647, %v5034
  %v5036 = vpop.f32.mrf.mxu0
  %5037 = vmatprep.mubr.f32.mxu0 0.0
  %5038 = vmatmul.mubr.f32.gmra.mxu0 %v4847
  %v5039 = vpop.f32.mrf.mxu0
  %v5040 = vadd.f32 %v4652, %v5039
  %v5041 = vpop.f32.mrf.mxu0
  %5042 = vmatprep.mubr.f32.mxu0 0.0
  %5043 = vmatmul.mubr.f32.gmra.mxu0 %v4850
  %v5044 = vpop.f32.mrf.mxu0
  %v5045 = vadd.f32 %v4657, %v5044
  %v5046 = vpop.f32.mrf.mxu0
  %5047 = vmatprep.mubr.f32.mxu0 0.0
  %5048 = vmatmul.mubr.f32.gmra.mxu0 %v4853
  %v5049 = vpop.f32.mrf.mxu0
  %v5050 = vadd.f32 %v4662, %v5049
  %v5051 = vpop.f32.mrf.mxu0
  %5052 = vmatprep.mubr.f32.mxu0 0.0
  %5053 = vmatmul.mubr.f32.gmra.mxu0 %v4856
  %v5054 = vpop.f32.mrf.mxu0
  %v5055 = vadd.f32 %v4667, %v5054
  %v5056 = vpop.f32.mrf.mxu0
  %5057 = vmatprep.mubr.f32.mxu0 0.0
  %5058 = vmatmul.mubr.f32.gmra.mxu0 %v4859
  %v5059 = vpop.f32.mrf.mxu0
  %v5060 = vadd.f32 %v4672, %v5059
  %v5061 = vpop.f32.mrf.mxu0
  %5062 = vmatprep.mubr.f32.mxu0 0.0
  %5063 = vmatmul.mubr.f32.gmra.mxu0 %v4862
  %v5064 = vpop.f32.mrf.mxu0
  %v5065 = vadd.f32 %v4677, %v5064
  %v5066 = vpop.f32.mrf.mxu0
  %5067 = vmatprep.mubr.f32.mxu0 0.0
  %5068 = vmatmul.mubr.f32.gmra.mxu0 %v4865
  %v5069 = vpop.f32.mrf.mxu0
  %v5070 = vadd.f32 %v4682, %v5069
  %v5071 = vpop.f32.mrf.mxu0
  %5072 = vmatprep.mubr.f32.mxu0 0.0
  %5073 = vmatmul.mubr.f32.gmra.mxu0 %v4868
  %v5074 = vpop.f32.mrf.mxu0
  %v5075 = vadd.f32 %v4687, %v5074
  %v5076 = vpop.f32.mrf.mxu0
  %5077 = vmatprep.mubr.f32.mxu0 0.0
  %5078 = vmatmul.mubr.f32.gmra.mxu0 %v4871
  %v5079 = vpop.f32.mrf.mxu0
  %v5080 = vadd.f32 %v4692, %v5079
  %v5081 = vpop.f32.mrf.mxu0
  %5082 = vmatprep.mubr.f32.mxu0 0.0
  %5083 = vmatmul.mubr.f32.gmra.mxu0 %v4874
  %v5084 = vpop.f32.mrf.mxu0
  %v5085 = vadd.f32 %v4697, %v5084
  %v5086 = vpop.f32.mrf.mxu0
  %5087 = vmatprep.mubr.f32.mxu0 0.0
  %5088 = vmatmul.mubr.f32.gmra.mxu0 %v4877
  %v5089 = vpop.f32.mrf.mxu0
  %v5090 = vadd.f32 %v4702, %v5089
  %v5091 = vpop.f32.mrf.mxu0
  %5092 = vmatprep.mubr.f32.mxu0 0.0
  %5093 = vmatmul.mubr.f32.gmra.mxu0 %v4880
  %v5094 = vpop.f32.mrf.mxu0
  %v5095 = vadd.f32 %v4707, %v5094
  %v5096 = vpop.f32.mrf.mxu0
  %5097 = vmatprep.mubr.f32.mxu0 0.0
  %5098 = vmatmul.mubr.f32.gmra.mxu0 %v4883
  %v5099 = vpop.f32.mrf.mxu0
  %v5100 = vadd.f32 %v4712, %v5099
  %v5101 = vpop.f32.mrf.mxu0
  %5102 = vmatprep.mubr.f32.mxu0 0.0
  %5103 = vmatmul.mubr.f32.gmra.mxu0 %v4886
  %v5104 = vpop.f32.mrf.mxu0
  %v5105 = vadd.f32 %v4717, %v5104
  %v5106 = vpop.f32.mrf.mxu0
  %5107 = vmatprep.mubr.f32.mxu0 0.0
  %5108 = vmatmul.mubr.f32.gmra.mxu0 %v4889
  %v5109 = vpop.f32.mrf.mxu0
  %v5110 = vadd.f32 %v4722, %v5109
  %v5111 = vpop.f32.mrf.mxu0
  %5112 = vmatprep.mubr.f32.mxu0 0.0
  %5113 = vmatmul.mubr.f32.gmra.mxu0 %v4892
  %v5114 = vpop.f32.mrf.mxu0
  %v5115 = vadd.f32 %v4727, %v5114
  %v5116 = vpop.f32.mrf.mxu0
  %5117 = vmatprep.mubr.f32.mxu0 0.0
  %5118 = vmatmul.mubr.f32.gmra.mxu0 %v4895
  %v5119 = vpop.f32.mrf.mxu0
  %v5120 = vadd.f32 %v4732, %v5119
  %v5121 = vpop.f32.mrf.mxu0
  %5122 = vmatprep.mubr.f32.mxu0 0.0
  %5123 = vmatmul.mubr.f32.gmra.mxu0 %v4898
  %v5124 = vpop.f32.mrf.mxu0
  %v5125 = vadd.f32 %v4737, %v5124
  %v5126 = vpop.f32.mrf.mxu0
  %5127 = vmatprep.mubr.f32.mxu0 0.0
  %5128 = vmatmul.mubr.f32.gmra.mxu0 %v4901
  %v5129 = vpop.f32.mrf.mxu0
  %v5130 = vadd.f32 %v4742, %v5129
  %v5131 = vpop.f32.mrf.mxu0
  %5132 = vmatprep.mubr.f32.mxu0 0.0
  %5133 = vmatmul.mubr.f32.gmra.mxu0 %v4904
  %v5134 = vpop.f32.mrf.mxu0
  %v5135 = vadd.f32 %v4747, %v5134
  %v5136 = vpop.f32.mrf.mxu0
  %5137 = vmatprep.mubr.f32.mxu0 0.0
  %5138 = vmatmul.mubr.f32.gmra.mxu0 %v4907
  %v5139 = vpop.f32.mrf.mxu0
  %v5140 = vadd.f32 %v4752, %v5139
  %v5141 = vpop.f32.mrf.mxu0
  %5142 = vmatprep.mubr.f32.mxu0 0.0
  %5143 = vmatmul.mubr.f32.gmra.mxu0 %v4910
  %v5144 = vpop.f32.mrf.mxu0
  %v5145 = vadd.f32 %v4757, %v5144
  %v5146 = vpop.f32.mrf.mxu0
  %5147 = vmatprep.mubr.f32.mxu0 0.0
  %5148 = vmatmul.mubr.f32.gmra.mxu0 %v4913
  %v5149 = vpop.f32.mrf.mxu0
  %v5150 = vadd.f32 %v4762, %v5149
  %v5151 = vpop.f32.mrf.mxu0
  %5152 = vmatprep.mubr.f32.mxu0 0.0
  %5153 = vmatmul.mubr.f32.gmra.mxu0 %v4916
  %v5154 = vpop.f32.mrf.mxu0
  %v5155 = vadd.f32 %v4767, %v5154
  %v5156 = vpop.f32.mrf.mxu0
  %5157 = vmatprep.mubr.f32.mxu0 0.0
  %5158 = vmatmul.mubr.f32.gmra.mxu0 %v4919
  %v5159 = vpop.f32.mrf.mxu0
  %v5160 = vadd.f32 %v4772, %v5159
  %v5161 = vpop.f32.mrf.mxu0
  %5162 = vmatprep.mubr.f32.mxu0 0.0
  %5163 = vmatmul.mubr.f32.gmra.mxu0 %v4922
  %v5164 = vpop.f32.mrf.mxu0
  %v5165 = vadd.f32 %v4777, %v5164
  %v5166 = vpop.f32.mrf.mxu0
  %5167 = vmatprep.mubr.f32.mxu0 0.0
  %5168 = vmatmul.mubr.f32.gmra.mxu0 %v4925
  %v5169 = vpop.f32.mrf.mxu0
  %v5170 = vadd.f32 %v4782, %v5169
  %v5171 = vpop.f32.mrf.mxu0
  %5172 = vmatprep.mubr.f32.mxu0 0.0
  %5173 = vmatmul.mubr.f32.gmra.mxu0 %v4928
  %v5174 = vpop.f32.mrf.mxu0
  %v5175 = vadd.f32 %v4787, %v5174
  %v5176 = vpop.f32.mrf.mxu0
  %5177 = vmatprep.mubr.f32.mxu0 0.0
  %5178 = vmatmul.mubr.f32.gmra.mxu0 %v4931
  %v5179 = vpop.f32.mrf.mxu0
  %v5180 = vadd.f32 %v4792, %v5179
  %v5181 = vpop.f32.mrf.mxu0
  %5182 = vmatprep.mubr.f32.mxu0 0.0
  %5183 = vmatmul.mubr.f32.gmra.mxu0 %v4934
  %v5184 = vpop.f32.mrf.mxu0
  %v5185 = vadd.f32 %v4797, %v5184
  %v5186 = vpop.f32.mrf.mxu0
  %5187 = vmatprep.mubr.f32.mxu0 0.0
  %5188 = vmatmul.mubr.f32.gmra.mxu0 %v4937
  %v5189 = vpop.f32.mrf.mxu0
  %v5190 = vadd.f32 %v4802, %v5189
  %v5191 = vpop.f32.mrf.mxu0
  %5192 = vmatprep.mubr.f32.mxu0 0.0
  %5193 = vmatmul.mubr.f32.gmra.mxu0 %v4940
  %v5194 = vpop.f32.mrf.mxu0
  %v5195 = vadd.f32 %v4807, %v5194
  %v5196 = vpop.f32.mrf.mxu0
  %5197 = vmatprep.mubr.f32.mxu0 0.0
  %5198 = vmatmul.mubr.f32.gmra.mxu0 %v4943
  %v5199 = vpop.f32.mrf.mxu0
  %v5200 = vadd.f32 %v4812, %v5199
  %v5201 = vpop.f32.mrf.mxu0
  %5202 = vmatprep.mubr.f32.mxu0 0.0
  %5203 = vmatmul.mubr.f32.gmra.mxu0 %v4946
  %v5204 = vpop.f32.mrf.mxu0
  %v5205 = vadd.f32 %v4817, %v5204
  %v5206 = vpop.f32.mrf.mxu0
  %5207 = vmatprep.mubr.f32.mxu0 0.0
  %5208 = vmatmul.mubr.f32.gmra.mxu0 %v4949
  %v5209 = vpop.f32.mrf.mxu0
  %v5210 = vadd.f32 %v4822, %v5209
  %v5211 = vpop.f32.mrf.mxu0
  %5212 = vmatprep.mubr.f32.mxu0 0.0
  %5213 = vmatmul.mubr.f32.gmra.mxu0 %v4952
  %v5214 = vpop.f32.mrf.mxu0
  %v5215 = vadd.f32 %v4827, %v5214
  %v5216 = vpop.f32.mrf.mxu0
  %5217 = vmatprep.mubr.f32.mxu0 0.0
  %5218 = vmatmul.mubr.f32.gmra.mxu0 %v4955
  %v5219 = vpop.f32.mrf.mxu0
  %v5220 = vadd.f32 %v4832, %v5219
  %v5221 = vpop.f32.mrf.mxu0
  %5222 = vmatprep.mubr.f32.mxu0 0.0
  %5223 = vmatmul.mubr.f32.gmra.mxu0 %v4958
  %v5224 = vpop.f32.mrf.mxu0
  %v5225 = vadd.f32 %v4837, %v5224
  %v5226 = vpop.f32.mrf.mxu0
  %5227 = vdwg.mxu0
  %v5228 = vrot.slane %v4325, 2
  %v5229 = vrot.slane %v4326, 2
  %v5230 = vrot.slane %v4327, 2
  %v5231 = vrot.slane %v4328, 2
  %v5232 = vrot.slane %v4329, 2
  %v5233 = vrot.slane %v4330, 2
  %v5234 = vrot.slane %v4331, 2
  %v5235 = vrot.slane %v4332, 2
  %v5236 = vrot.slane %v4333, 2
  %v5237 = vrot.slane %v4334, 2
  %v5238 = vrot.slane %v4335, 2
  %v5239 = vrot.slane %v4336, 2
  %v5240 = vrot.slane %v4337, 2
  %v5241 = vrot.slane %v4338, 2
  %v5242 = vrot.slane %v4339, 2
  %v5243 = vrot.slane %v4340, 2
  %v5244 = vrot.slane %v4341, 2
  %v5245 = vrot.slane %v4342, 2
  %v5246 = vrot.slane %v4343, 2
  %v5247 = vrot.slane %v4344, 2
  %v5248 = vrot.slane %v4345, 2
  %v5249 = vrot.slane %v4346, 2
  %v5250 = vrot.slane %v4347, 2
  %v5251 = vrot.slane %v4348, 2
  %v5252 = vrot.slane %v4349, 2
  %v5253 = vrot.slane %v4350, 2
  %v5254 = vrot.slane %v4351, 2
  %v5255 = vrot.slane %v4352, 2
  %v5256 = vrot.slane %v4353, 2
  %v5257 = vrot.slane %v4354, 2
  %v5258 = vrot.slane %v4355, 2
  %v5259 = vrot.slane %v4356, 2
  %v5260 = vrot.slane %v4357, 2
  %v5261 = vrot.slane %v4358, 2
  %v5262 = vrot.slane %v4359, 2
  %v5263 = vrot.slane %v4360, 2
  %v5264 = vrot.slane %v4361, 2
  %v5265 = vrot.slane %v4362, 2
  %v5266 = vrot.slane %v4363, 2
  %v5267 = vrot.slane %v4364, 2
  %v5268 = vsel %vm963, %v5266, %v5267
  %v5269 = vsel %vm963, %v5265, %v5266
  %v5270 = vsel %vm963, %v5264, %v5265
  %v5271 = vsel %vm963, %v5263, %v5264
  %v5272 = vsel %vm963, %v5262, %v5263
  %v5273 = vsel %vm963, %v5261, %v5262
  %v5274 = vsel %vm963, %v5260, %v5261
  %v5275 = vsel %vm963, %v5259, %v5260
  %v5276 = vsel %vm963, %v5258, %v5259
  %v5277 = vsel %vm963, %v5257, %v5258
  %v5278 = vsel %vm963, %v5256, %v5257
  %v5279 = vsel %vm963, %v5255, %v5256
  %v5280 = vsel %vm963, %v5254, %v5255
  %v5281 = vsel %vm963, %v5253, %v5254
  %v5282 = vsel %vm963, %v5252, %v5253
  %v5283 = vsel %vm963, %v5251, %v5252
  %v5284 = vsel %vm963, %v5250, %v5251
  %v5285 = vsel %vm963, %v5249, %v5250
  %v5286 = vsel %vm963, %v5248, %v5249
  %v5287 = vsel %vm963, %v5247, %v5248
  %v5288 = vsel %vm963, %v5246, %v5247
  %v5289 = vsel %vm963, %v5245, %v5246
  %v5290 = vsel %vm963, %v5244, %v5245
  %v5291 = vsel %vm963, %v5243, %v5244
  %v5292 = vsel %vm963, %v5242, %v5243
  %v5293 = vsel %vm963, %v5241, %v5242
  %v5294 = vsel %vm963, %v5240, %v5241
  %v5295 = vsel %vm963, %v5239, %v5240
  %v5296 = vsel %vm963, %v5238, %v5239
  %v5297 = vsel %vm963, %v5237, %v5238
  %v5298 = vsel %vm963, %v5236, %v5237
  %v5299 = vsel %vm963, %v5235, %v5236
  %v5300 = vsel %vm963, %v5234, %v5235
  %v5301 = vsel %vm963, %v5233, %v5234
  %v5302 = vsel %vm963, %v5232, %v5233
  %v5303 = vsel %vm963, %v5231, %v5232
  %v5304 = vsel %vm963, %v5230, %v5231
  %v5305 = vsel %vm963, %v5229, %v5230
  %v5306 = vsel %vm963, %v5228, %v5229
  %v5307 = vsel %vm963, %v5267, %v5228
  %s5308 = scalar_lea.vmem %s3, 32
  %v5309 = vld [vmem:[%s5308] sm:$0xff]
  %v5310 = vld [vmem:[%s5308 + $0x8] sm:$0x1]
  %v5312 = vsel %vm4450, %v5306, 0
  %v5315 = vsel %vm4450, %v5305, 0
  %v5318 = vsel %vm4450, %v5304, 0
  %v5321 = vsel %vm4450, %v5303, 0
  %v5324 = vsel %vm4450, %v5302, 0
  %v5327 = vsel %vm4450, %v5301, 0
  %v5330 = vsel %vm4450, %v5300, 0
  %v5333 = vsel %vm4450, %v5299, 0
  %v5336 = vsel %vm4450, %v5298, 0
  %v5339 = vsel %vm4450, %v5297, 0
  %v5342 = vsel %vm4450, %v5296, 0
  %v5345 = vsel %vm4450, %v5295, 0
  %v5348 = vsel %vm4450, %v5294, 0
  %v5351 = vsel %vm4450, %v5293, 0
  %v5354 = vsel %vm4450, %v5292, 0
  %v5357 = vsel %vm4450, %v5291, 0
  %v5360 = vsel %vm4450, %v5290, 0
  %v5363 = vsel %vm4450, %v5289, 0
  %v5366 = vsel %vm4450, %v5288, 0
  %v5369 = vsel %vm4450, %v5287, 0
  %v5372 = vsel %vm4450, %v5286, 0
  %v5375 = vsel %vm4450, %v5285, 0
  %v5378 = vsel %vm4450, %v5284, 0
  %v5381 = vsel %vm4450, %v5283, 0
  %v5384 = vsel %vm4450, %v5282, 0
  %v5387 = vsel %vm4450, %v5281, 0
  %v5390 = vsel %vm4450, %v5280, 0
  %v5393 = vsel %vm4450, %v5279, 0
  %v5396 = vsel %vm4450, %v5278, 0
  %v5399 = vsel %vm4450, %v5277, 0
  %v5402 = vsel %vm4450, %v5276, 0
  %v5405 = vsel %vm4450, %v5275, 0
  %v5408 = vsel %vm4450, %v5274, 0
  %v5411 = vsel %vm4450, %v5273, 0
  %v5414 = vsel %vm4450, %v5272, 0
  %v5417 = vsel %vm4450, %v5271, 0
  %v5420 = vsel %vm4450, %v5270, 0
  %v5423 = vsel %vm4450, %v5269, 0
  %v5426 = vsel %vm4450, %v5268, 0
  %v5429 = vsel %vm4450, %v5307, 0
  %v5432 = vsel %vm4571, %v5310, 0
  %5434 = vmatprep.subr.mxu0 0.0
  %5435 = vmatpush1.msra.mxu0 0.0
  %5436 = vmatprep.subr.mxu0 0.0
  %5437 = vmatpush1.msra.mxu0 0.0
  %5438 = vmatprep.subr.mxu0 0.0
  %5439 = vmatpush1.msra.mxu0 0.0
  %5440 = vmatprep.subr.mxu0 0.0
  %5441 = vmatpush1.msra.mxu0 0.0
  %5442 = vmatprep.subr.mxu0 0.0
  %5443 = vmatpush1.msra.mxu0 0.0
  %5444 = vmatprep.subr.mxu0 0.0
  %5445 = vmatpush1.msra.mxu0 0.0
  %5446 = vmatprep.subr.mxu0 0.0
  %5447 = vmatpush1.msra.mxu0 0.0
  %5448 = vmatprep.subr.mxu0 0.0
  %5449 = vmatpush1.msra.mxu0 0.0
  %5450 = vmatprep.subr.mxu0 0.0
  %5451 = vmatpush1.msra.mxu0 0.0
  %5452 = vmatprep.subr.mxu0 0.0
  %5453 = vmatpush1.msra.mxu0 0.0
  %5454 = vmatprep.subr.mxu0 0.0
  %5455 = vmatpush1.msra.mxu0 0.0
  %5456 = vmatprep.subr.mxu0 0.0
  %5457 = vmatpush1.msra.mxu0 0.0
  %5458 = vmatprep.subr.mxu0 0.0
  %5459 = vmatpush1.msra.mxu0 0.0
  %5460 = vmatprep.subr.mxu0 0.0
  %5461 = vmatpush1.msra.mxu0 0.0
  %5462 = vmatprep.subr.mxu0 0.0
  %5463 = vmatpush1.msra.mxu0 %v5432
  %5464 = vmatprep.subr.mxu0 0.0
  %5465 = vmatpush1.msra.mxu0 %v5309
  %5466 = vmatprep.subr.mxu0 0.0
  %5467 = vmatpush2.msra.mxu0 0.0
  %5468 = vmatprep.subr.mxu0 0.0
  %5469 = vmatpush2.msra.mxu0 0.0
  %5470 = vmatprep.subr.mxu0 0.0
  %5471 = vmatpush2.msra.mxu0 0.0
  %5472 = vmatprep.subr.mxu0 0.0
  %5473 = vmatpush2.msra.mxu0 0.0
  %5474 = vmatprep.subr.mxu0 0.0
  %5475 = vmatpush2.msra.mxu0 0.0
  %5476 = vmatprep.subr.mxu0 0.0
  %5477 = vmatpush2.msra.mxu0 0.0
  %5478 = vmatprep.subr.mxu0 0.0
  %5479 = vmatpush2.msra.mxu0 0.0
  %5480 = vmatprep.subr.mxu0 0.0
  %5481 = vmatpush2.msra.mxu0 0.0
  %5482 = vmatprep.subr.mxu0 0.0
  %5483 = vmatpush2.msra.mxu0 0.0
  %5484 = vmatprep.subr.mxu0 0.0
  %5485 = vmatpush2.msra.mxu0 0.0
  %5486 = vmatprep.subr.mxu0 0.0
  %5487 = vmatpush2.msra.mxu0 0.0
  %5488 = vmatprep.subr.mxu0 0.0
  %5489 = vmatpush2.msra.mxu0 0.0
  %5490 = vmatprep.subr.mxu0 0.0
  %5491 = vmatpush2.msra.mxu0 0.0
  %5492 = vmatprep.subr.mxu0 0.0
  %5493 = vmatpush2.msra.mxu0 0.0
  %5494 = vmatprep.subr.mxu0 0.0
  %5495 = vmatpush2.msra.mxu0 0.0
  %5496 = vmatprep.subr.mxu0 0.0
  %5497 = vmatpush2.msra.mxu0 0.0
  %5498 = vmatprep.mubr.f32.mxu0 0.0
  %5499 = vmatmul.mubr.f32.gmra.mxu0 %v5312
  %v5500 = vpop.f32.mrf.mxu0
  %v5501 = vadd.f32 0.0, %v5500
  %v5502 = vpop.f32.mrf.mxu0
  %5503 = vmatprep.mubr.f32.mxu0 0.0
  %5504 = vmatmul.mubr.f32.gmra.mxu0 %v5315
  %v5505 = vpop.f32.mrf.mxu0
  %v5506 = vadd.f32 0.0, %v5505
  %v5507 = vpop.f32.mrf.mxu0
  %5508 = vmatprep.mubr.f32.mxu0 0.0
  %5509 = vmatmul.mubr.f32.gmra.mxu0 %v5318
  %v5510 = vpop.f32.mrf.mxu0
  %v5511 = vadd.f32 0.0, %v5510
  %v5512 = vpop.f32.mrf.mxu0
  %5513 = vmatprep.mubr.f32.mxu0 0.0
  %5514 = vmatmul.mubr.f32.gmra.mxu0 %v5321
  %v5515 = vpop.f32.mrf.mxu0
  %v5516 = vadd.f32 0.0, %v5515
  %v5517 = vpop.f32.mrf.mxu0
  %5518 = vmatprep.mubr.f32.mxu0 0.0
  %5519 = vmatmul.mubr.f32.gmra.mxu0 %v5324
  %v5520 = vpop.f32.mrf.mxu0
  %v5521 = vadd.f32 0.0, %v5520
  %v5522 = vpop.f32.mrf.mxu0
  %5523 = vmatprep.mubr.f32.mxu0 0.0
  %5524 = vmatmul.mubr.f32.gmra.mxu0 %v5327
  %v5525 = vpop.f32.mrf.mxu0
  %v5526 = vadd.f32 0.0, %v5525
  %v5527 = vpop.f32.mrf.mxu0
  %5528 = vmatprep.mubr.f32.mxu0 0.0
  %5529 = vmatmul.mubr.f32.gmra.mxu0 %v5330
  %v5530 = vpop.f32.mrf.mxu0
  %v5531 = vadd.f32 0.0, %v5530
  %v5532 = vpop.f32.mrf.mxu0
  %5533 = vmatprep.mubr.f32.mxu0 0.0
  %5534 = vmatmul.mubr.f32.gmra.mxu0 %v5333
  %v5535 = vpop.f32.mrf.mxu0
  %v5536 = vadd.f32 0.0, %v5535
  %v5537 = vpop.f32.mrf.mxu0
  %5538 = vmatprep.mubr.f32.mxu0 0.0
  %5539 = vmatmul.mubr.f32.gmra.mxu0 %v5336
  %v5540 = vpop.f32.mrf.mxu0
  %v5541 = vadd.f32 0.0, %v5540
  %v5542 = vpop.f32.mrf.mxu0
  %5543 = vmatprep.mubr.f32.mxu0 0.0
  %5544 = vmatmul.mubr.f32.gmra.mxu0 %v5339
  %v5545 = vpop.f32.mrf.mxu0
  %v5546 = vadd.f32 0.0, %v5545
  %v5547 = vpop.f32.mrf.mxu0
  %5548 = vmatprep.mubr.f32.mxu0 0.0
  %5549 = vmatmul.mubr.f32.gmra.mxu0 %v5342
  %v5550 = vpop.f32.mrf.mxu0
  %v5551 = vadd.f32 0.0, %v5550
  %v5552 = vpop.f32.mrf.mxu0
  %5553 = vmatprep.mubr.f32.mxu0 0.0
  %5554 = vmatmul.mubr.f32.gmra.mxu0 %v5345
  %v5555 = vpop.f32.mrf.mxu0
  %v5556 = vadd.f32 0.0, %v5555
  %v5557 = vpop.f32.mrf.mxu0
  %5558 = vmatprep.mubr.f32.mxu0 0.0
  %5559 = vmatmul.mubr.f32.gmra.mxu0 %v5348
  %v5560 = vpop.f32.mrf.mxu0
  %v5561 = vadd.f32 0.0, %v5560
  %v5562 = vpop.f32.mrf.mxu0
  %5563 = vmatprep.mubr.f32.mxu0 0.0
  %5564 = vmatmul.mubr.f32.gmra.mxu0 %v5351
  %v5565 = vpop.f32.mrf.mxu0
  %v5566 = vadd.f32 0.0, %v5565
  %v5567 = vpop.f32.mrf.mxu0
  %5568 = vmatprep.mubr.f32.mxu0 0.0
  %5569 = vmatmul.mubr.f32.gmra.mxu0 %v5354
  %v5570 = vpop.f32.mrf.mxu0
  %v5571 = vadd.f32 0.0, %v5570
  %v5572 = vpop.f32.mrf.mxu0
  %5573 = vmatprep.mubr.f32.mxu0 0.0
  %5574 = vmatmul.mubr.f32.gmra.mxu0 %v5357
  %v5575 = vpop.f32.mrf.mxu0
  %v5576 = vadd.f32 0.0, %v5575
  %v5577 = vpop.f32.mrf.mxu0
  %5578 = vmatprep.mubr.f32.mxu0 0.0
  %5579 = vmatmul.mubr.f32.gmra.mxu0 %v5360
  %v5580 = vpop.f32.mrf.mxu0
  %v5581 = vadd.f32 0.0, %v5580
  %v5582 = vpop.f32.mrf.mxu0
  %5583 = vmatprep.mubr.f32.mxu0 0.0
  %5584 = vmatmul.mubr.f32.gmra.mxu0 %v5363
  %v5585 = vpop.f32.mrf.mxu0
  %v5586 = vadd.f32 0.0, %v5585
  %v5587 = vpop.f32.mrf.mxu0
  %5588 = vmatprep.mubr.f32.mxu0 0.0
  %5589 = vmatmul.mubr.f32.gmra.mxu0 %v5366
  %v5590 = vpop.f32.mrf.mxu0
  %v5591 = vadd.f32 0.0, %v5590
  %v5592 = vpop.f32.mrf.mxu0
  %5593 = vmatprep.mubr.f32.mxu0 0.0
  %5594 = vmatmul.mubr.f32.gmra.mxu0 %v5369
  %v5595 = vpop.f32.mrf.mxu0
  %v5596 = vadd.f32 0.0, %v5595
  %v5597 = vpop.f32.mrf.mxu0
  %5598 = vmatprep.mubr.f32.mxu0 0.0
  %5599 = vmatmul.mubr.f32.gmra.mxu0 %v5372
  %v5600 = vpop.f32.mrf.mxu0
  %v5601 = vadd.f32 0.0, %v5600
  %v5602 = vpop.f32.mrf.mxu0
  %5603 = vmatprep.mubr.f32.mxu0 0.0
  %5604 = vmatmul.mubr.f32.gmra.mxu0 %v5375
  %v5605 = vpop.f32.mrf.mxu0
  %v5606 = vadd.f32 0.0, %v5605
  %v5607 = vpop.f32.mrf.mxu0
  %5608 = vmatprep.mubr.f32.mxu0 0.0
  %5609 = vmatmul.mubr.f32.gmra.mxu0 %v5378
  %v5610 = vpop.f32.mrf.mxu0
  %v5611 = vadd.f32 0.0, %v5610
  %v5612 = vpop.f32.mrf.mxu0
  %5613 = vmatprep.mubr.f32.mxu0 0.0
  %5614 = vmatmul.mubr.f32.gmra.mxu0 %v5381
  %v5615 = vpop.f32.mrf.mxu0
  %v5616 = vadd.f32 0.0, %v5615
  %v5617 = vpop.f32.mrf.mxu0
  %5618 = vmatprep.mubr.f32.mxu0 0.0
  %5619 = vmatmul.mubr.f32.gmra.mxu0 %v5384
  %v5620 = vpop.f32.mrf.mxu0
  %v5621 = vadd.f32 0.0, %v5620
  %v5622 = vpop.f32.mrf.mxu0
  %5623 = vmatprep.mubr.f32.mxu0 0.0
  %5624 = vmatmul.mubr.f32.gmra.mxu0 %v5387
  %v5625 = vpop.f32.mrf.mxu0
  %v5626 = vadd.f32 0.0, %v5625
  %v5627 = vpop.f32.mrf.mxu0
  %5628 = vmatprep.mubr.f32.mxu0 0.0
  %5629 = vmatmul.mubr.f32.gmra.mxu0 %v5390
  %v5630 = vpop.f32.mrf.mxu0
  %v5631 = vadd.f32 0.0, %v5630
  %v5632 = vpop.f32.mrf.mxu0
  %5633 = vmatprep.mubr.f32.mxu0 0.0
  %5634 = vmatmul.mubr.f32.gmra.mxu0 %v5393
  %v5635 = vpop.f32.mrf.mxu0
  %v5636 = vadd.f32 0.0, %v5635
  %v5637 = vpop.f32.mrf.mxu0
  %5638 = vmatprep.mubr.f32.mxu0 0.0
  %5639 = vmatmul.mubr.f32.gmra.mxu0 %v5396
  %v5640 = vpop.f32.mrf.mxu0
  %v5641 = vadd.f32 0.0, %v5640
  %v5642 = vpop.f32.mrf.mxu0
  %5643 = vmatprep.mubr.f32.mxu0 0.0
  %5644 = vmatmul.mubr.f32.gmra.mxu0 %v5399
  %v5645 = vpop.f32.mrf.mxu0
  %v5646 = vadd.f32 0.0, %v5645
  %v5647 = vpop.f32.mrf.mxu0
  %5648 = vmatprep.mubr.f32.mxu0 0.0
  %5649 = vmatmul.mubr.f32.gmra.mxu0 %v5402
  %v5650 = vpop.f32.mrf.mxu0
  %v5651 = vadd.f32 0.0, %v5650
  %v5652 = vpop.f32.mrf.mxu0
  %5653 = vmatprep.mubr.f32.mxu0 0.0
  %5654 = vmatmul.mubr.f32.gmra.mxu0 %v5405
  %v5655 = vpop.f32.mrf.mxu0
  %v5656 = vadd.f32 0.0, %v5655
  %v5657 = vpop.f32.mrf.mxu0
  %5658 = vmatprep.mubr.f32.mxu0 0.0
  %5659 = vmatmul.mubr.f32.gmra.mxu0 %v5408
  %v5660 = vpop.f32.mrf.mxu0
  %v5661 = vadd.f32 0.0, %v5660
  %v5662 = vpop.f32.mrf.mxu0
  %5663 = vmatprep.mubr.f32.mxu0 0.0
  %5664 = vmatmul.mubr.f32.gmra.mxu0 %v5411
  %v5665 = vpop.f32.mrf.mxu0
  %v5666 = vadd.f32 0.0, %v5665
  %v5667 = vpop.f32.mrf.mxu0
  %5668 = vmatprep.mubr.f32.mxu0 0.0
  %5669 = vmatmul.mubr.f32.gmra.mxu0 %v5414
  %v5670 = vpop.f32.mrf.mxu0
  %v5671 = vadd.f32 0.0, %v5670
  %v5672 = vpop.f32.mrf.mxu0
  %5673 = vmatprep.mubr.f32.mxu0 0.0
  %5674 = vmatmul.mubr.f32.gmra.mxu0 %v5417
  %v5675 = vpop.f32.mrf.mxu0
  %v5676 = vadd.f32 0.0, %v5675
  %v5677 = vpop.f32.mrf.mxu0
  %5678 = vmatprep.mubr.f32.mxu0 0.0
  %5679 = vmatmul.mubr.f32.gmra.mxu0 %v5420
  %v5680 = vpop.f32.mrf.mxu0
  %v5681 = vadd.f32 0.0, %v5680
  %v5682 = vpop.f32.mrf.mxu0
  %5683 = vmatprep.mubr.f32.mxu0 0.0
  %5684 = vmatmul.mubr.f32.gmra.mxu0 %v5423
  %v5685 = vpop.f32.mrf.mxu0
  %v5686 = vadd.f32 0.0, %v5685
  %v5687 = vpop.f32.mrf.mxu0
  %5688 = vmatprep.mubr.f32.mxu0 0.0
  %5689 = vmatmul.mubr.f32.gmra.mxu0 %v5426
  %v5690 = vpop.f32.mrf.mxu0
  %v5691 = vadd.f32 0.0, %v5690
  %v5692 = vpop.f32.mrf.mxu0
  %5693 = vmatprep.mubr.f32.mxu0 0.0
  %5694 = vmatmul.mubr.f32.gmra.mxu0 %v5429
  %v5695 = vpop.f32.mrf.mxu0
  %v5696 = vadd.f32 0.0, %v5695
  %v5697 = vpop.f32.mrf.mxu0
  %5698 = vdwg.mxu0
  %v5699 = vadd.f32 %v5030, %v5501
  %v5700 = vadd.f32 %v5035, %v5506
  %v5701 = vadd.f32 %v5040, %v5511
  %v5702 = vadd.f32 %v5045, %v5516
  %v5703 = vadd.f32 %v5050, %v5521
  %v5704 = vadd.f32 %v5055, %v5526
  %v5705 = vadd.f32 %v5060, %v5531
  %v5706 = vadd.f32 %v5065, %v5536
  %v5707 = vadd.f32 %v5070, %v5541
  %v5708 = vadd.f32 %v5075, %v5546
  %v5709 = vadd.f32 %v5080, %v5551
  %v5710 = vadd.f32 %v5085, %v5556
  %v5711 = vadd.f32 %v5090, %v5561
  %v5712 = vadd.f32 %v5095, %v5566
  %v5713 = vadd.f32 %v5100, %v5571
  %v5714 = vadd.f32 %v5105, %v5576
  %v5715 = vadd.f32 %v5110, %v5581
  %v5716 = vadd.f32 %v5115, %v5586
  %v5717 = vadd.f32 %v5120, %v5591
  %v5718 = vadd.f32 %v5125, %v5596
  %v5719 = vadd.f32 %v5130, %v5601
  %v5720 = vadd.f32 %v5135, %v5606
  %v5721 = vadd.f32 %v5140, %v5611
  %v5722 = vadd.f32 %v5145, %v5616
  %v5723 = vadd.f32 %v5150, %v5621
  %v5724 = vadd.f32 %v5155, %v5626
  %v5725 = vadd.f32 %v5160, %v5631
  %v5726 = vadd.f32 %v5165, %v5636
  %v5727 = vadd.f32 %v5170, %v5641
  %v5728 = vadd.f32 %v5175, %v5646
  %v5729 = vadd.f32 %v5180, %v5651
  %v5730 = vadd.f32 %v5185, %v5656
  %v5731 = vadd.f32 %v5190, %v5661
  %v5732 = vadd.f32 %v5195, %v5666
  %v5733 = vadd.f32 %v5200, %v5671
  %v5734 = vadd.f32 %v5205, %v5676
  %v5735 = vadd.f32 %v5210, %v5681
  %v5736 = vadd.f32 %v5215, %v5686
  %v5737 = vadd.f32 %v5220, %v5691
  %v5738 = vadd.f32 %v5225, %v5696
  %v5739 = vrot.slane %v4325, 3
  %v5740 = vrot.slane %v4326, 3
  %v5741 = vrot.slane %v4327, 3
  %v5742 = vrot.slane %v4328, 3
  %v5743 = vrot.slane %v4329, 3
  %v5744 = vrot.slane %v4330, 3
  %v5745 = vrot.slane %v4331, 3
  %v5746 = vrot.slane %v4332, 3
  %v5747 = vrot.slane %v4333, 3
  %v5748 = vrot.slane %v4334, 3
  %v5749 = vrot.slane %v4335, 3
  %v5750 = vrot.slane %v4336, 3
  %v5751 = vrot.slane %v4337, 3
  %v5752 = vrot.slane %v4338, 3
  %v5753 = vrot.slane %v4339, 3
  %v5754 = vrot.slane %v4340, 3
  %v5755 = vrot.slane %v4341, 3
  %v5756 = vrot.slane %v4342, 3
  %v5757 = vrot.slane %v4343, 3
  %v5758 = vrot.slane %v4344, 3
  %v5759 = vrot.slane %v4345, 3
  %v5760 = vrot.slane %v4346, 3
  %v5761 = vrot.slane %v4347, 3
  %v5762 = vrot.slane %v4348, 3
  %v5763 = vrot.slane %v4349, 3
  %v5764 = vrot.slane %v4350, 3
  %v5765 = vrot.slane %v4351, 3
  %v5766 = vrot.slane %v4352, 3
  %v5767 = vrot.slane %v4353, 3
  %v5768 = vrot.slane %v4354, 3
  %v5769 = vrot.slane %v4355, 3
  %v5770 = vrot.slane %v4356, 3
  %v5771 = vrot.slane %v4357, 3
  %v5772 = vrot.slane %v4358, 3
  %v5773 = vrot.slane %v4359, 3
  %v5774 = vrot.slane %v4360, 3
  %v5775 = vrot.slane %v4361, 3
  %v5776 = vrot.slane %v4362, 3
  %v5777 = vrot.slane %v4363, 3
  %v5778 = vrot.slane %v4364, 3
  %v5779 = vsel %vm1471, %v5777, %v5778
  %v5780 = vsel %vm1471, %v5776, %v5777
  %v5781 = vsel %vm1471, %v5775, %v5776
  %v5782 = vsel %vm1471, %v5774, %v5775
  %v5783 = vsel %vm1471, %v5773, %v5774
  %v5784 = vsel %vm1471, %v5772, %v5773
  %v5785 = vsel %vm1471, %v5771, %v5772
  %v5786 = vsel %vm1471, %v5770, %v5771
  %v5787 = vsel %vm1471, %v5769, %v5770
  %v5788 = vsel %vm1471, %v5768, %v5769
  %v5789 = vsel %vm1471, %v5767, %v5768
  %v5790 = vsel %vm1471, %v5766, %v5767
  %v5791 = vsel %vm1471, %v5765, %v5766
  %v5792 = vsel %vm1471, %v5764, %v5765
  %v5793 = vsel %vm1471, %v5763, %v5764
  %v5794 = vsel %vm1471, %v5762, %v5763
  %v5795 = vsel %vm1471, %v5761, %v5762
  %v5796 = vsel %vm1471, %v5760, %v5761
  %v5797 = vsel %vm1471, %v5759, %v5760
  %v5798 = vsel %vm1471, %v5758, %v5759
  %v5799 = vsel %vm1471, %v5757, %v5758
  %v5800 = vsel %vm1471, %v5756, %v5757
  %v5801 = vsel %vm1471, %v5755, %v5756
  %v5802 = vsel %vm1471, %v5754, %v5755
  %v5803 = vsel %vm1471, %v5753, %v5754
  %v5804 = vsel %vm1471, %v5752, %v5753
  %v5805 = vsel %vm1471, %v5751, %v5752
  %v5806 = vsel %vm1471, %v5750, %v5751
  %v5807 = vsel %vm1471, %v5749, %v5750
  %v5808 = vsel %vm1471, %v5748, %v5749
  %v5809 = vsel %vm1471, %v5747, %v5748
  %v5810 = vsel %vm1471, %v5746, %v5747
  %v5811 = vsel %vm1471, %v5745, %v5746
  %v5812 = vsel %vm1471, %v5744, %v5745
  %v5813 = vsel %vm1471, %v5743, %v5744
  %v5814 = vsel %vm1471, %v5742, %v5743
  %v5815 = vsel %vm1471, %v5741, %v5742
  %v5816 = vsel %vm1471, %v5740, %v5741
  %v5817 = vsel %vm1471, %v5739, %v5740
  %v5818 = vsel %vm1471, %v5778, %v5739
  %s5819 = scalar_lea.vmem %s3, 48
  %v5820 = vld [vmem:[%s5819] sm:$0xff]
  %v5821 = vld [vmem:[%s5819 + $0x8] sm:$0x1]
  %v5823 = vsel %vm4450, %v5817, 0
  %v5826 = vsel %vm4450, %v5816, 0
  %v5829 = vsel %vm4450, %v5815, 0
  %v5832 = vsel %vm4450, %v5814, 0
  %v5835 = vsel %vm4450, %v5813, 0
  %v5838 = vsel %vm4450, %v5812, 0
  %v5841 = vsel %vm4450, %v5811, 0
  %v5844 = vsel %vm4450, %v5810, 0
  %v5847 = vsel %vm4450, %v5809, 0
  %v5850 = vsel %vm4450, %v5808, 0
  %v5853 = vsel %vm4450, %v5807, 0
  %v5856 = vsel %vm4450, %v5806, 0
  %v5859 = vsel %vm4450, %v5805, 0
  %v5862 = vsel %vm4450, %v5804, 0
  %v5865 = vsel %vm4450, %v5803, 0
  %v5868 = vsel %vm4450, %v5802, 0
  %v5871 = vsel %vm4450, %v5801, 0
  %v5874 = vsel %vm4450, %v5800, 0
  %v5877 = vsel %vm4450, %v5799, 0
  %v5880 = vsel %vm4450, %v5798, 0
  %v5883 = vsel %vm4450, %v5797, 0
  %v5886 = vsel %vm4450, %v5796, 0
  %v5889 = vsel %vm4450, %v5795, 0
  %v5892 = vsel %vm4450, %v5794, 0
  %v5895 = vsel %vm4450, %v5793, 0
  %v5898 = vsel %vm4450, %v5792, 0
  %v5901 = vsel %vm4450, %v5791, 0
  %v5904 = vsel %vm4450, %v5790, 0
  %v5907 = vsel %vm4450, %v5789, 0
  %v5910 = vsel %vm4450, %v5788, 0
  %v5913 = vsel %vm4450, %v5787, 0
  %v5916 = vsel %vm4450, %v5786, 0
  %v5919 = vsel %vm4450, %v5785, 0
  %v5922 = vsel %vm4450, %v5784, 0
  %v5925 = vsel %vm4450, %v5783, 0
  %v5928 = vsel %vm4450, %v5782, 0
  %v5931 = vsel %vm4450, %v5781, 0
  %v5934 = vsel %vm4450, %v5780, 0
  %v5937 = vsel %vm4450, %v5779, 0
  %v5940 = vsel %vm4450, %v5818, 0
  %v5943 = vsel %vm4571, %v5821, 0
  %5945 = vmatprep.subr.mxu0 0.0
  %5946 = vmatpush1.msra.mxu0 0.0
  %5947 = vmatprep.subr.mxu0 0.0
  %5948 = vmatpush1.msra.mxu0 0.0
  %5949 = vmatprep.subr.mxu0 0.0
  %5950 = vmatpush1.msra.mxu0 0.0
  %5951 = vmatprep.subr.mxu0 0.0
  %5952 = vmatpush1.msra.mxu0 0.0
  %5953 = vmatprep.subr.mxu0 0.0
  %5954 = vmatpush1.msra.mxu0 0.0
  %5955 = vmatprep.subr.mxu0 0.0
  %5956 = vmatpush1.msra.mxu0 0.0
  %5957 = vmatprep.subr.mxu0 0.0
  %5958 = vmatpush1.msra.mxu0 0.0
  %5959 = vmatprep.subr.mxu0 0.0
  %5960 = vmatpush1.msra.mxu0 0.0
  %5961 = vmatprep.subr.mxu0 0.0
  %5962 = vmatpush1.msra.mxu0 0.0
  %5963 = vmatprep.subr.mxu0 0.0
  %5964 = vmatpush1.msra.mxu0 0.0
  %5965 = vmatprep.subr.mxu0 0.0
  %5966 = vmatpush1.msra.mxu0 0.0
  %5967 = vmatprep.subr.mxu0 0.0
  %5968 = vmatpush1.msra.mxu0 0.0
  %5969 = vmatprep.subr.mxu0 0.0
  %5970 = vmatpush1.msra.mxu0 0.0
  %5971 = vmatprep.subr.mxu0 0.0
  %5972 = vmatpush1.msra.mxu0 0.0
  %5973 = vmatprep.subr.mxu0 0.0
  %5974 = vmatpush1.msra.mxu0 %v5943
  %5975 = vmatprep.subr.mxu0 0.0
  %5976 = vmatpush1.msra.mxu0 %v5820
  %5977 = vmatprep.subr.mxu0 0.0
  %5978 = vmatpush2.msra.mxu0 0.0
  %5979 = vmatprep.subr.mxu0 0.0
  %5980 = vmatpush2.msra.mxu0 0.0
  %5981 = vmatprep.subr.mxu0 0.0
  %5982 = vmatpush2.msra.mxu0 0.0
  %5983 = vmatprep.subr.mxu0 0.0
  %5984 = vmatpush2.msra.mxu0 0.0
  %5985 = vmatprep.subr.mxu0 0.0
  %5986 = vmatpush2.msra.mxu0 0.0
  %5987 = vmatprep.subr.mxu0 0.0
  %5988 = vmatpush2.msra.mxu0 0.0
  %5989 = vmatprep.subr.mxu0 0.0
  %5990 = vmatpush2.msra.mxu0 0.0
  %5991 = vmatprep.subr.mxu0 0.0
  %5992 = vmatpush2.msra.mxu0 0.0
  %5993 = vmatprep.subr.mxu0 0.0
  %5994 = vmatpush2.msra.mxu0 0.0
  %5995 = vmatprep.subr.mxu0 0.0
  %5996 = vmatpush2.msra.mxu0 0.0
  %5997 = vmatprep.subr.mxu0 0.0
  %5998 = vmatpush2.msra.mxu0 0.0
  %5999 = vmatprep.subr.mxu0 0.0
  %6000 = vmatpush2.msra.mxu0 0.0
  %6001 = vmatprep.subr.mxu0 0.0
  %6002 = vmatpush2.msra.mxu0 0.0
  %6003 = vmatprep.subr.mxu0 0.0
  %6004 = vmatpush2.msra.mxu0 0.0
  %6005 = vmatprep.subr.mxu0 0.0
  %6006 = vmatpush2.msra.mxu0 0.0
  %6007 = vmatprep.subr.mxu0 0.0
  %6008 = vmatpush2.msra.mxu0 0.0
  %6009 = vmatprep.mubr.f32.mxu0 0.0
  %6010 = vmatmul.mubr.f32.gmra.mxu0 %v5823
  %v6011 = vpop.f32.mrf.mxu0
  %v6012 = vadd.f32 0.0, %v6011
  %v6013 = vpop.f32.mrf.mxu0
  %6014 = vmatprep.mubr.f32.mxu0 0.0
  %6015 = vmatmul.mubr.f32.gmra.mxu0 %v5826
  %v6016 = vpop.f32.mrf.mxu0
  %v6017 = vadd.f32 0.0, %v6016
  %v6018 = vpop.f32.mrf.mxu0
  %6019 = vmatprep.mubr.f32.mxu0 0.0
  %6020 = vmatmul.mubr.f32.gmra.mxu0 %v5829
  %v6021 = vpop.f32.mrf.mxu0
  %v6022 = vadd.f32 0.0, %v6021
  %v6023 = vpop.f32.mrf.mxu0
  %6024 = vmatprep.mubr.f32.mxu0 0.0
  %6025 = vmatmul.mubr.f32.gmra.mxu0 %v5832
  %v6026 = vpop.f32.mrf.mxu0
  %v6027 = vadd.f32 0.0, %v6026
  %v6028 = vpop.f32.mrf.mxu0
  %6029 = vmatprep.mubr.f32.mxu0 0.0
  %6030 = vmatmul.mubr.f32.gmra.mxu0 %v5835
  %v6031 = vpop.f32.mrf.mxu0
  %v6032 = vadd.f32 0.0, %v6031
  %v6033 = vpop.f32.mrf.mxu0
  %6034 = vmatprep.mubr.f32.mxu0 0.0
  %6035 = vmatmul.mubr.f32.gmra.mxu0 %v5838
  %v6036 = vpop.f32.mrf.mxu0
  %v6037 = vadd.f32 0.0, %v6036
  %v6038 = vpop.f32.mrf.mxu0
  %6039 = vmatprep.mubr.f32.mxu0 0.0
  %6040 = vmatmul.mubr.f32.gmra.mxu0 %v5841
  %v6041 = vpop.f32.mrf.mxu0
  %v6042 = vadd.f32 0.0, %v6041
  %v6043 = vpop.f32.mrf.mxu0
  %6044 = vmatprep.mubr.f32.mxu0 0.0
  %6045 = vmatmul.mubr.f32.gmra.mxu0 %v5844
  %v6046 = vpop.f32.mrf.mxu0
  %v6047 = vadd.f32 0.0, %v6046
  %v6048 = vpop.f32.mrf.mxu0
  %6049 = vmatprep.mubr.f32.mxu0 0.0
  %6050 = vmatmul.mubr.f32.gmra.mxu0 %v5847
  %v6051 = vpop.f32.mrf.mxu0
  %v6052 = vadd.f32 0.0, %v6051
  %v6053 = vpop.f32.mrf.mxu0
  %6054 = vmatprep.mubr.f32.mxu0 0.0
  %6055 = vmatmul.mubr.f32.gmra.mxu0 %v5850
  %v6056 = vpop.f32.mrf.mxu0
  %v6057 = vadd.f32 0.0, %v6056
  %v6058 = vpop.f32.mrf.mxu0
  %6059 = vmatprep.mubr.f32.mxu0 0.0
  %6060 = vmatmul.mubr.f32.gmra.mxu0 %v5853
  %v6061 = vpop.f32.mrf.mxu0
  %v6062 = vadd.f32 0.0, %v6061
  %v6063 = vpop.f32.mrf.mxu0
  %6064 = vmatprep.mubr.f32.mxu0 0.0
  %6065 = vmatmul.mubr.f32.gmra.mxu0 %v5856
  %v6066 = vpop.f32.mrf.mxu0
  %v6067 = vadd.f32 0.0, %v6066
  %v6068 = vpop.f32.mrf.mxu0
  %6069 = vmatprep.mubr.f32.mxu0 0.0
  %6070 = vmatmul.mubr.f32.gmra.mxu0 %v5859
  %v6071 = vpop.f32.mrf.mxu0
  %v6072 = vadd.f32 0.0, %v6071
  %v6073 = vpop.f32.mrf.mxu0
  %6074 = vmatprep.mubr.f32.mxu0 0.0
  %6075 = vmatmul.mubr.f32.gmra.mxu0 %v5862
  %v6076 = vpop.f32.mrf.mxu0
  %v6077 = vadd.f32 0.0, %v6076
  %v6078 = vpop.f32.mrf.mxu0
  %6079 = vmatprep.mubr.f32.mxu0 0.0
  %6080 = vmatmul.mubr.f32.gmra.mxu0 %v5865
  %v6081 = vpop.f32.mrf.mxu0
  %v6082 = vadd.f32 0.0, %v6081
  %v6083 = vpop.f32.mrf.mxu0
  %6084 = vmatprep.mubr.f32.mxu0 0.0
  %6085 = vmatmul.mubr.f32.gmra.mxu0 %v5868
  %v6086 = vpop.f32.mrf.mxu0
  %v6087 = vadd.f32 0.0, %v6086
  %v6088 = vpop.f32.mrf.mxu0
  %6089 = vmatprep.mubr.f32.mxu0 0.0
  %6090 = vmatmul.mubr.f32.gmra.mxu0 %v5871
  %v6091 = vpop.f32.mrf.mxu0
  %v6092 = vadd.f32 0.0, %v6091
  %v6093 = vpop.f32.mrf.mxu0
  %6094 = vmatprep.mubr.f32.mxu0 0.0
  %6095 = vmatmul.mubr.f32.gmra.mxu0 %v5874
  %v6096 = vpop.f32.mrf.mxu0
  %v6097 = vadd.f32 0.0, %v6096
  %v6098 = vpop.f32.mrf.mxu0
  %6099 = vmatprep.mubr.f32.mxu0 0.0
  %6100 = vmatmul.mubr.f32.gmra.mxu0 %v5877
  %v6101 = vpop.f32.mrf.mxu0
  %v6102 = vadd.f32 0.0, %v6101
  %v6103 = vpop.f32.mrf.mxu0
  %6104 = vmatprep.mubr.f32.mxu0 0.0
  %6105 = vmatmul.mubr.f32.gmra.mxu0 %v5880
  %v6106 = vpop.f32.mrf.mxu0
  %v6107 = vadd.f32 0.0, %v6106
  %v6108 = vpop.f32.mrf.mxu0
  %6109 = vmatprep.mubr.f32.mxu0 0.0
  %6110 = vmatmul.mubr.f32.gmra.mxu0 %v5883
  %v6111 = vpop.f32.mrf.mxu0
  %v6112 = vadd.f32 0.0, %v6111
  %v6113 = vpop.f32.mrf.mxu0
  %6114 = vmatprep.mubr.f32.mxu0 0.0
  %6115 = vmatmul.mubr.f32.gmra.mxu0 %v5886
  %v6116 = vpop.f32.mrf.mxu0
  %v6117 = vadd.f32 0.0, %v6116
  %v6118 = vpop.f32.mrf.mxu0
  %6119 = vmatprep.mubr.f32.mxu0 0.0
  %6120 = vmatmul.mubr.f32.gmra.mxu0 %v5889
  %v6121 = vpop.f32.mrf.mxu0
  %v6122 = vadd.f32 0.0, %v6121
  %v6123 = vpop.f32.mrf.mxu0
  %6124 = vmatprep.mubr.f32.mxu0 0.0
  %6125 = vmatmul.mubr.f32.gmra.mxu0 %v5892
  %v6126 = vpop.f32.mrf.mxu0
  %v6127 = vadd.f32 0.0, %v6126
  %v6128 = vpop.f32.mrf.mxu0
  %6129 = vmatprep.mubr.f32.mxu0 0.0
  %6130 = vmatmul.mubr.f32.gmra.mxu0 %v5895
  %v6131 = vpop.f32.mrf.mxu0
  %v6132 = vadd.f32 0.0, %v6131
  %v6133 = vpop.f32.mrf.mxu0
  %6134 = vmatprep.mubr.f32.mxu0 0.0
  %6135 = vmatmul.mubr.f32.gmra.mxu0 %v5898
  %v6136 = vpop.f32.mrf.mxu0
  %v6137 = vadd.f32 0.0, %v6136
  %v6138 = vpop.f32.mrf.mxu0
  %6139 = vmatprep.mubr.f32.mxu0 0.0
  %6140 = vmatmul.mubr.f32.gmra.mxu0 %v5901
  %v6141 = vpop.f32.mrf.mxu0
  %v6142 = vadd.f32 0.0, %v6141
  %v6143 = vpop.f32.mrf.mxu0
  %6144 = vmatprep.mubr.f32.mxu0 0.0
  %6145 = vmatmul.mubr.f32.gmra.mxu0 %v5904
  %v6146 = vpop.f32.mrf.mxu0
  %v6147 = vadd.f32 0.0, %v6146
  %v6148 = vpop.f32.mrf.mxu0
  %6149 = vmatprep.mubr.f32.mxu0 0.0
  %6150 = vmatmul.mubr.f32.gmra.mxu0 %v5907
  %v6151 = vpop.f32.mrf.mxu0
  %v6152 = vadd.f32 0.0, %v6151
  %v6153 = vpop.f32.mrf.mxu0
  %6154 = vmatprep.mubr.f32.mxu0 0.0
  %6155 = vmatmul.mubr.f32.gmra.mxu0 %v5910
  %v6156 = vpop.f32.mrf.mxu0
  %v6157 = vadd.f32 0.0, %v6156
  %v6158 = vpop.f32.mrf.mxu0
  %6159 = vmatprep.mubr.f32.mxu0 0.0
  %6160 = vmatmul.mubr.f32.gmra.mxu0 %v5913
  %v6161 = vpop.f32.mrf.mxu0
  %v6162 = vadd.f32 0.0, %v6161
  %v6163 = vpop.f32.mrf.mxu0
  %6164 = vmatprep.mubr.f32.mxu0 0.0
  %6165 = vmatmul.mubr.f32.gmra.mxu0 %v5916
  %v6166 = vpop.f32.mrf.mxu0
  %v6167 = vadd.f32 0.0, %v6166
  %v6168 = vpop.f32.mrf.mxu0
  %6169 = vmatprep.mubr.f32.mxu0 0.0
  %6170 = vmatmul.mubr.f32.gmra.mxu0 %v5919
  %v6171 = vpop.f32.mrf.mxu0
  %v6172 = vadd.f32 0.0, %v6171
  %v6173 = vpop.f32.mrf.mxu0
  %6174 = vmatprep.mubr.f32.mxu0 0.0
  %6175 = vmatmul.mubr.f32.gmra.mxu0 %v5922
  %v6176 = vpop.f32.mrf.mxu0
  %v6177 = vadd.f32 0.0, %v6176
  %v6178 = vpop.f32.mrf.mxu0
  %6179 = vmatprep.mubr.f32.mxu0 0.0
  %6180 = vmatmul.mubr.f32.gmra.mxu0 %v5925
  %v6181 = vpop.f32.mrf.mxu0
  %v6182 = vadd.f32 0.0, %v6181
  %v6183 = vpop.f32.mrf.mxu0
  %6184 = vmatprep.mubr.f32.mxu0 0.0
  %6185 = vmatmul.mubr.f32.gmra.mxu0 %v5928
  %v6186 = vpop.f32.mrf.mxu0
  %v6187 = vadd.f32 0.0, %v6186
  %v6188 = vpop.f32.mrf.mxu0
  %6189 = vmatprep.mubr.f32.mxu0 0.0
  %6190 = vmatmul.mubr.f32.gmra.mxu0 %v5931
  %v6191 = vpop.f32.mrf.mxu0
  %v6192 = vadd.f32 0.0, %v6191
  %v6193 = vpop.f32.mrf.mxu0
  %6194 = vmatprep.mubr.f32.mxu0 0.0
  %6195 = vmatmul.mubr.f32.gmra.mxu0 %v5934
  %v6196 = vpop.f32.mrf.mxu0
  %v6197 = vadd.f32 0.0, %v6196
  %v6198 = vpop.f32.mrf.mxu0
  %6199 = vmatprep.mubr.f32.mxu0 0.0
  %6200 = vmatmul.mubr.f32.gmra.mxu0 %v5937
  %v6201 = vpop.f32.mrf.mxu0
  %v6202 = vadd.f32 0.0, %v6201
  %v6203 = vpop.f32.mrf.mxu0
  %6204 = vmatprep.mubr.f32.mxu0 0.0
  %6205 = vmatmul.mubr.f32.gmra.mxu0 %v5940
  %v6206 = vpop.f32.mrf.mxu0
  %v6207 = vadd.f32 0.0, %v6206
  %v6208 = vpop.f32.mrf.mxu0
  %6209 = vdwg.mxu0
  %v6210 = vadd.f32 %v5699, %v6012
  %v6211 = vadd.f32 %v5700, %v6017
  %v6212 = vadd.f32 %v5701, %v6022
  %v6213 = vadd.f32 %v5702, %v6027
  %v6214 = vadd.f32 %v5703, %v6032
  %v6215 = vadd.f32 %v5704, %v6037
  %v6216 = vadd.f32 %v5705, %v6042
  %v6217 = vadd.f32 %v5706, %v6047
  %v6218 = vadd.f32 %v5707, %v6052
  %v6219 = vadd.f32 %v5708, %v6057
  %v6220 = vadd.f32 %v5709, %v6062
  %v6221 = vadd.f32 %v5710, %v6067
  %v6222 = vadd.f32 %v5711, %v6072
  %v6223 = vadd.f32 %v5712, %v6077
  %v6224 = vadd.f32 %v5713, %v6082
  %v6225 = vadd.f32 %v5714, %v6087
  %v6226 = vadd.f32 %v5715, %v6092
  %v6227 = vadd.f32 %v5716, %v6097
  %v6228 = vadd.f32 %v5717, %v6102
  %v6229 = vadd.f32 %v5718, %v6107
  %v6230 = vadd.f32 %v5719, %v6112
  %v6231 = vadd.f32 %v5720, %v6117
  %v6232 = vadd.f32 %v5721, %v6122
  %v6233 = vadd.f32 %v5722, %v6127
  %v6234 = vadd.f32 %v5723, %v6132
  %v6235 = vadd.f32 %v5724, %v6137
  %v6236 = vadd.f32 %v5725, %v6142
  %v6237 = vadd.f32 %v5726, %v6147
  %v6238 = vadd.f32 %v5727, %v6152
  %v6239 = vadd.f32 %v5728, %v6157
  %v6240 = vadd.f32 %v5729, %v6162
  %v6241 = vadd.f32 %v5730, %v6167
  %v6242 = vadd.f32 %v5731, %v6172
  %v6243 = vadd.f32 %v5732, %v6177
  %v6244 = vadd.f32 %v5733, %v6182
  %v6245 = vadd.f32 %v5734, %v6187
  %v6246 = vadd.f32 %v5735, %v6192
  %v6247 = vadd.f32 %v5736, %v6197
  %v6248 = vadd.f32 %v5737, %v6202
  %v6249 = vadd.f32 %v5738, %v6207
  %v6250 = vrot.slane %v4325, 4
  %v6251 = vrot.slane %v4326, 4
  %v6252 = vrot.slane %v4327, 4
  %v6253 = vrot.slane %v4328, 4
  %v6254 = vrot.slane %v4329, 4
  %v6255 = vrot.slane %v4330, 4
  %v6256 = vrot.slane %v4331, 4
  %v6257 = vrot.slane %v4332, 4
  %v6258 = vrot.slane %v4333, 4
  %v6259 = vrot.slane %v4334, 4
  %v6260 = vrot.slane %v4335, 4
  %v6261 = vrot.slane %v4336, 4
  %v6262 = vrot.slane %v4337, 4
  %v6263 = vrot.slane %v4338, 4
  %v6264 = vrot.slane %v4339, 4
  %v6265 = vrot.slane %v4340, 4
  %v6266 = vrot.slane %v4341, 4
  %v6267 = vrot.slane %v4342, 4
  %v6268 = vrot.slane %v4343, 4
  %v6269 = vrot.slane %v4344, 4
  %v6270 = vrot.slane %v4345, 4
  %v6271 = vrot.slane %v4346, 4
  %v6272 = vrot.slane %v4347, 4
  %v6273 = vrot.slane %v4348, 4
  %v6274 = vrot.slane %v4349, 4
  %v6275 = vrot.slane %v4350, 4
  %v6276 = vrot.slane %v4351, 4
  %v6277 = vrot.slane %v4352, 4
  %v6278 = vrot.slane %v4353, 4
  %v6279 = vrot.slane %v4354, 4
  %v6280 = vrot.slane %v4355, 4
  %v6281 = vrot.slane %v4356, 4
  %v6282 = vrot.slane %v4357, 4
  %v6283 = vrot.slane %v4358, 4
  %v6284 = vrot.slane %v4359, 4
  %v6285 = vrot.slane %v4360, 4
  %v6286 = vrot.slane %v4361, 4
  %v6287 = vrot.slane %v4362, 4
  %v6288 = vrot.slane %v4363, 4
  %v6289 = vrot.slane %v4364, 4
  %v6290 = vsel %vm1979, %v6288, %v6289
  %v6291 = vsel %vm1979, %v6287, %v6288
  %v6292 = vsel %vm1979, %v6286, %v6287
  %v6293 = vsel %vm1979, %v6285, %v6286
  %v6294 = vsel %vm1979, %v6284, %v6285
  %v6295 = vsel %vm1979, %v6283, %v6284
  %v6296 = vsel %vm1979, %v6282, %v6283
  %v6297 = vsel %vm1979, %v6281, %v6282
  %v6298 = vsel %vm1979, %v6280, %v6281
  %v6299 = vsel %vm1979, %v6279, %v6280
  %v6300 = vsel %vm1979, %v6278, %v6279
  %v6301 = vsel %vm1979, %v6277, %v6278
  %v6302 = vsel %vm1979, %v6276, %v6277
  %v6303 = vsel %vm1979, %v6275, %v6276
  %v6304 = vsel %vm1979, %v6274, %v6275
  %v6305 = vsel %vm1979, %v6273, %v6274
  %v6306 = vsel %vm1979, %v6272, %v6273
  %v6307 = vsel %vm1979, %v6271, %v6272
  %v6308 = vsel %vm1979, %v6270, %v6271
  %v6309 = vsel %vm1979, %v6269, %v6270
  %v6310 = vsel %vm1979, %v6268, %v6269
  %v6311 = vsel %vm1979, %v6267, %v6268
  %v6312 = vsel %vm1979, %v6266, %v6267
  %v6313 = vsel %vm1979, %v6265, %v6266
  %v6314 = vsel %vm1979, %v6264, %v6265
  %v6315 = vsel %vm1979, %v6263, %v6264
  %v6316 = vsel %vm1979, %v6262, %v6263
  %v6317 = vsel %vm1979, %v6261, %v6262
  %v6318 = vsel %vm1979, %v6260, %v6261
  %v6319 = vsel %vm1979, %v6259, %v6260
  %v6320 = vsel %vm1979, %v6258, %v6259
  %v6321 = vsel %vm1979, %v6257, %v6258
  %v6322 = vsel %vm1979, %v6256, %v6257
  %v6323 = vsel %vm1979, %v6255, %v6256
  %v6324 = vsel %vm1979, %v6254, %v6255
  %v6325 = vsel %vm1979, %v6253, %v6254
  %v6326 = vsel %vm1979, %v6252, %v6253
  %v6327 = vsel %vm1979, %v6251, %v6252
  %v6328 = vsel %vm1979, %v6250, %v6251
  %v6329 = vsel %vm1979, %v6289, %v6250
  %s6330 = scalar_lea.vmem %s3, 64
  %v6331 = vld [vmem:[%s6330] sm:$0xff]
  %v6332 = vld [vmem:[%s6330 + $0x8] sm:$0x1]
  %v6334 = vsel %vm4450, %v6328, 0
  %v6337 = vsel %vm4450, %v6327, 0
  %v6340 = vsel %vm4450, %v6326, 0
  %v6343 = vsel %vm4450, %v6325, 0
  %v6346 = vsel %vm4450, %v6324, 0
  %v6349 = vsel %vm4450, %v6323, 0
  %v6352 = vsel %vm4450, %v6322, 0
  %v6355 = vsel %vm4450, %v6321, 0
  %v6358 = vsel %vm4450, %v6320, 0
  %v6361 = vsel %vm4450, %v6319, 0
  %v6364 = vsel %vm4450, %v6318, 0
  %v6367 = vsel %vm4450, %v6317, 0
  %v6370 = vsel %vm4450, %v6316, 0
  %v6373 = vsel %vm4450, %v6315, 0
  %v6376 = vsel %vm4450, %v6314, 0
  %v6379 = vsel %vm4450, %v6313, 0
  %v6382 = vsel %vm4450, %v6312, 0
  %v6385 = vsel %vm4450, %v6311, 0
  %v6388 = vsel %vm4450, %v6310, 0
  %v6391 = vsel %vm4450, %v6309, 0
  %v6394 = vsel %vm4450, %v6308, 0
  %v6397 = vsel %vm4450, %v6307, 0
  %v6400 = vsel %vm4450, %v6306, 0
  %v6403 = vsel %vm4450, %v6305, 0
  %v6406 = vsel %vm4450, %v6304, 0
  %v6409 = vsel %vm4450, %v6303, 0
  %v6412 = vsel %vm4450, %v6302, 0
  %v6415 = vsel %vm4450, %v6301, 0
  %v6418 = vsel %vm4450, %v6300, 0
  %v6421 = vsel %vm4450, %v6299, 0
  %v6424 = vsel %vm4450, %v6298, 0
  %v6427 = vsel %vm4450, %v6297, 0
  %v6430 = vsel %vm4450, %v6296, 0
  %v6433 = vsel %vm4450, %v6295, 0
  %v6436 = vsel %vm4450, %v6294, 0
  %v6439 = vsel %vm4450, %v6293, 0
  %v6442 = vsel %vm4450, %v6292, 0
  %v6445 = vsel %vm4450, %v6291, 0
  %v6448 = vsel %vm4450, %v6290, 0
  %v6451 = vsel %vm4450, %v6329, 0
  %v6454 = vsel %vm4571, %v6332, 0
  %6456 = vmatprep.subr.mxu0 0.0
  %6457 = vmatpush1.msra.mxu0 0.0
  %6458 = vmatprep.subr.mxu0 0.0
  %6459 = vmatpush1.msra.mxu0 0.0
  %6460 = vmatprep.subr.mxu0 0.0
  %6461 = vmatpush1.msra.mxu0 0.0
  %6462 = vmatprep.subr.mxu0 0.0
  %6463 = vmatpush1.msra.mxu0 0.0
  %6464 = vmatprep.subr.mxu0 0.0
  %6465 = vmatpush1.msra.mxu0 0.0
  %6466 = vmatprep.subr.mxu0 0.0
  %6467 = vmatpush1.msra.mxu0 0.0
  %6468 = vmatprep.subr.mxu0 0.0
  %6469 = vmatpush1.msra.mxu0 0.0
  %6470 = vmatprep.subr.mxu0 0.0
  %6471 = vmatpush1.msra.mxu0 0.0
  %6472 = vmatprep.subr.mxu0 0.0
  %6473 = vmatpush1.msra.mxu0 0.0
  %6474 = vmatprep.subr.mxu0 0.0
  %6475 = vmatpush1.msra.mxu0 0.0
  %6476 = vmatprep.subr.mxu0 0.0
  %6477 = vmatpush1.msra.mxu0 0.0
  %6478 = vmatprep.subr.mxu0 0.0
  %6479 = vmatpush1.msra.mxu0 0.0
  %6480 = vmatprep.subr.mxu0 0.0
  %6481 = vmatpush1.msra.mxu0 0.0
  %6482 = vmatprep.subr.mxu0 0.0
  %6483 = vmatpush1.msra.mxu0 0.0
  %6484 = vmatprep.subr.mxu0 0.0
  %6485 = vmatpush1.msra.mxu0 %v6454
  %6486 = vmatprep.subr.mxu0 0.0
  %6487 = vmatpush1.msra.mxu0 %v6331
  %6488 = vmatprep.subr.mxu0 0.0
  %6489 = vmatpush2.msra.mxu0 0.0
  %6490 = vmatprep.subr.mxu0 0.0
  %6491 = vmatpush2.msra.mxu0 0.0
  %6492 = vmatprep.subr.mxu0 0.0
  %6493 = vmatpush2.msra.mxu0 0.0
  %6494 = vmatprep.subr.mxu0 0.0
  %6495 = vmatpush2.msra.mxu0 0.0
  %6496 = vmatprep.subr.mxu0 0.0
  %6497 = vmatpush2.msra.mxu0 0.0
  %6498 = vmatprep.subr.mxu0 0.0
  %6499 = vmatpush2.msra.mxu0 0.0
  %6500 = vmatprep.subr.mxu0 0.0
  %6501 = vmatpush2.msra.mxu0 0.0
  %6502 = vmatprep.subr.mxu0 0.0
  %6503 = vmatpush2.msra.mxu0 0.0
  %6504 = vmatprep.subr.mxu0 0.0
  %6505 = vmatpush2.msra.mxu0 0.0
  %6506 = vmatprep.subr.mxu0 0.0
  %6507 = vmatpush2.msra.mxu0 0.0
  %6508 = vmatprep.subr.mxu0 0.0
  %6509 = vmatpush2.msra.mxu0 0.0
  %6510 = vmatprep.subr.mxu0 0.0
  %6511 = vmatpush2.msra.mxu0 0.0
  %6512 = vmatprep.subr.mxu0 0.0
  %6513 = vmatpush2.msra.mxu0 0.0
  %6514 = vmatprep.subr.mxu0 0.0
  %6515 = vmatpush2.msra.mxu0 0.0
  %6516 = vmatprep.subr.mxu0 0.0
  %6517 = vmatpush2.msra.mxu0 0.0
  %6518 = vmatprep.subr.mxu0 0.0
  %6519 = vmatpush2.msra.mxu0 0.0
  %6520 = vmatprep.mubr.f32.mxu0 0.0
  %6521 = vmatmul.mubr.f32.gmra.mxu0 %v6334
  %v6522 = vpop.f32.mrf.mxu0
  %v6523 = vadd.f32 0.0, %v6522
  %v6524 = vpop.f32.mrf.mxu0
  %6525 = vmatprep.mubr.f32.mxu0 0.0
  %6526 = vmatmul.mubr.f32.gmra.mxu0 %v6337
  %v6527 = vpop.f32.mrf.mxu0
  %v6528 = vadd.f32 0.0, %v6527
  %v6529 = vpop.f32.mrf.mxu0
  %6530 = vmatprep.mubr.f32.mxu0 0.0
  %6531 = vmatmul.mubr.f32.gmra.mxu0 %v6340
  %v6532 = vpop.f32.mrf.mxu0
  %v6533 = vadd.f32 0.0, %v6532
  %v6534 = vpop.f32.mrf.mxu0
  %6535 = vmatprep.mubr.f32.mxu0 0.0
  %6536 = vmatmul.mubr.f32.gmra.mxu0 %v6343
  %v6537 = vpop.f32.mrf.mxu0
  %v6538 = vadd.f32 0.0, %v6537
  %v6539 = vpop.f32.mrf.mxu0
  %6540 = vmatprep.mubr.f32.mxu0 0.0
  %6541 = vmatmul.mubr.f32.gmra.mxu0 %v6346
  %v6542 = vpop.f32.mrf.mxu0
  %v6543 = vadd.f32 0.0, %v6542
  %v6544 = vpop.f32.mrf.mxu0
  %6545 = vmatprep.mubr.f32.mxu0 0.0
  %6546 = vmatmul.mubr.f32.gmra.mxu0 %v6349
  %v6547 = vpop.f32.mrf.mxu0
  %v6548 = vadd.f32 0.0, %v6547
  %v6549 = vpop.f32.mrf.mxu0
  %6550 = vmatprep.mubr.f32.mxu0 0.0
  %6551 = vmatmul.mubr.f32.gmra.mxu0 %v6352
  %v6552 = vpop.f32.mrf.mxu0
  %v6553 = vadd.f32 0.0, %v6552
  %v6554 = vpop.f32.mrf.mxu0
  %6555 = vmatprep.mubr.f32.mxu0 0.0
  %6556 = vmatmul.mubr.f32.gmra.mxu0 %v6355
  %v6557 = vpop.f32.mrf.mxu0
  %v6558 = vadd.f32 0.0, %v6557
  %v6559 = vpop.f32.mrf.mxu0
  %6560 = vmatprep.mubr.f32.mxu0 0.0
  %6561 = vmatmul.mubr.f32.gmra.mxu0 %v6358
  %v6562 = vpop.f32.mrf.mxu0
  %v6563 = vadd.f32 0.0, %v6562
  %v6564 = vpop.f32.mrf.mxu0
  %6565 = vmatprep.mubr.f32.mxu0 0.0
  %6566 = vmatmul.mubr.f32.gmra.mxu0 %v6361
  %v6567 = vpop.f32.mrf.mxu0
  %v6568 = vadd.f32 0.0, %v6567
  %v6569 = vpop.f32.mrf.mxu0
  %6570 = vmatprep.mubr.f32.mxu0 0.0
  %6571 = vmatmul.mubr.f32.gmra.mxu0 %v6364
  %v6572 = vpop.f32.mrf.mxu0
  %v6573 = vadd.f32 0.0, %v6572
  %v6574 = vpop.f32.mrf.mxu0
  %6575 = vmatprep.mubr.f32.mxu0 0.0
  %6576 = vmatmul.mubr.f32.gmra.mxu0 %v6367
  %v6577 = vpop.f32.mrf.mxu0
  %v6578 = vadd.f32 0.0, %v6577
  %v6579 = vpop.f32.mrf.mxu0
  %6580 = vmatprep.mubr.f32.mxu0 0.0
  %6581 = vmatmul.mubr.f32.gmra.mxu0 %v6370
  %v6582 = vpop.f32.mrf.mxu0
  %v6583 = vadd.f32 0.0, %v6582
  %v6584 = vpop.f32.mrf.mxu0
  %6585 = vmatprep.mubr.f32.mxu0 0.0
  %6586 = vmatmul.mubr.f32.gmra.mxu0 %v6373
  %v6587 = vpop.f32.mrf.mxu0
  %v6588 = vadd.f32 0.0, %v6587
  %v6589 = vpop.f32.mrf.mxu0
  %6590 = vmatprep.mubr.f32.mxu0 0.0
  %6591 = vmatmul.mubr.f32.gmra.mxu0 %v6376
  %v6592 = vpop.f32.mrf.mxu0
  %v6593 = vadd.f32 0.0, %v6592
  %v6594 = vpop.f32.mrf.mxu0
  %6595 = vmatprep.mubr.f32.mxu0 0.0
  %6596 = vmatmul.mubr.f32.gmra.mxu0 %v6379
  %v6597 = vpop.f32.mrf.mxu0
  %v6598 = vadd.f32 0.0, %v6597
  %v6599 = vpop.f32.mrf.mxu0
  %6600 = vmatprep.mubr.f32.mxu0 0.0
  %6601 = vmatmul.mubr.f32.gmra.mxu0 %v6382
  %v6602 = vpop.f32.mrf.mxu0
  %v6603 = vadd.f32 0.0, %v6602
  %v6604 = vpop.f32.mrf.mxu0
  %6605 = vmatprep.mubr.f32.mxu0 0.0
  %6606 = vmatmul.mubr.f32.gmra.mxu0 %v6385
  %v6607 = vpop.f32.mrf.mxu0
  %v6608 = vadd.f32 0.0, %v6607
  %v6609 = vpop.f32.mrf.mxu0
  %6610 = vmatprep.mubr.f32.mxu0 0.0
  %6611 = vmatmul.mubr.f32.gmra.mxu0 %v6388
  %v6612 = vpop.f32.mrf.mxu0
  %v6613 = vadd.f32 0.0, %v6612
  %v6614 = vpop.f32.mrf.mxu0
  %6615 = vmatprep.mubr.f32.mxu0 0.0
  %6616 = vmatmul.mubr.f32.gmra.mxu0 %v6391
  %v6617 = vpop.f32.mrf.mxu0
  %v6618 = vadd.f32 0.0, %v6617
  %v6619 = vpop.f32.mrf.mxu0
  %6620 = vmatprep.mubr.f32.mxu0 0.0
  %6621 = vmatmul.mubr.f32.gmra.mxu0 %v6394
  %v6622 = vpop.f32.mrf.mxu0
  %v6623 = vadd.f32 0.0, %v6622
  %v6624 = vpop.f32.mrf.mxu0
  %6625 = vmatprep.mubr.f32.mxu0 0.0
  %6626 = vmatmul.mubr.f32.gmra.mxu0 %v6397
  %v6627 = vpop.f32.mrf.mxu0
  %v6628 = vadd.f32 0.0, %v6627
  %v6629 = vpop.f32.mrf.mxu0
  %6630 = vmatprep.mubr.f32.mxu0 0.0
  %6631 = vmatmul.mubr.f32.gmra.mxu0 %v6400
  %v6632 = vpop.f32.mrf.mxu0
  %v6633 = vadd.f32 0.0, %v6632
  %v6634 = vpop.f32.mrf.mxu0
  %6635 = vmatprep.mubr.f32.mxu0 0.0
  %6636 = vmatmul.mubr.f32.gmra.mxu0 %v6403
  %v6637 = vpop.f32.mrf.mxu0
  %v6638 = vadd.f32 0.0, %v6637
  %v6639 = vpop.f32.mrf.mxu0
  %6640 = vmatprep.mubr.f32.mxu0 0.0
  %6641 = vmatmul.mubr.f32.gmra.mxu0 %v6406
  %v6642 = vpop.f32.mrf.mxu0
  %v6643 = vadd.f32 0.0, %v6642
  %v6644 = vpop.f32.mrf.mxu0
  %6645 = vmatprep.mubr.f32.mxu0 0.0
  %6646 = vmatmul.mubr.f32.gmra.mxu0 %v6409
  %v6647 = vpop.f32.mrf.mxu0
  %v6648 = vadd.f32 0.0, %v6647
  %v6649 = vpop.f32.mrf.mxu0
  %6650 = vmatprep.mubr.f32.mxu0 0.0
  %6651 = vmatmul.mubr.f32.gmra.mxu0 %v6412
  %v6652 = vpop.f32.mrf.mxu0
  %v6653 = vadd.f32 0.0, %v6652
  %v6654 = vpop.f32.mrf.mxu0
  %6655 = vmatprep.mubr.f32.mxu0 0.0
  %6656 = vmatmul.mubr.f32.gmra.mxu0 %v6415
  %v6657 = vpop.f32.mrf.mxu0
  %v6658 = vadd.f32 0.0, %v6657
  %v6659 = vpop.f32.mrf.mxu0
  %6660 = vmatprep.mubr.f32.mxu0 0.0
  %6661 = vmatmul.mubr.f32.gmra.mxu0 %v6418
  %v6662 = vpop.f32.mrf.mxu0
  %v6663 = vadd.f32 0.0, %v6662
  %v6664 = vpop.f32.mrf.mxu0
  %6665 = vmatprep.mubr.f32.mxu0 0.0
  %6666 = vmatmul.mubr.f32.gmra.mxu0 %v6421
  %v6667 = vpop.f32.mrf.mxu0
  %v6668 = vadd.f32 0.0, %v6667
  %v6669 = vpop.f32.mrf.mxu0
  %6670 = vmatprep.mubr.f32.mxu0 0.0
  %6671 = vmatmul.mubr.f32.gmra.mxu0 %v6424
  %v6672 = vpop.f32.mrf.mxu0
  %v6673 = vadd.f32 0.0, %v6672
  %v6674 = vpop.f32.mrf.mxu0
  %6675 = vmatprep.mubr.f32.mxu0 0.0
  %6676 = vmatmul.mubr.f32.gmra.mxu0 %v6427
  %v6677 = vpop.f32.mrf.mxu0
  %v6678 = vadd.f32 0.0, %v6677
  %v6679 = vpop.f32.mrf.mxu0
  %6680 = vmatprep.mubr.f32.mxu0 0.0
  %6681 = vmatmul.mubr.f32.gmra.mxu0 %v6430
  %v6682 = vpop.f32.mrf.mxu0
  %v6683 = vadd.f32 0.0, %v6682
  %v6684 = vpop.f32.mrf.mxu0
  %6685 = vmatprep.mubr.f32.mxu0 0.0
  %6686 = vmatmul.mubr.f32.gmra.mxu0 %v6433
  %v6687 = vpop.f32.mrf.mxu0
  %v6688 = vadd.f32 0.0, %v6687
  %v6689 = vpop.f32.mrf.mxu0
  %6690 = vmatprep.mubr.f32.mxu0 0.0
  %6691 = vmatmul.mubr.f32.gmra.mxu0 %v6436
  %v6692 = vpop.f32.mrf.mxu0
  %v6693 = vadd.f32 0.0, %v6692
  %v6694 = vpop.f32.mrf.mxu0
  %6695 = vmatprep.mubr.f32.mxu0 0.0
  %6696 = vmatmul.mubr.f32.gmra.mxu0 %v6439
  %v6697 = vpop.f32.mrf.mxu0
  %v6698 = vadd.f32 0.0, %v6697
  %v6699 = vpop.f32.mrf.mxu0
  %6700 = vmatprep.mubr.f32.mxu0 0.0
  %6701 = vmatmul.mubr.f32.gmra.mxu0 %v6442
  %v6702 = vpop.f32.mrf.mxu0
  %v6703 = vadd.f32 0.0, %v6702
  %v6704 = vpop.f32.mrf.mxu0
  %6705 = vmatprep.mubr.f32.mxu0 0.0
  %6706 = vmatmul.mubr.f32.gmra.mxu0 %v6445
  %v6707 = vpop.f32.mrf.mxu0
  %v6708 = vadd.f32 0.0, %v6707
  %v6709 = vpop.f32.mrf.mxu0
  %6710 = vmatprep.mubr.f32.mxu0 0.0
  %6711 = vmatmul.mubr.f32.gmra.mxu0 %v6448
  %v6712 = vpop.f32.mrf.mxu0
  %v6713 = vadd.f32 0.0, %v6712
  %v6714 = vpop.f32.mrf.mxu0
  %6715 = vmatprep.mubr.f32.mxu0 0.0
  %6716 = vmatmul.mubr.f32.gmra.mxu0 %v6451
  %v6717 = vpop.f32.mrf.mxu0
  %v6718 = vadd.f32 0.0, %v6717
  %v6719 = vpop.f32.mrf.mxu0
  %6720 = vdwg.mxu0
  %v6721 = vadd.f32 %v6210, %v6523
  %v6722 = vadd.f32 %v6211, %v6528
  %v6723 = vadd.f32 %v6212, %v6533
  %v6724 = vadd.f32 %v6213, %v6538
  %v6725 = vadd.f32 %v6214, %v6543
  %v6726 = vadd.f32 %v6215, %v6548
  %v6727 = vadd.f32 %v6216, %v6553
  %v6728 = vadd.f32 %v6217, %v6558
  %v6729 = vadd.f32 %v6218, %v6563
  %v6730 = vadd.f32 %v6219, %v6568
  %v6731 = vadd.f32 %v6220, %v6573
  %v6732 = vadd.f32 %v6221, %v6578
  %v6733 = vadd.f32 %v6222, %v6583
  %v6734 = vadd.f32 %v6223, %v6588
  %v6735 = vadd.f32 %v6224, %v6593
  %v6736 = vadd.f32 %v6225, %v6598
  %v6737 = vadd.f32 %v6226, %v6603
  %v6738 = vadd.f32 %v6227, %v6608
  %v6739 = vadd.f32 %v6228, %v6613
  %v6740 = vadd.f32 %v6229, %v6618
  %v6741 = vadd.f32 %v6230, %v6623
  %v6742 = vadd.f32 %v6231, %v6628
  %v6743 = vadd.f32 %v6232, %v6633
  %v6744 = vadd.f32 %v6233, %v6638
  %v6745 = vadd.f32 %v6234, %v6643
  %v6746 = vadd.f32 %v6235, %v6648
  %v6747 = vadd.f32 %v6236, %v6653
  %v6748 = vadd.f32 %v6237, %v6658
  %v6749 = vadd.f32 %v6238, %v6663
  %v6750 = vadd.f32 %v6239, %v6668
  %v6751 = vadd.f32 %v6240, %v6673
  %v6752 = vadd.f32 %v6241, %v6678
  %v6753 = vadd.f32 %v6242, %v6683
  %v6754 = vadd.f32 %v6243, %v6688
  %v6755 = vadd.f32 %v6244, %v6693
  %v6756 = vadd.f32 %v6245, %v6698
  %v6757 = vadd.f32 %v6246, %v6703
  %v6758 = vadd.f32 %v6247, %v6708
  %v6759 = vadd.f32 %v6248, %v6713
  %v6760 = vadd.f32 %v6249, %v6718
  %v6761 = vrot.slane %v4325, 5
  %v6762 = vrot.slane %v4326, 5
  %v6763 = vrot.slane %v4327, 5
  %v6764 = vrot.slane %v4328, 5
  %v6765 = vrot.slane %v4329, 5
  %v6766 = vrot.slane %v4330, 5
  %v6767 = vrot.slane %v4331, 5
  %v6768 = vrot.slane %v4332, 5
  %v6769 = vrot.slane %v4333, 5
  %v6770 = vrot.slane %v4334, 5
  %v6771 = vrot.slane %v4335, 5
  %v6772 = vrot.slane %v4336, 5
  %v6773 = vrot.slane %v4337, 5
  %v6774 = vrot.slane %v4338, 5
  %v6775 = vrot.slane %v4339, 5
  %v6776 = vrot.slane %v4340, 5
  %v6777 = vrot.slane %v4341, 5
  %v6778 = vrot.slane %v4342, 5
  %v6779 = vrot.slane %v4343, 5
  %v6780 = vrot.slane %v4344, 5
  %v6781 = vrot.slane %v4345, 5
  %v6782 = vrot.slane %v4346, 5
  %v6783 = vrot.slane %v4347, 5
  %v6784 = vrot.slane %v4348, 5
  %v6785 = vrot.slane %v4349, 5
  %v6786 = vrot.slane %v4350, 5
  %v6787 = vrot.slane %v4351, 5
  %v6788 = vrot.slane %v4352, 5
  %v6789 = vrot.slane %v4353, 5
  %v6790 = vrot.slane %v4354, 5
  %v6791 = vrot.slane %v4355, 5
  %v6792 = vrot.slane %v4356, 5
  %v6793 = vrot.slane %v4357, 5
  %v6794 = vrot.slane %v4358, 5
  %v6795 = vrot.slane %v4359, 5
  %v6796 = vrot.slane %v4360, 5
  %v6797 = vrot.slane %v4361, 5
  %v6798 = vrot.slane %v4362, 5
  %v6799 = vrot.slane %v4363, 5
  %v6800 = vrot.slane %v4364, 5
  %v6801 = vsel %vm2487, %v6799, %v6800
  %v6802 = vsel %vm2487, %v6798, %v6799
  %v6803 = vsel %vm2487, %v6797, %v6798
  %v6804 = vsel %vm2487, %v6796, %v6797
  %v6805 = vsel %vm2487, %v6795, %v6796
  %v6806 = vsel %vm2487, %v6794, %v6795
  %v6807 = vsel %vm2487, %v6793, %v6794
  %v6808 = vsel %vm2487, %v6792, %v6793
  %v6809 = vsel %vm2487, %v6791, %v6792
  %v6810 = vsel %vm2487, %v6790, %v6791
  %v6811 = vsel %vm2487, %v6789, %v6790
  %v6812 = vsel %vm2487, %v6788, %v6789
  %v6813 = vsel %vm2487, %v6787, %v6788
  %v6814 = vsel %vm2487, %v6786, %v6787
  %v6815 = vsel %vm2487, %v6785, %v6786
  %v6816 = vsel %vm2487, %v6784, %v6785
  %v6817 = vsel %vm2487, %v6783, %v6784
  %v6818 = vsel %vm2487, %v6782, %v6783
  %v6819 = vsel %vm2487, %v6781, %v6782
  %v6820 = vsel %vm2487, %v6780, %v6781
  %v6821 = vsel %vm2487, %v6779, %v6780
  %v6822 = vsel %vm2487, %v6778, %v6779
  %v6823 = vsel %vm2487, %v6777, %v6778
  %v6824 = vsel %vm2487, %v6776, %v6777
  %v6825 = vsel %vm2487, %v6775, %v6776
  %v6826 = vsel %vm2487, %v6774, %v6775
  %v6827 = vsel %vm2487, %v6773, %v6774
  %v6828 = vsel %vm2487, %v6772, %v6773
  %v6829 = vsel %vm2487, %v6771, %v6772
  %v6830 = vsel %vm2487, %v6770, %v6771
  %v6831 = vsel %vm2487, %v6769, %v6770
  %v6832 = vsel %vm2487, %v6768, %v6769
  %v6833 = vsel %vm2487, %v6767, %v6768
  %v6834 = vsel %vm2487, %v6766, %v6767
  %v6835 = vsel %vm2487, %v6765, %v6766
  %v6836 = vsel %vm2487, %v6764, %v6765
  %v6837 = vsel %vm2487, %v6763, %v6764
  %v6838 = vsel %vm2487, %v6762, %v6763
  %v6839 = vsel %vm2487, %v6761, %v6762
  %v6840 = vsel %vm2487, %v6800, %v6761
  %s6841 = scalar_lea.vmem %s3, 80
  %v6842 = vld [vmem:[%s6841] sm:$0xff]
  %v6843 = vld [vmem:[%s6841 + $0x8] sm:$0x1]
  %v6845 = vsel %vm4450, %v6839, 0
  %v6848 = vsel %vm4450, %v6838, 0
  %v6851 = vsel %vm4450, %v6837, 0
  %v6854 = vsel %vm4450, %v6836, 0
  %v6857 = vsel %vm4450, %v6835, 0
  %v6860 = vsel %vm4450, %v6834, 0
  %v6863 = vsel %vm4450, %v6833, 0
  %v6866 = vsel %vm4450, %v6832, 0
  %v6869 = vsel %vm4450, %v6831, 0
  %v6872 = vsel %vm4450, %v6830, 0
  %v6875 = vsel %vm4450, %v6829, 0
  %v6878 = vsel %vm4450, %v6828, 0
  %v6881 = vsel %vm4450, %v6827, 0
  %v6884 = vsel %vm4450, %v6826, 0
  %v6887 = vsel %vm4450, %v6825, 0
  %v6890 = vsel %vm4450, %v6824, 0
  %v6893 = vsel %vm4450, %v6823, 0
  %v6896 = vsel %vm4450, %v6822, 0
  %v6899 = vsel %vm4450, %v6821, 0
  %v6902 = vsel %vm4450, %v6820, 0
  %v6905 = vsel %vm4450, %v6819, 0
  %v6908 = vsel %vm4450, %v6818, 0
  %v6911 = vsel %vm4450, %v6817, 0
  %v6914 = vsel %vm4450, %v6816, 0
  %v6917 = vsel %vm4450, %v6815, 0
  %v6920 = vsel %vm4450, %v6814, 0
  %v6923 = vsel %vm4450, %v6813, 0
  %v6926 = vsel %vm4450, %v6812, 0
  %v6929 = vsel %vm4450, %v6811, 0
  %v6932 = vsel %vm4450, %v6810, 0
  %v6935 = vsel %vm4450, %v6809, 0
  %v6938 = vsel %vm4450, %v6808, 0
  %v6941 = vsel %vm4450, %v6807, 0
  %v6944 = vsel %vm4450, %v6806, 0
  %v6947 = vsel %vm4450, %v6805, 0
  %v6950 = vsel %vm4450, %v6804, 0
  %v6953 = vsel %vm4450, %v6803, 0
  %v6956 = vsel %vm4450, %v6802, 0
  %v6959 = vsel %vm4450, %v6801, 0
  %v6962 = vsel %vm4450, %v6840, 0
  %v6965 = vsel %vm4571, %v6843, 0
  %6967 = vmatprep.subr.mxu0 0.0
  %6968 = vmatpush1.msra.mxu0 0.0
  %6969 = vmatprep.subr.mxu0 0.0
  %6970 = vmatpush1.msra.mxu0 0.0
  %6971 = vmatprep.subr.mxu0 0.0
  %6972 = vmatpush1.msra.mxu0 0.0
  %6973 = vmatprep.subr.mxu0 0.0
  %6974 = vmatpush1.msra.mxu0 0.0
  %6975 = vmatprep.subr.mxu0 0.0
  %6976 = vmatpush1.msra.mxu0 0.0
  %6977 = vmatprep.subr.mxu0 0.0
  %6978 = vmatpush1.msra.mxu0 0.0
  %6979 = vmatprep.subr.mxu0 0.0
  %6980 = vmatpush1.msra.mxu0 0.0
  %6981 = vmatprep.subr.mxu0 0.0
  %6982 = vmatpush1.msra.mxu0 0.0
  %6983 = vmatprep.subr.mxu0 0.0
  %6984 = vmatpush1.msra.mxu0 0.0
  %6985 = vmatprep.subr.mxu0 0.0
  %6986 = vmatpush1.msra.mxu0 0.0
  %6987 = vmatprep.subr.mxu0 0.0
  %6988 = vmatpush1.msra.mxu0 0.0
  %6989 = vmatprep.subr.mxu0 0.0
  %6990 = vmatpush1.msra.mxu0 0.0
  %6991 = vmatprep.subr.mxu0 0.0
  %6992 = vmatpush1.msra.mxu0 0.0
  %6993 = vmatprep.subr.mxu0 0.0
  %6994 = vmatpush1.msra.mxu0 0.0
  %6995 = vmatprep.subr.mxu0 0.0
  %6996 = vmatpush1.msra.mxu0 %v6965
  %6997 = vmatprep.subr.mxu0 0.0
  %6998 = vmatpush1.msra.mxu0 %v6842
  %6999 = vmatprep.subr.mxu0 0.0
  %7000 = vmatpush2.msra.mxu0 0.0
  %7001 = vmatprep.subr.mxu0 0.0
  %7002 = vmatpush2.msra.mxu0 0.0
  %7003 = vmatprep.subr.mxu0 0.0
  %7004 = vmatpush2.msra.mxu0 0.0
  %7005 = vmatprep.subr.mxu0 0.0
  %7006 = vmatpush2.msra.mxu0 0.0
  %7007 = vmatprep.subr.mxu0 0.0
  %7008 = vmatpush2.msra.mxu0 0.0
  %7009 = vmatprep.subr.mxu0 0.0
  %7010 = vmatpush2.msra.mxu0 0.0
  %7011 = vmatprep.subr.mxu0 0.0
  %7012 = vmatpush2.msra.mxu0 0.0
  %7013 = vmatprep.subr.mxu0 0.0
  %7014 = vmatpush2.msra.mxu0 0.0
  %7015 = vmatprep.subr.mxu0 0.0
  %7016 = vmatpush2.msra.mxu0 0.0
  %7017 = vmatprep.subr.mxu0 0.0
  %7018 = vmatpush2.msra.mxu0 0.0
  %7019 = vmatprep.subr.mxu0 0.0
  %7020 = vmatpush2.msra.mxu0 0.0
  %7021 = vmatprep.subr.mxu0 0.0
  %7022 = vmatpush2.msra.mxu0 0.0
  %7023 = vmatprep.subr.mxu0 0.0
  %7024 = vmatpush2.msra.mxu0 0.0
  %7025 = vmatprep.subr.mxu0 0.0
  %7026 = vmatpush2.msra.mxu0 0.0
  %7027 = vmatprep.subr.mxu0 0.0
  %7028 = vmatpush2.msra.mxu0 0.0
  %7029 = vmatprep.subr.mxu0 0.0
  %7030 = vmatpush2.msra.mxu0 0.0
  %7031 = vmatprep.mubr.f32.mxu0 0.0
  %7032 = vmatmul.mubr.f32.gmra.mxu0 %v6845
  %v7033 = vpop.f32.mrf.mxu0
  %v7034 = vadd.f32 0.0, %v7033
  %v7035 = vpop.f32.mrf.mxu0
  %7036 = vmatprep.mubr.f32.mxu0 0.0
  %7037 = vmatmul.mubr.f32.gmra.mxu0 %v6848
  %v7038 = vpop.f32.mrf.mxu0
  %v7039 = vadd.f32 0.0, %v7038
  %v7040 = vpop.f32.mrf.mxu0
  %7041 = vmatprep.mubr.f32.mxu0 0.0
  %7042 = vmatmul.mubr.f32.gmra.mxu0 %v6851
  %v7043 = vpop.f32.mrf.mxu0
  %v7044 = vadd.f32 0.0, %v7043
  %v7045 = vpop.f32.mrf.mxu0
  %7046 = vmatprep.mubr.f32.mxu0 0.0
  %7047 = vmatmul.mubr.f32.gmra.mxu0 %v6854
  %v7048 = vpop.f32.mrf.mxu0
  %v7049 = vadd.f32 0.0, %v7048
  %v7050 = vpop.f32.mrf.mxu0
  %7051 = vmatprep.mubr.f32.mxu0 0.0
  %7052 = vmatmul.mubr.f32.gmra.mxu0 %v6857
  %v7053 = vpop.f32.mrf.mxu0
  %v7054 = vadd.f32 0.0, %v7053
  %v7055 = vpop.f32.mrf.mxu0
  %7056 = vmatprep.mubr.f32.mxu0 0.0
  %7057 = vmatmul.mubr.f32.gmra.mxu0 %v6860
  %v7058 = vpop.f32.mrf.mxu0
  %v7059 = vadd.f32 0.0, %v7058
  %v7060 = vpop.f32.mrf.mxu0
  %7061 = vmatprep.mubr.f32.mxu0 0.0
  %7062 = vmatmul.mubr.f32.gmra.mxu0 %v6863
  %v7063 = vpop.f32.mrf.mxu0
  %v7064 = vadd.f32 0.0, %v7063
  %v7065 = vpop.f32.mrf.mxu0
  %7066 = vmatprep.mubr.f32.mxu0 0.0
  %7067 = vmatmul.mubr.f32.gmra.mxu0 %v6866
  %v7068 = vpop.f32.mrf.mxu0
  %v7069 = vadd.f32 0.0, %v7068
  %v7070 = vpop.f32.mrf.mxu0
  %7071 = vmatprep.mubr.f32.mxu0 0.0
  %7072 = vmatmul.mubr.f32.gmra.mxu0 %v6869
  %v7073 = vpop.f32.mrf.mxu0
  %v7074 = vadd.f32 0.0, %v7073
  %v7075 = vpop.f32.mrf.mxu0
  %7076 = vmatprep.mubr.f32.mxu0 0.0
  %7077 = vmatmul.mubr.f32.gmra.mxu0 %v6872
  %v7078 = vpop.f32.mrf.mxu0
  %v7079 = vadd.f32 0.0, %v7078
  %v7080 = vpop.f32.mrf.mxu0
  %7081 = vmatprep.mubr.f32.mxu0 0.0
  %7082 = vmatmul.mubr.f32.gmra.mxu0 %v6875
  %v7083 = vpop.f32.mrf.mxu0
  %v7084 = vadd.f32 0.0, %v7083
  %v7085 = vpop.f32.mrf.mxu0
  %7086 = vmatprep.mubr.f32.mxu0 0.0
  %7087 = vmatmul.mubr.f32.gmra.mxu0 %v6878
  %v7088 = vpop.f32.mrf.mxu0
  %v7089 = vadd.f32 0.0, %v7088
  %v7090 = vpop.f32.mrf.mxu0
  %7091 = vmatprep.mubr.f32.mxu0 0.0
  %7092 = vmatmul.mubr.f32.gmra.mxu0 %v6881
  %v7093 = vpop.f32.mrf.mxu0
  %v7094 = vadd.f32 0.0, %v7093
  %v7095 = vpop.f32.mrf.mxu0
  %7096 = vmatprep.mubr.f32.mxu0 0.0
  %7097 = vmatmul.mubr.f32.gmra.mxu0 %v6884
  %v7098 = vpop.f32.mrf.mxu0
  %v7099 = vadd.f32 0.0, %v7098
  %v7100 = vpop.f32.mrf.mxu0
  %7101 = vmatprep.mubr.f32.mxu0 0.0
  %7102 = vmatmul.mubr.f32.gmra.mxu0 %v6887
  %v7103 = vpop.f32.mrf.mxu0
  %v7104 = vadd.f32 0.0, %v7103
  %v7105 = vpop.f32.mrf.mxu0
  %7106 = vmatprep.mubr.f32.mxu0 0.0
  %7107 = vmatmul.mubr.f32.gmra.mxu0 %v6890
  %v7108 = vpop.f32.mrf.mxu0
  %v7109 = vadd.f32 0.0, %v7108
  %v7110 = vpop.f32.mrf.mxu0
  %7111 = vmatprep.mubr.f32.mxu0 0.0
  %7112 = vmatmul.mubr.f32.gmra.mxu0 %v6893
  %v7113 = vpop.f32.mrf.mxu0
  %v7114 = vadd.f32 0.0, %v7113
  %v7115 = vpop.f32.mrf.mxu0
  %7116 = vmatprep.mubr.f32.mxu0 0.0
  %7117 = vmatmul.mubr.f32.gmra.mxu0 %v6896
  %v7118 = vpop.f32.mrf.mxu0
  %v7119 = vadd.f32 0.0, %v7118
  %v7120 = vpop.f32.mrf.mxu0
  %7121 = vmatprep.mubr.f32.mxu0 0.0
  %7122 = vmatmul.mubr.f32.gmra.mxu0 %v6899
  %v7123 = vpop.f32.mrf.mxu0
  %v7124 = vadd.f32 0.0, %v7123
  %v7125 = vpop.f32.mrf.mxu0
  %7126 = vmatprep.mubr.f32.mxu0 0.0
  %7127 = vmatmul.mubr.f32.gmra.mxu0 %v6902
  %v7128 = vpop.f32.mrf.mxu0
  %v7129 = vadd.f32 0.0, %v7128
  %v7130 = vpop.f32.mrf.mxu0
  %7131 = vmatprep.mubr.f32.mxu0 0.0
  %7132 = vmatmul.mubr.f32.gmra.mxu0 %v6905
  %v7133 = vpop.f32.mrf.mxu0
  %v7134 = vadd.f32 0.0, %v7133
  %v7135 = vpop.f32.mrf.mxu0
  %7136 = vmatprep.mubr.f32.mxu0 0.0
  %7137 = vmatmul.mubr.f32.gmra.mxu0 %v6908
  %v7138 = vpop.f32.mrf.mxu0
  %v7139 = vadd.f32 0.0, %v7138
  %v7140 = vpop.f32.mrf.mxu0
  %7141 = vmatprep.mubr.f32.mxu0 0.0
  %7142 = vmatmul.mubr.f32.gmra.mxu0 %v6911
  %v7143 = vpop.f32.mrf.mxu0
  %v7144 = vadd.f32 0.0, %v7143
  %v7145 = vpop.f32.mrf.mxu0
  %7146 = vmatprep.mubr.f32.mxu0 0.0
  %7147 = vmatmul.mubr.f32.gmra.mxu0 %v6914
  %v7148 = vpop.f32.mrf.mxu0
  %v7149 = vadd.f32 0.0, %v7148
  %v7150 = vpop.f32.mrf.mxu0
  %7151 = vmatprep.mubr.f32.mxu0 0.0
  %7152 = vmatmul.mubr.f32.gmra.mxu0 %v6917
  %v7153 = vpop.f32.mrf.mxu0
  %v7154 = vadd.f32 0.0, %v7153
  %v7155 = vpop.f32.mrf.mxu0
  %7156 = vmatprep.mubr.f32.mxu0 0.0
  %7157 = vmatmul.mubr.f32.gmra.mxu0 %v6920
  %v7158 = vpop.f32.mrf.mxu0
  %v7159 = vadd.f32 0.0, %v7158
  %v7160 = vpop.f32.mrf.mxu0
  %7161 = vmatprep.mubr.f32.mxu0 0.0
  %7162 = vmatmul.mubr.f32.gmra.mxu0 %v6923
  %v7163 = vpop.f32.mrf.mxu0
  %v7164 = vadd.f32 0.0, %v7163
  %v7165 = vpop.f32.mrf.mxu0
  %7166 = vmatprep.mubr.f32.mxu0 0.0
  %7167 = vmatmul.mubr.f32.gmra.mxu0 %v6926
  %v7168 = vpop.f32.mrf.mxu0
  %v7169 = vadd.f32 0.0, %v7168
  %v7170 = vpop.f32.mrf.mxu0
  %7171 = vmatprep.mubr.f32.mxu0 0.0
  %7172 = vmatmul.mubr.f32.gmra.mxu0 %v6929
  %v7173 = vpop.f32.mrf.mxu0
  %v7174 = vadd.f32 0.0, %v7173
  %v7175 = vpop.f32.mrf.mxu0
  %7176 = vmatprep.mubr.f32.mxu0 0.0
  %7177 = vmatmul.mubr.f32.gmra.mxu0 %v6932
  %v7178 = vpop.f32.mrf.mxu0
  %v7179 = vadd.f32 0.0, %v7178
  %v7180 = vpop.f32.mrf.mxu0
  %7181 = vmatprep.mubr.f32.mxu0 0.0
  %7182 = vmatmul.mubr.f32.gmra.mxu0 %v6935
  %v7183 = vpop.f32.mrf.mxu0
  %v7184 = vadd.f32 0.0, %v7183
  %v7185 = vpop.f32.mrf.mxu0
  %7186 = vmatprep.mubr.f32.mxu0 0.0
  %7187 = vmatmul.mubr.f32.gmra.mxu0 %v6938
  %v7188 = vpop.f32.mrf.mxu0
  %v7189 = vadd.f32 0.0, %v7188
  %v7190 = vpop.f32.mrf.mxu0
  %7191 = vmatprep.mubr.f32.mxu0 0.0
  %7192 = vmatmul.mubr.f32.gmra.mxu0 %v6941
  %v7193 = vpop.f32.mrf.mxu0
  %v7194 = vadd.f32 0.0, %v7193
  %v7195 = vpop.f32.mrf.mxu0
  %7196 = vmatprep.mubr.f32.mxu0 0.0
  %7197 = vmatmul.mubr.f32.gmra.mxu0 %v6944
  %v7198 = vpop.f32.mrf.mxu0
  %v7199 = vadd.f32 0.0, %v7198
  %v7200 = vpop.f32.mrf.mxu0
  %7201 = vmatprep.mubr.f32.mxu0 0.0
  %7202 = vmatmul.mubr.f32.gmra.mxu0 %v6947
  %v7203 = vpop.f32.mrf.mxu0
  %v7204 = vadd.f32 0.0, %v7203
  %v7205 = vpop.f32.mrf.mxu0
  %7206 = vmatprep.mubr.f32.mxu0 0.0
  %7207 = vmatmul.mubr.f32.gmra.mxu0 %v6950
  %v7208 = vpop.f32.mrf.mxu0
  %v7209 = vadd.f32 0.0, %v7208
  %v7210 = vpop.f32.mrf.mxu0
  %7211 = vmatprep.mubr.f32.mxu0 0.0
  %7212 = vmatmul.mubr.f32.gmra.mxu0 %v6953
  %v7213 = vpop.f32.mrf.mxu0
  %v7214 = vadd.f32 0.0, %v7213
  %v7215 = vpop.f32.mrf.mxu0
  %7216 = vmatprep.mubr.f32.mxu0 0.0
  %7217 = vmatmul.mubr.f32.gmra.mxu0 %v6956
  %v7218 = vpop.f32.mrf.mxu0
  %v7219 = vadd.f32 0.0, %v7218
  %v7220 = vpop.f32.mrf.mxu0
  %7221 = vmatprep.mubr.f32.mxu0 0.0
  %7222 = vmatmul.mubr.f32.gmra.mxu0 %v6959
  %v7223 = vpop.f32.mrf.mxu0
  %v7224 = vadd.f32 0.0, %v7223
  %v7225 = vpop.f32.mrf.mxu0
  %7226 = vmatprep.mubr.f32.mxu0 0.0
  %7227 = vmatmul.mubr.f32.gmra.mxu0 %v6962
  %v7228 = vpop.f32.mrf.mxu0
  %v7229 = vadd.f32 0.0, %v7228
  %v7230 = vpop.f32.mrf.mxu0
  %7231 = vdwg.mxu0
  %v7232 = vadd.f32 %v6721, %v7034
  %v7233 = vadd.f32 %v6722, %v7039
  %v7234 = vadd.f32 %v6723, %v7044
  %v7235 = vadd.f32 %v6724, %v7049
  %v7236 = vadd.f32 %v6725, %v7054
  %v7237 = vadd.f32 %v6726, %v7059
  %v7238 = vadd.f32 %v6727, %v7064
  %v7239 = vadd.f32 %v6728, %v7069
  %v7240 = vadd.f32 %v6729, %v7074
  %v7241 = vadd.f32 %v6730, %v7079
  %v7242 = vadd.f32 %v6731, %v7084
  %v7243 = vadd.f32 %v6732, %v7089
  %v7244 = vadd.f32 %v6733, %v7094
  %v7245 = vadd.f32 %v6734, %v7099
  %v7246 = vadd.f32 %v6735, %v7104
  %v7247 = vadd.f32 %v6736, %v7109
  %v7248 = vadd.f32 %v6737, %v7114
  %v7249 = vadd.f32 %v6738, %v7119
  %v7250 = vadd.f32 %v6739, %v7124
  %v7251 = vadd.f32 %v6740, %v7129
  %v7252 = vadd.f32 %v6741, %v7134
  %v7253 = vadd.f32 %v6742, %v7139
  %v7254 = vadd.f32 %v6743, %v7144
  %v7255 = vadd.f32 %v6744, %v7149
  %v7256 = vadd.f32 %v6745, %v7154
  %v7257 = vadd.f32 %v6746, %v7159
  %v7258 = vadd.f32 %v6747, %v7164
  %v7259 = vadd.f32 %v6748, %v7169
  %v7260 = vadd.f32 %v6749, %v7174
  %v7261 = vadd.f32 %v6750, %v7179
  %v7262 = vadd.f32 %v6751, %v7184
  %v7263 = vadd.f32 %v6752, %v7189
  %v7264 = vadd.f32 %v6753, %v7194
  %v7265 = vadd.f32 %v6754, %v7199
  %v7266 = vadd.f32 %v6755, %v7204
  %v7267 = vadd.f32 %v6756, %v7209
  %v7268 = vadd.f32 %v6757, %v7214
  %v7269 = vadd.f32 %v6758, %v7219
  %v7270 = vadd.f32 %v6759, %v7224
  %v7271 = vadd.f32 %v6760, %v7229
  %v7272 = vrot.slane %v4325, 6
  %v7273 = vrot.slane %v4326, 6
  %v7274 = vrot.slane %v4327, 6
  %v7275 = vrot.slane %v4328, 6
  %v7276 = vrot.slane %v4329, 6
  %v7277 = vrot.slane %v4330, 6
  %v7278 = vrot.slane %v4331, 6
  %v7279 = vrot.slane %v4332, 6
  %v7280 = vrot.slane %v4333, 6
  %v7281 = vrot.slane %v4334, 6
  %v7282 = vrot.slane %v4335, 6
  %v7283 = vrot.slane %v4336, 6
  %v7284 = vrot.slane %v4337, 6
  %v7285 = vrot.slane %v4338, 6
  %v7286 = vrot.slane %v4339, 6
  %v7287 = vrot.slane %v4340, 6
  %v7288 = vrot.slane %v4341, 6
  %v7289 = vrot.slane %v4342, 6
  %v7290 = vrot.slane %v4343, 6
  %v7291 = vrot.slane %v4344, 6
  %v7292 = vrot.slane %v4345, 6
  %v7293 = vrot.slane %v4346, 6
  %v7294 = vrot.slane %v4347, 6
  %v7295 = vrot.slane %v4348, 6
  %v7296 = vrot.slane %v4349, 6
  %v7297 = vrot.slane %v4350, 6
  %v7298 = vrot.slane %v4351, 6
  %v7299 = vrot.slane %v4352, 6
  %v7300 = vrot.slane %v4353, 6
  %v7301 = vrot.slane %v4354, 6
  %v7302 = vrot.slane %v4355, 6
  %v7303 = vrot.slane %v4356, 6
  %v7304 = vrot.slane %v4357, 6
  %v7305 = vrot.slane %v4358, 6
  %v7306 = vrot.slane %v4359, 6
  %v7307 = vrot.slane %v4360, 6
  %v7308 = vrot.slane %v4361, 6
  %v7309 = vrot.slane %v4362, 6
  %v7310 = vrot.slane %v4363, 6
  %v7311 = vrot.slane %v4364, 6
  %v7312 = vsel %vm2995, %v7310, %v7311
  %v7313 = vsel %vm2995, %v7309, %v7310
  %v7314 = vsel %vm2995, %v7308, %v7309
  %v7315 = vsel %vm2995, %v7307, %v7308
  %v7316 = vsel %vm2995, %v7306, %v7307
  %v7317 = vsel %vm2995, %v7305, %v7306
  %v7318 = vsel %vm2995, %v7304, %v7305
  %v7319 = vsel %vm2995, %v7303, %v7304
  %v7320 = vsel %vm2995, %v7302, %v7303
  %v7321 = vsel %vm2995, %v7301, %v7302
  %v7322 = vsel %vm2995, %v7300, %v7301
  %v7323 = vsel %vm2995, %v7299, %v7300
  %v7324 = vsel %vm2995, %v7298, %v7299
  %v7325 = vsel %vm2995, %v7297, %v7298
  %v7326 = vsel %vm2995, %v7296, %v7297
  %v7327 = vsel %vm2995, %v7295, %v7296
  %v7328 = vsel %vm2995, %v7294, %v7295
  %v7329 = vsel %vm2995, %v7293, %v7294
  %v7330 = vsel %vm2995, %v7292, %v7293
  %v7331 = vsel %vm2995, %v7291, %v7292
  %v7332 = vsel %vm2995, %v7290, %v7291
  %v7333 = vsel %vm2995, %v7289, %v7290
  %v7334 = vsel %vm2995, %v7288, %v7289
  %v7335 = vsel %vm2995, %v7287, %v7288
  %v7336 = vsel %vm2995, %v7286, %v7287
  %v7337 = vsel %vm2995, %v7285, %v7286
  %v7338 = vsel %vm2995, %v7284, %v7285
  %v7339 = vsel %vm2995, %v7283, %v7284
  %v7340 = vsel %vm2995, %v7282, %v7283
  %v7341 = vsel %vm2995, %v7281, %v7282
  %v7342 = vsel %vm2995, %v7280, %v7281
  %v7343 = vsel %vm2995, %v7279, %v7280
  %v7344 = vsel %vm2995, %v7278, %v7279
  %v7345 = vsel %vm2995, %v7277, %v7278
  %v7346 = vsel %vm2995, %v7276, %v7277
  %v7347 = vsel %vm2995, %v7275, %v7276
  %v7348 = vsel %vm2995, %v7274, %v7275
  %v7349 = vsel %vm2995, %v7273, %v7274
  %v7350 = vsel %vm2995, %v7272, %v7273
  %v7351 = vsel %vm2995, %v7311, %v7272
  %s7352 = scalar_lea.vmem %s3, 96
  %v7353 = vld [vmem:[%s7352] sm:$0xff]
  %v7354 = vld [vmem:[%s7352 + $0x8] sm:$0x1]
  %v7356 = vsel %vm4450, %v7350, 0
  %v7359 = vsel %vm4450, %v7349, 0
  %v7362 = vsel %vm4450, %v7348, 0
  %v7365 = vsel %vm4450, %v7347, 0
  %v7368 = vsel %vm4450, %v7346, 0
  %v7371 = vsel %vm4450, %v7345, 0
  %v7374 = vsel %vm4450, %v7344, 0
  %v7377 = vsel %vm4450, %v7343, 0
  %v7380 = vsel %vm4450, %v7342, 0
  %v7383 = vsel %vm4450, %v7341, 0
  %v7386 = vsel %vm4450, %v7340, 0
  %v7389 = vsel %vm4450, %v7339, 0
  %v7392 = vsel %vm4450, %v7338, 0
  %v7395 = vsel %vm4450, %v7337, 0
  %v7398 = vsel %vm4450, %v7336, 0
  %v7401 = vsel %vm4450, %v7335, 0
  %v7404 = vsel %vm4450, %v7334, 0
  %v7407 = vsel %vm4450, %v7333, 0
  %v7410 = vsel %vm4450, %v7332, 0
  %v7413 = vsel %vm4450, %v7331, 0
  %v7416 = vsel %vm4450, %v7330, 0
  %v7419 = vsel %vm4450, %v7329, 0
  %v7422 = vsel %vm4450, %v7328, 0
  %v7425 = vsel %vm4450, %v7327, 0
  %v7428 = vsel %vm4450, %v7326, 0
  %v7431 = vsel %vm4450, %v7325, 0
  %v7434 = vsel %vm4450, %v7324, 0
  %v7437 = vsel %vm4450, %v7323, 0
  %v7440 = vsel %vm4450, %v7322, 0
  %v7443 = vsel %vm4450, %v7321, 0
  %v7446 = vsel %vm4450, %v7320, 0
  %v7449 = vsel %vm4450, %v7319, 0
  %v7452 = vsel %vm4450, %v7318, 0
  %v7455 = vsel %vm4450, %v7317, 0
  %v7458 = vsel %vm4450, %v7316, 0
  %v7461 = vsel %vm4450, %v7315, 0
  %v7464 = vsel %vm4450, %v7314, 0
  %v7467 = vsel %vm4450, %v7313, 0
  %v7470 = vsel %vm4450, %v7312, 0
  %v7473 = vsel %vm4450, %v7351, 0
  %v7476 = vsel %vm4571, %v7354, 0
  %7478 = vmatprep.subr.mxu0 0.0
  %7479 = vmatpush1.msra.mxu0 0.0
  %7480 = vmatprep.subr.mxu0 0.0
  %7481 = vmatpush1.msra.mxu0 0.0
  %7482 = vmatprep.subr.mxu0 0.0
  %7483 = vmatpush1.msra.mxu0 0.0
  %7484 = vmatprep.subr.mxu0 0.0
  %7485 = vmatpush1.msra.mxu0 0.0
  %7486 = vmatprep.subr.mxu0 0.0
  %7487 = vmatpush1.msra.mxu0 0.0
  %7488 = vmatprep.subr.mxu0 0.0
  %7489 = vmatpush1.msra.mxu0 0.0
  %7490 = vmatprep.subr.mxu0 0.0
  %7491 = vmatpush1.msra.mxu0 0.0
  %7492 = vmatprep.subr.mxu0 0.0
  %7493 = vmatpush1.msra.mxu0 0.0
  %7494 = vmatprep.subr.mxu0 0.0
  %7495 = vmatpush1.msra.mxu0 0.0
  %7496 = vmatprep.subr.mxu0 0.0
  %7497 = vmatpush1.msra.mxu0 0.0
  %7498 = vmatprep.subr.mxu0 0.0
  %7499 = vmatpush1.msra.mxu0 0.0
  %7500 = vmatprep.subr.mxu0 0.0
  %7501 = vmatpush1.msra.mxu0 0.0
  %7502 = vmatprep.subr.mxu0 0.0
  %7503 = vmatpush1.msra.mxu0 0.0
  %7504 = vmatprep.subr.mxu0 0.0
  %7505 = vmatpush1.msra.mxu0 0.0
  %7506 = vmatprep.subr.mxu0 0.0
  %7507 = vmatpush1.msra.mxu0 %v7476
  %7508 = vmatprep.subr.mxu0 0.0
  %7509 = vmatpush1.msra.mxu0 %v7353
  %7510 = vmatprep.subr.mxu0 0.0
  %7511 = vmatpush2.msra.mxu0 0.0
  %7512 = vmatprep.subr.mxu0 0.0
  %7513 = vmatpush2.msra.mxu0 0.0
  %7514 = vmatprep.subr.mxu0 0.0
  %7515 = vmatpush2.msra.mxu0 0.0
  %7516 = vmatprep.subr.mxu0 0.0
  %7517 = vmatpush2.msra.mxu0 0.0
  %7518 = vmatprep.subr.mxu0 0.0
  %7519 = vmatpush2.msra.mxu0 0.0
  %7520 = vmatprep.subr.mxu0 0.0
  %7521 = vmatpush2.msra.mxu0 0.0
  %7522 = vmatprep.subr.mxu0 0.0
  %7523 = vmatpush2.msra.mxu0 0.0
  %7524 = vmatprep.subr.mxu0 0.0
  %7525 = vmatpush2.msra.mxu0 0.0
  %7526 = vmatprep.subr.mxu0 0.0
  %7527 = vmatpush2.msra.mxu0 0.0
  %7528 = vmatprep.subr.mxu0 0.0
  %7529 = vmatpush2.msra.mxu0 0.0
  %7530 = vmatprep.subr.mxu0 0.0
  %7531 = vmatpush2.msra.mxu0 0.0
  %7532 = vmatprep.subr.mxu0 0.0
  %7533 = vmatpush2.msra.mxu0 0.0
  %7534 = vmatprep.subr.mxu0 0.0
  %7535 = vmatpush2.msra.mxu0 0.0
  %7536 = vmatprep.subr.mxu0 0.0
  %7537 = vmatpush2.msra.mxu0 0.0
  %7538 = vmatprep.subr.mxu0 0.0
  %7539 = vmatpush2.msra.mxu0 0.0
  %7540 = vmatprep.subr.mxu0 0.0
  %7541 = vmatpush2.msra.mxu0 0.0
  %7542 = vmatprep.mubr.f32.mxu0 0.0
  %7543 = vmatmul.mubr.f32.gmra.mxu0 %v7356
  %v7544 = vpop.f32.mrf.mxu0
  %v7545 = vadd.f32 0.0, %v7544
  %v7546 = vpop.f32.mrf.mxu0
  %7547 = vmatprep.mubr.f32.mxu0 0.0
  %7548 = vmatmul.mubr.f32.gmra.mxu0 %v7359
  %v7549 = vpop.f32.mrf.mxu0
  %v7550 = vadd.f32 0.0, %v7549
  %v7551 = vpop.f32.mrf.mxu0
  %7552 = vmatprep.mubr.f32.mxu0 0.0
  %7553 = vmatmul.mubr.f32.gmra.mxu0 %v7362
  %v7554 = vpop.f32.mrf.mxu0
  %v7555 = vadd.f32 0.0, %v7554
  %v7556 = vpop.f32.mrf.mxu0
  %7557 = vmatprep.mubr.f32.mxu0 0.0
  %7558 = vmatmul.mubr.f32.gmra.mxu0 %v7365
  %v7559 = vpop.f32.mrf.mxu0
  %v7560 = vadd.f32 0.0, %v7559
  %v7561 = vpop.f32.mrf.mxu0
  %7562 = vmatprep.mubr.f32.mxu0 0.0
  %7563 = vmatmul.mubr.f32.gmra.mxu0 %v7368
  %v7564 = vpop.f32.mrf.mxu0
  %v7565 = vadd.f32 0.0, %v7564
  %v7566 = vpop.f32.mrf.mxu0
  %7567 = vmatprep.mubr.f32.mxu0 0.0
  %7568 = vmatmul.mubr.f32.gmra.mxu0 %v7371
  %v7569 = vpop.f32.mrf.mxu0
  %v7570 = vadd.f32 0.0, %v7569
  %v7571 = vpop.f32.mrf.mxu0
  %7572 = vmatprep.mubr.f32.mxu0 0.0
  %7573 = vmatmul.mubr.f32.gmra.mxu0 %v7374
  %v7574 = vpop.f32.mrf.mxu0
  %v7575 = vadd.f32 0.0, %v7574
  %v7576 = vpop.f32.mrf.mxu0
  %7577 = vmatprep.mubr.f32.mxu0 0.0
  %7578 = vmatmul.mubr.f32.gmra.mxu0 %v7377
  %v7579 = vpop.f32.mrf.mxu0
  %v7580 = vadd.f32 0.0, %v7579
  %v7581 = vpop.f32.mrf.mxu0
  %7582 = vmatprep.mubr.f32.mxu0 0.0
  %7583 = vmatmul.mubr.f32.gmra.mxu0 %v7380
  %v7584 = vpop.f32.mrf.mxu0
  %v7585 = vadd.f32 0.0, %v7584
  %v7586 = vpop.f32.mrf.mxu0
  %7587 = vmatprep.mubr.f32.mxu0 0.0
  %7588 = vmatmul.mubr.f32.gmra.mxu0 %v7383
  %v7589 = vpop.f32.mrf.mxu0
  %v7590 = vadd.f32 0.0, %v7589
  %v7591 = vpop.f32.mrf.mxu0
  %7592 = vmatprep.mubr.f32.mxu0 0.0
  %7593 = vmatmul.mubr.f32.gmra.mxu0 %v7386
  %v7594 = vpop.f32.mrf.mxu0
  %v7595 = vadd.f32 0.0, %v7594
  %v7596 = vpop.f32.mrf.mxu0
  %7597 = vmatprep.mubr.f32.mxu0 0.0
  %7598 = vmatmul.mubr.f32.gmra.mxu0 %v7389
  %v7599 = vpop.f32.mrf.mxu0
  %v7600 = vadd.f32 0.0, %v7599
  %v7601 = vpop.f32.mrf.mxu0
  %7602 = vmatprep.mubr.f32.mxu0 0.0
  %7603 = vmatmul.mubr.f32.gmra.mxu0 %v7392
  %v7604 = vpop.f32.mrf.mxu0
  %v7605 = vadd.f32 0.0, %v7604
  %v7606 = vpop.f32.mrf.mxu0
  %7607 = vmatprep.mubr.f32.mxu0 0.0
  %7608 = vmatmul.mubr.f32.gmra.mxu0 %v7395
  %v7609 = vpop.f32.mrf.mxu0
  %v7610 = vadd.f32 0.0, %v7609
  %v7611 = vpop.f32.mrf.mxu0
  %7612 = vmatprep.mubr.f32.mxu0 0.0
  %7613 = vmatmul.mubr.f32.gmra.mxu0 %v7398
  %v7614 = vpop.f32.mrf.mxu0
  %v7615 = vadd.f32 0.0, %v7614
  %v7616 = vpop.f32.mrf.mxu0
  %7617 = vmatprep.mubr.f32.mxu0 0.0
  %7618 = vmatmul.mubr.f32.gmra.mxu0 %v7401
  %v7619 = vpop.f32.mrf.mxu0
  %v7620 = vadd.f32 0.0, %v7619
  %v7621 = vpop.f32.mrf.mxu0
  %7622 = vmatprep.mubr.f32.mxu0 0.0
  %7623 = vmatmul.mubr.f32.gmra.mxu0 %v7404
  %v7624 = vpop.f32.mrf.mxu0
  %v7625 = vadd.f32 0.0, %v7624
  %v7626 = vpop.f32.mrf.mxu0
  %7627 = vmatprep.mubr.f32.mxu0 0.0
  %7628 = vmatmul.mubr.f32.gmra.mxu0 %v7407
  %v7629 = vpop.f32.mrf.mxu0
  %v7630 = vadd.f32 0.0, %v7629
  %v7631 = vpop.f32.mrf.mxu0
  %7632 = vmatprep.mubr.f32.mxu0 0.0
  %7633 = vmatmul.mubr.f32.gmra.mxu0 %v7410
  %v7634 = vpop.f32.mrf.mxu0
  %v7635 = vadd.f32 0.0, %v7634
  %v7636 = vpop.f32.mrf.mxu0
  %7637 = vmatprep.mubr.f32.mxu0 0.0
  %7638 = vmatmul.mubr.f32.gmra.mxu0 %v7413
  %v7639 = vpop.f32.mrf.mxu0
  %v7640 = vadd.f32 0.0, %v7639
  %v7641 = vpop.f32.mrf.mxu0
  %7642 = vmatprep.mubr.f32.mxu0 0.0
  %7643 = vmatmul.mubr.f32.gmra.mxu0 %v7416
  %v7644 = vpop.f32.mrf.mxu0
  %v7645 = vadd.f32 0.0, %v7644
  %v7646 = vpop.f32.mrf.mxu0
  %7647 = vmatprep.mubr.f32.mxu0 0.0
  %7648 = vmatmul.mubr.f32.gmra.mxu0 %v7419
  %v7649 = vpop.f32.mrf.mxu0
  %v7650 = vadd.f32 0.0, %v7649
  %v7651 = vpop.f32.mrf.mxu0
  %7652 = vmatprep.mubr.f32.mxu0 0.0
  %7653 = vmatmul.mubr.f32.gmra.mxu0 %v7422
  %v7654 = vpop.f32.mrf.mxu0
  %v7655 = vadd.f32 0.0, %v7654
  %v7656 = vpop.f32.mrf.mxu0
  %7657 = vmatprep.mubr.f32.mxu0 0.0
  %7658 = vmatmul.mubr.f32.gmra.mxu0 %v7425
  %v7659 = vpop.f32.mrf.mxu0
  %v7660 = vadd.f32 0.0, %v7659
  %v7661 = vpop.f32.mrf.mxu0
  %7662 = vmatprep.mubr.f32.mxu0 0.0
  %7663 = vmatmul.mubr.f32.gmra.mxu0 %v7428
  %v7664 = vpop.f32.mrf.mxu0
  %v7665 = vadd.f32 0.0, %v7664
  %v7666 = vpop.f32.mrf.mxu0
  %7667 = vmatprep.mubr.f32.mxu0 0.0
  %7668 = vmatmul.mubr.f32.gmra.mxu0 %v7431
  %v7669 = vpop.f32.mrf.mxu0
  %v7670 = vadd.f32 0.0, %v7669
  %v7671 = vpop.f32.mrf.mxu0
  %7672 = vmatprep.mubr.f32.mxu0 0.0
  %7673 = vmatmul.mubr.f32.gmra.mxu0 %v7434
  %v7674 = vpop.f32.mrf.mxu0
  %v7675 = vadd.f32 0.0, %v7674
  %v7676 = vpop.f32.mrf.mxu0
  %7677 = vmatprep.mubr.f32.mxu0 0.0
  %7678 = vmatmul.mubr.f32.gmra.mxu0 %v7437
  %v7679 = vpop.f32.mrf.mxu0
  %v7680 = vadd.f32 0.0, %v7679
  %v7681 = vpop.f32.mrf.mxu0
  %7682 = vmatprep.mubr.f32.mxu0 0.0
  %7683 = vmatmul.mubr.f32.gmra.mxu0 %v7440
  %v7684 = vpop.f32.mrf.mxu0
  %v7685 = vadd.f32 0.0, %v7684
  %v7686 = vpop.f32.mrf.mxu0
  %7687 = vmatprep.mubr.f32.mxu0 0.0
  %7688 = vmatmul.mubr.f32.gmra.mxu0 %v7443
  %v7689 = vpop.f32.mrf.mxu0
  %v7690 = vadd.f32 0.0, %v7689
  %v7691 = vpop.f32.mrf.mxu0
  %7692 = vmatprep.mubr.f32.mxu0 0.0
  %7693 = vmatmul.mubr.f32.gmra.mxu0 %v7446
  %v7694 = vpop.f32.mrf.mxu0
  %v7695 = vadd.f32 0.0, %v7694
  %v7696 = vpop.f32.mrf.mxu0
  %7697 = vmatprep.mubr.f32.mxu0 0.0
  %7698 = vmatmul.mubr.f32.gmra.mxu0 %v7449
  %v7699 = vpop.f32.mrf.mxu0
  %v7700 = vadd.f32 0.0, %v7699
  %v7701 = vpop.f32.mrf.mxu0
  %7702 = vmatprep.mubr.f32.mxu0 0.0
  %7703 = vmatmul.mubr.f32.gmra.mxu0 %v7452
  %v7704 = vpop.f32.mrf.mxu0
  %v7705 = vadd.f32 0.0, %v7704
  %v7706 = vpop.f32.mrf.mxu0
  %7707 = vmatprep.mubr.f32.mxu0 0.0
  %7708 = vmatmul.mubr.f32.gmra.mxu0 %v7455
  %v7709 = vpop.f32.mrf.mxu0
  %v7710 = vadd.f32 0.0, %v7709
  %v7711 = vpop.f32.mrf.mxu0
  %7712 = vmatprep.mubr.f32.mxu0 0.0
  %7713 = vmatmul.mubr.f32.gmra.mxu0 %v7458
  %v7714 = vpop.f32.mrf.mxu0
  %v7715 = vadd.f32 0.0, %v7714
  %v7716 = vpop.f32.mrf.mxu0
  %7717 = vmatprep.mubr.f32.mxu0 0.0
  %7718 = vmatmul.mubr.f32.gmra.mxu0 %v7461
  %v7719 = vpop.f32.mrf.mxu0
  %v7720 = vadd.f32 0.0, %v7719
  %v7721 = vpop.f32.mrf.mxu0
  %7722 = vmatprep.mubr.f32.mxu0 0.0
  %7723 = vmatmul.mubr.f32.gmra.mxu0 %v7464
  %v7724 = vpop.f32.mrf.mxu0
  %v7725 = vadd.f32 0.0, %v7724
  %v7726 = vpop.f32.mrf.mxu0
  %7727 = vmatprep.mubr.f32.mxu0 0.0
  %7728 = vmatmul.mubr.f32.gmra.mxu0 %v7467
  %v7729 = vpop.f32.mrf.mxu0
  %v7730 = vadd.f32 0.0, %v7729
  %v7731 = vpop.f32.mrf.mxu0
  %7732 = vmatprep.mubr.f32.mxu0 0.0
  %7733 = vmatmul.mubr.f32.gmra.mxu0 %v7470
  %v7734 = vpop.f32.mrf.mxu0
  %v7735 = vadd.f32 0.0, %v7734
  %v7736 = vpop.f32.mrf.mxu0
  %7737 = vmatprep.mubr.f32.mxu0 0.0
  %7738 = vmatmul.mubr.f32.gmra.mxu0 %v7473
  %v7739 = vpop.f32.mrf.mxu0
  %v7740 = vadd.f32 0.0, %v7739
  %v7741 = vpop.f32.mrf.mxu0
  %7742 = vdwg.mxu0
  %v7743 = vadd.f32 %v7232, %v7545
  %v7744 = vadd.f32 %v7233, %v7550
  %v7745 = vadd.f32 %v7234, %v7555
  %v7746 = vadd.f32 %v7235, %v7560
  %v7747 = vadd.f32 %v7236, %v7565
  %v7748 = vadd.f32 %v7237, %v7570
  %v7749 = vadd.f32 %v7238, %v7575
  %v7750 = vadd.f32 %v7239, %v7580
  %v7751 = vadd.f32 %v7240, %v7585
  %v7752 = vadd.f32 %v7241, %v7590
  %v7753 = vadd.f32 %v7242, %v7595
  %v7754 = vadd.f32 %v7243, %v7600
  %v7755 = vadd.f32 %v7244, %v7605
  %v7756 = vadd.f32 %v7245, %v7610
  %v7757 = vadd.f32 %v7246, %v7615
  %v7758 = vadd.f32 %v7247, %v7620
  %v7759 = vadd.f32 %v7248, %v7625
  %v7760 = vadd.f32 %v7249, %v7630
  %v7761 = vadd.f32 %v7250, %v7635
  %v7762 = vadd.f32 %v7251, %v7640
  %v7763 = vadd.f32 %v7252, %v7645
  %v7764 = vadd.f32 %v7253, %v7650
  %v7765 = vadd.f32 %v7254, %v7655
  %v7766 = vadd.f32 %v7255, %v7660
  %v7767 = vadd.f32 %v7256, %v7665
  %v7768 = vadd.f32 %v7257, %v7670
  %v7769 = vadd.f32 %v7258, %v7675
  %v7770 = vadd.f32 %v7259, %v7680
  %v7771 = vadd.f32 %v7260, %v7685
  %v7772 = vadd.f32 %v7261, %v7690
  %v7773 = vadd.f32 %v7262, %v7695
  %v7774 = vadd.f32 %v7263, %v7700
  %v7775 = vadd.f32 %v7264, %v7705
  %v7776 = vadd.f32 %v7265, %v7710
  %v7777 = vadd.f32 %v7266, %v7715
  %v7778 = vadd.f32 %v7267, %v7720
  %v7779 = vadd.f32 %v7268, %v7725
  %v7780 = vadd.f32 %v7269, %v7730
  %v7781 = vadd.f32 %v7270, %v7735
  %v7782 = vadd.f32 %v7271, %v7740
  %v7783 = vrot.slane %v4325, 7
  %v7784 = vrot.slane %v4326, 7
  %v7785 = vrot.slane %v4327, 7
  %v7786 = vrot.slane %v4328, 7
  %v7787 = vrot.slane %v4329, 7
  %v7788 = vrot.slane %v4330, 7
  %v7789 = vrot.slane %v4331, 7
  %v7790 = vrot.slane %v4332, 7
  %v7791 = vrot.slane %v4333, 7
  %v7792 = vrot.slane %v4334, 7
  %v7793 = vrot.slane %v4335, 7
  %v7794 = vrot.slane %v4336, 7
  %v7795 = vrot.slane %v4337, 7
  %v7796 = vrot.slane %v4338, 7
  %v7797 = vrot.slane %v4339, 7
  %v7798 = vrot.slane %v4340, 7
  %v7799 = vrot.slane %v4341, 7
  %v7800 = vrot.slane %v4342, 7
  %v7801 = vrot.slane %v4343, 7
  %v7802 = vrot.slane %v4344, 7
  %v7803 = vrot.slane %v4345, 7
  %v7804 = vrot.slane %v4346, 7
  %v7805 = vrot.slane %v4347, 7
  %v7806 = vrot.slane %v4348, 7
  %v7807 = vrot.slane %v4349, 7
  %v7808 = vrot.slane %v4350, 7
  %v7809 = vrot.slane %v4351, 7
  %v7810 = vrot.slane %v4352, 7
  %v7811 = vrot.slane %v4353, 7
  %v7812 = vrot.slane %v4354, 7
  %v7813 = vrot.slane %v4355, 7
  %v7814 = vrot.slane %v4356, 7
  %v7815 = vrot.slane %v4357, 7
  %v7816 = vrot.slane %v4358, 7
  %v7817 = vrot.slane %v4359, 7
  %v7818 = vrot.slane %v4360, 7
  %v7819 = vrot.slane %v4361, 7
  %v7820 = vrot.slane %v4362, 7
  %v7821 = vrot.slane %v4363, 7
  %v7822 = vrot.slane %v4364, 7
  %v7823 = vsel %vm3503, %v7821, %v7822
  %v7824 = vsel %vm3503, %v7820, %v7821
  %v7825 = vsel %vm3503, %v7819, %v7820
  %v7826 = vsel %vm3503, %v7818, %v7819
  %v7827 = vsel %vm3503, %v7817, %v7818
  %v7828 = vsel %vm3503, %v7816, %v7817
  %v7829 = vsel %vm3503, %v7815, %v7816
  %v7830 = vsel %vm3503, %v7814, %v7815
  %v7831 = vsel %vm3503, %v7813, %v7814
  %v7832 = vsel %vm3503, %v7812, %v7813
  %v7833 = vsel %vm3503, %v7811, %v7812
  %v7834 = vsel %vm3503, %v7810, %v7811
  %v7835 = vsel %vm3503, %v7809, %v7810
  %v7836 = vsel %vm3503, %v7808, %v7809
  %v7837 = vsel %vm3503, %v7807, %v7808
  %v7838 = vsel %vm3503, %v7806, %v7807
  %v7839 = vsel %vm3503, %v7805, %v7806
  %v7840 = vsel %vm3503, %v7804, %v7805
  %v7841 = vsel %vm3503, %v7803, %v7804
  %v7842 = vsel %vm3503, %v7802, %v7803
  %v7843 = vsel %vm3503, %v7801, %v7802
  %v7844 = vsel %vm3503, %v7800, %v7801
  %v7845 = vsel %vm3503, %v7799, %v7800
  %v7846 = vsel %vm3503, %v7798, %v7799
  %v7847 = vsel %vm3503, %v7797, %v7798
  %v7848 = vsel %vm3503, %v7796, %v7797
  %v7849 = vsel %vm3503, %v7795, %v7796
  %v7850 = vsel %vm3503, %v7794, %v7795
  %v7851 = vsel %vm3503, %v7793, %v7794
  %v7852 = vsel %vm3503, %v7792, %v7793
  %v7853 = vsel %vm3503, %v7791, %v7792
  %v7854 = vsel %vm3503, %v7790, %v7791
  %v7855 = vsel %vm3503, %v7789, %v7790
  %v7856 = vsel %vm3503, %v7788, %v7789
  %v7857 = vsel %vm3503, %v7787, %v7788
  %v7858 = vsel %vm3503, %v7786, %v7787
  %v7859 = vsel %vm3503, %v7785, %v7786
  %v7860 = vsel %vm3503, %v7784, %v7785
  %v7861 = vsel %vm3503, %v7783, %v7784
  %v7862 = vsel %vm3503, %v7822, %v7783
  %s7863 = scalar_lea.vmem %s3, 112
  %v7864 = vld [vmem:[%s7863] sm:$0xff]
  %v7865 = vld [vmem:[%s7863 + $0x8] sm:$0x1]
  %v7867 = vsel %vm4450, %v7861, 0
  %v7870 = vsel %vm4450, %v7860, 0
  %v7873 = vsel %vm4450, %v7859, 0
  %v7876 = vsel %vm4450, %v7858, 0
  %v7879 = vsel %vm4450, %v7857, 0
  %v7882 = vsel %vm4450, %v7856, 0
  %v7885 = vsel %vm4450, %v7855, 0
  %v7888 = vsel %vm4450, %v7854, 0
  %v7891 = vsel %vm4450, %v7853, 0
  %v7894 = vsel %vm4450, %v7852, 0
  %v7897 = vsel %vm4450, %v7851, 0
  %v7900 = vsel %vm4450, %v7850, 0
  %v7903 = vsel %vm4450, %v7849, 0
  %v7906 = vsel %vm4450, %v7848, 0
  %v7909 = vsel %vm4450, %v7847, 0
  %v7912 = vsel %vm4450, %v7846, 0
  %v7915 = vsel %vm4450, %v7845, 0
  %v7918 = vsel %vm4450, %v7844, 0
  %v7921 = vsel %vm4450, %v7843, 0
  %v7924 = vsel %vm4450, %v7842, 0
  %v7927 = vsel %vm4450, %v7841, 0
  %v7930 = vsel %vm4450, %v7840, 0
  %v7933 = vsel %vm4450, %v7839, 0
  %v7936 = vsel %vm4450, %v7838, 0
  %v7939 = vsel %vm4450, %v7837, 0
  %v7942 = vsel %vm4450, %v7836, 0
  %v7945 = vsel %vm4450, %v7835, 0
  %v7948 = vsel %vm4450, %v7834, 0
  %v7951 = vsel %vm4450, %v7833, 0
  %v7954 = vsel %vm4450, %v7832, 0
  %v7957 = vsel %vm4450, %v7831, 0
  %v7960 = vsel %vm4450, %v7830, 0
  %v7963 = vsel %vm4450, %v7829, 0
  %v7966 = vsel %vm4450, %v7828, 0
  %v7969 = vsel %vm4450, %v7827, 0
  %v7972 = vsel %vm4450, %v7826, 0
  %v7975 = vsel %vm4450, %v7825, 0
  %v7978 = vsel %vm4450, %v7824, 0
  %v7981 = vsel %vm4450, %v7823, 0
  %v7984 = vsel %vm4450, %v7862, 0
  %v7987 = vsel %vm4571, %v7865, 0
  %7989 = vmatprep.subr.mxu0 0.0
  %7990 = vmatpush1.msra.mxu0 0.0
  %7991 = vmatprep.subr.mxu0 0.0
  %7992 = vmatpush1.msra.mxu0 0.0
  %7993 = vmatprep.subr.mxu0 0.0
  %7994 = vmatpush1.msra.mxu0 0.0
  %7995 = vmatprep.subr.mxu0 0.0
  %7996 = vmatpush1.msra.mxu0 0.0
  %7997 = vmatprep.subr.mxu0 0.0
  %7998 = vmatpush1.msra.mxu0 0.0
  %7999 = vmatprep.subr.mxu0 0.0
  %8000 = vmatpush1.msra.mxu0 0.0
  %8001 = vmatprep.subr.mxu0 0.0
  %8002 = vmatpush1.msra.mxu0 0.0
  %8003 = vmatprep.subr.mxu0 0.0
  %8004 = vmatpush1.msra.mxu0 0.0
  %8005 = vmatprep.subr.mxu0 0.0
  %8006 = vmatpush1.msra.mxu0 0.0
  %8007 = vmatprep.subr.mxu0 0.0
  %8008 = vmatpush1.msra.mxu0 0.0
  %8009 = vmatprep.subr.mxu0 0.0
  %8010 = vmatpush1.msra.mxu0 0.0
  %8011 = vmatprep.subr.mxu0 0.0
  %8012 = vmatpush1.msra.mxu0 0.0
  %8013 = vmatprep.subr.mxu0 0.0
  %8014 = vmatpush1.msra.mxu0 0.0
  %8015 = vmatprep.subr.mxu0 0.0
  %8016 = vmatpush1.msra.mxu0 0.0
  %8017 = vmatprep.subr.mxu0 0.0
  %8018 = vmatpush1.msra.mxu0 %v7987
  %8019 = vmatprep.subr.mxu0 0.0
  %8020 = vmatpush1.msra.mxu0 %v7864
  %8021 = vmatprep.subr.mxu0 0.0
  %8022 = vmatpush2.msra.mxu0 0.0
  %8023 = vmatprep.subr.mxu0 0.0
  %8024 = vmatpush2.msra.mxu0 0.0
  %8025 = vmatprep.subr.mxu0 0.0
  %8026 = vmatpush2.msra.mxu0 0.0
  %8027 = vmatprep.subr.mxu0 0.0
  %8028 = vmatpush2.msra.mxu0 0.0
  %8029 = vmatprep.subr.mxu0 0.0
  %8030 = vmatpush2.msra.mxu0 0.0
  %8031 = vmatprep.subr.mxu0 0.0
  %8032 = vmatpush2.msra.mxu0 0.0
  %8033 = vmatprep.subr.mxu0 0.0
  %8034 = vmatpush2.msra.mxu0 0.0
  %8035 = vmatprep.subr.mxu0 0.0
  %8036 = vmatpush2.msra.mxu0 0.0
  %8037 = vmatprep.subr.mxu0 0.0
  %8038 = vmatpush2.msra.mxu0 0.0
  %8039 = vmatprep.subr.mxu0 0.0
  %8040 = vmatpush2.msra.mxu0 0.0
  %8041 = vmatprep.subr.mxu0 0.0
  %8042 = vmatpush2.msra.mxu0 0.0
  %8043 = vmatprep.subr.mxu0 0.0
  %8044 = vmatpush2.msra.mxu0 0.0
  %8045 = vmatprep.subr.mxu0 0.0
  %8046 = vmatpush2.msra.mxu0 0.0
  %8047 = vmatprep.subr.mxu0 0.0
  %8048 = vmatpush2.msra.mxu0 0.0
  %8049 = vmatprep.subr.mxu0 0.0
  %8050 = vmatpush2.msra.mxu0 0.0
  %8051 = vmatprep.subr.mxu0 0.0
  %8052 = vmatpush2.msra.mxu0 0.0
  %8053 = vmatprep.mubr.f32.mxu0 0.0
  %8054 = vmatmul.mubr.f32.gmra.mxu0 %v7867
  %v8055 = vpop.f32.mrf.mxu0
  %v8056 = vadd.f32 0.0, %v8055
  %v8057 = vpop.f32.mrf.mxu0
  %8058 = vmatprep.mubr.f32.mxu0 0.0
  %8059 = vmatmul.mubr.f32.gmra.mxu0 %v7870
  %v8060 = vpop.f32.mrf.mxu0
  %v8061 = vadd.f32 0.0, %v8060
  %v8062 = vpop.f32.mrf.mxu0
  %8063 = vmatprep.mubr.f32.mxu0 0.0
  %8064 = vmatmul.mubr.f32.gmra.mxu0 %v7873
  %v8065 = vpop.f32.mrf.mxu0
  %v8066 = vadd.f32 0.0, %v8065
  %v8067 = vpop.f32.mrf.mxu0
  %8068 = vmatprep.mubr.f32.mxu0 0.0
  %8069 = vmatmul.mubr.f32.gmra.mxu0 %v7876
  %v8070 = vpop.f32.mrf.mxu0
  %v8071 = vadd.f32 0.0, %v8070
  %v8072 = vpop.f32.mrf.mxu0
  %8073 = vmatprep.mubr.f32.mxu0 0.0
  %8074 = vmatmul.mubr.f32.gmra.mxu0 %v7879
  %v8075 = vpop.f32.mrf.mxu0
  %v8076 = vadd.f32 0.0, %v8075
  %v8077 = vpop.f32.mrf.mxu0
  %8078 = vmatprep.mubr.f32.mxu0 0.0
  %8079 = vmatmul.mubr.f32.gmra.mxu0 %v7882
  %v8080 = vpop.f32.mrf.mxu0
  %v8081 = vadd.f32 0.0, %v8080
  %v8082 = vpop.f32.mrf.mxu0
  %8083 = vmatprep.mubr.f32.mxu0 0.0
  %8084 = vmatmul.mubr.f32.gmra.mxu0 %v7885
  %v8085 = vpop.f32.mrf.mxu0
  %v8086 = vadd.f32 0.0, %v8085
  %v8087 = vpop.f32.mrf.mxu0
  %8088 = vmatprep.mubr.f32.mxu0 0.0
  %8089 = vmatmul.mubr.f32.gmra.mxu0 %v7888
  %v8090 = vpop.f32.mrf.mxu0
  %v8091 = vadd.f32 0.0, %v8090
  %v8092 = vpop.f32.mrf.mxu0
  %8093 = vmatprep.mubr.f32.mxu0 0.0
  %8094 = vmatmul.mubr.f32.gmra.mxu0 %v7891
  %v8095 = vpop.f32.mrf.mxu0
  %v8096 = vadd.f32 0.0, %v8095
  %v8097 = vpop.f32.mrf.mxu0
  %8098 = vmatprep.mubr.f32.mxu0 0.0
  %8099 = vmatmul.mubr.f32.gmra.mxu0 %v7894
  %v8100 = vpop.f32.mrf.mxu0
  %v8101 = vadd.f32 0.0, %v8100
  %v8102 = vpop.f32.mrf.mxu0
  %8103 = vmatprep.mubr.f32.mxu0 0.0
  %8104 = vmatmul.mubr.f32.gmra.mxu0 %v7897
  %v8105 = vpop.f32.mrf.mxu0
  %v8106 = vadd.f32 0.0, %v8105
  %v8107 = vpop.f32.mrf.mxu0
  %8108 = vmatprep.mubr.f32.mxu0 0.0
  %8109 = vmatmul.mubr.f32.gmra.mxu0 %v7900
  %v8110 = vpop.f32.mrf.mxu0
  %v8111 = vadd.f32 0.0, %v8110
  %v8112 = vpop.f32.mrf.mxu0
  %8113 = vmatprep.mubr.f32.mxu0 0.0
  %8114 = vmatmul.mubr.f32.gmra.mxu0 %v7903
  %v8115 = vpop.f32.mrf.mxu0
  %v8116 = vadd.f32 0.0, %v8115
  %v8117 = vpop.f32.mrf.mxu0
  %8118 = vmatprep.mubr.f32.mxu0 0.0
  %8119 = vmatmul.mubr.f32.gmra.mxu0 %v7906
  %v8120 = vpop.f32.mrf.mxu0
  %v8121 = vadd.f32 0.0, %v8120
  %v8122 = vpop.f32.mrf.mxu0
  %8123 = vmatprep.mubr.f32.mxu0 0.0
  %8124 = vmatmul.mubr.f32.gmra.mxu0 %v7909
  %v8125 = vpop.f32.mrf.mxu0
  %v8126 = vadd.f32 0.0, %v8125
  %v8127 = vpop.f32.mrf.mxu0
  %8128 = vmatprep.mubr.f32.mxu0 0.0
  %8129 = vmatmul.mubr.f32.gmra.mxu0 %v7912
  %v8130 = vpop.f32.mrf.mxu0
  %v8131 = vadd.f32 0.0, %v8130
  %v8132 = vpop.f32.mrf.mxu0
  %8133 = vmatprep.mubr.f32.mxu0 0.0
  %8134 = vmatmul.mubr.f32.gmra.mxu0 %v7915
  %v8135 = vpop.f32.mrf.mxu0
  %v8136 = vadd.f32 0.0, %v8135
  %v8137 = vpop.f32.mrf.mxu0
  %8138 = vmatprep.mubr.f32.mxu0 0.0
  %8139 = vmatmul.mubr.f32.gmra.mxu0 %v7918
  %v8140 = vpop.f32.mrf.mxu0
  %v8141 = vadd.f32 0.0, %v8140
  %v8142 = vpop.f32.mrf.mxu0
  %8143 = vmatprep.mubr.f32.mxu0 0.0
  %8144 = vmatmul.mubr.f32.gmra.mxu0 %v7921
  %v8145 = vpop.f32.mrf.mxu0
  %v8146 = vadd.f32 0.0, %v8145
  %v8147 = vpop.f32.mrf.mxu0
  %8148 = vmatprep.mubr.f32.mxu0 0.0
  %8149 = vmatmul.mubr.f32.gmra.mxu0 %v7924
  %v8150 = vpop.f32.mrf.mxu0
  %v8151 = vadd.f32 0.0, %v8150
  %v8152 = vpop.f32.mrf.mxu0
  %8153 = vmatprep.mubr.f32.mxu0 0.0
  %8154 = vmatmul.mubr.f32.gmra.mxu0 %v7927
  %v8155 = vpop.f32.mrf.mxu0
  %v8156 = vadd.f32 0.0, %v8155
  %v8157 = vpop.f32.mrf.mxu0
  %8158 = vmatprep.mubr.f32.mxu0 0.0
  %8159 = vmatmul.mubr.f32.gmra.mxu0 %v7930
  %v8160 = vpop.f32.mrf.mxu0
  %v8161 = vadd.f32 0.0, %v8160
  %v8162 = vpop.f32.mrf.mxu0
  %8163 = vmatprep.mubr.f32.mxu0 0.0
  %8164 = vmatmul.mubr.f32.gmra.mxu0 %v7933
  %v8165 = vpop.f32.mrf.mxu0
  %v8166 = vadd.f32 0.0, %v8165
  %v8167 = vpop.f32.mrf.mxu0
  %8168 = vmatprep.mubr.f32.mxu0 0.0
  %8169 = vmatmul.mubr.f32.gmra.mxu0 %v7936
  %v8170 = vpop.f32.mrf.mxu0
  %v8171 = vadd.f32 0.0, %v8170
  %v8172 = vpop.f32.mrf.mxu0
  %8173 = vmatprep.mubr.f32.mxu0 0.0
  %8174 = vmatmul.mubr.f32.gmra.mxu0 %v7939
  %v8175 = vpop.f32.mrf.mxu0
  %v8176 = vadd.f32 0.0, %v8175
  %v8177 = vpop.f32.mrf.mxu0
  %8178 = vmatprep.mubr.f32.mxu0 0.0
  %8179 = vmatmul.mubr.f32.gmra.mxu0 %v7942
  %v8180 = vpop.f32.mrf.mxu0
  %v8181 = vadd.f32 0.0, %v8180
  %v8182 = vpop.f32.mrf.mxu0
  %8183 = vmatprep.mubr.f32.mxu0 0.0
  %8184 = vmatmul.mubr.f32.gmra.mxu0 %v7945
  %v8185 = vpop.f32.mrf.mxu0
  %v8186 = vadd.f32 0.0, %v8185
  %v8187 = vpop.f32.mrf.mxu0
  %8188 = vmatprep.mubr.f32.mxu0 0.0
  %8189 = vmatmul.mubr.f32.gmra.mxu0 %v7948
  %v8190 = vpop.f32.mrf.mxu0
  %v8191 = vadd.f32 0.0, %v8190
  %v8192 = vpop.f32.mrf.mxu0
  %8193 = vmatprep.mubr.f32.mxu0 0.0
  %8194 = vmatmul.mubr.f32.gmra.mxu0 %v7951
  %v8195 = vpop.f32.mrf.mxu0
  %v8196 = vadd.f32 0.0, %v8195
  %v8197 = vpop.f32.mrf.mxu0
  %8198 = vmatprep.mubr.f32.mxu0 0.0
  %8199 = vmatmul.mubr.f32.gmra.mxu0 %v7954
  %v8200 = vpop.f32.mrf.mxu0
  %v8201 = vadd.f32 0.0, %v8200
  %v8202 = vpop.f32.mrf.mxu0
  %8203 = vmatprep.mubr.f32.mxu0 0.0
  %8204 = vmatmul.mubr.f32.gmra.mxu0 %v7957
  %v8205 = vpop.f32.mrf.mxu0
  %v8206 = vadd.f32 0.0, %v8205
  %v8207 = vpop.f32.mrf.mxu0
  %8208 = vmatprep.mubr.f32.mxu0 0.0
  %8209 = vmatmul.mubr.f32.gmra.mxu0 %v7960
  %v8210 = vpop.f32.mrf.mxu0
  %v8211 = vadd.f32 0.0, %v8210
  %v8212 = vpop.f32.mrf.mxu0
  %8213 = vmatprep.mubr.f32.mxu0 0.0
  %8214 = vmatmul.mubr.f32.gmra.mxu0 %v7963
  %v8215 = vpop.f32.mrf.mxu0
  %v8216 = vadd.f32 0.0, %v8215
  %v8217 = vpop.f32.mrf.mxu0
  %8218 = vmatprep.mubr.f32.mxu0 0.0
  %8219 = vmatmul.mubr.f32.gmra.mxu0 %v7966
  %v8220 = vpop.f32.mrf.mxu0
  %v8221 = vadd.f32 0.0, %v8220
  %v8222 = vpop.f32.mrf.mxu0
  %8223 = vmatprep.mubr.f32.mxu0 0.0
  %8224 = vmatmul.mubr.f32.gmra.mxu0 %v7969
  %v8225 = vpop.f32.mrf.mxu0
  %v8226 = vadd.f32 0.0, %v8225
  %v8227 = vpop.f32.mrf.mxu0
  %8228 = vmatprep.mubr.f32.mxu0 0.0
  %8229 = vmatmul.mubr.f32.gmra.mxu0 %v7972
  %v8230 = vpop.f32.mrf.mxu0
  %v8231 = vadd.f32 0.0, %v8230
  %v8232 = vpop.f32.mrf.mxu0
  %8233 = vmatprep.mubr.f32.mxu0 0.0
  %8234 = vmatmul.mubr.f32.gmra.mxu0 %v7975
  %v8235 = vpop.f32.mrf.mxu0
  %v8236 = vadd.f32 0.0, %v8235
  %v8237 = vpop.f32.mrf.mxu0
  %8238 = vmatprep.mubr.f32.mxu0 0.0
  %8239 = vmatmul.mubr.f32.gmra.mxu0 %v7978
  %v8240 = vpop.f32.mrf.mxu0
  %v8241 = vadd.f32 0.0, %v8240
  %v8242 = vpop.f32.mrf.mxu0
  %8243 = vmatprep.mubr.f32.mxu0 0.0
  %8244 = vmatmul.mubr.f32.gmra.mxu0 %v7981
  %v8245 = vpop.f32.mrf.mxu0
  %v8246 = vadd.f32 0.0, %v8245
  %v8247 = vpop.f32.mrf.mxu0
  %8248 = vmatprep.mubr.f32.mxu0 0.0
  %8249 = vmatmul.mubr.f32.gmra.mxu0 %v7984
  %v8250 = vpop.f32.mrf.mxu0
  %v8251 = vadd.f32 0.0, %v8250
  %v8252 = vpop.f32.mrf.mxu0
  %8253 = vdwg.mxu0
  %v8254 = vadd.f32 %v7743, %v8056
  %v8255 = vadd.f32 %v7744, %v8061
  %v8256 = vadd.f32 %v7745, %v8066
  %v8257 = vadd.f32 %v7746, %v8071
  %v8258 = vadd.f32 %v7747, %v8076
  %v8259 = vadd.f32 %v7748, %v8081
  %v8260 = vadd.f32 %v7749, %v8086
  %v8261 = vadd.f32 %v7750, %v8091
  %v8262 = vadd.f32 %v7751, %v8096
  %v8263 = vadd.f32 %v7752, %v8101
  %v8264 = vadd.f32 %v7753, %v8106
  %v8265 = vadd.f32 %v7754, %v8111
  %v8266 = vadd.f32 %v7755, %v8116
  %v8267 = vadd.f32 %v7756, %v8121
  %v8268 = vadd.f32 %v7757, %v8126
  %v8269 = vadd.f32 %v7758, %v8131
  %v8270 = vadd.f32 %v7759, %v8136
  %v8271 = vadd.f32 %v7760, %v8141
  %v8272 = vadd.f32 %v7761, %v8146
  %v8273 = vadd.f32 %v7762, %v8151
  %v8274 = vadd.f32 %v7763, %v8156
  %v8275 = vadd.f32 %v7764, %v8161
  %v8276 = vadd.f32 %v7765, %v8166
  %v8277 = vadd.f32 %v7766, %v8171
  %v8278 = vadd.f32 %v7767, %v8176
  %v8279 = vadd.f32 %v7768, %v8181
  %v8280 = vadd.f32 %v7769, %v8186
  %v8281 = vadd.f32 %v7770, %v8191
  %v8282 = vadd.f32 %v7771, %v8196
  %v8283 = vadd.f32 %v7772, %v8201
  %v8284 = vadd.f32 %v7773, %v8206
  %v8285 = vadd.f32 %v7774, %v8211
  %v8286 = vadd.f32 %v7775, %v8216
  %v8287 = vadd.f32 %v7776, %v8221
  %v8288 = vadd.f32 %v7777, %v8226
  %v8289 = vadd.f32 %v7778, %v8231
  %v8290 = vadd.f32 %v7779, %v8236
  %v8291 = vadd.f32 %v7780, %v8241
  %v8292 = vadd.f32 %v7781, %v8246
  %v8293 = vadd.f32 %v7782, %v8251
  %s8294 = scalar_lea.vmem %s3, 128
  %v8295 = vld [vmem:[%s8294] sm:$0xff]
  %v8296 = vld [vmem:[%s8294 + $0x8] sm:$0x1]
  %v8298 = vsel %vm4571, %v8296, 0
  %8300 = vmatprep.subr.mxu0 0.0
  %8301 = vmatpush1.msra.mxu0 0.0
  %8302 = vmatprep.subr.mxu0 0.0
  %8303 = vmatpush1.msra.mxu0 0.0
  %8304 = vmatprep.subr.mxu0 0.0
  %8305 = vmatpush1.msra.mxu0 0.0
  %8306 = vmatprep.subr.mxu0 0.0
  %8307 = vmatpush1.msra.mxu0 0.0
  %8308 = vmatprep.subr.mxu0 0.0
  %8309 = vmatpush1.msra.mxu0 0.0
  %8310 = vmatprep.subr.mxu0 0.0
  %8311 = vmatpush1.msra.mxu0 0.0
  %8312 = vmatprep.subr.mxu0 0.0
  %8313 = vmatpush1.msra.mxu0 0.0
  %8314 = vmatprep.subr.mxu0 0.0
  %8315 = vmatpush1.msra.mxu0 0.0
  %8316 = vmatprep.subr.mxu0 0.0
  %8317 = vmatpush1.msra.mxu0 0.0
  %8318 = vmatprep.subr.mxu0 0.0
  %8319 = vmatpush1.msra.mxu0 0.0
  %8320 = vmatprep.subr.mxu0 0.0
  %8321 = vmatpush1.msra.mxu0 0.0
  %8322 = vmatprep.subr.mxu0 0.0
  %8323 = vmatpush1.msra.mxu0 0.0
  %8324 = vmatprep.subr.mxu0 0.0
  %8325 = vmatpush1.msra.mxu0 0.0
  %8326 = vmatprep.subr.mxu0 0.0
  %8327 = vmatpush1.msra.mxu0 0.0
  %8328 = vmatprep.subr.mxu0 0.0
  %8329 = vmatpush1.msra.mxu0 %v8298
  %8330 = vmatprep.subr.mxu0 0.0
  %8331 = vmatpush1.msra.mxu0 %v8295
  %8332 = vmatprep.subr.mxu0 0.0
  %8333 = vmatpush2.msra.mxu0 0.0
  %8334 = vmatprep.subr.mxu0 0.0
  %8335 = vmatpush2.msra.mxu0 0.0
  %8336 = vmatprep.subr.mxu0 0.0
  %8337 = vmatpush2.msra.mxu0 0.0
  %8338 = vmatprep.subr.mxu0 0.0
  %8339 = vmatpush2.msra.mxu0 0.0
  %8340 = vmatprep.subr.mxu0 0.0
  %8341 = vmatpush2.msra.mxu0 0.0
  %8342 = vmatprep.subr.mxu0 0.0
  %8343 = vmatpush2.msra.mxu0 0.0
  %8344 = vmatprep.subr.mxu0 0.0
  %8345 = vmatpush2.msra.mxu0 0.0
  %8346 = vmatprep.subr.mxu0 0.0
  %8347 = vmatpush2.msra.mxu0 0.0
  %8348 = vmatprep.subr.mxu0 0.0
  %8349 = vmatpush2.msra.mxu0 0.0
  %8350 = vmatprep.subr.mxu0 0.0
  %8351 = vmatpush2.msra.mxu0 0.0
  %8352 = vmatprep.subr.mxu0 0.0
  %8353 = vmatpush2.msra.mxu0 0.0
  %8354 = vmatprep.subr.mxu0 0.0
  %8355 = vmatpush2.msra.mxu0 0.0
  %8356 = vmatprep.subr.mxu0 0.0
  %8357 = vmatpush2.msra.mxu0 0.0
  %8358 = vmatprep.subr.mxu0 0.0
  %8359 = vmatpush2.msra.mxu0 0.0
  %8360 = vmatprep.subr.mxu0 0.0
  %8361 = vmatpush2.msra.mxu0 0.0
  %8362 = vmatprep.subr.mxu0 0.0
  %8363 = vmatpush2.msra.mxu0 0.0
  %8364 = vmatprep.mubr.f32.mxu0 0.0
  %8365 = vmatmul.mubr.f32.gmra.mxu0 %v4844
  %v8366 = vpop.f32.mrf.mxu0
  %v8367 = vadd.f32 0.0, %v8366
  %v8368 = vpop.f32.mrf.mxu0
  %8369 = vmatprep.mubr.f32.mxu0 0.0
  %8370 = vmatmul.mubr.f32.gmra.mxu0 %v4847
  %v8371 = vpop.f32.mrf.mxu0
  %v8372 = vadd.f32 0.0, %v8371
  %v8373 = vpop.f32.mrf.mxu0
  %8374 = vmatprep.mubr.f32.mxu0 0.0
  %8375 = vmatmul.mubr.f32.gmra.mxu0 %v4850
  %v8376 = vpop.f32.mrf.mxu0
  %v8377 = vadd.f32 0.0, %v8376
  %v8378 = vpop.f32.mrf.mxu0
  %8379 = vmatprep.mubr.f32.mxu0 0.0
  %8380 = vmatmul.mubr.f32.gmra.mxu0 %v4853
  %v8381 = vpop.f32.mrf.mxu0
  %v8382 = vadd.f32 0.0, %v8381
  %v8383 = vpop.f32.mrf.mxu0
  %8384 = vmatprep.mubr.f32.mxu0 0.0
  %8385 = vmatmul.mubr.f32.gmra.mxu0 %v4856
  %v8386 = vpop.f32.mrf.mxu0
  %v8387 = vadd.f32 0.0, %v8386
  %v8388 = vpop.f32.mrf.mxu0
  %8389 = vmatprep.mubr.f32.mxu0 0.0
  %8390 = vmatmul.mubr.f32.gmra.mxu0 %v4859
  %v8391 = vpop.f32.mrf.mxu0
  %v8392 = vadd.f32 0.0, %v8391
  %v8393 = vpop.f32.mrf.mxu0
  %8394 = vmatprep.mubr.f32.mxu0 0.0
  %8395 = vmatmul.mubr.f32.gmra.mxu0 %v4862
  %v8396 = vpop.f32.mrf.mxu0
  %v8397 = vadd.f32 0.0, %v8396
  %v8398 = vpop.f32.mrf.mxu0
  %8399 = vmatprep.mubr.f32.mxu0 0.0
  %8400 = vmatmul.mubr.f32.gmra.mxu0 %v4865
  %v8401 = vpop.f32.mrf.mxu0
  %v8402 = vadd.f32 0.0, %v8401
  %v8403 = vpop.f32.mrf.mxu0
  %8404 = vmatprep.mubr.f32.mxu0 0.0
  %8405 = vmatmul.mubr.f32.gmra.mxu0 %v4868
  %v8406 = vpop.f32.mrf.mxu0
  %v8407 = vadd.f32 0.0, %v8406
  %v8408 = vpop.f32.mrf.mxu0
  %8409 = vmatprep.mubr.f32.mxu0 0.0
  %8410 = vmatmul.mubr.f32.gmra.mxu0 %v4871
  %v8411 = vpop.f32.mrf.mxu0
  %v8412 = vadd.f32 0.0, %v8411
  %v8413 = vpop.f32.mrf.mxu0
  %8414 = vmatprep.mubr.f32.mxu0 0.0
  %8415 = vmatmul.mubr.f32.gmra.mxu0 %v4874
  %v8416 = vpop.f32.mrf.mxu0
  %v8417 = vadd.f32 0.0, %v8416
  %v8418 = vpop.f32.mrf.mxu0
  %8419 = vmatprep.mubr.f32.mxu0 0.0
  %8420 = vmatmul.mubr.f32.gmra.mxu0 %v4877
  %v8421 = vpop.f32.mrf.mxu0
  %v8422 = vadd.f32 0.0, %v8421
  %v8423 = vpop.f32.mrf.mxu0
  %8424 = vmatprep.mubr.f32.mxu0 0.0
  %8425 = vmatmul.mubr.f32.gmra.mxu0 %v4880
  %v8426 = vpop.f32.mrf.mxu0
  %v8427 = vadd.f32 0.0, %v8426
  %v8428 = vpop.f32.mrf.mxu0
  %8429 = vmatprep.mubr.f32.mxu0 0.0
  %8430 = vmatmul.mubr.f32.gmra.mxu0 %v4883
  %v8431 = vpop.f32.mrf.mxu0
  %v8432 = vadd.f32 0.0, %v8431
  %v8433 = vpop.f32.mrf.mxu0
  %8434 = vmatprep.mubr.f32.mxu0 0.0
  %8435 = vmatmul.mubr.f32.gmra.mxu0 %v4886
  %v8436 = vpop.f32.mrf.mxu0
  %v8437 = vadd.f32 0.0, %v8436
  %v8438 = vpop.f32.mrf.mxu0
  %8439 = vmatprep.mubr.f32.mxu0 0.0
  %8440 = vmatmul.mubr.f32.gmra.mxu0 %v4889
  %v8441 = vpop.f32.mrf.mxu0
  %v8442 = vadd.f32 0.0, %v8441
  %v8443 = vpop.f32.mrf.mxu0
  %8444 = vmatprep.mubr.f32.mxu0 0.0
  %8445 = vmatmul.mubr.f32.gmra.mxu0 %v4892
  %v8446 = vpop.f32.mrf.mxu0
  %v8447 = vadd.f32 0.0, %v8446
  %v8448 = vpop.f32.mrf.mxu0
  %8449 = vmatprep.mubr.f32.mxu0 0.0
  %8450 = vmatmul.mubr.f32.gmra.mxu0 %v4895
  %v8451 = vpop.f32.mrf.mxu0
  %v8452 = vadd.f32 0.0, %v8451
  %v8453 = vpop.f32.mrf.mxu0
  %8454 = vmatprep.mubr.f32.mxu0 0.0
  %8455 = vmatmul.mubr.f32.gmra.mxu0 %v4898
  %v8456 = vpop.f32.mrf.mxu0
  %v8457 = vadd.f32 0.0, %v8456
  %v8458 = vpop.f32.mrf.mxu0
  %8459 = vmatprep.mubr.f32.mxu0 0.0
  %8460 = vmatmul.mubr.f32.gmra.mxu0 %v4901
  %v8461 = vpop.f32.mrf.mxu0
  %v8462 = vadd.f32 0.0, %v8461
  %v8463 = vpop.f32.mrf.mxu0
  %8464 = vmatprep.mubr.f32.mxu0 0.0
  %8465 = vmatmul.mubr.f32.gmra.mxu0 %v4904
  %v8466 = vpop.f32.mrf.mxu0
  %v8467 = vadd.f32 0.0, %v8466
  %v8468 = vpop.f32.mrf.mxu0
  %8469 = vmatprep.mubr.f32.mxu0 0.0
  %8470 = vmatmul.mubr.f32.gmra.mxu0 %v4907
  %v8471 = vpop.f32.mrf.mxu0
  %v8472 = vadd.f32 0.0, %v8471
  %v8473 = vpop.f32.mrf.mxu0
  %8474 = vmatprep.mubr.f32.mxu0 0.0
  %8475 = vmatmul.mubr.f32.gmra.mxu0 %v4910
  %v8476 = vpop.f32.mrf.mxu0
  %v8477 = vadd.f32 0.0, %v8476
  %v8478 = vpop.f32.mrf.mxu0
  %8479 = vmatprep.mubr.f32.mxu0 0.0
  %8480 = vmatmul.mubr.f32.gmra.mxu0 %v4913
  %v8481 = vpop.f32.mrf.mxu0
  %v8482 = vadd.f32 0.0, %v8481
  %v8483 = vpop.f32.mrf.mxu0
  %8484 = vmatprep.mubr.f32.mxu0 0.0
  %8485 = vmatmul.mubr.f32.gmra.mxu0 %v4916
  %v8486 = vpop.f32.mrf.mxu0
  %v8487 = vadd.f32 0.0, %v8486
  %v8488 = vpop.f32.mrf.mxu0
  %8489 = vmatprep.mubr.f32.mxu0 0.0
  %8490 = vmatmul.mubr.f32.gmra.mxu0 %v4919
  %v8491 = vpop.f32.mrf.mxu0
  %v8492 = vadd.f32 0.0, %v8491
  %v8493 = vpop.f32.mrf.mxu0
  %8494 = vmatprep.mubr.f32.mxu0 0.0
  %8495 = vmatmul.mubr.f32.gmra.mxu0 %v4922
  %v8496 = vpop.f32.mrf.mxu0
  %v8497 = vadd.f32 0.0, %v8496
  %v8498 = vpop.f32.mrf.mxu0
  %8499 = vmatprep.mubr.f32.mxu0 0.0
  %8500 = vmatmul.mubr.f32.gmra.mxu0 %v4925
  %v8501 = vpop.f32.mrf.mxu0
  %v8502 = vadd.f32 0.0, %v8501
  %v8503 = vpop.f32.mrf.mxu0
  %8504 = vmatprep.mubr.f32.mxu0 0.0
  %8505 = vmatmul.mubr.f32.gmra.mxu0 %v4928
  %v8506 = vpop.f32.mrf.mxu0
  %v8507 = vadd.f32 0.0, %v8506
  %v8508 = vpop.f32.mrf.mxu0
  %8509 = vmatprep.mubr.f32.mxu0 0.0
  %8510 = vmatmul.mubr.f32.gmra.mxu0 %v4931
  %v8511 = vpop.f32.mrf.mxu0
  %v8512 = vadd.f32 0.0, %v8511
  %v8513 = vpop.f32.mrf.mxu0
  %8514 = vmatprep.mubr.f32.mxu0 0.0
  %8515 = vmatmul.mubr.f32.gmra.mxu0 %v4934
  %v8516 = vpop.f32.mrf.mxu0
  %v8517 = vadd.f32 0.0, %v8516
  %v8518 = vpop.f32.mrf.mxu0
  %8519 = vmatprep.mubr.f32.mxu0 0.0
  %8520 = vmatmul.mubr.f32.gmra.mxu0 %v4937
  %v8521 = vpop.f32.mrf.mxu0
  %v8522 = vadd.f32 0.0, %v8521
  %v8523 = vpop.f32.mrf.mxu0
  %8524 = vmatprep.mubr.f32.mxu0 0.0
  %8525 = vmatmul.mubr.f32.gmra.mxu0 %v4940
  %v8526 = vpop.f32.mrf.mxu0
  %v8527 = vadd.f32 0.0, %v8526
  %v8528 = vpop.f32.mrf.mxu0
  %8529 = vmatprep.mubr.f32.mxu0 0.0
  %8530 = vmatmul.mubr.f32.gmra.mxu0 %v4943
  %v8531 = vpop.f32.mrf.mxu0
  %v8532 = vadd.f32 0.0, %v8531
  %v8533 = vpop.f32.mrf.mxu0
  %8534 = vmatprep.mubr.f32.mxu0 0.0
  %8535 = vmatmul.mubr.f32.gmra.mxu0 %v4946
  %v8536 = vpop.f32.mrf.mxu0
  %v8537 = vadd.f32 0.0, %v8536
  %v8538 = vpop.f32.mrf.mxu0
  %8539 = vmatprep.mubr.f32.mxu0 0.0
  %8540 = vmatmul.mubr.f32.gmra.mxu0 %v4949
  %v8541 = vpop.f32.mrf.mxu0
  %v8542 = vadd.f32 0.0, %v8541
  %v8543 = vpop.f32.mrf.mxu0
  %8544 = vmatprep.mubr.f32.mxu0 0.0
  %8545 = vmatmul.mubr.f32.gmra.mxu0 %v4952
  %v8546 = vpop.f32.mrf.mxu0
  %v8547 = vadd.f32 0.0, %v8546
  %v8548 = vpop.f32.mrf.mxu0
  %8549 = vmatprep.mubr.f32.mxu0 0.0
  %8550 = vmatmul.mubr.f32.gmra.mxu0 %v4955
  %v8551 = vpop.f32.mrf.mxu0
  %v8552 = vadd.f32 0.0, %v8551
  %v8553 = vpop.f32.mrf.mxu0
  %8554 = vmatprep.mubr.f32.mxu0 0.0
  %8555 = vmatmul.mubr.f32.gmra.mxu0 %v4958
  %v8556 = vpop.f32.mrf.mxu0
  %v8557 = vadd.f32 0.0, %v8556
  %v8558 = vpop.f32.mrf.mxu0
  %8559 = vmatprep.mubr.f32.mxu0 0.0
  %8560 = vmatmul.mubr.f32.gmra.mxu0 %v4841
  %v8561 = vpop.f32.mrf.mxu0
  %v8562 = vadd.f32 0.0, %v8561
  %v8563 = vpop.f32.mrf.mxu0
  %8564 = vdwg.mxu0
  %v8565 = vadd.f32 %v8254, %v8367
  %v8566 = vadd.f32 %v8255, %v8372
  %v8567 = vadd.f32 %v8256, %v8377
  %v8568 = vadd.f32 %v8257, %v8382
  %v8569 = vadd.f32 %v8258, %v8387
  %v8570 = vadd.f32 %v8259, %v8392
  %v8571 = vadd.f32 %v8260, %v8397
  %v8572 = vadd.f32 %v8261, %v8402
  %v8573 = vadd.f32 %v8262, %v8407
  %v8574 = vadd.f32 %v8263, %v8412
  %v8575 = vadd.f32 %v8264, %v8417
  %v8576 = vadd.f32 %v8265, %v8422
  %v8577 = vadd.f32 %v8266, %v8427
  %v8578 = vadd.f32 %v8267, %v8432
  %v8579 = vadd.f32 %v8268, %v8437
  %v8580 = vadd.f32 %v8269, %v8442
  %v8581 = vadd.f32 %v8270, %v8447
  %v8582 = vadd.f32 %v8271, %v8452
  %v8583 = vadd.f32 %v8272, %v8457
  %v8584 = vadd.f32 %v8273, %v8462
  %v8585 = vadd.f32 %v8274, %v8467
  %v8586 = vadd.f32 %v8275, %v8472
  %v8587 = vadd.f32 %v8276, %v8477
  %v8588 = vadd.f32 %v8277, %v8482
  %v8589 = vadd.f32 %v8278, %v8487
  %v8590 = vadd.f32 %v8279, %v8492
  %v8591 = vadd.f32 %v8280, %v8497
  %v8592 = vadd.f32 %v8281, %v8502
  %v8593 = vadd.f32 %v8282, %v8507
  %v8594 = vadd.f32 %v8283, %v8512
  %v8595 = vadd.f32 %v8284, %v8517
  %v8596 = vadd.f32 %v8285, %v8522
  %v8597 = vadd.f32 %v8286, %v8527
  %v8598 = vadd.f32 %v8287, %v8532
  %v8599 = vadd.f32 %v8288, %v8537
  %v8600 = vadd.f32 %v8289, %v8542
  %v8601 = vadd.f32 %v8290, %v8547
  %v8602 = vadd.f32 %v8291, %v8552
  %v8603 = vadd.f32 %v8292, %v8557
  %v8604 = vadd.f32 %v8293, %v8562
  %v8605 = vld [vmem:[%s4] sm:$0x1]
  %v8607 = vlaneseq
  %v8608 = vshrl.u32 %v8607, 7
  %v8609 = vsub.s32 0, %v8608
  %v8610 = vrot.slane %v8605, %v8609
  %v8612 = vadd.f32 %v8565, %v8610
  %v8613 = vadd.f32 %v8566, %v8610
  %v8614 = vadd.f32 %v8567, %v8610
  %v8615 = vadd.f32 %v8568, %v8610
  %v8616 = vadd.f32 %v8569, %v8610
  %v8617 = vadd.f32 %v8570, %v8610
  %v8618 = vadd.f32 %v8571, %v8610
  %v8619 = vadd.f32 %v8572, %v8610
  %v8620 = vadd.f32 %v8573, %v8610
  %v8621 = vadd.f32 %v8574, %v8610
  %v8622 = vadd.f32 %v8575, %v8610
  %v8623 = vadd.f32 %v8576, %v8610
  %v8624 = vadd.f32 %v8577, %v8610
  %v8625 = vadd.f32 %v8578, %v8610
  %v8626 = vadd.f32 %v8579, %v8610
  %v8627 = vadd.f32 %v8580, %v8610
  %v8628 = vadd.f32 %v8581, %v8610
  %v8629 = vadd.f32 %v8582, %v8610
  %v8630 = vadd.f32 %v8583, %v8610
  %v8631 = vadd.f32 %v8584, %v8610
  %v8632 = vadd.f32 %v8585, %v8610
  %v8633 = vadd.f32 %v8586, %v8610
  %v8634 = vadd.f32 %v8587, %v8610
  %v8635 = vadd.f32 %v8588, %v8610
  %v8636 = vadd.f32 %v8589, %v8610
  %v8637 = vadd.f32 %v8590, %v8610
  %v8638 = vadd.f32 %v8591, %v8610
  %v8639 = vadd.f32 %v8592, %v8610
  %v8640 = vadd.f32 %v8593, %v8610
  %v8641 = vadd.f32 %v8594, %v8610
  %v8642 = vadd.f32 %v8595, %v8610
  %v8643 = vadd.f32 %v8596, %v8610
  %v8644 = vadd.f32 %v8597, %v8610
  %v8645 = vadd.f32 %v8598, %v8610
  %v8646 = vadd.f32 %v8599, %v8610
  %v8647 = vadd.f32 %v8600, %v8610
  %v8648 = vadd.f32 %v8601, %v8610
  %v8649 = vadd.f32 %v8602, %v8610
  %v8650 = vadd.f32 %v8603, %v8610
  %v8651 = vadd.f32 %v8604, %v8610
  %v8652 = vmax.f32 %v8612, 0.0
  %v8653 = vmax.f32 %v8613, 0.0
  %v8654 = vmax.f32 %v8614, 0.0
  %v8655 = vmax.f32 %v8615, 0.0
  %v8656 = vmax.f32 %v8616, 0.0
  %v8657 = vmax.f32 %v8617, 0.0
  %v8658 = vmax.f32 %v8618, 0.0
  %v8659 = vmax.f32 %v8619, 0.0
  %v8660 = vmax.f32 %v8620, 0.0
  %v8661 = vmax.f32 %v8621, 0.0
  %v8662 = vmax.f32 %v8622, 0.0
  %v8663 = vmax.f32 %v8623, 0.0
  %v8664 = vmax.f32 %v8624, 0.0
  %v8665 = vmax.f32 %v8625, 0.0
  %v8666 = vmax.f32 %v8626, 0.0
  %v8667 = vmax.f32 %v8627, 0.0
  %v8668 = vmax.f32 %v8628, 0.0
  %v8669 = vmax.f32 %v8629, 0.0
  %v8670 = vmax.f32 %v8630, 0.0
  %v8671 = vmax.f32 %v8631, 0.0
  %v8672 = vmax.f32 %v8632, 0.0
  %v8673 = vmax.f32 %v8633, 0.0
  %v8674 = vmax.f32 %v8634, 0.0
  %v8675 = vmax.f32 %v8635, 0.0
  %v8676 = vmax.f32 %v8636, 0.0
  %v8677 = vmax.f32 %v8637, 0.0
  %v8678 = vmax.f32 %v8638, 0.0
  %v8679 = vmax.f32 %v8639, 0.0
  %v8680 = vmax.f32 %v8640, 0.0
  %v8681 = vmax.f32 %v8641, 0.0
  %v8682 = vmax.f32 %v8642, 0.0
  %v8683 = vmax.f32 %v8643, 0.0
  %v8684 = vmax.f32 %v8644, 0.0
  %v8685 = vmax.f32 %v8645, 0.0
  %v8686 = vmax.f32 %v8646, 0.0
  %v8687 = vmax.f32 %v8647, 0.0
  %v8688 = vmax.f32 %v8648, 0.0
  %v8689 = vmax.f32 %v8649, 0.0
  %v8690 = vmax.f32 %v8650, 0.0
  %v8691 = vmax.f32 %v8651, 0.0
  %v8692 = vld [vmem:[%s5] sm:$0xff]
  %v8693 = vld [vmem:[%s5 + $0x8] sm:$0x3]
  %v8694 = vrot.slane %v8652, 1
  %v8695 = vrot.slane %v8653, 1
  %v8696 = vrot.slane %v8654, 1
  %v8697 = vrot.slane %v8655, 1
  %v8698 = vrot.slane %v8656, 1
  %v8699 = vrot.slane %v8657, 1
  %v8700 = vrot.slane %v8658, 1
  %v8701 = vrot.slane %v8659, 1
  %v8702 = vrot.slane %v8660, 1
  %v8703 = vrot.slane %v8661, 1
  %v8704 = vrot.slane %v8662, 1
  %v8705 = vrot.slane %v8663, 1
  %v8706 = vrot.slane %v8664, 1
  %v8707 = vrot.slane %v8665, 1
  %v8708 = vrot.slane %v8666, 1
  %v8709 = vrot.slane %v8667, 1
  %v8710 = vrot.slane %v8668, 1
  %v8711 = vrot.slane %v8669, 1
  %v8712 = vrot.slane %v8670, 1
  %v8713 = vrot.slane %v8671, 1
  %v8714 = vrot.slane %v8672, 1
  %v8715 = vrot.slane %v8673, 1
  %v8716 = vrot.slane %v8674, 1
  %v8717 = vrot.slane %v8675, 1
  %v8718 = vrot.slane %v8676, 1
  %v8719 = vrot.slane %v8677, 1
  %v8720 = vrot.slane %v8678, 1
  %v8721 = vrot.slane %v8679, 1
  %v8722 = vrot.slane %v8680, 1
  %v8723 = vrot.slane %v8681, 1
  %v8724 = vrot.slane %v8682, 1
  %v8725 = vrot.slane %v8683, 1
  %v8726 = vrot.slane %v8684, 1
  %v8727 = vrot.slane %v8685, 1
  %v8728 = vrot.slane %v8686, 1
  %v8729 = vrot.slane %v8687, 1
  %v8730 = vrot.slane %v8688, 1
  %v8731 = vrot.slane %v8689, 1
  %v8732 = vrot.slane %v8690, 1
  %v8733 = vrot.slane %v8691, 1
  %v8734 = vsel %vm109, %v8732, %v8733
  %v8735 = vsel %vm109, %v8731, %v8732
  %v8736 = vsel %vm109, %v8730, %v8731
  %v8737 = vsel %vm109, %v8729, %v8730
  %v8738 = vsel %vm109, %v8728, %v8729
  %v8739 = vsel %vm109, %v8727, %v8728
  %v8740 = vsel %vm109, %v8726, %v8727
  %v8741 = vsel %vm109, %v8725, %v8726
  %v8742 = vsel %vm109, %v8724, %v8725
  %v8743 = vsel %vm109, %v8723, %v8724
  %v8744 = vsel %vm109, %v8722, %v8723
  %v8745 = vsel %vm109, %v8721, %v8722
  %v8746 = vsel %vm109, %v8720, %v8721
  %v8747 = vsel %vm109, %v8719, %v8720
  %v8748 = vsel %vm109, %v8718, %v8719
  %v8749 = vsel %vm109, %v8717, %v8718
  %v8750 = vsel %vm109, %v8716, %v8717
  %v8751 = vsel %vm109, %v8715, %v8716
  %v8752 = vsel %vm109, %v8714, %v8715
  %v8753 = vsel %vm109, %v8713, %v8714
  %v8754 = vsel %vm109, %v8712, %v8713
  %v8755 = vsel %vm109, %v8711, %v8712
  %v8756 = vsel %vm109, %v8710, %v8711
  %v8757 = vsel %vm109, %v8709, %v8710
  %v8758 = vsel %vm109, %v8708, %v8709
  %v8759 = vsel %vm109, %v8707, %v8708
  %v8760 = vsel %vm109, %v8706, %v8707
  %v8761 = vsel %vm109, %v8705, %v8706
  %v8762 = vsel %vm109, %v8704, %v8705
  %v8763 = vsel %vm109, %v8703, %v8704
  %v8764 = vsel %vm109, %v8702, %v8703
  %v8765 = vsel %vm109, %v8701, %v8702
  %v8766 = vsel %vm109, %v8700, %v8701
  %v8767 = vsel %vm109, %v8699, %v8700
  %v8768 = vsel %vm109, %v8698, %v8699
  %v8769 = vsel %vm109, %v8697, %v8698
  %v8770 = vsel %vm109, %v8696, %v8697
  %v8771 = vsel %vm109, %v8695, %v8696
  %v8772 = vsel %vm109, %v8694, %v8695
  %v8773 = vsel %vm109, %v8733, %v8694
  %s8774 = scalar_lea.vmem %s5, 16
  %v8775 = vld [vmem:[%s8774] sm:$0xff]
  %v8776 = vld [vmem:[%s8774 + $0x8] sm:$0x3]
  %vm8777 = vcmask 80896
  %v8779 = vsel %vm8777, %v8772, 0
  %v8782 = vsel %vm8777, %v8771, 0
  %v8785 = vsel %vm8777, %v8770, 0
  %v8788 = vsel %vm8777, %v8769, 0
  %v8791 = vsel %vm8777, %v8768, 0
  %v8794 = vsel %vm8777, %v8767, 0
  %v8797 = vsel %vm8777, %v8766, 0
  %v8800 = vsel %vm8777, %v8765, 0
  %v8803 = vsel %vm8777, %v8764, 0
  %v8806 = vsel %vm8777, %v8763, 0
  %v8809 = vsel %vm8777, %v8762, 0
  %v8812 = vsel %vm8777, %v8761, 0
  %v8815 = vsel %vm8777, %v8760, 0
  %v8818 = vsel %vm8777, %v8759, 0
  %v8821 = vsel %vm8777, %v8758, 0
  %v8824 = vsel %vm8777, %v8757, 0
  %v8827 = vsel %vm8777, %v8756, 0
  %v8830 = vsel %vm8777, %v8755, 0
  %v8833 = vsel %vm8777, %v8754, 0
  %v8836 = vsel %vm8777, %v8753, 0
  %v8839 = vsel %vm8777, %v8752, 0
  %v8842 = vsel %vm8777, %v8751, 0
  %v8845 = vsel %vm8777, %v8750, 0
  %v8848 = vsel %vm8777, %v8749, 0
  %v8851 = vsel %vm8777, %v8748, 0
  %v8854 = vsel %vm8777, %v8747, 0
  %v8857 = vsel %vm8777, %v8746, 0
  %v8860 = vsel %vm8777, %v8745, 0
  %v8863 = vsel %vm8777, %v8744, 0
  %v8866 = vsel %vm8777, %v8743, 0
  %v8869 = vsel %vm8777, %v8742, 0
  %v8872 = vsel %vm8777, %v8741, 0
  %v8875 = vsel %vm8777, %v8740, 0
  %v8878 = vsel %vm8777, %v8739, 0
  %v8881 = vsel %vm8777, %v8738, 0
  %v8884 = vsel %vm8777, %v8737, 0
  %v8887 = vsel %vm8777, %v8736, 0
  %v8890 = vsel %vm8777, %v8735, 0
  %v8893 = vsel %vm8777, %v8734, 0
  %v8896 = vsel %vm8777, %v8773, 0
  %vm8898 = vcmask 1041408
  %v8900 = vsel %vm8898, %v8776, 0
  %8902 = vmatprep.subr.mxu0 0.0
  %8903 = vmatpush1.msra.mxu0 0.0
  %8904 = vmatprep.subr.mxu0 0.0
  %8905 = vmatpush1.msra.mxu0 0.0
  %8906 = vmatprep.subr.mxu0 0.0
  %8907 = vmatpush1.msra.mxu0 0.0
  %8908 = vmatprep.subr.mxu0 0.0
  %8909 = vmatpush1.msra.mxu0 0.0
  %8910 = vmatprep.subr.mxu0 0.0
  %8911 = vmatpush1.msra.mxu0 0.0
  %8912 = vmatprep.subr.mxu0 0.0
  %8913 = vmatpush1.msra.mxu0 0.0
  %8914 = vmatprep.subr.mxu0 0.0
  %8915 = vmatpush1.msra.mxu0 0.0
  %8916 = vmatprep.subr.mxu0 0.0
  %8917 = vmatpush1.msra.mxu0 0.0
  %8918 = vmatprep.subr.mxu0 0.0
  %8919 = vmatpush1.msra.mxu0 0.0
  %8920 = vmatprep.subr.mxu0 0.0
  %8921 = vmatpush1.msra.mxu0 0.0
  %8922 = vmatprep.subr.mxu0 0.0
  %8923 = vmatpush1.msra.mxu0 0.0
  %8924 = vmatprep.subr.mxu0 0.0
  %8925 = vmatpush1.msra.mxu0 0.0
  %8926 = vmatprep.subr.mxu0 0.0
  %8927 = vmatpush1.msra.mxu0 0.0
  %8928 = vmatprep.subr.mxu0 0.0
  %8929 = vmatpush1.msra.mxu0 0.0
  %8930 = vmatprep.subr.mxu0 0.0
  %8931 = vmatpush1.msra.mxu0 %v8900
  %8932 = vmatprep.subr.mxu0 0.0
  %8933 = vmatpush1.msra.mxu0 %v8775
  %8934 = vmatprep.subr.mxu0 0.0
  %8935 = vmatpush2.msra.mxu0 0.0
  %8936 = vmatprep.subr.mxu0 0.0
  %8937 = vmatpush2.msra.mxu0 0.0
  %8938 = vmatprep.subr.mxu0 0.0
  %8939 = vmatpush2.msra.mxu0 0.0
  %8940 = vmatprep.subr.mxu0 0.0
  %8941 = vmatpush2.msra.mxu0 0.0
  %8942 = vmatprep.subr.mxu0 0.0
  %8943 = vmatpush2.msra.mxu0 0.0
  %8944 = vmatprep.subr.mxu0 0.0
  %8945 = vmatpush2.msra.mxu0 0.0
  %8946 = vmatprep.subr.mxu0 0.0
  %8947 = vmatpush2.msra.mxu0 0.0
  %8948 = vmatprep.subr.mxu0 0.0
  %8949 = vmatpush2.msra.mxu0 0.0
  %8950 = vmatprep.subr.mxu0 0.0
  %8951 = vmatpush2.msra.mxu0 0.0
  %8952 = vmatprep.subr.mxu0 0.0
  %8953 = vmatpush2.msra.mxu0 0.0
  %8954 = vmatprep.subr.mxu0 0.0
  %8955 = vmatpush2.msra.mxu0 0.0
  %8956 = vmatprep.subr.mxu0 0.0
  %8957 = vmatpush2.msra.mxu0 0.0
  %8958 = vmatprep.subr.mxu0 0.0
  %8959 = vmatpush2.msra.mxu0 0.0
  %8960 = vmatprep.subr.mxu0 0.0
  %8961 = vmatpush2.msra.mxu0 0.0
  %8962 = vmatprep.subr.mxu0 0.0
  %8963 = vmatpush2.msra.mxu0 0.0
  %8964 = vmatprep.subr.mxu0 0.0
  %8965 = vmatpush2.msra.mxu0 0.0
  %8966 = vmatprep.mubr.f32.mxu0 0.0
  %8967 = vmatmul.mubr.f32.gmra.mxu0 %v8779
  %v8968 = vpop.f32.mrf.mxu0
  %v8969 = vadd.f32 0.0, %v8968
  %v8970 = vpop.f32.mrf.mxu0
  %8971 = vmatprep.mubr.f32.mxu0 0.0
  %8972 = vmatmul.mubr.f32.gmra.mxu0 %v8782
  %v8973 = vpop.f32.mrf.mxu0
  %v8974 = vadd.f32 0.0, %v8973
  %v8975 = vpop.f32.mrf.mxu0
  %8976 = vmatprep.mubr.f32.mxu0 0.0
  %8977 = vmatmul.mubr.f32.gmra.mxu0 %v8785
  %v8978 = vpop.f32.mrf.mxu0
  %v8979 = vadd.f32 0.0, %v8978
  %v8980 = vpop.f32.mrf.mxu0
  %8981 = vmatprep.mubr.f32.mxu0 0.0
  %8982 = vmatmul.mubr.f32.gmra.mxu0 %v8788
  %v8983 = vpop.f32.mrf.mxu0
  %v8984 = vadd.f32 0.0, %v8983
  %v8985 = vpop.f32.mrf.mxu0
  %8986 = vmatprep.mubr.f32.mxu0 0.0
  %8987 = vmatmul.mubr.f32.gmra.mxu0 %v8791
  %v8988 = vpop.f32.mrf.mxu0
  %v8989 = vadd.f32 0.0, %v8988
  %v8990 = vpop.f32.mrf.mxu0
  %8991 = vmatprep.mubr.f32.mxu0 0.0
  %8992 = vmatmul.mubr.f32.gmra.mxu0 %v8794
  %v8993 = vpop.f32.mrf.mxu0
  %v8994 = vadd.f32 0.0, %v8993
  %v8995 = vpop.f32.mrf.mxu0
  %8996 = vmatprep.mubr.f32.mxu0 0.0
  %8997 = vmatmul.mubr.f32.gmra.mxu0 %v8797
  %v8998 = vpop.f32.mrf.mxu0
  %v8999 = vadd.f32 0.0, %v8998
  %v9000 = vpop.f32.mrf.mxu0
  %9001 = vmatprep.mubr.f32.mxu0 0.0
  %9002 = vmatmul.mubr.f32.gmra.mxu0 %v8800
  %v9003 = vpop.f32.mrf.mxu0
  %v9004 = vadd.f32 0.0, %v9003
  %v9005 = vpop.f32.mrf.mxu0
  %9006 = vmatprep.mubr.f32.mxu0 0.0
  %9007 = vmatmul.mubr.f32.gmra.mxu0 %v8803
  %v9008 = vpop.f32.mrf.mxu0
  %v9009 = vadd.f32 0.0, %v9008
  %v9010 = vpop.f32.mrf.mxu0
  %9011 = vmatprep.mubr.f32.mxu0 0.0
  %9012 = vmatmul.mubr.f32.gmra.mxu0 %v8806
  %v9013 = vpop.f32.mrf.mxu0
  %v9014 = vadd.f32 0.0, %v9013
  %v9015 = vpop.f32.mrf.mxu0
  %9016 = vmatprep.mubr.f32.mxu0 0.0
  %9017 = vmatmul.mubr.f32.gmra.mxu0 %v8809
  %v9018 = vpop.f32.mrf.mxu0
  %v9019 = vadd.f32 0.0, %v9018
  %v9020 = vpop.f32.mrf.mxu0
  %9021 = vmatprep.mubr.f32.mxu0 0.0
  %9022 = vmatmul.mubr.f32.gmra.mxu0 %v8812
  %v9023 = vpop.f32.mrf.mxu0
  %v9024 = vadd.f32 0.0, %v9023
  %v9025 = vpop.f32.mrf.mxu0
  %9026 = vmatprep.mubr.f32.mxu0 0.0
  %9027 = vmatmul.mubr.f32.gmra.mxu0 %v8815
  %v9028 = vpop.f32.mrf.mxu0
  %v9029 = vadd.f32 0.0, %v9028
  %v9030 = vpop.f32.mrf.mxu0
  %9031 = vmatprep.mubr.f32.mxu0 0.0
  %9032 = vmatmul.mubr.f32.gmra.mxu0 %v8818
  %v9033 = vpop.f32.mrf.mxu0
  %v9034 = vadd.f32 0.0, %v9033
  %v9035 = vpop.f32.mrf.mxu0
  %9036 = vmatprep.mubr.f32.mxu0 0.0
  %9037 = vmatmul.mubr.f32.gmra.mxu0 %v8821
  %v9038 = vpop.f32.mrf.mxu0
  %v9039 = vadd.f32 0.0, %v9038
  %v9040 = vpop.f32.mrf.mxu0
  %9041 = vmatprep.mubr.f32.mxu0 0.0
  %9042 = vmatmul.mubr.f32.gmra.mxu0 %v8824
  %v9043 = vpop.f32.mrf.mxu0
  %v9044 = vadd.f32 0.0, %v9043
  %v9045 = vpop.f32.mrf.mxu0
  %9046 = vmatprep.mubr.f32.mxu0 0.0
  %9047 = vmatmul.mubr.f32.gmra.mxu0 %v8827
  %v9048 = vpop.f32.mrf.mxu0
  %v9049 = vadd.f32 0.0, %v9048
  %v9050 = vpop.f32.mrf.mxu0
  %9051 = vmatprep.mubr.f32.mxu0 0.0
  %9052 = vmatmul.mubr.f32.gmra.mxu0 %v8830
  %v9053 = vpop.f32.mrf.mxu0
  %v9054 = vadd.f32 0.0, %v9053
  %v9055 = vpop.f32.mrf.mxu0
  %9056 = vmatprep.mubr.f32.mxu0 0.0
  %9057 = vmatmul.mubr.f32.gmra.mxu0 %v8833
  %v9058 = vpop.f32.mrf.mxu0
  %v9059 = vadd.f32 0.0, %v9058
  %v9060 = vpop.f32.mrf.mxu0
  %9061 = vmatprep.mubr.f32.mxu0 0.0
  %9062 = vmatmul.mubr.f32.gmra.mxu0 %v8836
  %v9063 = vpop.f32.mrf.mxu0
  %v9064 = vadd.f32 0.0, %v9063
  %v9065 = vpop.f32.mrf.mxu0
  %9066 = vmatprep.mubr.f32.mxu0 0.0
  %9067 = vmatmul.mubr.f32.gmra.mxu0 %v8839
  %v9068 = vpop.f32.mrf.mxu0
  %v9069 = vadd.f32 0.0, %v9068
  %v9070 = vpop.f32.mrf.mxu0
  %9071 = vmatprep.mubr.f32.mxu0 0.0
  %9072 = vmatmul.mubr.f32.gmra.mxu0 %v8842
  %v9073 = vpop.f32.mrf.mxu0
  %v9074 = vadd.f32 0.0, %v9073
  %v9075 = vpop.f32.mrf.mxu0
  %9076 = vmatprep.mubr.f32.mxu0 0.0
  %9077 = vmatmul.mubr.f32.gmra.mxu0 %v8845
  %v9078 = vpop.f32.mrf.mxu0
  %v9079 = vadd.f32 0.0, %v9078
  %v9080 = vpop.f32.mrf.mxu0
  %9081 = vmatprep.mubr.f32.mxu0 0.0
  %9082 = vmatmul.mubr.f32.gmra.mxu0 %v8848
  %v9083 = vpop.f32.mrf.mxu0
  %v9084 = vadd.f32 0.0, %v9083
  %v9085 = vpop.f32.mrf.mxu0
  %9086 = vmatprep.mubr.f32.mxu0 0.0
  %9087 = vmatmul.mubr.f32.gmra.mxu0 %v8851
  %v9088 = vpop.f32.mrf.mxu0
  %v9089 = vadd.f32 0.0, %v9088
  %v9090 = vpop.f32.mrf.mxu0
  %9091 = vmatprep.mubr.f32.mxu0 0.0
  %9092 = vmatmul.mubr.f32.gmra.mxu0 %v8854
  %v9093 = vpop.f32.mrf.mxu0
  %v9094 = vadd.f32 0.0, %v9093
  %v9095 = vpop.f32.mrf.mxu0
  %9096 = vmatprep.mubr.f32.mxu0 0.0
  %9097 = vmatmul.mubr.f32.gmra.mxu0 %v8857
  %v9098 = vpop.f32.mrf.mxu0
  %v9099 = vadd.f32 0.0, %v9098
  %v9100 = vpop.f32.mrf.mxu0
  %9101 = vmatprep.mubr.f32.mxu0 0.0
  %9102 = vmatmul.mubr.f32.gmra.mxu0 %v8860
  %v9103 = vpop.f32.mrf.mxu0
  %v9104 = vadd.f32 0.0, %v9103
  %v9105 = vpop.f32.mrf.mxu0
  %9106 = vmatprep.mubr.f32.mxu0 0.0
  %9107 = vmatmul.mubr.f32.gmra.mxu0 %v8863
  %v9108 = vpop.f32.mrf.mxu0
  %v9109 = vadd.f32 0.0, %v9108
  %v9110 = vpop.f32.mrf.mxu0
  %9111 = vmatprep.mubr.f32.mxu0 0.0
  %9112 = vmatmul.mubr.f32.gmra.mxu0 %v8866
  %v9113 = vpop.f32.mrf.mxu0
  %v9114 = vadd.f32 0.0, %v9113
  %v9115 = vpop.f32.mrf.mxu0
  %9116 = vmatprep.mubr.f32.mxu0 0.0
  %9117 = vmatmul.mubr.f32.gmra.mxu0 %v8869
  %v9118 = vpop.f32.mrf.mxu0
  %v9119 = vadd.f32 0.0, %v9118
  %v9120 = vpop.f32.mrf.mxu0
  %9121 = vmatprep.mubr.f32.mxu0 0.0
  %9122 = vmatmul.mubr.f32.gmra.mxu0 %v8872
  %v9123 = vpop.f32.mrf.mxu0
  %v9124 = vadd.f32 0.0, %v9123
  %v9125 = vpop.f32.mrf.mxu0
  %9126 = vmatprep.mubr.f32.mxu0 0.0
  %9127 = vmatmul.mubr.f32.gmra.mxu0 %v8875
  %v9128 = vpop.f32.mrf.mxu0
  %v9129 = vadd.f32 0.0, %v9128
  %v9130 = vpop.f32.mrf.mxu0
  %9131 = vmatprep.mubr.f32.mxu0 0.0
  %9132 = vmatmul.mubr.f32.gmra.mxu0 %v8878
  %v9133 = vpop.f32.mrf.mxu0
  %v9134 = vadd.f32 0.0, %v9133
  %v9135 = vpop.f32.mrf.mxu0
  %9136 = vmatprep.mubr.f32.mxu0 0.0
  %9137 = vmatmul.mubr.f32.gmra.mxu0 %v8881
  %v9138 = vpop.f32.mrf.mxu0
  %v9139 = vadd.f32 0.0, %v9138
  %v9140 = vpop.f32.mrf.mxu0
  %9141 = vmatprep.mubr.f32.mxu0 0.0
  %9142 = vmatmul.mubr.f32.gmra.mxu0 %v8884
  %v9143 = vpop.f32.mrf.mxu0
  %v9144 = vadd.f32 0.0, %v9143
  %v9145 = vpop.f32.mrf.mxu0
  %9146 = vmatprep.mubr.f32.mxu0 0.0
  %9147 = vmatmul.mubr.f32.gmra.mxu0 %v8887
  %v9148 = vpop.f32.mrf.mxu0
  %v9149 = vadd.f32 0.0, %v9148
  %v9150 = vpop.f32.mrf.mxu0
  %9151 = vmatprep.mubr.f32.mxu0 0.0
  %9152 = vmatmul.mubr.f32.gmra.mxu0 %v8890
  %v9153 = vpop.f32.mrf.mxu0
  %v9154 = vadd.f32 0.0, %v9153
  %v9155 = vpop.f32.mrf.mxu0
  %9156 = vmatprep.mubr.f32.mxu0 0.0
  %9157 = vmatmul.mubr.f32.gmra.mxu0 %v8893
  %v9158 = vpop.f32.mrf.mxu0
  %v9159 = vadd.f32 0.0, %v9158
  %v9160 = vpop.f32.mrf.mxu0
  %9161 = vmatprep.mubr.f32.mxu0 0.0
  %9162 = vmatmul.mubr.f32.gmra.mxu0 %v8896
  %v9163 = vpop.f32.mrf.mxu0
  %v9164 = vadd.f32 0.0, %v9163
  %v9165 = vpop.f32.mrf.mxu0
  %9166 = vdwg.mxu0
  %v9168 = vsel %vm8777, %v8652, 0
  %v9171 = vsel %vm8777, %v8653, 0
  %v9174 = vsel %vm8777, %v8654, 0
  %v9177 = vsel %vm8777, %v8655, 0
  %v9180 = vsel %vm8777, %v8656, 0
  %v9183 = vsel %vm8777, %v8657, 0
  %v9186 = vsel %vm8777, %v8658, 0
  %v9189 = vsel %vm8777, %v8659, 0
  %v9192 = vsel %vm8777, %v8660, 0
  %v9195 = vsel %vm8777, %v8661, 0
  %v9198 = vsel %vm8777, %v8662, 0
  %v9201 = vsel %vm8777, %v8663, 0
  %v9204 = vsel %vm8777, %v8664, 0
  %v9207 = vsel %vm8777, %v8665, 0
  %v9210 = vsel %vm8777, %v8666, 0
  %v9213 = vsel %vm8777, %v8667, 0
  %v9216 = vsel %vm8777, %v8668, 0
  %v9219 = vsel %vm8777, %v8669, 0
  %v9222 = vsel %vm8777, %v8670, 0
  %v9225 = vsel %vm8777, %v8671, 0
  %v9228 = vsel %vm8777, %v8672, 0
  %v9231 = vsel %vm8777, %v8673, 0
  %v9234 = vsel %vm8777, %v8674, 0
  %v9237 = vsel %vm8777, %v8675, 0
  %v9240 = vsel %vm8777, %v8676, 0
  %v9243 = vsel %vm8777, %v8677, 0
  %v9246 = vsel %vm8777, %v8678, 0
  %v9249 = vsel %vm8777, %v8679, 0
  %v9252 = vsel %vm8777, %v8680, 0
  %v9255 = vsel %vm8777, %v8681, 0
  %v9258 = vsel %vm8777, %v8682, 0
  %v9261 = vsel %vm8777, %v8683, 0
  %v9264 = vsel %vm8777, %v8684, 0
  %v9267 = vsel %vm8777, %v8685, 0
  %v9270 = vsel %vm8777, %v8686, 0
  %v9273 = vsel %vm8777, %v8687, 0
  %v9276 = vsel %vm8777, %v8688, 0
  %v9279 = vsel %vm8777, %v8689, 0
  %v9282 = vsel %vm8777, %v8690, 0
  %v9285 = vsel %vm8777, %v8691, 0
  %v9288 = vsel %vm8898, %v8693, 0
  %9290 = vmatprep.subr.mxu0 0.0
  %9291 = vmatpush1.msra.mxu0 0.0
  %9292 = vmatprep.subr.mxu0 0.0
  %9293 = vmatpush1.msra.mxu0 0.0
  %9294 = vmatprep.subr.mxu0 0.0
  %9295 = vmatpush1.msra.mxu0 0.0
  %9296 = vmatprep.subr.mxu0 0.0
  %9297 = vmatpush1.msra.mxu0 0.0
  %9298 = vmatprep.subr.mxu0 0.0
  %9299 = vmatpush1.msra.mxu0 0.0
  %9300 = vmatprep.subr.mxu0 0.0
  %9301 = vmatpush1.msra.mxu0 0.0
  %9302 = vmatprep.subr.mxu0 0.0
  %9303 = vmatpush1.msra.mxu0 0.0
  %9304 = vmatprep.subr.mxu0 0.0
  %9305 = vmatpush1.msra.mxu0 0.0
  %9306 = vmatprep.subr.mxu0 0.0
  %9307 = vmatpush1.msra.mxu0 0.0
  %9308 = vmatprep.subr.mxu0 0.0
  %9309 = vmatpush1.msra.mxu0 0.0
  %9310 = vmatprep.subr.mxu0 0.0
  %9311 = vmatpush1.msra.mxu0 0.0
  %9312 = vmatprep.subr.mxu0 0.0
  %9313 = vmatpush1.msra.mxu0 0.0
  %9314 = vmatprep.subr.mxu0 0.0
  %9315 = vmatpush1.msra.mxu0 0.0
  %9316 = vmatprep.subr.mxu0 0.0
  %9317 = vmatpush1.msra.mxu0 0.0
  %9318 = vmatprep.subr.mxu0 0.0
  %9319 = vmatpush1.msra.mxu0 %v9288
  %9320 = vmatprep.subr.mxu0 0.0
  %9321 = vmatpush1.msra.mxu0 %v8692
  %9322 = vmatprep.subr.mxu0 0.0
  %9323 = vmatpush2.msra.mxu0 0.0
  %9324 = vmatprep.subr.mxu0 0.0
  %9325 = vmatpush2.msra.mxu0 0.0
  %9326 = vmatprep.subr.mxu0 0.0
  %9327 = vmatpush2.msra.mxu0 0.0
  %9328 = vmatprep.subr.mxu0 0.0
  %9329 = vmatpush2.msra.mxu0 0.0
  %9330 = vmatprep.subr.mxu0 0.0
  %9331 = vmatpush2.msra.mxu0 0.0
  %9332 = vmatprep.subr.mxu0 0.0
  %9333 = vmatpush2.msra.mxu0 0.0
  %9334 = vmatprep.subr.mxu0 0.0
  %9335 = vmatpush2.msra.mxu0 0.0
  %9336 = vmatprep.subr.mxu0 0.0
  %9337 = vmatpush2.msra.mxu0 0.0
  %9338 = vmatprep.subr.mxu0 0.0
  %9339 = vmatpush2.msra.mxu0 0.0
  %9340 = vmatprep.subr.mxu0 0.0
  %9341 = vmatpush2.msra.mxu0 0.0
  %9342 = vmatprep.subr.mxu0 0.0
  %9343 = vmatpush2.msra.mxu0 0.0
  %9344 = vmatprep.subr.mxu0 0.0
  %9345 = vmatpush2.msra.mxu0 0.0
  %9346 = vmatprep.subr.mxu0 0.0
  %9347 = vmatpush2.msra.mxu0 0.0
  %9348 = vmatprep.subr.mxu0 0.0
  %9349 = vmatpush2.msra.mxu0 0.0
  %9350 = vmatprep.subr.mxu0 0.0
  %9351 = vmatpush2.msra.mxu0 0.0
  %9352 = vmatprep.subr.mxu0 0.0
  %9353 = vmatpush2.msra.mxu0 0.0
  %9354 = vmatprep.mubr.f32.mxu0 0.0
  %9355 = vmatmul.mubr.f32.gmra.mxu0 %v9168
  %v9356 = vpop.f32.mrf.mxu0
  %v9357 = vadd.f32 %v8969, %v9356
  %v9358 = vpop.f32.mrf.mxu0
  %9359 = vmatprep.mubr.f32.mxu0 0.0
  %9360 = vmatmul.mubr.f32.gmra.mxu0 %v9171
  %v9361 = vpop.f32.mrf.mxu0
  %v9362 = vadd.f32 %v8974, %v9361
  %v9363 = vpop.f32.mrf.mxu0
  %9364 = vmatprep.mubr.f32.mxu0 0.0
  %9365 = vmatmul.mubr.f32.gmra.mxu0 %v9174
  %v9366 = vpop.f32.mrf.mxu0
  %v9367 = vadd.f32 %v8979, %v9366
  %v9368 = vpop.f32.mrf.mxu0
  %9369 = vmatprep.mubr.f32.mxu0 0.0
  %9370 = vmatmul.mubr.f32.gmra.mxu0 %v9177
  %v9371 = vpop.f32.mrf.mxu0
  %v9372 = vadd.f32 %v8984, %v9371
  %v9373 = vpop.f32.mrf.mxu0
  %9374 = vmatprep.mubr.f32.mxu0 0.0
  %9375 = vmatmul.mubr.f32.gmra.mxu0 %v9180
  %v9376 = vpop.f32.mrf.mxu0
  %v9377 = vadd.f32 %v8989, %v9376
  %v9378 = vpop.f32.mrf.mxu0
  %9379 = vmatprep.mubr.f32.mxu0 0.0
  %9380 = vmatmul.mubr.f32.gmra.mxu0 %v9183
  %v9381 = vpop.f32.mrf.mxu0
  %v9382 = vadd.f32 %v8994, %v9381
  %v9383 = vpop.f32.mrf.mxu0
  %9384 = vmatprep.mubr.f32.mxu0 0.0
  %9385 = vmatmul.mubr.f32.gmra.mxu0 %v9186
  %v9386 = vpop.f32.mrf.mxu0
  %v9387 = vadd.f32 %v8999, %v9386
  %v9388 = vpop.f32.mrf.mxu0
  %9389 = vmatprep.mubr.f32.mxu0 0.0
  %9390 = vmatmul.mubr.f32.gmra.mxu0 %v9189
  %v9391 = vpop.f32.mrf.mxu0
  %v9392 = vadd.f32 %v9004, %v9391
  %v9393 = vpop.f32.mrf.mxu0
  %9394 = vmatprep.mubr.f32.mxu0 0.0
  %9395 = vmatmul.mubr.f32.gmra.mxu0 %v9192
  %v9396 = vpop.f32.mrf.mxu0
  %v9397 = vadd.f32 %v9009, %v9396
  %v9398 = vpop.f32.mrf.mxu0
  %9399 = vmatprep.mubr.f32.mxu0 0.0
  %9400 = vmatmul.mubr.f32.gmra.mxu0 %v9195
  %v9401 = vpop.f32.mrf.mxu0
  %v9402 = vadd.f32 %v9014, %v9401
  %v9403 = vpop.f32.mrf.mxu0
  %9404 = vmatprep.mubr.f32.mxu0 0.0
  %9405 = vmatmul.mubr.f32.gmra.mxu0 %v9198
  %v9406 = vpop.f32.mrf.mxu0
  %v9407 = vadd.f32 %v9019, %v9406
  %v9408 = vpop.f32.mrf.mxu0
  %9409 = vmatprep.mubr.f32.mxu0 0.0
  %9410 = vmatmul.mubr.f32.gmra.mxu0 %v9201
  %v9411 = vpop.f32.mrf.mxu0
  %v9412 = vadd.f32 %v9024, %v9411
  %v9413 = vpop.f32.mrf.mxu0
  %9414 = vmatprep.mubr.f32.mxu0 0.0
  %9415 = vmatmul.mubr.f32.gmra.mxu0 %v9204
  %v9416 = vpop.f32.mrf.mxu0
  %v9417 = vadd.f32 %v9029, %v9416
  %v9418 = vpop.f32.mrf.mxu0
  %9419 = vmatprep.mubr.f32.mxu0 0.0
  %9420 = vmatmul.mubr.f32.gmra.mxu0 %v9207
  %v9421 = vpop.f32.mrf.mxu0
  %v9422 = vadd.f32 %v9034, %v9421
  %v9423 = vpop.f32.mrf.mxu0
  %9424 = vmatprep.mubr.f32.mxu0 0.0
  %9425 = vmatmul.mubr.f32.gmra.mxu0 %v9210
  %v9426 = vpop.f32.mrf.mxu0
  %v9427 = vadd.f32 %v9039, %v9426
  %v9428 = vpop.f32.mrf.mxu0
  %9429 = vmatprep.mubr.f32.mxu0 0.0
  %9430 = vmatmul.mubr.f32.gmra.mxu0 %v9213
  %v9431 = vpop.f32.mrf.mxu0
  %v9432 = vadd.f32 %v9044, %v9431
  %v9433 = vpop.f32.mrf.mxu0
  %9434 = vmatprep.mubr.f32.mxu0 0.0
  %9435 = vmatmul.mubr.f32.gmra.mxu0 %v9216
  %v9436 = vpop.f32.mrf.mxu0
  %v9437 = vadd.f32 %v9049, %v9436
  %v9438 = vpop.f32.mrf.mxu0
  %9439 = vmatprep.mubr.f32.mxu0 0.0
  %9440 = vmatmul.mubr.f32.gmra.mxu0 %v9219
  %v9441 = vpop.f32.mrf.mxu0
  %v9442 = vadd.f32 %v9054, %v9441
  %v9443 = vpop.f32.mrf.mxu0
  %9444 = vmatprep.mubr.f32.mxu0 0.0
  %9445 = vmatmul.mubr.f32.gmra.mxu0 %v9222
  %v9446 = vpop.f32.mrf.mxu0
  %v9447 = vadd.f32 %v9059, %v9446
  %v9448 = vpop.f32.mrf.mxu0
  %9449 = vmatprep.mubr.f32.mxu0 0.0
  %9450 = vmatmul.mubr.f32.gmra.mxu0 %v9225
  %v9451 = vpop.f32.mrf.mxu0
  %v9452 = vadd.f32 %v9064, %v9451
  %v9453 = vpop.f32.mrf.mxu0
  %9454 = vmatprep.mubr.f32.mxu0 0.0
  %9455 = vmatmul.mubr.f32.gmra.mxu0 %v9228
  %v9456 = vpop.f32.mrf.mxu0
  %v9457 = vadd.f32 %v9069, %v9456
  %v9458 = vpop.f32.mrf.mxu0
  %9459 = vmatprep.mubr.f32.mxu0 0.0
  %9460 = vmatmul.mubr.f32.gmra.mxu0 %v9231
  %v9461 = vpop.f32.mrf.mxu0
  %v9462 = vadd.f32 %v9074, %v9461
  %v9463 = vpop.f32.mrf.mxu0
  %9464 = vmatprep.mubr.f32.mxu0 0.0
  %9465 = vmatmul.mubr.f32.gmra.mxu0 %v9234
  %v9466 = vpop.f32.mrf.mxu0
  %v9467 = vadd.f32 %v9079, %v9466
  %v9468 = vpop.f32.mrf.mxu0
  %9469 = vmatprep.mubr.f32.mxu0 0.0
  %9470 = vmatmul.mubr.f32.gmra.mxu0 %v9237
  %v9471 = vpop.f32.mrf.mxu0
  %v9472 = vadd.f32 %v9084, %v9471
  %v9473 = vpop.f32.mrf.mxu0
  %9474 = vmatprep.mubr.f32.mxu0 0.0
  %9475 = vmatmul.mubr.f32.gmra.mxu0 %v9240
  %v9476 = vpop.f32.mrf.mxu0
  %v9477 = vadd.f32 %v9089, %v9476
  %v9478 = vpop.f32.mrf.mxu0
  %9479 = vmatprep.mubr.f32.mxu0 0.0
  %9480 = vmatmul.mubr.f32.gmra.mxu0 %v9243
  %v9481 = vpop.f32.mrf.mxu0
  %v9482 = vadd.f32 %v9094, %v9481
  %v9483 = vpop.f32.mrf.mxu0
  %9484 = vmatprep.mubr.f32.mxu0 0.0
  %9485 = vmatmul.mubr.f32.gmra.mxu0 %v9246
  %v9486 = vpop.f32.mrf.mxu0
  %v9487 = vadd.f32 %v9099, %v9486
  %v9488 = vpop.f32.mrf.mxu0
  %9489 = vmatprep.mubr.f32.mxu0 0.0
  %9490 = vmatmul.mubr.f32.gmra.mxu0 %v9249
  %v9491 = vpop.f32.mrf.mxu0
  %v9492 = vadd.f32 %v9104, %v9491
  %v9493 = vpop.f32.mrf.mxu0
  %9494 = vmatprep.mubr.f32.mxu0 0.0
  %9495 = vmatmul.mubr.f32.gmra.mxu0 %v9252
  %v9496 = vpop.f32.mrf.mxu0
  %v9497 = vadd.f32 %v9109, %v9496
  %v9498 = vpop.f32.mrf.mxu0
  %9499 = vmatprep.mubr.f32.mxu0 0.0
  %9500 = vmatmul.mubr.f32.gmra.mxu0 %v9255
  %v9501 = vpop.f32.mrf.mxu0
  %v9502 = vadd.f32 %v9114, %v9501
  %v9503 = vpop.f32.mrf.mxu0
  %9504 = vmatprep.mubr.f32.mxu0 0.0
  %9505 = vmatmul.mubr.f32.gmra.mxu0 %v9258
  %v9506 = vpop.f32.mrf.mxu0
  %v9507 = vadd.f32 %v9119, %v9506
  %v9508 = vpop.f32.mrf.mxu0
  %9509 = vmatprep.mubr.f32.mxu0 0.0
  %9510 = vmatmul.mubr.f32.gmra.mxu0 %v9261
  %v9511 = vpop.f32.mrf.mxu0
  %v9512 = vadd.f32 %v9124, %v9511
  %v9513 = vpop.f32.mrf.mxu0
  %9514 = vmatprep.mubr.f32.mxu0 0.0
  %9515 = vmatmul.mubr.f32.gmra.mxu0 %v9264
  %v9516 = vpop.f32.mrf.mxu0
  %v9517 = vadd.f32 %v9129, %v9516
  %v9518 = vpop.f32.mrf.mxu0
  %9519 = vmatprep.mubr.f32.mxu0 0.0
  %9520 = vmatmul.mubr.f32.gmra.mxu0 %v9267
  %v9521 = vpop.f32.mrf.mxu0
  %v9522 = vadd.f32 %v9134, %v9521
  %v9523 = vpop.f32.mrf.mxu0
  %9524 = vmatprep.mubr.f32.mxu0 0.0
  %9525 = vmatmul.mubr.f32.gmra.mxu0 %v9270
  %v9526 = vpop.f32.mrf.mxu0
  %v9527 = vadd.f32 %v9139, %v9526
  %v9528 = vpop.f32.mrf.mxu0
  %9529 = vmatprep.mubr.f32.mxu0 0.0
  %9530 = vmatmul.mubr.f32.gmra.mxu0 %v9273
  %v9531 = vpop.f32.mrf.mxu0
  %v9532 = vadd.f32 %v9144, %v9531
  %v9533 = vpop.f32.mrf.mxu0
  %9534 = vmatprep.mubr.f32.mxu0 0.0
  %9535 = vmatmul.mubr.f32.gmra.mxu0 %v9276
  %v9536 = vpop.f32.mrf.mxu0
  %v9537 = vadd.f32 %v9149, %v9536
  %v9538 = vpop.f32.mrf.mxu0
  %9539 = vmatprep.mubr.f32.mxu0 0.0
  %9540 = vmatmul.mubr.f32.gmra.mxu0 %v9279
  %v9541 = vpop.f32.mrf.mxu0
  %v9542 = vadd.f32 %v9154, %v9541
  %v9543 = vpop.f32.mrf.mxu0
  %9544 = vmatprep.mubr.f32.mxu0 0.0
  %9545 = vmatmul.mubr.f32.gmra.mxu0 %v9282
  %v9546 = vpop.f32.mrf.mxu0
  %v9547 = vadd.f32 %v9159, %v9546
  %v9548 = vpop.f32.mrf.mxu0
  %9549 = vmatprep.mubr.f32.mxu0 0.0
  %9550 = vmatmul.mubr.f32.gmra.mxu0 %v9285
  %v9551 = vpop.f32.mrf.mxu0
  %v9552 = vadd.f32 %v9164, %v9551
  %v9553 = vpop.f32.mrf.mxu0
  %9554 = vdwg.mxu0
  %v9555 = vrot.slane %v8652, 2
  %v9556 = vrot.slane %v8653, 2
  %v9557 = vrot.slane %v8654, 2
  %v9558 = vrot.slane %v8655, 2
  %v9559 = vrot.slane %v8656, 2
  %v9560 = vrot.slane %v8657, 2
  %v9561 = vrot.slane %v8658, 2
  %v9562 = vrot.slane %v8659, 2
  %v9563 = vrot.slane %v8660, 2
  %v9564 = vrot.slane %v8661, 2
  %v9565 = vrot.slane %v8662, 2
  %v9566 = vrot.slane %v8663, 2
  %v9567 = vrot.slane %v8664, 2
  %v9568 = vrot.slane %v8665, 2
  %v9569 = vrot.slane %v8666, 2
  %v9570 = vrot.slane %v8667, 2
  %v9571 = vrot.slane %v8668, 2
  %v9572 = vrot.slane %v8669, 2
  %v9573 = vrot.slane %v8670, 2
  %v9574 = vrot.slane %v8671, 2
  %v9575 = vrot.slane %v8672, 2
  %v9576 = vrot.slane %v8673, 2
  %v9577 = vrot.slane %v8674, 2
  %v9578 = vrot.slane %v8675, 2
  %v9579 = vrot.slane %v8676, 2
  %v9580 = vrot.slane %v8677, 2
  %v9581 = vrot.slane %v8678, 2
  %v9582 = vrot.slane %v8679, 2
  %v9583 = vrot.slane %v8680, 2
  %v9584 = vrot.slane %v8681, 2
  %v9585 = vrot.slane %v8682, 2
  %v9586 = vrot.slane %v8683, 2
  %v9587 = vrot.slane %v8684, 2
  %v9588 = vrot.slane %v8685, 2
  %v9589 = vrot.slane %v8686, 2
  %v9590 = vrot.slane %v8687, 2
  %v9591 = vrot.slane %v8688, 2
  %v9592 = vrot.slane %v8689, 2
  %v9593 = vrot.slane %v8690, 2
  %v9594 = vrot.slane %v8691, 2
  %v9595 = vsel %vm963, %v9593, %v9594
  %v9596 = vsel %vm963, %v9592, %v9593
  %v9597 = vsel %vm963, %v9591, %v9592
  %v9598 = vsel %vm963, %v9590, %v9591
  %v9599 = vsel %vm963, %v9589, %v9590
  %v9600 = vsel %vm963, %v9588, %v9589
  %v9601 = vsel %vm963, %v9587, %v9588
  %v9602 = vsel %vm963, %v9586, %v9587
  %v9603 = vsel %vm963, %v9585, %v9586
  %v9604 = vsel %vm963, %v9584, %v9585
  %v9605 = vsel %vm963, %v9583, %v9584
  %v9606 = vsel %vm963, %v9582, %v9583
  %v9607 = vsel %vm963, %v9581, %v9582
  %v9608 = vsel %vm963, %v9580, %v9581
  %v9609 = vsel %vm963, %v9579, %v9580
  %v9610 = vsel %vm963, %v9578, %v9579
  %v9611 = vsel %vm963, %v9577, %v9578
  %v9612 = vsel %vm963, %v9576, %v9577
  %v9613 = vsel %vm963, %v9575, %v9576
  %v9614 = vsel %vm963, %v9574, %v9575
  %v9615 = vsel %vm963, %v9573, %v9574
  %v9616 = vsel %vm963, %v9572, %v9573
  %v9617 = vsel %vm963, %v9571, %v9572
  %v9618 = vsel %vm963, %v9570, %v9571
  %v9619 = vsel %vm963, %v9569, %v9570
  %v9620 = vsel %vm963, %v9568, %v9569
  %v9621 = vsel %vm963, %v9567, %v9568
  %v9622 = vsel %vm963, %v9566, %v9567
  %v9623 = vsel %vm963, %v9565, %v9566
  %v9624 = vsel %vm963, %v9564, %v9565
  %v9625 = vsel %vm963, %v9563, %v9564
  %v9626 = vsel %vm963, %v9562, %v9563
  %v9627 = vsel %vm963, %v9561, %v9562
  %v9628 = vsel %vm963, %v9560, %v9561
  %v9629 = vsel %vm963, %v9559, %v9560
  %v9630 = vsel %vm963, %v9558, %v9559
  %v9631 = vsel %vm963, %v9557, %v9558
  %v9632 = vsel %vm963, %v9556, %v9557
  %v9633 = vsel %vm963, %v9555, %v9556
  %v9634 = vsel %vm963, %v9594, %v9555
  %s9635 = scalar_lea.vmem %s5, 32
  %v9636 = vld [vmem:[%s9635] sm:$0xff]
  %v9637 = vld [vmem:[%s9635 + $0x8] sm:$0x3]
  %v9639 = vsel %vm8777, %v9633, 0
  %v9642 = vsel %vm8777, %v9632, 0
  %v9645 = vsel %vm8777, %v9631, 0
  %v9648 = vsel %vm8777, %v9630, 0
  %v9651 = vsel %vm8777, %v9629, 0
  %v9654 = vsel %vm8777, %v9628, 0
  %v9657 = vsel %vm8777, %v9627, 0
  %v9660 = vsel %vm8777, %v9626, 0
  %v9663 = vsel %vm8777, %v9625, 0
  %v9666 = vsel %vm8777, %v9624, 0
  %v9669 = vsel %vm8777, %v9623, 0
  %v9672 = vsel %vm8777, %v9622, 0
  %v9675 = vsel %vm8777, %v9621, 0
  %v9678 = vsel %vm8777, %v9620, 0
  %v9681 = vsel %vm8777, %v9619, 0
  %v9684 = vsel %vm8777, %v9618, 0
  %v9687 = vsel %vm8777, %v9617, 0
  %v9690 = vsel %vm8777, %v9616, 0
  %v9693 = vsel %vm8777, %v9615, 0
  %v9696 = vsel %vm8777, %v9614, 0
  %v9699 = vsel %vm8777, %v9613, 0
  %v9702 = vsel %vm8777, %v9612, 0
  %v9705 = vsel %vm8777, %v9611, 0
  %v9708 = vsel %vm8777, %v9610, 0
  %v9711 = vsel %vm8777, %v9609, 0
  %v9714 = vsel %vm8777, %v9608, 0
  %v9717 = vsel %vm8777, %v9607, 0
  %v9720 = vsel %vm8777, %v9606, 0
  %v9723 = vsel %vm8777, %v9605, 0
  %v9726 = vsel %vm8777, %v9604, 0
  %v9729 = vsel %vm8777, %v9603, 0
  %v9732 = vsel %vm8777, %v9602, 0
  %v9735 = vsel %vm8777, %v9601, 0
  %v9738 = vsel %vm8777, %v9600, 0
  %v9741 = vsel %vm8777, %v9599, 0
  %v9744 = vsel %vm8777, %v9598, 0
  %v9747 = vsel %vm8777, %v9597, 0
  %v9750 = vsel %vm8777, %v9596, 0
  %v9753 = vsel %vm8777, %v9595, 0
  %v9756 = vsel %vm8777, %v9634, 0
  %v9759 = vsel %vm8898, %v9637, 0
  %9761 = vmatprep.subr.mxu0 0.0
  %9762 = vmatpush1.msra.mxu0 0.0
  %9763 = vmatprep.subr.mxu0 0.0
  %9764 = vmatpush1.msra.mxu0 0.0
  %9765 = vmatprep.subr.mxu0 0.0
  %9766 = vmatpush1.msra.mxu0 0.0
  %9767 = vmatprep.subr.mxu0 0.0
  %9768 = vmatpush1.msra.mxu0 0.0
  %9769 = vmatprep.subr.mxu0 0.0
  %9770 = vmatpush1.msra.mxu0 0.0
  %9771 = vmatprep.subr.mxu0 0.0
  %9772 = vmatpush1.msra.mxu0 0.0
  %9773 = vmatprep.subr.mxu0 0.0
  %9774 = vmatpush1.msra.mxu0 0.0
  %9775 = vmatprep.subr.mxu0 0.0
  %9776 = vmatpush1.msra.mxu0 0.0
  %9777 = vmatprep.subr.mxu0 0.0
  %9778 = vmatpush1.msra.mxu0 0.0
  %9779 = vmatprep.subr.mxu0 0.0
  %9780 = vmatpush1.msra.mxu0 0.0
  %9781 = vmatprep.subr.mxu0 0.0
  %9782 = vmatpush1.msra.mxu0 0.0
  %9783 = vmatprep.subr.mxu0 0.0
  %9784 = vmatpush1.msra.mxu0 0.0
  %9785 = vmatprep.subr.mxu0 0.0
  %9786 = vmatpush1.msra.mxu0 0.0
  %9787 = vmatprep.subr.mxu0 0.0
  %9788 = vmatpush1.msra.mxu0 0.0
  %9789 = vmatprep.subr.mxu0 0.0
  %9790 = vmatpush1.msra.mxu0 %v9759
  %9791 = vmatprep.subr.mxu0 0.0
  %9792 = vmatpush1.msra.mxu0 %v9636
  %9793 = vmatprep.subr.mxu0 0.0
  %9794 = vmatpush2.msra.mxu0 0.0
  %9795 = vmatprep.subr.mxu0 0.0
  %9796 = vmatpush2.msra.mxu0 0.0
  %9797 = vmatprep.subr.mxu0 0.0
  %9798 = vmatpush2.msra.mxu0 0.0
  %9799 = vmatprep.subr.mxu0 0.0
  %9800 = vmatpush2.msra.mxu0 0.0
  %9801 = vmatprep.subr.mxu0 0.0
  %9802 = vmatpush2.msra.mxu0 0.0
  %9803 = vmatprep.subr.mxu0 0.0
  %9804 = vmatpush2.msra.mxu0 0.0
  %9805 = vmatprep.subr.mxu0 0.0
  %9806 = vmatpush2.msra.mxu0 0.0
  %9807 = vmatprep.subr.mxu0 0.0
  %9808 = vmatpush2.msra.mxu0 0.0
  %9809 = vmatprep.subr.mxu0 0.0
  %9810 = vmatpush2.msra.mxu0 0.0
  %9811 = vmatprep.subr.mxu0 0.0
  %9812 = vmatpush2.msra.mxu0 0.0
  %9813 = vmatprep.subr.mxu0 0.0
  %9814 = vmatpush2.msra.mxu0 0.0
  %9815 = vmatprep.subr.mxu0 0.0
  %9816 = vmatpush2.msra.mxu0 0.0
  %9817 = vmatprep.subr.mxu0 0.0
  %9818 = vmatpush2.msra.mxu0 0.0
  %9819 = vmatprep.subr.mxu0 0.0
  %9820 = vmatpush2.msra.mxu0 0.0
  %9821 = vmatprep.subr.mxu0 0.0
  %9822 = vmatpush2.msra.mxu0 0.0
  %9823 = vmatprep.subr.mxu0 0.0
  %9824 = vmatpush2.msra.mxu0 0.0
  %9825 = vmatprep.mubr.f32.mxu0 0.0
  %9826 = vmatmul.mubr.f32.gmra.mxu0 %v9639
  %v9827 = vpop.f32.mrf.mxu0
  %v9828 = vadd.f32 0.0, %v9827
  %v9829 = vpop.f32.mrf.mxu0
  %9830 = vmatprep.mubr.f32.mxu0 0.0
  %9831 = vmatmul.mubr.f32.gmra.mxu0 %v9642
  %v9832 = vpop.f32.mrf.mxu0
  %v9833 = vadd.f32 0.0, %v9832
  %v9834 = vpop.f32.mrf.mxu0
  %9835 = vmatprep.mubr.f32.mxu0 0.0
  %9836 = vmatmul.mubr.f32.gmra.mxu0 %v9645
  %v9837 = vpop.f32.mrf.mxu0
  %v9838 = vadd.f32 0.0, %v9837
  %v9839 = vpop.f32.mrf.mxu0
  %9840 = vmatprep.mubr.f32.mxu0 0.0
  %9841 = vmatmul.mubr.f32.gmra.mxu0 %v9648
  %v9842 = vpop.f32.mrf.mxu0
  %v9843 = vadd.f32 0.0, %v9842
  %v9844 = vpop.f32.mrf.mxu0
  %9845 = vmatprep.mubr.f32.mxu0 0.0
  %9846 = vmatmul.mubr.f32.gmra.mxu0 %v9651
  %v9847 = vpop.f32.mrf.mxu0
  %v9848 = vadd.f32 0.0, %v9847
  %v9849 = vpop.f32.mrf.mxu0
  %9850 = vmatprep.mubr.f32.mxu0 0.0
  %9851 = vmatmul.mubr.f32.gmra.mxu0 %v9654
  %v9852 = vpop.f32.mrf.mxu0
  %v9853 = vadd.f32 0.0, %v9852
  %v9854 = vpop.f32.mrf.mxu0
  %9855 = vmatprep.mubr.f32.mxu0 0.0
  %9856 = vmatmul.mubr.f32.gmra.mxu0 %v9657
  %v9857 = vpop.f32.mrf.mxu0
  %v9858 = vadd.f32 0.0, %v9857
  %v9859 = vpop.f32.mrf.mxu0
  %9860 = vmatprep.mubr.f32.mxu0 0.0
  %9861 = vmatmul.mubr.f32.gmra.mxu0 %v9660
  %v9862 = vpop.f32.mrf.mxu0
  %v9863 = vadd.f32 0.0, %v9862
  %v9864 = vpop.f32.mrf.mxu0
  %9865 = vmatprep.mubr.f32.mxu0 0.0
  %9866 = vmatmul.mubr.f32.gmra.mxu0 %v9663
  %v9867 = vpop.f32.mrf.mxu0
  %v9868 = vadd.f32 0.0, %v9867
  %v9869 = vpop.f32.mrf.mxu0
  %9870 = vmatprep.mubr.f32.mxu0 0.0
  %9871 = vmatmul.mubr.f32.gmra.mxu0 %v9666
  %v9872 = vpop.f32.mrf.mxu0
  %v9873 = vadd.f32 0.0, %v9872
  %v9874 = vpop.f32.mrf.mxu0
  %9875 = vmatprep.mubr.f32.mxu0 0.0
  %9876 = vmatmul.mubr.f32.gmra.mxu0 %v9669
  %v9877 = vpop.f32.mrf.mxu0
  %v9878 = vadd.f32 0.0, %v9877
  %v9879 = vpop.f32.mrf.mxu0
  %9880 = vmatprep.mubr.f32.mxu0 0.0
  %9881 = vmatmul.mubr.f32.gmra.mxu0 %v9672
  %v9882 = vpop.f32.mrf.mxu0
  %v9883 = vadd.f32 0.0, %v9882
  %v9884 = vpop.f32.mrf.mxu0
  %9885 = vmatprep.mubr.f32.mxu0 0.0
  %9886 = vmatmul.mubr.f32.gmra.mxu0 %v9675
  %v9887 = vpop.f32.mrf.mxu0
  %v9888 = vadd.f32 0.0, %v9887
  %v9889 = vpop.f32.mrf.mxu0
  %9890 = vmatprep.mubr.f32.mxu0 0.0
  %9891 = vmatmul.mubr.f32.gmra.mxu0 %v9678
  %v9892 = vpop.f32.mrf.mxu0
  %v9893 = vadd.f32 0.0, %v9892
  %v9894 = vpop.f32.mrf.mxu0
  %9895 = vmatprep.mubr.f32.mxu0 0.0
  %9896 = vmatmul.mubr.f32.gmra.mxu0 %v9681
  %v9897 = vpop.f32.mrf.mxu0
  %v9898 = vadd.f32 0.0, %v9897
  %v9899 = vpop.f32.mrf.mxu0
  %9900 = vmatprep.mubr.f32.mxu0 0.0
  %9901 = vmatmul.mubr.f32.gmra.mxu0 %v9684
  %v9902 = vpop.f32.mrf.mxu0
  %v9903 = vadd.f32 0.0, %v9902
  %v9904 = vpop.f32.mrf.mxu0
  %9905 = vmatprep.mubr.f32.mxu0 0.0
  %9906 = vmatmul.mubr.f32.gmra.mxu0 %v9687
  %v9907 = vpop.f32.mrf.mxu0
  %v9908 = vadd.f32 0.0, %v9907
  %v9909 = vpop.f32.mrf.mxu0
  %9910 = vmatprep.mubr.f32.mxu0 0.0
  %9911 = vmatmul.mubr.f32.gmra.mxu0 %v9690
  %v9912 = vpop.f32.mrf.mxu0
  %v9913 = vadd.f32 0.0, %v9912
  %v9914 = vpop.f32.mrf.mxu0
  %9915 = vmatprep.mubr.f32.mxu0 0.0
  %9916 = vmatmul.mubr.f32.gmra.mxu0 %v9693
  %v9917 = vpop.f32.mrf.mxu0
  %v9918 = vadd.f32 0.0, %v9917
  %v9919 = vpop.f32.mrf.mxu0
  %9920 = vmatprep.mubr.f32.mxu0 0.0
  %9921 = vmatmul.mubr.f32.gmra.mxu0 %v9696
  %v9922 = vpop.f32.mrf.mxu0
  %v9923 = vadd.f32 0.0, %v9922
  %v9924 = vpop.f32.mrf.mxu0
  %9925 = vmatprep.mubr.f32.mxu0 0.0
  %9926 = vmatmul.mubr.f32.gmra.mxu0 %v9699
  %v9927 = vpop.f32.mrf.mxu0
  %v9928 = vadd.f32 0.0, %v9927
  %v9929 = vpop.f32.mrf.mxu0
  %9930 = vmatprep.mubr.f32.mxu0 0.0
  %9931 = vmatmul.mubr.f32.gmra.mxu0 %v9702
  %v9932 = vpop.f32.mrf.mxu0
  %v9933 = vadd.f32 0.0, %v9932
  %v9934 = vpop.f32.mrf.mxu0
  %9935 = vmatprep.mubr.f32.mxu0 0.0
  %9936 = vmatmul.mubr.f32.gmra.mxu0 %v9705
  %v9937 = vpop.f32.mrf.mxu0
  %v9938 = vadd.f32 0.0, %v9937
  %v9939 = vpop.f32.mrf.mxu0
  %9940 = vmatprep.mubr.f32.mxu0 0.0
  %9941 = vmatmul.mubr.f32.gmra.mxu0 %v9708
  %v9942 = vpop.f32.mrf.mxu0
  %v9943 = vadd.f32 0.0, %v9942
  %v9944 = vpop.f32.mrf.mxu0
  %9945 = vmatprep.mubr.f32.mxu0 0.0
  %9946 = vmatmul.mubr.f32.gmra.mxu0 %v9711
  %v9947 = vpop.f32.mrf.mxu0
  %v9948 = vadd.f32 0.0, %v9947
  %v9949 = vpop.f32.mrf.mxu0
  %9950 = vmatprep.mubr.f32.mxu0 0.0
  %9951 = vmatmul.mubr.f32.gmra.mxu0 %v9714
  %v9952 = vpop.f32.mrf.mxu0
  %v9953 = vadd.f32 0.0, %v9952
  %v9954 = vpop.f32.mrf.mxu0
  %9955 = vmatprep.mubr.f32.mxu0 0.0
  %9956 = vmatmul.mubr.f32.gmra.mxu0 %v9717
  %v9957 = vpop.f32.mrf.mxu0
  %v9958 = vadd.f32 0.0, %v9957
  %v9959 = vpop.f32.mrf.mxu0
  %9960 = vmatprep.mubr.f32.mxu0 0.0
  %9961 = vmatmul.mubr.f32.gmra.mxu0 %v9720
  %v9962 = vpop.f32.mrf.mxu0
  %v9963 = vadd.f32 0.0, %v9962
  %v9964 = vpop.f32.mrf.mxu0
  %9965 = vmatprep.mubr.f32.mxu0 0.0
  %9966 = vmatmul.mubr.f32.gmra.mxu0 %v9723
  %v9967 = vpop.f32.mrf.mxu0
  %v9968 = vadd.f32 0.0, %v9967
  %v9969 = vpop.f32.mrf.mxu0
  %9970 = vmatprep.mubr.f32.mxu0 0.0
  %9971 = vmatmul.mubr.f32.gmra.mxu0 %v9726
  %v9972 = vpop.f32.mrf.mxu0
  %v9973 = vadd.f32 0.0, %v9972
  %v9974 = vpop.f32.mrf.mxu0
  %9975 = vmatprep.mubr.f32.mxu0 0.0
  %9976 = vmatmul.mubr.f32.gmra.mxu0 %v9729
  %v9977 = vpop.f32.mrf.mxu0
  %v9978 = vadd.f32 0.0, %v9977
  %v9979 = vpop.f32.mrf.mxu0
  %9980 = vmatprep.mubr.f32.mxu0 0.0
  %9981 = vmatmul.mubr.f32.gmra.mxu0 %v9732
  %v9982 = vpop.f32.mrf.mxu0
  %v9983 = vadd.f32 0.0, %v9982
  %v9984 = vpop.f32.mrf.mxu0
  %9985 = vmatprep.mubr.f32.mxu0 0.0
  %9986 = vmatmul.mubr.f32.gmra.mxu0 %v9735
  %v9987 = vpop.f32.mrf.mxu0
  %v9988 = vadd.f32 0.0, %v9987
  %v9989 = vpop.f32.mrf.mxu0
  %9990 = vmatprep.mubr.f32.mxu0 0.0
  %9991 = vmatmul.mubr.f32.gmra.mxu0 %v9738
  %v9992 = vpop.f32.mrf.mxu0
  %v9993 = vadd.f32 0.0, %v9992
  %v9994 = vpop.f32.mrf.mxu0
  %9995 = vmatprep.mubr.f32.mxu0 0.0
  %9996 = vmatmul.mubr.f32.gmra.mxu0 %v9741
  %v9997 = vpop.f32.mrf.mxu0
  %v9998 = vadd.f32 0.0, %v9997
  %v9999 = vpop.f32.mrf.mxu0
  %10000 = vmatprep.mubr.f32.mxu0 0.0
  %10001 = vmatmul.mubr.f32.gmra.mxu0 %v9744
  %v10002 = vpop.f32.mrf.mxu0
  %v10003 = vadd.f32 0.0, %v10002
  %v10004 = vpop.f32.mrf.mxu0
  %10005 = vmatprep.mubr.f32.mxu0 0.0
  %10006 = vmatmul.mubr.f32.gmra.mxu0 %v9747
  %v10007 = vpop.f32.mrf.mxu0
  %v10008 = vadd.f32 0.0, %v10007
  %v10009 = vpop.f32.mrf.mxu0
  %10010 = vmatprep.mubr.f32.mxu0 0.0
  %10011 = vmatmul.mubr.f32.gmra.mxu0 %v9750
  %v10012 = vpop.f32.mrf.mxu0
  %v10013 = vadd.f32 0.0, %v10012
  %v10014 = vpop.f32.mrf.mxu0
  %10015 = vmatprep.mubr.f32.mxu0 0.0
  %10016 = vmatmul.mubr.f32.gmra.mxu0 %v9753
  %v10017 = vpop.f32.mrf.mxu0
  %v10018 = vadd.f32 0.0, %v10017
  %v10019 = vpop.f32.mrf.mxu0
  %10020 = vmatprep.mubr.f32.mxu0 0.0
  %10021 = vmatmul.mubr.f32.gmra.mxu0 %v9756
  %v10022 = vpop.f32.mrf.mxu0
  %v10023 = vadd.f32 0.0, %v10022
  %v10024 = vpop.f32.mrf.mxu0
  %10025 = vdwg.mxu0
  %v10026 = vadd.f32 %v9357, %v9828
  %v10027 = vadd.f32 %v9362, %v9833
  %v10028 = vadd.f32 %v9367, %v9838
  %v10029 = vadd.f32 %v9372, %v9843
  %v10030 = vadd.f32 %v9377, %v9848
  %v10031 = vadd.f32 %v9382, %v9853
  %v10032 = vadd.f32 %v9387, %v9858
  %v10033 = vadd.f32 %v9392, %v9863
  %v10034 = vadd.f32 %v9397, %v9868
  %v10035 = vadd.f32 %v9402, %v9873
  %v10036 = vadd.f32 %v9407, %v9878
  %v10037 = vadd.f32 %v9412, %v9883
  %v10038 = vadd.f32 %v9417, %v9888
  %v10039 = vadd.f32 %v9422, %v9893
  %v10040 = vadd.f32 %v9427, %v9898
  %v10041 = vadd.f32 %v9432, %v9903
  %v10042 = vadd.f32 %v9437, %v9908
  %v10043 = vadd.f32 %v9442, %v9913
  %v10044 = vadd.f32 %v9447, %v9918
  %v10045 = vadd.f32 %v9452, %v9923
  %v10046 = vadd.f32 %v9457, %v9928
  %v10047 = vadd.f32 %v9462, %v9933
  %v10048 = vadd.f32 %v9467, %v9938
  %v10049 = vadd.f32 %v9472, %v9943
  %v10050 = vadd.f32 %v9477, %v9948
  %v10051 = vadd.f32 %v9482, %v9953
  %v10052 = vadd.f32 %v9487, %v9958
  %v10053 = vadd.f32 %v9492, %v9963
  %v10054 = vadd.f32 %v9497, %v9968
  %v10055 = vadd.f32 %v9502, %v9973
  %v10056 = vadd.f32 %v9507, %v9978
  %v10057 = vadd.f32 %v9512, %v9983
  %v10058 = vadd.f32 %v9517, %v9988
  %v10059 = vadd.f32 %v9522, %v9993
  %v10060 = vadd.f32 %v9527, %v9998
  %v10061 = vadd.f32 %v9532, %v10003
  %v10062 = vadd.f32 %v9537, %v10008
  %v10063 = vadd.f32 %v9542, %v10013
  %v10064 = vadd.f32 %v9547, %v10018
  %v10065 = vadd.f32 %v9552, %v10023
  %v10066 = vrot.slane %v8652, 3
  %v10067 = vrot.slane %v8653, 3
  %v10068 = vrot.slane %v8654, 3
  %v10069 = vrot.slane %v8655, 3
  %v10070 = vrot.slane %v8656, 3
  %v10071 = vrot.slane %v8657, 3
  %v10072 = vrot.slane %v8658, 3
  %v10073 = vrot.slane %v8659, 3
  %v10074 = vrot.slane %v8660, 3
  %v10075 = vrot.slane %v8661, 3
  %v10076 = vrot.slane %v8662, 3
  %v10077 = vrot.slane %v8663, 3
  %v10078 = vrot.slane %v8664, 3
  %v10079 = vrot.slane %v8665, 3
  %v10080 = vrot.slane %v8666, 3
  %v10081 = vrot.slane %v8667, 3
  %v10082 = vrot.slane %v8668, 3
  %v10083 = vrot.slane %v8669, 3
  %v10084 = vrot.slane %v8670, 3
  %v10085 = vrot.slane %v8671, 3
  %v10086 = vrot.slane %v8672, 3
  %v10087 = vrot.slane %v8673, 3
  %v10088 = vrot.slane %v8674, 3
  %v10089 = vrot.slane %v8675, 3
  %v10090 = vrot.slane %v8676, 3
  %v10091 = vrot.slane %v8677, 3
  %v10092 = vrot.slane %v8678, 3
  %v10093 = vrot.slane %v8679, 3
  %v10094 = vrot.slane %v8680, 3
  %v10095 = vrot.slane %v8681, 3
  %v10096 = vrot.slane %v8682, 3
  %v10097 = vrot.slane %v8683, 3
  %v10098 = vrot.slane %v8684, 3
  %v10099 = vrot.slane %v8685, 3
  %v10100 = vrot.slane %v8686, 3
  %v10101 = vrot.slane %v8687, 3
  %v10102 = vrot.slane %v8688, 3
  %v10103 = vrot.slane %v8689, 3
  %v10104 = vrot.slane %v8690, 3
  %v10105 = vrot.slane %v8691, 3
  %v10106 = vsel %vm1471, %v10104, %v10105
  %v10107 = vsel %vm1471, %v10103, %v10104
  %v10108 = vsel %vm1471, %v10102, %v10103
  %v10109 = vsel %vm1471, %v10101, %v10102
  %v10110 = vsel %vm1471, %v10100, %v10101
  %v10111 = vsel %vm1471, %v10099, %v10100
  %v10112 = vsel %vm1471, %v10098, %v10099
  %v10113 = vsel %vm1471, %v10097, %v10098
  %v10114 = vsel %vm1471, %v10096, %v10097
  %v10115 = vsel %vm1471, %v10095, %v10096
  %v10116 = vsel %vm1471, %v10094, %v10095
  %v10117 = vsel %vm1471, %v10093, %v10094
  %v10118 = vsel %vm1471, %v10092, %v10093
  %v10119 = vsel %vm1471, %v10091, %v10092
  %v10120 = vsel %vm1471, %v10090, %v10091
  %v10121 = vsel %vm1471, %v10089, %v10090
  %v10122 = vsel %vm1471, %v10088, %v10089
  %v10123 = vsel %vm1471, %v10087, %v10088
  %v10124 = vsel %vm1471, %v10086, %v10087
  %v10125 = vsel %vm1471, %v10085, %v10086
  %v10126 = vsel %vm1471, %v10084, %v10085
  %v10127 = vsel %vm1471, %v10083, %v10084
  %v10128 = vsel %vm1471, %v10082, %v10083
  %v10129 = vsel %vm1471, %v10081, %v10082
  %v10130 = vsel %vm1471, %v10080, %v10081
  %v10131 = vsel %vm1471, %v10079, %v10080
  %v10132 = vsel %vm1471, %v10078, %v10079
  %v10133 = vsel %vm1471, %v10077, %v10078
  %v10134 = vsel %vm1471, %v10076, %v10077
  %v10135 = vsel %vm1471, %v10075, %v10076
  %v10136 = vsel %vm1471, %v10074, %v10075
  %v10137 = vsel %vm1471, %v10073, %v10074
  %v10138 = vsel %vm1471, %v10072, %v10073
  %v10139 = vsel %vm1471, %v10071, %v10072
  %v10140 = vsel %vm1471, %v10070, %v10071
  %v10141 = vsel %vm1471, %v10069, %v10070
  %v10142 = vsel %vm1471, %v10068, %v10069
  %v10143 = vsel %vm1471, %v10067, %v10068
  %v10144 = vsel %vm1471, %v10066, %v10067
  %v10145 = vsel %vm1471, %v10105, %v10066
  %s10146 = scalar_lea.vmem %s5, 48
  %v10147 = vld [vmem:[%s10146] sm:$0xff]
  %v10148 = vld [vmem:[%s10146 + $0x8] sm:$0x3]
  %v10150 = vsel %vm8777, %v10144, 0
  %v10153 = vsel %vm8777, %v10143, 0
  %v10156 = vsel %vm8777, %v10142, 0
  %v10159 = vsel %vm8777, %v10141, 0
  %v10162 = vsel %vm8777, %v10140, 0
  %v10165 = vsel %vm8777, %v10139, 0
  %v10168 = vsel %vm8777, %v10138, 0
  %v10171 = vsel %vm8777, %v10137, 0
  %v10174 = vsel %vm8777, %v10136, 0
  %v10177 = vsel %vm8777, %v10135, 0
  %v10180 = vsel %vm8777, %v10134, 0
  %v10183 = vsel %vm8777, %v10133, 0
  %v10186 = vsel %vm8777, %v10132, 0
  %v10189 = vsel %vm8777, %v10131, 0
  %v10192 = vsel %vm8777, %v10130, 0
  %v10195 = vsel %vm8777, %v10129, 0
  %v10198 = vsel %vm8777, %v10128, 0
  %v10201 = vsel %vm8777, %v10127, 0
  %v10204 = vsel %vm8777, %v10126, 0
  %v10207 = vsel %vm8777, %v10125, 0
  %v10210 = vsel %vm8777, %v10124, 0
  %v10213 = vsel %vm8777, %v10123, 0
  %v10216 = vsel %vm8777, %v10122, 0
  %v10219 = vsel %vm8777, %v10121, 0
  %v10222 = vsel %vm8777, %v10120, 0
  %v10225 = vsel %vm8777, %v10119, 0
  %v10228 = vsel %vm8777, %v10118, 0
  %v10231 = vsel %vm8777, %v10117, 0
  %v10234 = vsel %vm8777, %v10116, 0
  %v10237 = vsel %vm8777, %v10115, 0
  %v10240 = vsel %vm8777, %v10114, 0
  %v10243 = vsel %vm8777, %v10113, 0
  %v10246 = vsel %vm8777, %v10112, 0
  %v10249 = vsel %vm8777, %v10111, 0
  %v10252 = vsel %vm8777, %v10110, 0
  %v10255 = vsel %vm8777, %v10109, 0
  %v10258 = vsel %vm8777, %v10108, 0
  %v10261 = vsel %vm8777, %v10107, 0
  %v10264 = vsel %vm8777, %v10106, 0
  %v10267 = vsel %vm8777, %v10145, 0
  %v10270 = vsel %vm8898, %v10148, 0
  %10272 = vmatprep.subr.mxu0 0.0
  %10273 = vmatpush1.msra.mxu0 0.0
  %10274 = vmatprep.subr.mxu0 0.0
  %10275 = vmatpush1.msra.mxu0 0.0
  %10276 = vmatprep.subr.mxu0 0.0
  %10277 = vmatpush1.msra.mxu0 0.0
  %10278 = vmatprep.subr.mxu0 0.0
  %10279 = vmatpush1.msra.mxu0 0.0
  %10280 = vmatprep.subr.mxu0 0.0
  %10281 = vmatpush1.msra.mxu0 0.0
  %10282 = vmatprep.subr.mxu0 0.0
  %10283 = vmatpush1.msra.mxu0 0.0
  %10284 = vmatprep.subr.mxu0 0.0
  %10285 = vmatpush1.msra.mxu0 0.0
  %10286 = vmatprep.subr.mxu0 0.0
  %10287 = vmatpush1.msra.mxu0 0.0
  %10288 = vmatprep.subr.mxu0 0.0
  %10289 = vmatpush1.msra.mxu0 0.0
  %10290 = vmatprep.subr.mxu0 0.0
  %10291 = vmatpush1.msra.mxu0 0.0
  %10292 = vmatprep.subr.mxu0 0.0
  %10293 = vmatpush1.msra.mxu0 0.0
  %10294 = vmatprep.subr.mxu0 0.0
  %10295 = vmatpush1.msra.mxu0 0.0
  %10296 = vmatprep.subr.mxu0 0.0
  %10297 = vmatpush1.msra.mxu0 0.0
  %10298 = vmatprep.subr.mxu0 0.0
  %10299 = vmatpush1.msra.mxu0 0.0
  %10300 = vmatprep.subr.mxu0 0.0
  %10301 = vmatpush1.msra.mxu0 %v10270
  %10302 = vmatprep.subr.mxu0 0.0
  %10303 = vmatpush1.msra.mxu0 %v10147
  %10304 = vmatprep.subr.mxu0 0.0
  %10305 = vmatpush2.msra.mxu0 0.0
  %10306 = vmatprep.subr.mxu0 0.0
  %10307 = vmatpush2.msra.mxu0 0.0
  %10308 = vmatprep.subr.mxu0 0.0
  %10309 = vmatpush2.msra.mxu0 0.0
  %10310 = vmatprep.subr.mxu0 0.0
  %10311 = vmatpush2.msra.mxu0 0.0
  %10312 = vmatprep.subr.mxu0 0.0
  %10313 = vmatpush2.msra.mxu0 0.0
  %10314 = vmatprep.subr.mxu0 0.0
  %10315 = vmatpush2.msra.mxu0 0.0
  %10316 = vmatprep.subr.mxu0 0.0
  %10317 = vmatpush2.msra.mxu0 0.0
  %10318 = vmatprep.subr.mxu0 0.0
  %10319 = vmatpush2.msra.mxu0 0.0
  %10320 = vmatprep.subr.mxu0 0.0
  %10321 = vmatpush2.msra.mxu0 0.0
  %10322 = vmatprep.subr.mxu0 0.0
  %10323 = vmatpush2.msra.mxu0 0.0
  %10324 = vmatprep.subr.mxu0 0.0
  %10325 = vmatpush2.msra.mxu0 0.0
  %10326 = vmatprep.subr.mxu0 0.0
  %10327 = vmatpush2.msra.mxu0 0.0
  %10328 = vmatprep.subr.mxu0 0.0
  %10329 = vmatpush2.msra.mxu0 0.0
  %10330 = vmatprep.subr.mxu0 0.0
  %10331 = vmatpush2.msra.mxu0 0.0
  %10332 = vmatprep.subr.mxu0 0.0
  %10333 = vmatpush2.msra.mxu0 0.0
  %10334 = vmatprep.subr.mxu0 0.0
  %10335 = vmatpush2.msra.mxu0 0.0
  %10336 = vmatprep.mubr.f32.mxu0 0.0
  %10337 = vmatmul.mubr.f32.gmra.mxu0 %v10150
  %v10338 = vpop.f32.mrf.mxu0
  %v10339 = vadd.f32 0.0, %v10338
  %v10340 = vpop.f32.mrf.mxu0
  %10341 = vmatprep.mubr.f32.mxu0 0.0
  %10342 = vmatmul.mubr.f32.gmra.mxu0 %v10153
  %v10343 = vpop.f32.mrf.mxu0
  %v10344 = vadd.f32 0.0, %v10343
  %v10345 = vpop.f32.mrf.mxu0
  %10346 = vmatprep.mubr.f32.mxu0 0.0
  %10347 = vmatmul.mubr.f32.gmra.mxu0 %v10156
  %v10348 = vpop.f32.mrf.mxu0
  %v10349 = vadd.f32 0.0, %v10348
  %v10350 = vpop.f32.mrf.mxu0
  %10351 = vmatprep.mubr.f32.mxu0 0.0
  %10352 = vmatmul.mubr.f32.gmra.mxu0 %v10159
  %v10353 = vpop.f32.mrf.mxu0
  %v10354 = vadd.f32 0.0, %v10353
  %v10355 = vpop.f32.mrf.mxu0
  %10356 = vmatprep.mubr.f32.mxu0 0.0
  %10357 = vmatmul.mubr.f32.gmra.mxu0 %v10162
  %v10358 = vpop.f32.mrf.mxu0
  %v10359 = vadd.f32 0.0, %v10358
  %v10360 = vpop.f32.mrf.mxu0
  %10361 = vmatprep.mubr.f32.mxu0 0.0
  %10362 = vmatmul.mubr.f32.gmra.mxu0 %v10165
  %v10363 = vpop.f32.mrf.mxu0
  %v10364 = vadd.f32 0.0, %v10363
  %v10365 = vpop.f32.mrf.mxu0
  %10366 = vmatprep.mubr.f32.mxu0 0.0
  %10367 = vmatmul.mubr.f32.gmra.mxu0 %v10168
  %v10368 = vpop.f32.mrf.mxu0
  %v10369 = vadd.f32 0.0, %v10368
  %v10370 = vpop.f32.mrf.mxu0
  %10371 = vmatprep.mubr.f32.mxu0 0.0
  %10372 = vmatmul.mubr.f32.gmra.mxu0 %v10171
  %v10373 = vpop.f32.mrf.mxu0
  %v10374 = vadd.f32 0.0, %v10373
  %v10375 = vpop.f32.mrf.mxu0
  %10376 = vmatprep.mubr.f32.mxu0 0.0
  %10377 = vmatmul.mubr.f32.gmra.mxu0 %v10174
  %v10378 = vpop.f32.mrf.mxu0
  %v10379 = vadd.f32 0.0, %v10378
  %v10380 = vpop.f32.mrf.mxu0
  %10381 = vmatprep.mubr.f32.mxu0 0.0
  %10382 = vmatmul.mubr.f32.gmra.mxu0 %v10177
  %v10383 = vpop.f32.mrf.mxu0
  %v10384 = vadd.f32 0.0, %v10383
  %v10385 = vpop.f32.mrf.mxu0
  %10386 = vmatprep.mubr.f32.mxu0 0.0
  %10387 = vmatmul.mubr.f32.gmra.mxu0 %v10180
  %v10388 = vpop.f32.mrf.mxu0
  %v10389 = vadd.f32 0.0, %v10388
  %v10390 = vpop.f32.mrf.mxu0
  %10391 = vmatprep.mubr.f32.mxu0 0.0
  %10392 = vmatmul.mubr.f32.gmra.mxu0 %v10183
  %v10393 = vpop.f32.mrf.mxu0
  %v10394 = vadd.f32 0.0, %v10393
  %v10395 = vpop.f32.mrf.mxu0
  %10396 = vmatprep.mubr.f32.mxu0 0.0
  %10397 = vmatmul.mubr.f32.gmra.mxu0 %v10186
  %v10398 = vpop.f32.mrf.mxu0
  %v10399 = vadd.f32 0.0, %v10398
  %v10400 = vpop.f32.mrf.mxu0
  %10401 = vmatprep.mubr.f32.mxu0 0.0
  %10402 = vmatmul.mubr.f32.gmra.mxu0 %v10189
  %v10403 = vpop.f32.mrf.mxu0
  %v10404 = vadd.f32 0.0, %v10403
  %v10405 = vpop.f32.mrf.mxu0
  %10406 = vmatprep.mubr.f32.mxu0 0.0
  %10407 = vmatmul.mubr.f32.gmra.mxu0 %v10192
  %v10408 = vpop.f32.mrf.mxu0
  %v10409 = vadd.f32 0.0, %v10408
  %v10410 = vpop.f32.mrf.mxu0
  %10411 = vmatprep.mubr.f32.mxu0 0.0
  %10412 = vmatmul.mubr.f32.gmra.mxu0 %v10195
  %v10413 = vpop.f32.mrf.mxu0
  %v10414 = vadd.f32 0.0, %v10413
  %v10415 = vpop.f32.mrf.mxu0
  %10416 = vmatprep.mubr.f32.mxu0 0.0
  %10417 = vmatmul.mubr.f32.gmra.mxu0 %v10198
  %v10418 = vpop.f32.mrf.mxu0
  %v10419 = vadd.f32 0.0, %v10418
  %v10420 = vpop.f32.mrf.mxu0
  %10421 = vmatprep.mubr.f32.mxu0 0.0
  %10422 = vmatmul.mubr.f32.gmra.mxu0 %v10201
  %v10423 = vpop.f32.mrf.mxu0
  %v10424 = vadd.f32 0.0, %v10423
  %v10425 = vpop.f32.mrf.mxu0
  %10426 = vmatprep.mubr.f32.mxu0 0.0
  %10427 = vmatmul.mubr.f32.gmra.mxu0 %v10204
  %v10428 = vpop.f32.mrf.mxu0
  %v10429 = vadd.f32 0.0, %v10428
  %v10430 = vpop.f32.mrf.mxu0
  %10431 = vmatprep.mubr.f32.mxu0 0.0
  %10432 = vmatmul.mubr.f32.gmra.mxu0 %v10207
  %v10433 = vpop.f32.mrf.mxu0
  %v10434 = vadd.f32 0.0, %v10433
  %v10435 = vpop.f32.mrf.mxu0
  %10436 = vmatprep.mubr.f32.mxu0 0.0
  %10437 = vmatmul.mubr.f32.gmra.mxu0 %v10210
  %v10438 = vpop.f32.mrf.mxu0
  %v10439 = vadd.f32 0.0, %v10438
  %v10440 = vpop.f32.mrf.mxu0
  %10441 = vmatprep.mubr.f32.mxu0 0.0
  %10442 = vmatmul.mubr.f32.gmra.mxu0 %v10213
  %v10443 = vpop.f32.mrf.mxu0
  %v10444 = vadd.f32 0.0, %v10443
  %v10445 = vpop.f32.mrf.mxu0
  %10446 = vmatprep.mubr.f32.mxu0 0.0
  %10447 = vmatmul.mubr.f32.gmra.mxu0 %v10216
  %v10448 = vpop.f32.mrf.mxu0
  %v10449 = vadd.f32 0.0, %v10448
  %v10450 = vpop.f32.mrf.mxu0
  %10451 = vmatprep.mubr.f32.mxu0 0.0
  %10452 = vmatmul.mubr.f32.gmra.mxu0 %v10219
  %v10453 = vpop.f32.mrf.mxu0
  %v10454 = vadd.f32 0.0, %v10453
  %v10455 = vpop.f32.mrf.mxu0
  %10456 = vmatprep.mubr.f32.mxu0 0.0
  %10457 = vmatmul.mubr.f32.gmra.mxu0 %v10222
  %v10458 = vpop.f32.mrf.mxu0
  %v10459 = vadd.f32 0.0, %v10458
  %v10460 = vpop.f32.mrf.mxu0
  %10461 = vmatprep.mubr.f32.mxu0 0.0
  %10462 = vmatmul.mubr.f32.gmra.mxu0 %v10225
  %v10463 = vpop.f32.mrf.mxu0
  %v10464 = vadd.f32 0.0, %v10463
  %v10465 = vpop.f32.mrf.mxu0
  %10466 = vmatprep.mubr.f32.mxu0 0.0
  %10467 = vmatmul.mubr.f32.gmra.mxu0 %v10228
  %v10468 = vpop.f32.mrf.mxu0
  %v10469 = vadd.f32 0.0, %v10468
  %v10470 = vpop.f32.mrf.mxu0
  %10471 = vmatprep.mubr.f32.mxu0 0.0
  %10472 = vmatmul.mubr.f32.gmra.mxu0 %v10231
  %v10473 = vpop.f32.mrf.mxu0
  %v10474 = vadd.f32 0.0, %v10473
  %v10475 = vpop.f32.mrf.mxu0
  %10476 = vmatprep.mubr.f32.mxu0 0.0
  %10477 = vmatmul.mubr.f32.gmra.mxu0 %v10234
  %v10478 = vpop.f32.mrf.mxu0
  %v10479 = vadd.f32 0.0, %v10478
  %v10480 = vpop.f32.mrf.mxu0
  %10481 = vmatprep.mubr.f32.mxu0 0.0
  %10482 = vmatmul.mubr.f32.gmra.mxu0 %v10237
  %v10483 = vpop.f32.mrf.mxu0
  %v10484 = vadd.f32 0.0, %v10483
  %v10485 = vpop.f32.mrf.mxu0
  %10486 = vmatprep.mubr.f32.mxu0 0.0
  %10487 = vmatmul.mubr.f32.gmra.mxu0 %v10240
  %v10488 = vpop.f32.mrf.mxu0
  %v10489 = vadd.f32 0.0, %v10488
  %v10490 = vpop.f32.mrf.mxu0
  %10491 = vmatprep.mubr.f32.mxu0 0.0
  %10492 = vmatmul.mubr.f32.gmra.mxu0 %v10243
  %v10493 = vpop.f32.mrf.mxu0
  %v10494 = vadd.f32 0.0, %v10493
  %v10495 = vpop.f32.mrf.mxu0
  %10496 = vmatprep.mubr.f32.mxu0 0.0
  %10497 = vmatmul.mubr.f32.gmra.mxu0 %v10246
  %v10498 = vpop.f32.mrf.mxu0
  %v10499 = vadd.f32 0.0, %v10498
  %v10500 = vpop.f32.mrf.mxu0
  %10501 = vmatprep.mubr.f32.mxu0 0.0
  %10502 = vmatmul.mubr.f32.gmra.mxu0 %v10249
  %v10503 = vpop.f32.mrf.mxu0
  %v10504 = vadd.f32 0.0, %v10503
  %v10505 = vpop.f32.mrf.mxu0
  %10506 = vmatprep.mubr.f32.mxu0 0.0
  %10507 = vmatmul.mubr.f32.gmra.mxu0 %v10252
  %v10508 = vpop.f32.mrf.mxu0
  %v10509 = vadd.f32 0.0, %v10508
  %v10510 = vpop.f32.mrf.mxu0
  %10511 = vmatprep.mubr.f32.mxu0 0.0
  %10512 = vmatmul.mubr.f32.gmra.mxu0 %v10255
  %v10513 = vpop.f32.mrf.mxu0
  %v10514 = vadd.f32 0.0, %v10513
  %v10515 = vpop.f32.mrf.mxu0
  %10516 = vmatprep.mubr.f32.mxu0 0.0
  %10517 = vmatmul.mubr.f32.gmra.mxu0 %v10258
  %v10518 = vpop.f32.mrf.mxu0
  %v10519 = vadd.f32 0.0, %v10518
  %v10520 = vpop.f32.mrf.mxu0
  %10521 = vmatprep.mubr.f32.mxu0 0.0
  %10522 = vmatmul.mubr.f32.gmra.mxu0 %v10261
  %v10523 = vpop.f32.mrf.mxu0
  %v10524 = vadd.f32 0.0, %v10523
  %v10525 = vpop.f32.mrf.mxu0
  %10526 = vmatprep.mubr.f32.mxu0 0.0
  %10527 = vmatmul.mubr.f32.gmra.mxu0 %v10264
  %v10528 = vpop.f32.mrf.mxu0
  %v10529 = vadd.f32 0.0, %v10528
  %v10530 = vpop.f32.mrf.mxu0
  %10531 = vmatprep.mubr.f32.mxu0 0.0
  %10532 = vmatmul.mubr.f32.gmra.mxu0 %v10267
  %v10533 = vpop.f32.mrf.mxu0
  %v10534 = vadd.f32 0.0, %v10533
  %v10535 = vpop.f32.mrf.mxu0
  %10536 = vdwg.mxu0
  %v10537 = vadd.f32 %v10026, %v10339
  %v10538 = vadd.f32 %v10027, %v10344
  %v10539 = vadd.f32 %v10028, %v10349
  %v10540 = vadd.f32 %v10029, %v10354
  %v10541 = vadd.f32 %v10030, %v10359
  %v10542 = vadd.f32 %v10031, %v10364
  %v10543 = vadd.f32 %v10032, %v10369
  %v10544 = vadd.f32 %v10033, %v10374
  %v10545 = vadd.f32 %v10034, %v10379
  %v10546 = vadd.f32 %v10035, %v10384
  %v10547 = vadd.f32 %v10036, %v10389
  %v10548 = vadd.f32 %v10037, %v10394
  %v10549 = vadd.f32 %v10038, %v10399
  %v10550 = vadd.f32 %v10039, %v10404
  %v10551 = vadd.f32 %v10040, %v10409
  %v10552 = vadd.f32 %v10041, %v10414
  %v10553 = vadd.f32 %v10042, %v10419
  %v10554 = vadd.f32 %v10043, %v10424
  %v10555 = vadd.f32 %v10044, %v10429
  %v10556 = vadd.f32 %v10045, %v10434
  %v10557 = vadd.f32 %v10046, %v10439
  %v10558 = vadd.f32 %v10047, %v10444
  %v10559 = vadd.f32 %v10048, %v10449
  %v10560 = vadd.f32 %v10049, %v10454
  %v10561 = vadd.f32 %v10050, %v10459
  %v10562 = vadd.f32 %v10051, %v10464
  %v10563 = vadd.f32 %v10052, %v10469
  %v10564 = vadd.f32 %v10053, %v10474
  %v10565 = vadd.f32 %v10054, %v10479
  %v10566 = vadd.f32 %v10055, %v10484
  %v10567 = vadd.f32 %v10056, %v10489
  %v10568 = vadd.f32 %v10057, %v10494
  %v10569 = vadd.f32 %v10058, %v10499
  %v10570 = vadd.f32 %v10059, %v10504
  %v10571 = vadd.f32 %v10060, %v10509
  %v10572 = vadd.f32 %v10061, %v10514
  %v10573 = vadd.f32 %v10062, %v10519
  %v10574 = vadd.f32 %v10063, %v10524
  %v10575 = vadd.f32 %v10064, %v10529
  %v10576 = vadd.f32 %v10065, %v10534
  %v10577 = vrot.slane %v8652, 4
  %v10578 = vrot.slane %v8653, 4
  %v10579 = vrot.slane %v8654, 4
  %v10580 = vrot.slane %v8655, 4
  %v10581 = vrot.slane %v8656, 4
  %v10582 = vrot.slane %v8657, 4
  %v10583 = vrot.slane %v8658, 4
  %v10584 = vrot.slane %v8659, 4
  %v10585 = vrot.slane %v8660, 4
  %v10586 = vrot.slane %v8661, 4
  %v10587 = vrot.slane %v8662, 4
  %v10588 = vrot.slane %v8663, 4
  %v10589 = vrot.slane %v8664, 4
  %v10590 = vrot.slane %v8665, 4
  %v10591 = vrot.slane %v8666, 4
  %v10592 = vrot.slane %v8667, 4
  %v10593 = vrot.slane %v8668, 4
  %v10594 = vrot.slane %v8669, 4
  %v10595 = vrot.slane %v8670, 4
  %v10596 = vrot.slane %v8671, 4
  %v10597 = vrot.slane %v8672, 4
  %v10598 = vrot.slane %v8673, 4
  %v10599 = vrot.slane %v8674, 4
  %v10600 = vrot.slane %v8675, 4
  %v10601 = vrot.slane %v8676, 4
  %v10602 = vrot.slane %v8677, 4
  %v10603 = vrot.slane %v8678, 4
  %v10604 = vrot.slane %v8679, 4
  %v10605 = vrot.slane %v8680, 4
  %v10606 = vrot.slane %v8681, 4
  %v10607 = vrot.slane %v8682, 4
  %v10608 = vrot.slane %v8683, 4
  %v10609 = vrot.slane %v8684, 4
  %v10610 = vrot.slane %v8685, 4
  %v10611 = vrot.slane %v8686, 4
  %v10612 = vrot.slane %v8687, 4
  %v10613 = vrot.slane %v8688, 4
  %v10614 = vrot.slane %v8689, 4
  %v10615 = vrot.slane %v8690, 4
  %v10616 = vrot.slane %v8691, 4
  %v10617 = vsel %vm1979, %v10615, %v10616
  %v10618 = vsel %vm1979, %v10614, %v10615
  %v10619 = vsel %vm1979, %v10613, %v10614
  %v10620 = vsel %vm1979, %v10612, %v10613
  %v10621 = vsel %vm1979, %v10611, %v10612
  %v10622 = vsel %vm1979, %v10610, %v10611
  %v10623 = vsel %vm1979, %v10609, %v10610
  %v10624 = vsel %vm1979, %v10608, %v10609
  %v10625 = vsel %vm1979, %v10607, %v10608
  %v10626 = vsel %vm1979, %v10606, %v10607
  %v10627 = vsel %vm1979, %v10605, %v10606
  %v10628 = vsel %vm1979, %v10604, %v10605
  %v10629 = vsel %vm1979, %v10603, %v10604
  %v10630 = vsel %vm1979, %v10602, %v10603
  %v10631 = vsel %vm1979, %v10601, %v10602
  %v10632 = vsel %vm1979, %v10600, %v10601
  %v10633 = vsel %vm1979, %v10599, %v10600
  %v10634 = vsel %vm1979, %v10598, %v10599
  %v10635 = vsel %vm1979, %v10597, %v10598
  %v10636 = vsel %vm1979, %v10596, %v10597
  %v10637 = vsel %vm1979, %v10595, %v10596
  %v10638 = vsel %vm1979, %v10594, %v10595
  %v10639 = vsel %vm1979, %v10593, %v10594
  %v10640 = vsel %vm1979, %v10592, %v10593
  %v10641 = vsel %vm1979, %v10591, %v10592
  %v10642 = vsel %vm1979, %v10590, %v10591
  %v10643 = vsel %vm1979, %v10589, %v10590
  %v10644 = vsel %vm1979, %v10588, %v10589
  %v10645 = vsel %vm1979, %v10587, %v10588
  %v10646 = vsel %vm1979, %v10586, %v10587
  %v10647 = vsel %vm1979, %v10585, %v10586
  %v10648 = vsel %vm1979, %v10584, %v10585
  %v10649 = vsel %vm1979, %v10583, %v10584
  %v10650 = vsel %vm1979, %v10582, %v10583
  %v10651 = vsel %vm1979, %v10581, %v10582
  %v10652 = vsel %vm1979, %v10580, %v10581
  %v10653 = vsel %vm1979, %v10579, %v10580
  %v10654 = vsel %vm1979, %v10578, %v10579
  %v10655 = vsel %vm1979, %v10577, %v10578
  %v10656 = vsel %vm1979, %v10616, %v10577
  %s10657 = scalar_lea.vmem %s5, 64
  %v10658 = vld [vmem:[%s10657] sm:$0xff]
  %v10659 = vld [vmem:[%s10657 + $0x8] sm:$0x3]
  %v10661 = vsel %vm8777, %v10655, 0
  %v10664 = vsel %vm8777, %v10654, 0
  %v10667 = vsel %vm8777, %v10653, 0
  %v10670 = vsel %vm8777, %v10652, 0
  %v10673 = vsel %vm8777, %v10651, 0
  %v10676 = vsel %vm8777, %v10650, 0
  %v10679 = vsel %vm8777, %v10649, 0
  %v10682 = vsel %vm8777, %v10648, 0
  %v10685 = vsel %vm8777, %v10647, 0
  %v10688 = vsel %vm8777, %v10646, 0
  %v10691 = vsel %vm8777, %v10645, 0
  %v10694 = vsel %vm8777, %v10644, 0
  %v10697 = vsel %vm8777, %v10643, 0
  %v10700 = vsel %vm8777, %v10642, 0
  %v10703 = vsel %vm8777, %v10641, 0
  %v10706 = vsel %vm8777, %v10640, 0
  %v10709 = vsel %vm8777, %v10639, 0
  %v10712 = vsel %vm8777, %v10638, 0
  %v10715 = vsel %vm8777, %v10637, 0
  %v10718 = vsel %vm8777, %v10636, 0
  %v10721 = vsel %vm8777, %v10635, 0
  %v10724 = vsel %vm8777, %v10634, 0
  %v10727 = vsel %vm8777, %v10633, 0
  %v10730 = vsel %vm8777, %v10632, 0
  %v10733 = vsel %vm8777, %v10631, 0
  %v10736 = vsel %vm8777, %v10630, 0
  %v10739 = vsel %vm8777, %v10629, 0
  %v10742 = vsel %vm8777, %v10628, 0
  %v10745 = vsel %vm8777, %v10627, 0
  %v10748 = vsel %vm8777, %v10626, 0
  %v10751 = vsel %vm8777, %v10625, 0
  %v10754 = vsel %vm8777, %v10624, 0
  %v10757 = vsel %vm8777, %v10623, 0
  %v10760 = vsel %vm8777, %v10622, 0
  %v10763 = vsel %vm8777, %v10621, 0
  %v10766 = vsel %vm8777, %v10620, 0
  %v10769 = vsel %vm8777, %v10619, 0
  %v10772 = vsel %vm8777, %v10618, 0
  %v10775 = vsel %vm8777, %v10617, 0
  %v10778 = vsel %vm8777, %v10656, 0
  %v10781 = vsel %vm8898, %v10659, 0
  %10783 = vmatprep.subr.mxu0 0.0
  %10784 = vmatpush1.msra.mxu0 0.0
  %10785 = vmatprep.subr.mxu0 0.0
  %10786 = vmatpush1.msra.mxu0 0.0
  %10787 = vmatprep.subr.mxu0 0.0
  %10788 = vmatpush1.msra.mxu0 0.0
  %10789 = vmatprep.subr.mxu0 0.0
  %10790 = vmatpush1.msra.mxu0 0.0
  %10791 = vmatprep.subr.mxu0 0.0
  %10792 = vmatpush1.msra.mxu0 0.0
  %10793 = vmatprep.subr.mxu0 0.0
  %10794 = vmatpush1.msra.mxu0 0.0
  %10795 = vmatprep.subr.mxu0 0.0
  %10796 = vmatpush1.msra.mxu0 0.0
  %10797 = vmatprep.subr.mxu0 0.0
  %10798 = vmatpush1.msra.mxu0 0.0
  %10799 = vmatprep.subr.mxu0 0.0
  %10800 = vmatpush1.msra.mxu0 0.0
  %10801 = vmatprep.subr.mxu0 0.0
  %10802 = vmatpush1.msra.mxu0 0.0
  %10803 = vmatprep.subr.mxu0 0.0
  %10804 = vmatpush1.msra.mxu0 0.0
  %10805 = vmatprep.subr.mxu0 0.0
  %10806 = vmatpush1.msra.mxu0 0.0
  %10807 = vmatprep.subr.mxu0 0.0
  %10808 = vmatpush1.msra.mxu0 0.0
  %10809 = vmatprep.subr.mxu0 0.0
  %10810 = vmatpush1.msra.mxu0 0.0
  %10811 = vmatprep.subr.mxu0 0.0
  %10812 = vmatpush1.msra.mxu0 %v10781
  %10813 = vmatprep.subr.mxu0 0.0
  %10814 = vmatpush1.msra.mxu0 %v10658
  %10815 = vmatprep.subr.mxu0 0.0
  %10816 = vmatpush2.msra.mxu0 0.0
  %10817 = vmatprep.subr.mxu0 0.0
  %10818 = vmatpush2.msra.mxu0 0.0
  %10819 = vmatprep.subr.mxu0 0.0
  %10820 = vmatpush2.msra.mxu0 0.0
  %10821 = vmatprep.subr.mxu0 0.0
  %10822 = vmatpush2.msra.mxu0 0.0
  %10823 = vmatprep.subr.mxu0 0.0
  %10824 = vmatpush2.msra.mxu0 0.0
  %10825 = vmatprep.subr.mxu0 0.0
  %10826 = vmatpush2.msra.mxu0 0.0
  %10827 = vmatprep.subr.mxu0 0.0
  %10828 = vmatpush2.msra.mxu0 0.0
  %10829 = vmatprep.subr.mxu0 0.0
  %10830 = vmatpush2.msra.mxu0 0.0
  %10831 = vmatprep.subr.mxu0 0.0
  %10832 = vmatpush2.msra.mxu0 0.0
  %10833 = vmatprep.subr.mxu0 0.0
  %10834 = vmatpush2.msra.mxu0 0.0
  %10835 = vmatprep.subr.mxu0 0.0
  %10836 = vmatpush2.msra.mxu0 0.0
  %10837 = vmatprep.subr.mxu0 0.0
  %10838 = vmatpush2.msra.mxu0 0.0
  %10839 = vmatprep.subr.mxu0 0.0
  %10840 = vmatpush2.msra.mxu0 0.0
  %10841 = vmatprep.subr.mxu0 0.0
  %10842 = vmatpush2.msra.mxu0 0.0
  %10843 = vmatprep.subr.mxu0 0.0
  %10844 = vmatpush2.msra.mxu0 0.0
  %10845 = vmatprep.subr.mxu0 0.0
  %10846 = vmatpush2.msra.mxu0 0.0
  %10847 = vmatprep.mubr.f32.mxu0 0.0
  %10848 = vmatmul.mubr.f32.gmra.mxu0 %v10661
  %v10849 = vpop.f32.mrf.mxu0
  %v10850 = vadd.f32 0.0, %v10849
  %v10851 = vpop.f32.mrf.mxu0
  %10852 = vmatprep.mubr.f32.mxu0 0.0
  %10853 = vmatmul.mubr.f32.gmra.mxu0 %v10664
  %v10854 = vpop.f32.mrf.mxu0
  %v10855 = vadd.f32 0.0, %v10854
  %v10856 = vpop.f32.mrf.mxu0
  %10857 = vmatprep.mubr.f32.mxu0 0.0
  %10858 = vmatmul.mubr.f32.gmra.mxu0 %v10667
  %v10859 = vpop.f32.mrf.mxu0
  %v10860 = vadd.f32 0.0, %v10859
  %v10861 = vpop.f32.mrf.mxu0
  %10862 = vmatprep.mubr.f32.mxu0 0.0
  %10863 = vmatmul.mubr.f32.gmra.mxu0 %v10670
  %v10864 = vpop.f32.mrf.mxu0
  %v10865 = vadd.f32 0.0, %v10864
  %v10866 = vpop.f32.mrf.mxu0
  %10867 = vmatprep.mubr.f32.mxu0 0.0
  %10868 = vmatmul.mubr.f32.gmra.mxu0 %v10673
  %v10869 = vpop.f32.mrf.mxu0
  %v10870 = vadd.f32 0.0, %v10869
  %v10871 = vpop.f32.mrf.mxu0
  %10872 = vmatprep.mubr.f32.mxu0 0.0
  %10873 = vmatmul.mubr.f32.gmra.mxu0 %v10676
  %v10874 = vpop.f32.mrf.mxu0
  %v10875 = vadd.f32 0.0, %v10874
  %v10876 = vpop.f32.mrf.mxu0
  %10877 = vmatprep.mubr.f32.mxu0 0.0
  %10878 = vmatmul.mubr.f32.gmra.mxu0 %v10679
  %v10879 = vpop.f32.mrf.mxu0
  %v10880 = vadd.f32 0.0, %v10879
  %v10881 = vpop.f32.mrf.mxu0
  %10882 = vmatprep.mubr.f32.mxu0 0.0
  %10883 = vmatmul.mubr.f32.gmra.mxu0 %v10682
  %v10884 = vpop.f32.mrf.mxu0
  %v10885 = vadd.f32 0.0, %v10884
  %v10886 = vpop.f32.mrf.mxu0
  %10887 = vmatprep.mubr.f32.mxu0 0.0
  %10888 = vmatmul.mubr.f32.gmra.mxu0 %v10685
  %v10889 = vpop.f32.mrf.mxu0
  %v10890 = vadd.f32 0.0, %v10889
  %v10891 = vpop.f32.mrf.mxu0
  %10892 = vmatprep.mubr.f32.mxu0 0.0
  %10893 = vmatmul.mubr.f32.gmra.mxu0 %v10688
  %v10894 = vpop.f32.mrf.mxu0
  %v10895 = vadd.f32 0.0, %v10894
  %v10896 = vpop.f32.mrf.mxu0
  %10897 = vmatprep.mubr.f32.mxu0 0.0
  %10898 = vmatmul.mubr.f32.gmra.mxu0 %v10691
  %v10899 = vpop.f32.mrf.mxu0
  %v10900 = vadd.f32 0.0, %v10899
  %v10901 = vpop.f32.mrf.mxu0
  %10902 = vmatprep.mubr.f32.mxu0 0.0
  %10903 = vmatmul.mubr.f32.gmra.mxu0 %v10694
  %v10904 = vpop.f32.mrf.mxu0
  %v10905 = vadd.f32 0.0, %v10904
  %v10906 = vpop.f32.mrf.mxu0
  %10907 = vmatprep.mubr.f32.mxu0 0.0
  %10908 = vmatmul.mubr.f32.gmra.mxu0 %v10697
  %v10909 = vpop.f32.mrf.mxu0
  %v10910 = vadd.f32 0.0, %v10909
  %v10911 = vpop.f32.mrf.mxu0
  %10912 = vmatprep.mubr.f32.mxu0 0.0
  %10913 = vmatmul.mubr.f32.gmra.mxu0 %v10700
  %v10914 = vpop.f32.mrf.mxu0
  %v10915 = vadd.f32 0.0, %v10914
  %v10916 = vpop.f32.mrf.mxu0
  %10917 = vmatprep.mubr.f32.mxu0 0.0
  %10918 = vmatmul.mubr.f32.gmra.mxu0 %v10703
  %v10919 = vpop.f32.mrf.mxu0
  %v10920 = vadd.f32 0.0, %v10919
  %v10921 = vpop.f32.mrf.mxu0
  %10922 = vmatprep.mubr.f32.mxu0 0.0
  %10923 = vmatmul.mubr.f32.gmra.mxu0 %v10706
  %v10924 = vpop.f32.mrf.mxu0
  %v10925 = vadd.f32 0.0, %v10924
  %v10926 = vpop.f32.mrf.mxu0
  %10927 = vmatprep.mubr.f32.mxu0 0.0
  %10928 = vmatmul.mubr.f32.gmra.mxu0 %v10709
  %v10929 = vpop.f32.mrf.mxu0
  %v10930 = vadd.f32 0.0, %v10929
  %v10931 = vpop.f32.mrf.mxu0
  %10932 = vmatprep.mubr.f32.mxu0 0.0
  %10933 = vmatmul.mubr.f32.gmra.mxu0 %v10712
  %v10934 = vpop.f32.mrf.mxu0
  %v10935 = vadd.f32 0.0, %v10934
  %v10936 = vpop.f32.mrf.mxu0
  %10937 = vmatprep.mubr.f32.mxu0 0.0
  %10938 = vmatmul.mubr.f32.gmra.mxu0 %v10715
  %v10939 = vpop.f32.mrf.mxu0
  %v10940 = vadd.f32 0.0, %v10939
  %v10941 = vpop.f32.mrf.mxu0
  %10942 = vmatprep.mubr.f32.mxu0 0.0
  %10943 = vmatmul.mubr.f32.gmra.mxu0 %v10718
  %v10944 = vpop.f32.mrf.mxu0
  %v10945 = vadd.f32 0.0, %v10944
  %v10946 = vpop.f32.mrf.mxu0
  %10947 = vmatprep.mubr.f32.mxu0 0.0
  %10948 = vmatmul.mubr.f32.gmra.mxu0 %v10721
  %v10949 = vpop.f32.mrf.mxu0
  %v10950 = vadd.f32 0.0, %v10949
  %v10951 = vpop.f32.mrf.mxu0
  %10952 = vmatprep.mubr.f32.mxu0 0.0
  %10953 = vmatmul.mubr.f32.gmra.mxu0 %v10724
  %v10954 = vpop.f32.mrf.mxu0
  %v10955 = vadd.f32 0.0, %v10954
  %v10956 = vpop.f32.mrf.mxu0
  %10957 = vmatprep.mubr.f32.mxu0 0.0
  %10958 = vmatmul.mubr.f32.gmra.mxu0 %v10727
  %v10959 = vpop.f32.mrf.mxu0
  %v10960 = vadd.f32 0.0, %v10959
  %v10961 = vpop.f32.mrf.mxu0
  %10962 = vmatprep.mubr.f32.mxu0 0.0
  %10963 = vmatmul.mubr.f32.gmra.mxu0 %v10730
  %v10964 = vpop.f32.mrf.mxu0
  %v10965 = vadd.f32 0.0, %v10964
  %v10966 = vpop.f32.mrf.mxu0
  %10967 = vmatprep.mubr.f32.mxu0 0.0
  %10968 = vmatmul.mubr.f32.gmra.mxu0 %v10733
  %v10969 = vpop.f32.mrf.mxu0
  %v10970 = vadd.f32 0.0, %v10969
  %v10971 = vpop.f32.mrf.mxu0
  %10972 = vmatprep.mubr.f32.mxu0 0.0
  %10973 = vmatmul.mubr.f32.gmra.mxu0 %v10736
  %v10974 = vpop.f32.mrf.mxu0
  %v10975 = vadd.f32 0.0, %v10974
  %v10976 = vpop.f32.mrf.mxu0
  %10977 = vmatprep.mubr.f32.mxu0 0.0
  %10978 = vmatmul.mubr.f32.gmra.mxu0 %v10739
  %v10979 = vpop.f32.mrf.mxu0
  %v10980 = vadd.f32 0.0, %v10979
  %v10981 = vpop.f32.mrf.mxu0
  %10982 = vmatprep.mubr.f32.mxu0 0.0
  %10983 = vmatmul.mubr.f32.gmra.mxu0 %v10742
  %v10984 = vpop.f32.mrf.mxu0
  %v10985 = vadd.f32 0.0, %v10984
  %v10986 = vpop.f32.mrf.mxu0
  %10987 = vmatprep.mubr.f32.mxu0 0.0
  %10988 = vmatmul.mubr.f32.gmra.mxu0 %v10745
  %v10989 = vpop.f32.mrf.mxu0
  %v10990 = vadd.f32 0.0, %v10989
  %v10991 = vpop.f32.mrf.mxu0
  %10992 = vmatprep.mubr.f32.mxu0 0.0
  %10993 = vmatmul.mubr.f32.gmra.mxu0 %v10748
  %v10994 = vpop.f32.mrf.mxu0
  %v10995 = vadd.f32 0.0, %v10994
  %v10996 = vpop.f32.mrf.mxu0
  %10997 = vmatprep.mubr.f32.mxu0 0.0
  %10998 = vmatmul.mubr.f32.gmra.mxu0 %v10751
  %v10999 = vpop.f32.mrf.mxu0
  %v11000 = vadd.f32 0.0, %v10999
  %v11001 = vpop.f32.mrf.mxu0
  %11002 = vmatprep.mubr.f32.mxu0 0.0
  %11003 = vmatmul.mubr.f32.gmra.mxu0 %v10754
  %v11004 = vpop.f32.mrf.mxu0
  %v11005 = vadd.f32 0.0, %v11004
  %v11006 = vpop.f32.mrf.mxu0
  %11007 = vmatprep.mubr.f32.mxu0 0.0
  %11008 = vmatmul.mubr.f32.gmra.mxu0 %v10757
  %v11009 = vpop.f32.mrf.mxu0
  %v11010 = vadd.f32 0.0, %v11009
  %v11011 = vpop.f32.mrf.mxu0
  %11012 = vmatprep.mubr.f32.mxu0 0.0
  %11013 = vmatmul.mubr.f32.gmra.mxu0 %v10760
  %v11014 = vpop.f32.mrf.mxu0
  %v11015 = vadd.f32 0.0, %v11014
  %v11016 = vpop.f32.mrf.mxu0
  %11017 = vmatprep.mubr.f32.mxu0 0.0
  %11018 = vmatmul.mubr.f32.gmra.mxu0 %v10763
  %v11019 = vpop.f32.mrf.mxu0
  %v11020 = vadd.f32 0.0, %v11019
  %v11021 = vpop.f32.mrf.mxu0
  %11022 = vmatprep.mubr.f32.mxu0 0.0
  %11023 = vmatmul.mubr.f32.gmra.mxu0 %v10766
  %v11024 = vpop.f32.mrf.mxu0
  %v11025 = vadd.f32 0.0, %v11024
  %v11026 = vpop.f32.mrf.mxu0
  %11027 = vmatprep.mubr.f32.mxu0 0.0
  %11028 = vmatmul.mubr.f32.gmra.mxu0 %v10769
  %v11029 = vpop.f32.mrf.mxu0
  %v11030 = vadd.f32 0.0, %v11029
  %v11031 = vpop.f32.mrf.mxu0
  %11032 = vmatprep.mubr.f32.mxu0 0.0
  %11033 = vmatmul.mubr.f32.gmra.mxu0 %v10772
  %v11034 = vpop.f32.mrf.mxu0
  %v11035 = vadd.f32 0.0, %v11034
  %v11036 = vpop.f32.mrf.mxu0
  %11037 = vmatprep.mubr.f32.mxu0 0.0
  %11038 = vmatmul.mubr.f32.gmra.mxu0 %v10775
  %v11039 = vpop.f32.mrf.mxu0
  %v11040 = vadd.f32 0.0, %v11039
  %v11041 = vpop.f32.mrf.mxu0
  %11042 = vmatprep.mubr.f32.mxu0 0.0
  %11043 = vmatmul.mubr.f32.gmra.mxu0 %v10778
  %v11044 = vpop.f32.mrf.mxu0
  %v11045 = vadd.f32 0.0, %v11044
  %v11046 = vpop.f32.mrf.mxu0
  %11047 = vdwg.mxu0
  %v11048 = vadd.f32 %v10537, %v10850
  %v11049 = vadd.f32 %v10538, %v10855
  %v11050 = vadd.f32 %v10539, %v10860
  %v11051 = vadd.f32 %v10540, %v10865
  %v11052 = vadd.f32 %v10541, %v10870
  %v11053 = vadd.f32 %v10542, %v10875
  %v11054 = vadd.f32 %v10543, %v10880
  %v11055 = vadd.f32 %v10544, %v10885
  %v11056 = vadd.f32 %v10545, %v10890
  %v11057 = vadd.f32 %v10546, %v10895
  %v11058 = vadd.f32 %v10547, %v10900
  %v11059 = vadd.f32 %v10548, %v10905
  %v11060 = vadd.f32 %v10549, %v10910
  %v11061 = vadd.f32 %v10550, %v10915
  %v11062 = vadd.f32 %v10551, %v10920
  %v11063 = vadd.f32 %v10552, %v10925
  %v11064 = vadd.f32 %v10553, %v10930
  %v11065 = vadd.f32 %v10554, %v10935
  %v11066 = vadd.f32 %v10555, %v10940
  %v11067 = vadd.f32 %v10556, %v10945
  %v11068 = vadd.f32 %v10557, %v10950
  %v11069 = vadd.f32 %v10558, %v10955
  %v11070 = vadd.f32 %v10559, %v10960
  %v11071 = vadd.f32 %v10560, %v10965
  %v11072 = vadd.f32 %v10561, %v10970
  %v11073 = vadd.f32 %v10562, %v10975
  %v11074 = vadd.f32 %v10563, %v10980
  %v11075 = vadd.f32 %v10564, %v10985
  %v11076 = vadd.f32 %v10565, %v10990
  %v11077 = vadd.f32 %v10566, %v10995
  %v11078 = vadd.f32 %v10567, %v11000
  %v11079 = vadd.f32 %v10568, %v11005
  %v11080 = vadd.f32 %v10569, %v11010
  %v11081 = vadd.f32 %v10570, %v11015
  %v11082 = vadd.f32 %v10571, %v11020
  %v11083 = vadd.f32 %v10572, %v11025
  %v11084 = vadd.f32 %v10573, %v11030
  %v11085 = vadd.f32 %v10574, %v11035
  %v11086 = vadd.f32 %v10575, %v11040
  %v11087 = vadd.f32 %v10576, %v11045
  %v11088 = vrot.slane %v8652, 5
  %v11089 = vrot.slane %v8653, 5
  %v11090 = vrot.slane %v8654, 5
  %v11091 = vrot.slane %v8655, 5
  %v11092 = vrot.slane %v8656, 5
  %v11093 = vrot.slane %v8657, 5
  %v11094 = vrot.slane %v8658, 5
  %v11095 = vrot.slane %v8659, 5
  %v11096 = vrot.slane %v8660, 5
  %v11097 = vrot.slane %v8661, 5
  %v11098 = vrot.slane %v8662, 5
  %v11099 = vrot.slane %v8663, 5
  %v11100 = vrot.slane %v8664, 5
  %v11101 = vrot.slane %v8665, 5
  %v11102 = vrot.slane %v8666, 5
  %v11103 = vrot.slane %v8667, 5
  %v11104 = vrot.slane %v8668, 5
  %v11105 = vrot.slane %v8669, 5
  %v11106 = vrot.slane %v8670, 5
  %v11107 = vrot.slane %v8671, 5
  %v11108 = vrot.slane %v8672, 5
  %v11109 = vrot.slane %v8673, 5
  %v11110 = vrot.slane %v8674, 5
  %v11111 = vrot.slane %v8675, 5
  %v11112 = vrot.slane %v8676, 5
  %v11113 = vrot.slane %v8677, 5
  %v11114 = vrot.slane %v8678, 5
  %v11115 = vrot.slane %v8679, 5
  %v11116 = vrot.slane %v8680, 5
  %v11117 = vrot.slane %v8681, 5
  %v11118 = vrot.slane %v8682, 5
  %v11119 = vrot.slane %v8683, 5
  %v11120 = vrot.slane %v8684, 5
  %v11121 = vrot.slane %v8685, 5
  %v11122 = vrot.slane %v8686, 5
  %v11123 = vrot.slane %v8687, 5
  %v11124 = vrot.slane %v8688, 5
  %v11125 = vrot.slane %v8689, 5
  %v11126 = vrot.slane %v8690, 5
  %v11127 = vrot.slane %v8691, 5
  %v11128 = vsel %vm2487, %v11126, %v11127
  %v11129 = vsel %vm2487, %v11125, %v11126
  %v11130 = vsel %vm2487, %v11124, %v11125
  %v11131 = vsel %vm2487, %v11123, %v11124
  %v11132 = vsel %vm2487, %v11122, %v11123
  %v11133 = vsel %vm2487, %v11121, %v11122
  %v11134 = vsel %vm2487, %v11120, %v11121
  %v11135 = vsel %vm2487, %v11119, %v11120
  %v11136 = vsel %vm2487, %v11118, %v11119
  %v11137 = vsel %vm2487, %v11117, %v11118
  %v11138 = vsel %vm2487, %v11116, %v11117
  %v11139 = vsel %vm2487, %v11115, %v11116
  %v11140 = vsel %vm2487, %v11114, %v11115
  %v11141 = vsel %vm2487, %v11113, %v11114
  %v11142 = vsel %vm2487, %v11112, %v11113
  %v11143 = vsel %vm2487, %v11111, %v11112
  %v11144 = vsel %vm2487, %v11110, %v11111
  %v11145 = vsel %vm2487, %v11109, %v11110
  %v11146 = vsel %vm2487, %v11108, %v11109
  %v11147 = vsel %vm2487, %v11107, %v11108
  %v11148 = vsel %vm2487, %v11106, %v11107
  %v11149 = vsel %vm2487, %v11105, %v11106
  %v11150 = vsel %vm2487, %v11104, %v11105
  %v11151 = vsel %vm2487, %v11103, %v11104
  %v11152 = vsel %vm2487, %v11102, %v11103
  %v11153 = vsel %vm2487, %v11101, %v11102
  %v11154 = vsel %vm2487, %v11100, %v11101
  %v11155 = vsel %vm2487, %v11099, %v11100
  %v11156 = vsel %vm2487, %v11098, %v11099
  %v11157 = vsel %vm2487, %v11097, %v11098
  %v11158 = vsel %vm2487, %v11096, %v11097
  %v11159 = vsel %vm2487, %v11095, %v11096
  %v11160 = vsel %vm2487, %v11094, %v11095
  %v11161 = vsel %vm2487, %v11093, %v11094
  %v11162 = vsel %vm2487, %v11092, %v11093
  %v11163 = vsel %vm2487, %v11091, %v11092
  %v11164 = vsel %vm2487, %v11090, %v11091
  %v11165 = vsel %vm2487, %v11089, %v11090
  %v11166 = vsel %vm2487, %v11088, %v11089
  %v11167 = vsel %vm2487, %v11127, %v11088
  %s11168 = scalar_lea.vmem %s5, 80
  %v11169 = vld [vmem:[%s11168] sm:$0xff]
  %v11170 = vld [vmem:[%s11168 + $0x8] sm:$0x3]
  %v11172 = vsel %vm8777, %v11166, 0
  %v11175 = vsel %vm8777, %v11165, 0
  %v11178 = vsel %vm8777, %v11164, 0
  %v11181 = vsel %vm8777, %v11163, 0
  %v11184 = vsel %vm8777, %v11162, 0
  %v11187 = vsel %vm8777, %v11161, 0
  %v11190 = vsel %vm8777, %v11160, 0
  %v11193 = vsel %vm8777, %v11159, 0
  %v11196 = vsel %vm8777, %v11158, 0
  %v11199 = vsel %vm8777, %v11157, 0
  %v11202 = vsel %vm8777, %v11156, 0
  %v11205 = vsel %vm8777, %v11155, 0
  %v11208 = vsel %vm8777, %v11154, 0
  %v11211 = vsel %vm8777, %v11153, 0
  %v11214 = vsel %vm8777, %v11152, 0
  %v11217 = vsel %vm8777, %v11151, 0
  %v11220 = vsel %vm8777, %v11150, 0
  %v11223 = vsel %vm8777, %v11149, 0
  %v11226 = vsel %vm8777, %v11148, 0
  %v11229 = vsel %vm8777, %v11147, 0
  %v11232 = vsel %vm8777, %v11146, 0
  %v11235 = vsel %vm8777, %v11145, 0
  %v11238 = vsel %vm8777, %v11144, 0
  %v11241 = vsel %vm8777, %v11143, 0
  %v11244 = vsel %vm8777, %v11142, 0
  %v11247 = vsel %vm8777, %v11141, 0
  %v11250 = vsel %vm8777, %v11140, 0
  %v11253 = vsel %vm8777, %v11139, 0
  %v11256 = vsel %vm8777, %v11138, 0
  %v11259 = vsel %vm8777, %v11137, 0
  %v11262 = vsel %vm8777, %v11136, 0
  %v11265 = vsel %vm8777, %v11135, 0
  %v11268 = vsel %vm8777, %v11134, 0
  %v11271 = vsel %vm8777, %v11133, 0
  %v11274 = vsel %vm8777, %v11132, 0
  %v11277 = vsel %vm8777, %v11131, 0
  %v11280 = vsel %vm8777, %v11130, 0
  %v11283 = vsel %vm8777, %v11129, 0
  %v11286 = vsel %vm8777, %v11128, 0
  %v11289 = vsel %vm8777, %v11167, 0
  %v11292 = vsel %vm8898, %v11170, 0
  %11294 = vmatprep.subr.mxu0 0.0
  %11295 = vmatpush1.msra.mxu0 0.0
  %11296 = vmatprep.subr.mxu0 0.0
  %11297 = vmatpush1.msra.mxu0 0.0
  %11298 = vmatprep.subr.mxu0 0.0
  %11299 = vmatpush1.msra.mxu0 0.0
  %11300 = vmatprep.subr.mxu0 0.0
  %11301 = vmatpush1.msra.mxu0 0.0
  %11302 = vmatprep.subr.mxu0 0.0
  %11303 = vmatpush1.msra.mxu0 0.0
  %11304 = vmatprep.subr.mxu0 0.0
  %11305 = vmatpush1.msra.mxu0 0.0
  %11306 = vmatprep.subr.mxu0 0.0
  %11307 = vmatpush1.msra.mxu0 0.0
  %11308 = vmatprep.subr.mxu0 0.0
  %11309 = vmatpush1.msra.mxu0 0.0
  %11310 = vmatprep.subr.mxu0 0.0
  %11311 = vmatpush1.msra.mxu0 0.0
  %11312 = vmatprep.subr.mxu0 0.0
  %11313 = vmatpush1.msra.mxu0 0.0
  %11314 = vmatprep.subr.mxu0 0.0
  %11315 = vmatpush1.msra.mxu0 0.0
  %11316 = vmatprep.subr.mxu0 0.0
  %11317 = vmatpush1.msra.mxu0 0.0
  %11318 = vmatprep.subr.mxu0 0.0
  %11319 = vmatpush1.msra.mxu0 0.0
  %11320 = vmatprep.subr.mxu0 0.0
  %11321 = vmatpush1.msra.mxu0 0.0
  %11322 = vmatprep.subr.mxu0 0.0
  %11323 = vmatpush1.msra.mxu0 %v11292
  %11324 = vmatprep.subr.mxu0 0.0
  %11325 = vmatpush1.msra.mxu0 %v11169
  %11326 = vmatprep.subr.mxu0 0.0
  %11327 = vmatpush2.msra.mxu0 0.0
  %11328 = vmatprep.subr.mxu0 0.0
  %11329 = vmatpush2.msra.mxu0 0.0
  %11330 = vmatprep.subr.mxu0 0.0
  %11331 = vmatpush2.msra.mxu0 0.0
  %11332 = vmatprep.subr.mxu0 0.0
  %11333 = vmatpush2.msra.mxu0 0.0
  %11334 = vmatprep.subr.mxu0 0.0
  %11335 = vmatpush2.msra.mxu0 0.0
  %11336 = vmatprep.subr.mxu0 0.0
  %11337 = vmatpush2.msra.mxu0 0.0
  %11338 = vmatprep.subr.mxu0 0.0
  %11339 = vmatpush2.msra.mxu0 0.0
  %11340 = vmatprep.subr.mxu0 0.0
  %11341 = vmatpush2.msra.mxu0 0.0
  %11342 = vmatprep.subr.mxu0 0.0
  %11343 = vmatpush2.msra.mxu0 0.0
  %11344 = vmatprep.subr.mxu0 0.0
  %11345 = vmatpush2.msra.mxu0 0.0
  %11346 = vmatprep.subr.mxu0 0.0
  %11347 = vmatpush2.msra.mxu0 0.0
  %11348 = vmatprep.subr.mxu0 0.0
  %11349 = vmatpush2.msra.mxu0 0.0
  %11350 = vmatprep.subr.mxu0 0.0
  %11351 = vmatpush2.msra.mxu0 0.0
  %11352 = vmatprep.subr.mxu0 0.0
  %11353 = vmatpush2.msra.mxu0 0.0
  %11354 = vmatprep.subr.mxu0 0.0
  %11355 = vmatpush2.msra.mxu0 0.0
  %11356 = vmatprep.subr.mxu0 0.0
  %11357 = vmatpush2.msra.mxu0 0.0
  %11358 = vmatprep.mubr.f32.mxu0 0.0
  %11359 = vmatmul.mubr.f32.gmra.mxu0 %v11172
  %v11360 = vpop.f32.mrf.mxu0
  %v11361 = vadd.f32 0.0, %v11360
  %v11362 = vpop.f32.mrf.mxu0
  %11363 = vmatprep.mubr.f32.mxu0 0.0
  %11364 = vmatmul.mubr.f32.gmra.mxu0 %v11175
  %v11365 = vpop.f32.mrf.mxu0
  %v11366 = vadd.f32 0.0, %v11365
  %v11367 = vpop.f32.mrf.mxu0
  %11368 = vmatprep.mubr.f32.mxu0 0.0
  %11369 = vmatmul.mubr.f32.gmra.mxu0 %v11178
  %v11370 = vpop.f32.mrf.mxu0
  %v11371 = vadd.f32 0.0, %v11370
  %v11372 = vpop.f32.mrf.mxu0
  %11373 = vmatprep.mubr.f32.mxu0 0.0
  %11374 = vmatmul.mubr.f32.gmra.mxu0 %v11181
  %v11375 = vpop.f32.mrf.mxu0
  %v11376 = vadd.f32 0.0, %v11375
  %v11377 = vpop.f32.mrf.mxu0
  %11378 = vmatprep.mubr.f32.mxu0 0.0
  %11379 = vmatmul.mubr.f32.gmra.mxu0 %v11184
  %v11380 = vpop.f32.mrf.mxu0
  %v11381 = vadd.f32 0.0, %v11380
  %v11382 = vpop.f32.mrf.mxu0
  %11383 = vmatprep.mubr.f32.mxu0 0.0
  %11384 = vmatmul.mubr.f32.gmra.mxu0 %v11187
  %v11385 = vpop.f32.mrf.mxu0
  %v11386 = vadd.f32 0.0, %v11385
  %v11387 = vpop.f32.mrf.mxu0
  %11388 = vmatprep.mubr.f32.mxu0 0.0
  %11389 = vmatmul.mubr.f32.gmra.mxu0 %v11190
  %v11390 = vpop.f32.mrf.mxu0
  %v11391 = vadd.f32 0.0, %v11390
  %v11392 = vpop.f32.mrf.mxu0
  %11393 = vmatprep.mubr.f32.mxu0 0.0
  %11394 = vmatmul.mubr.f32.gmra.mxu0 %v11193
  %v11395 = vpop.f32.mrf.mxu0
  %v11396 = vadd.f32 0.0, %v11395
  %v11397 = vpop.f32.mrf.mxu0
  %11398 = vmatprep.mubr.f32.mxu0 0.0
  %11399 = vmatmul.mubr.f32.gmra.mxu0 %v11196
  %v11400 = vpop.f32.mrf.mxu0
  %v11401 = vadd.f32 0.0, %v11400
  %v11402 = vpop.f32.mrf.mxu0
  %11403 = vmatprep.mubr.f32.mxu0 0.0
  %11404 = vmatmul.mubr.f32.gmra.mxu0 %v11199
  %v11405 = vpop.f32.mrf.mxu0
  %v11406 = vadd.f32 0.0, %v11405
  %v11407 = vpop.f32.mrf.mxu0
  %11408 = vmatprep.mubr.f32.mxu0 0.0
  %11409 = vmatmul.mubr.f32.gmra.mxu0 %v11202
  %v11410 = vpop.f32.mrf.mxu0
  %v11411 = vadd.f32 0.0, %v11410
  %v11412 = vpop.f32.mrf.mxu0
  %11413 = vmatprep.mubr.f32.mxu0 0.0
  %11414 = vmatmul.mubr.f32.gmra.mxu0 %v11205
  %v11415 = vpop.f32.mrf.mxu0
  %v11416 = vadd.f32 0.0, %v11415
  %v11417 = vpop.f32.mrf.mxu0
  %11418 = vmatprep.mubr.f32.mxu0 0.0
  %11419 = vmatmul.mubr.f32.gmra.mxu0 %v11208
  %v11420 = vpop.f32.mrf.mxu0
  %v11421 = vadd.f32 0.0, %v11420
  %v11422 = vpop.f32.mrf.mxu0
  %11423 = vmatprep.mubr.f32.mxu0 0.0
  %11424 = vmatmul.mubr.f32.gmra.mxu0 %v11211
  %v11425 = vpop.f32.mrf.mxu0
  %v11426 = vadd.f32 0.0, %v11425
  %v11427 = vpop.f32.mrf.mxu0
  %11428 = vmatprep.mubr.f32.mxu0 0.0
  %11429 = vmatmul.mubr.f32.gmra.mxu0 %v11214
  %v11430 = vpop.f32.mrf.mxu0
  %v11431 = vadd.f32 0.0, %v11430
  %v11432 = vpop.f32.mrf.mxu0
  %11433 = vmatprep.mubr.f32.mxu0 0.0
  %11434 = vmatmul.mubr.f32.gmra.mxu0 %v11217
  %v11435 = vpop.f32.mrf.mxu0
  %v11436 = vadd.f32 0.0, %v11435
  %v11437 = vpop.f32.mrf.mxu0
  %11438 = vmatprep.mubr.f32.mxu0 0.0
  %11439 = vmatmul.mubr.f32.gmra.mxu0 %v11220
  %v11440 = vpop.f32.mrf.mxu0
  %v11441 = vadd.f32 0.0, %v11440
  %v11442 = vpop.f32.mrf.mxu0
  %11443 = vmatprep.mubr.f32.mxu0 0.0
  %11444 = vmatmul.mubr.f32.gmra.mxu0 %v11223
  %v11445 = vpop.f32.mrf.mxu0
  %v11446 = vadd.f32 0.0, %v11445
  %v11447 = vpop.f32.mrf.mxu0
  %11448 = vmatprep.mubr.f32.mxu0 0.0
  %11449 = vmatmul.mubr.f32.gmra.mxu0 %v11226
  %v11450 = vpop.f32.mrf.mxu0
  %v11451 = vadd.f32 0.0, %v11450
  %v11452 = vpop.f32.mrf.mxu0
  %11453 = vmatprep.mubr.f32.mxu0 0.0
  %11454 = vmatmul.mubr.f32.gmra.mxu0 %v11229
  %v11455 = vpop.f32.mrf.mxu0
  %v11456 = vadd.f32 0.0, %v11455
  %v11457 = vpop.f32.mrf.mxu0
  %11458 = vmatprep.mubr.f32.mxu0 0.0
  %11459 = vmatmul.mubr.f32.gmra.mxu0 %v11232
  %v11460 = vpop.f32.mrf.mxu0
  %v11461 = vadd.f32 0.0, %v11460
  %v11462 = vpop.f32.mrf.mxu0
  %11463 = vmatprep.mubr.f32.mxu0 0.0
  %11464 = vmatmul.mubr.f32.gmra.mxu0 %v11235
  %v11465 = vpop.f32.mrf.mxu0
  %v11466 = vadd.f32 0.0, %v11465
  %v11467 = vpop.f32.mrf.mxu0
  %11468 = vmatprep.mubr.f32.mxu0 0.0
  %11469 = vmatmul.mubr.f32.gmra.mxu0 %v11238
  %v11470 = vpop.f32.mrf.mxu0
  %v11471 = vadd.f32 0.0, %v11470
  %v11472 = vpop.f32.mrf.mxu0
  %11473 = vmatprep.mubr.f32.mxu0 0.0
  %11474 = vmatmul.mubr.f32.gmra.mxu0 %v11241
  %v11475 = vpop.f32.mrf.mxu0
  %v11476 = vadd.f32 0.0, %v11475
  %v11477 = vpop.f32.mrf.mxu0
  %11478 = vmatprep.mubr.f32.mxu0 0.0
  %11479 = vmatmul.mubr.f32.gmra.mxu0 %v11244
  %v11480 = vpop.f32.mrf.mxu0
  %v11481 = vadd.f32 0.0, %v11480
  %v11482 = vpop.f32.mrf.mxu0
  %11483 = vmatprep.mubr.f32.mxu0 0.0
  %11484 = vmatmul.mubr.f32.gmra.mxu0 %v11247
  %v11485 = vpop.f32.mrf.mxu0
  %v11486 = vadd.f32 0.0, %v11485
  %v11487 = vpop.f32.mrf.mxu0
  %11488 = vmatprep.mubr.f32.mxu0 0.0
  %11489 = vmatmul.mubr.f32.gmra.mxu0 %v11250
  %v11490 = vpop.f32.mrf.mxu0
  %v11491 = vadd.f32 0.0, %v11490
  %v11492 = vpop.f32.mrf.mxu0
  %11493 = vmatprep.mubr.f32.mxu0 0.0
  %11494 = vmatmul.mubr.f32.gmra.mxu0 %v11253
  %v11495 = vpop.f32.mrf.mxu0
  %v11496 = vadd.f32 0.0, %v11495
  %v11497 = vpop.f32.mrf.mxu0
  %11498 = vmatprep.mubr.f32.mxu0 0.0
  %11499 = vmatmul.mubr.f32.gmra.mxu0 %v11256
  %v11500 = vpop.f32.mrf.mxu0
  %v11501 = vadd.f32 0.0, %v11500
  %v11502 = vpop.f32.mrf.mxu0
  %11503 = vmatprep.mubr.f32.mxu0 0.0
  %11504 = vmatmul.mubr.f32.gmra.mxu0 %v11259
  %v11505 = vpop.f32.mrf.mxu0
  %v11506 = vadd.f32 0.0, %v11505
  %v11507 = vpop.f32.mrf.mxu0
  %11508 = vmatprep.mubr.f32.mxu0 0.0
  %11509 = vmatmul.mubr.f32.gmra.mxu0 %v11262
  %v11510 = vpop.f32.mrf.mxu0
  %v11511 = vadd.f32 0.0, %v11510
  %v11512 = vpop.f32.mrf.mxu0
  %11513 = vmatprep.mubr.f32.mxu0 0.0
  %11514 = vmatmul.mubr.f32.gmra.mxu0 %v11265
  %v11515 = vpop.f32.mrf.mxu0
  %v11516 = vadd.f32 0.0, %v11515
  %v11517 = vpop.f32.mrf.mxu0
  %11518 = vmatprep.mubr.f32.mxu0 0.0
  %11519 = vmatmul.mubr.f32.gmra.mxu0 %v11268
  %v11520 = vpop.f32.mrf.mxu0
  %v11521 = vadd.f32 0.0, %v11520
  %v11522 = vpop.f32.mrf.mxu0
  %11523 = vmatprep.mubr.f32.mxu0 0.0
  %11524 = vmatmul.mubr.f32.gmra.mxu0 %v11271
  %v11525 = vpop.f32.mrf.mxu0
  %v11526 = vadd.f32 0.0, %v11525
  %v11527 = vpop.f32.mrf.mxu0
  %11528 = vmatprep.mubr.f32.mxu0 0.0
  %11529 = vmatmul.mubr.f32.gmra.mxu0 %v11274
  %v11530 = vpop.f32.mrf.mxu0
  %v11531 = vadd.f32 0.0, %v11530
  %v11532 = vpop.f32.mrf.mxu0
  %11533 = vmatprep.mubr.f32.mxu0 0.0
  %11534 = vmatmul.mubr.f32.gmra.mxu0 %v11277
  %v11535 = vpop.f32.mrf.mxu0
  %v11536 = vadd.f32 0.0, %v11535
  %v11537 = vpop.f32.mrf.mxu0
  %11538 = vmatprep.mubr.f32.mxu0 0.0
  %11539 = vmatmul.mubr.f32.gmra.mxu0 %v11280
  %v11540 = vpop.f32.mrf.mxu0
  %v11541 = vadd.f32 0.0, %v11540
  %v11542 = vpop.f32.mrf.mxu0
  %11543 = vmatprep.mubr.f32.mxu0 0.0
  %11544 = vmatmul.mubr.f32.gmra.mxu0 %v11283
  %v11545 = vpop.f32.mrf.mxu0
  %v11546 = vadd.f32 0.0, %v11545
  %v11547 = vpop.f32.mrf.mxu0
  %11548 = vmatprep.mubr.f32.mxu0 0.0
  %11549 = vmatmul.mubr.f32.gmra.mxu0 %v11286
  %v11550 = vpop.f32.mrf.mxu0
  %v11551 = vadd.f32 0.0, %v11550
  %v11552 = vpop.f32.mrf.mxu0
  %11553 = vmatprep.mubr.f32.mxu0 0.0
  %11554 = vmatmul.mubr.f32.gmra.mxu0 %v11289
  %v11555 = vpop.f32.mrf.mxu0
  %v11556 = vadd.f32 0.0, %v11555
  %v11557 = vpop.f32.mrf.mxu0
  %11558 = vdwg.mxu0
  %v11559 = vadd.f32 %v11048, %v11361
  %v11560 = vadd.f32 %v11049, %v11366
  %v11561 = vadd.f32 %v11050, %v11371
  %v11562 = vadd.f32 %v11051, %v11376
  %v11563 = vadd.f32 %v11052, %v11381
  %v11564 = vadd.f32 %v11053, %v11386
  %v11565 = vadd.f32 %v11054, %v11391
  %v11566 = vadd.f32 %v11055, %v11396
  %v11567 = vadd.f32 %v11056, %v11401
  %v11568 = vadd.f32 %v11057, %v11406
  %v11569 = vadd.f32 %v11058, %v11411
  %v11570 = vadd.f32 %v11059, %v11416
  %v11571 = vadd.f32 %v11060, %v11421
  %v11572 = vadd.f32 %v11061, %v11426
  %v11573 = vadd.f32 %v11062, %v11431
  %v11574 = vadd.f32 %v11063, %v11436
  %v11575 = vadd.f32 %v11064, %v11441
  %v11576 = vadd.f32 %v11065, %v11446
  %v11577 = vadd.f32 %v11066, %v11451
  %v11578 = vadd.f32 %v11067, %v11456
  %v11579 = vadd.f32 %v11068, %v11461
  %v11580 = vadd.f32 %v11069, %v11466
  %v11581 = vadd.f32 %v11070, %v11471
  %v11582 = vadd.f32 %v11071, %v11476
  %v11583 = vadd.f32 %v11072, %v11481
  %v11584 = vadd.f32 %v11073, %v11486
  %v11585 = vadd.f32 %v11074, %v11491
  %v11586 = vadd.f32 %v11075, %v11496
  %v11587 = vadd.f32 %v11076, %v11501
  %v11588 = vadd.f32 %v11077, %v11506
  %v11589 = vadd.f32 %v11078, %v11511
  %v11590 = vadd.f32 %v11079, %v11516
  %v11591 = vadd.f32 %v11080, %v11521
  %v11592 = vadd.f32 %v11081, %v11526
  %v11593 = vadd.f32 %v11082, %v11531
  %v11594 = vadd.f32 %v11083, %v11536
  %v11595 = vadd.f32 %v11084, %v11541
  %v11596 = vadd.f32 %v11085, %v11546
  %v11597 = vadd.f32 %v11086, %v11551
  %v11598 = vadd.f32 %v11087, %v11556
  %v11599 = vrot.slane %v8652, 6
  %v11600 = vrot.slane %v8653, 6
  %v11601 = vrot.slane %v8654, 6
  %v11602 = vrot.slane %v8655, 6
  %v11603 = vrot.slane %v8656, 6
  %v11604 = vrot.slane %v8657, 6
  %v11605 = vrot.slane %v8658, 6
  %v11606 = vrot.slane %v8659, 6
  %v11607 = vrot.slane %v8660, 6
  %v11608 = vrot.slane %v8661, 6
  %v11609 = vrot.slane %v8662, 6
  %v11610 = vrot.slane %v8663, 6
  %v11611 = vrot.slane %v8664, 6
  %v11612 = vrot.slane %v8665, 6
  %v11613 = vrot.slane %v8666, 6
  %v11614 = vrot.slane %v8667, 6
  %v11615 = vrot.slane %v8668, 6
  %v11616 = vrot.slane %v8669, 6
  %v11617 = vrot.slane %v8670, 6
  %v11618 = vrot.slane %v8671, 6
  %v11619 = vrot.slane %v8672, 6
  %v11620 = vrot.slane %v8673, 6
  %v11621 = vrot.slane %v8674, 6
  %v11622 = vrot.slane %v8675, 6
  %v11623 = vrot.slane %v8676, 6
  %v11624 = vrot.slane %v8677, 6
  %v11625 = vrot.slane %v8678, 6
  %v11626 = vrot.slane %v8679, 6
  %v11627 = vrot.slane %v8680, 6
  %v11628 = vrot.slane %v8681, 6
  %v11629 = vrot.slane %v8682, 6
  %v11630 = vrot.slane %v8683, 6
  %v11631 = vrot.slane %v8684, 6
  %v11632 = vrot.slane %v8685, 6
  %v11633 = vrot.slane %v8686, 6
  %v11634 = vrot.slane %v8687, 6
  %v11635 = vrot.slane %v8688, 6
  %v11636 = vrot.slane %v8689, 6
  %v11637 = vrot.slane %v8690, 6
  %v11638 = vrot.slane %v8691, 6
  %v11639 = vsel %vm2995, %v11637, %v11638
  %v11640 = vsel %vm2995, %v11636, %v11637
  %v11641 = vsel %vm2995, %v11635, %v11636
  %v11642 = vsel %vm2995, %v11634, %v11635
  %v11643 = vsel %vm2995, %v11633, %v11634
  %v11644 = vsel %vm2995, %v11632, %v11633
  %v11645 = vsel %vm2995, %v11631, %v11632
  %v11646 = vsel %vm2995, %v11630, %v11631
  %v11647 = vsel %vm2995, %v11629, %v11630
  %v11648 = vsel %vm2995, %v11628, %v11629
  %v11649 = vsel %vm2995, %v11627, %v11628
  %v11650 = vsel %vm2995, %v11626, %v11627
  %v11651 = vsel %vm2995, %v11625, %v11626
  %v11652 = vsel %vm2995, %v11624, %v11625
  %v11653 = vsel %vm2995, %v11623, %v11624
  %v11654 = vsel %vm2995, %v11622, %v11623
  %v11655 = vsel %vm2995, %v11621, %v11622
  %v11656 = vsel %vm2995, %v11620, %v11621
  %v11657 = vsel %vm2995, %v11619, %v11620
  %v11658 = vsel %vm2995, %v11618, %v11619
  %v11659 = vsel %vm2995, %v11617, %v11618
  %v11660 = vsel %vm2995, %v11616, %v11617
  %v11661 = vsel %vm2995, %v11615, %v11616
  %v11662 = vsel %vm2995, %v11614, %v11615
  %v11663 = vsel %vm2995, %v11613, %v11614
  %v11664 = vsel %vm2995, %v11612, %v11613
  %v11665 = vsel %vm2995, %v11611, %v11612
  %v11666 = vsel %vm2995, %v11610, %v11611
  %v11667 = vsel %vm2995, %v11609, %v11610
  %v11668 = vsel %vm2995, %v11608, %v11609
  %v11669 = vsel %vm2995, %v11607, %v11608
  %v11670 = vsel %vm2995, %v11606, %v11607
  %v11671 = vsel %vm2995, %v11605, %v11606
  %v11672 = vsel %vm2995, %v11604, %v11605
  %v11673 = vsel %vm2995, %v11603, %v11604
  %v11674 = vsel %vm2995, %v11602, %v11603
  %v11675 = vsel %vm2995, %v11601, %v11602
  %v11676 = vsel %vm2995, %v11600, %v11601
  %v11677 = vsel %vm2995, %v11599, %v11600
  %v11678 = vsel %vm2995, %v11638, %v11599
  %s11679 = scalar_lea.vmem %s5, 96
  %v11680 = vld [vmem:[%s11679] sm:$0xff]
  %v11681 = vld [vmem:[%s11679 + $0x8] sm:$0x3]
  %v11683 = vsel %vm8777, %v11677, 0
  %v11686 = vsel %vm8777, %v11676, 0
  %v11689 = vsel %vm8777, %v11675, 0
  %v11692 = vsel %vm8777, %v11674, 0
  %v11695 = vsel %vm8777, %v11673, 0
  %v11698 = vsel %vm8777, %v11672, 0
  %v11701 = vsel %vm8777, %v11671, 0
  %v11704 = vsel %vm8777, %v11670, 0
  %v11707 = vsel %vm8777, %v11669, 0
  %v11710 = vsel %vm8777, %v11668, 0
  %v11713 = vsel %vm8777, %v11667, 0
  %v11716 = vsel %vm8777, %v11666, 0
  %v11719 = vsel %vm8777, %v11665, 0
  %v11722 = vsel %vm8777, %v11664, 0
  %v11725 = vsel %vm8777, %v11663, 0
  %v11728 = vsel %vm8777, %v11662, 0
  %v11731 = vsel %vm8777, %v11661, 0
  %v11734 = vsel %vm8777, %v11660, 0
  %v11737 = vsel %vm8777, %v11659, 0
  %v11740 = vsel %vm8777, %v11658, 0
  %v11743 = vsel %vm8777, %v11657, 0
  %v11746 = vsel %vm8777, %v11656, 0
  %v11749 = vsel %vm8777, %v11655, 0
  %v11752 = vsel %vm8777, %v11654, 0
  %v11755 = vsel %vm8777, %v11653, 0
  %v11758 = vsel %vm8777, %v11652, 0
  %v11761 = vsel %vm8777, %v11651, 0
  %v11764 = vsel %vm8777, %v11650, 0
  %v11767 = vsel %vm8777, %v11649, 0
  %v11770 = vsel %vm8777, %v11648, 0
  %v11773 = vsel %vm8777, %v11647, 0
  %v11776 = vsel %vm8777, %v11646, 0
  %v11779 = vsel %vm8777, %v11645, 0
  %v11782 = vsel %vm8777, %v11644, 0
  %v11785 = vsel %vm8777, %v11643, 0
  %v11788 = vsel %vm8777, %v11642, 0
  %v11791 = vsel %vm8777, %v11641, 0
  %v11794 = vsel %vm8777, %v11640, 0
  %v11797 = vsel %vm8777, %v11639, 0
  %v11800 = vsel %vm8777, %v11678, 0
  %v11803 = vsel %vm8898, %v11681, 0
  %11805 = vmatprep.subr.mxu0 0.0
  %11806 = vmatpush1.msra.mxu0 0.0
  %11807 = vmatprep.subr.mxu0 0.0
  %11808 = vmatpush1.msra.mxu0 0.0
  %11809 = vmatprep.subr.mxu0 0.0
  %11810 = vmatpush1.msra.mxu0 0.0
  %11811 = vmatprep.subr.mxu0 0.0
  %11812 = vmatpush1.msra.mxu0 0.0
  %11813 = vmatprep.subr.mxu0 0.0
  %11814 = vmatpush1.msra.mxu0 0.0
  %11815 = vmatprep.subr.mxu0 0.0
  %11816 = vmatpush1.msra.mxu0 0.0
  %11817 = vmatprep.subr.mxu0 0.0
  %11818 = vmatpush1.msra.mxu0 0.0
  %11819 = vmatprep.subr.mxu0 0.0
  %11820 = vmatpush1.msra.mxu0 0.0
  %11821 = vmatprep.subr.mxu0 0.0
  %11822 = vmatpush1.msra.mxu0 0.0
  %11823 = vmatprep.subr.mxu0 0.0
  %11824 = vmatpush1.msra.mxu0 0.0
  %11825 = vmatprep.subr.mxu0 0.0
  %11826 = vmatpush1.msra.mxu0 0.0
  %11827 = vmatprep.subr.mxu0 0.0
  %11828 = vmatpush1.msra.mxu0 0.0
  %11829 = vmatprep.subr.mxu0 0.0
  %11830 = vmatpush1.msra.mxu0 0.0
  %11831 = vmatprep.subr.mxu0 0.0
  %11832 = vmatpush1.msra.mxu0 0.0
  %11833 = vmatprep.subr.mxu0 0.0
  %11834 = vmatpush1.msra.mxu0 %v11803
  %11835 = vmatprep.subr.mxu0 0.0
  %11836 = vmatpush1.msra.mxu0 %v11680
  %11837 = vmatprep.subr.mxu0 0.0
  %11838 = vmatpush2.msra.mxu0 0.0
  %11839 = vmatprep.subr.mxu0 0.0
  %11840 = vmatpush2.msra.mxu0 0.0
  %11841 = vmatprep.subr.mxu0 0.0
  %11842 = vmatpush2.msra.mxu0 0.0
  %11843 = vmatprep.subr.mxu0 0.0
  %11844 = vmatpush2.msra.mxu0 0.0
  %11845 = vmatprep.subr.mxu0 0.0
  %11846 = vmatpush2.msra.mxu0 0.0
  %11847 = vmatprep.subr.mxu0 0.0
  %11848 = vmatpush2.msra.mxu0 0.0
  %11849 = vmatprep.subr.mxu0 0.0
  %11850 = vmatpush2.msra.mxu0 0.0
  %11851 = vmatprep.subr.mxu0 0.0
  %11852 = vmatpush2.msra.mxu0 0.0
  %11853 = vmatprep.subr.mxu0 0.0
  %11854 = vmatpush2.msra.mxu0 0.0
  %11855 = vmatprep.subr.mxu0 0.0
  %11856 = vmatpush2.msra.mxu0 0.0
  %11857 = vmatprep.subr.mxu0 0.0
  %11858 = vmatpush2.msra.mxu0 0.0
  %11859 = vmatprep.subr.mxu0 0.0
  %11860 = vmatpush2.msra.mxu0 0.0
  %11861 = vmatprep.subr.mxu0 0.0
  %11862 = vmatpush2.msra.mxu0 0.0
  %11863 = vmatprep.subr.mxu0 0.0
  %11864 = vmatpush2.msra.mxu0 0.0
  %11865 = vmatprep.subr.mxu0 0.0
  %11866 = vmatpush2.msra.mxu0 0.0
  %11867 = vmatprep.subr.mxu0 0.0
  %11868 = vmatpush2.msra.mxu0 0.0
  %11869 = vmatprep.mubr.f32.mxu0 0.0
  %11870 = vmatmul.mubr.f32.gmra.mxu0 %v11683
  %v11871 = vpop.f32.mrf.mxu0
  %v11872 = vadd.f32 0.0, %v11871
  %v11873 = vpop.f32.mrf.mxu0
  %11874 = vmatprep.mubr.f32.mxu0 0.0
  %11875 = vmatmul.mubr.f32.gmra.mxu0 %v11686
  %v11876 = vpop.f32.mrf.mxu0
  %v11877 = vadd.f32 0.0, %v11876
  %v11878 = vpop.f32.mrf.mxu0
  %11879 = vmatprep.mubr.f32.mxu0 0.0
  %11880 = vmatmul.mubr.f32.gmra.mxu0 %v11689
  %v11881 = vpop.f32.mrf.mxu0
  %v11882 = vadd.f32 0.0, %v11881
  %v11883 = vpop.f32.mrf.mxu0
  %11884 = vmatprep.mubr.f32.mxu0 0.0
  %11885 = vmatmul.mubr.f32.gmra.mxu0 %v11692
  %v11886 = vpop.f32.mrf.mxu0
  %v11887 = vadd.f32 0.0, %v11886
  %v11888 = vpop.f32.mrf.mxu0
  %11889 = vmatprep.mubr.f32.mxu0 0.0
  %11890 = vmatmul.mubr.f32.gmra.mxu0 %v11695
  %v11891 = vpop.f32.mrf.mxu0
  %v11892 = vadd.f32 0.0, %v11891
  %v11893 = vpop.f32.mrf.mxu0
  %11894 = vmatprep.mubr.f32.mxu0 0.0
  %11895 = vmatmul.mubr.f32.gmra.mxu0 %v11698
  %v11896 = vpop.f32.mrf.mxu0
  %v11897 = vadd.f32 0.0, %v11896
  %v11898 = vpop.f32.mrf.mxu0
  %11899 = vmatprep.mubr.f32.mxu0 0.0
  %11900 = vmatmul.mubr.f32.gmra.mxu0 %v11701
  %v11901 = vpop.f32.mrf.mxu0
  %v11902 = vadd.f32 0.0, %v11901
  %v11903 = vpop.f32.mrf.mxu0
  %11904 = vmatprep.mubr.f32.mxu0 0.0
  %11905 = vmatmul.mubr.f32.gmra.mxu0 %v11704
  %v11906 = vpop.f32.mrf.mxu0
  %v11907 = vadd.f32 0.0, %v11906
  %v11908 = vpop.f32.mrf.mxu0
  %11909 = vmatprep.mubr.f32.mxu0 0.0
  %11910 = vmatmul.mubr.f32.gmra.mxu0 %v11707
  %v11911 = vpop.f32.mrf.mxu0
  %v11912 = vadd.f32 0.0, %v11911
  %v11913 = vpop.f32.mrf.mxu0
  %11914 = vmatprep.mubr.f32.mxu0 0.0
  %11915 = vmatmul.mubr.f32.gmra.mxu0 %v11710
  %v11916 = vpop.f32.mrf.mxu0
  %v11917 = vadd.f32 0.0, %v11916
  %v11918 = vpop.f32.mrf.mxu0
  %11919 = vmatprep.mubr.f32.mxu0 0.0
  %11920 = vmatmul.mubr.f32.gmra.mxu0 %v11713
  %v11921 = vpop.f32.mrf.mxu0
  %v11922 = vadd.f32 0.0, %v11921
  %v11923 = vpop.f32.mrf.mxu0
  %11924 = vmatprep.mubr.f32.mxu0 0.0
  %11925 = vmatmul.mubr.f32.gmra.mxu0 %v11716
  %v11926 = vpop.f32.mrf.mxu0
  %v11927 = vadd.f32 0.0, %v11926
  %v11928 = vpop.f32.mrf.mxu0
  %11929 = vmatprep.mubr.f32.mxu0 0.0
  %11930 = vmatmul.mubr.f32.gmra.mxu0 %v11719
  %v11931 = vpop.f32.mrf.mxu0
  %v11932 = vadd.f32 0.0, %v11931
  %v11933 = vpop.f32.mrf.mxu0
  %11934 = vmatprep.mubr.f32.mxu0 0.0
  %11935 = vmatmul.mubr.f32.gmra.mxu0 %v11722
  %v11936 = vpop.f32.mrf.mxu0
  %v11937 = vadd.f32 0.0, %v11936
  %v11938 = vpop.f32.mrf.mxu0
  %11939 = vmatprep.mubr.f32.mxu0 0.0
  %11940 = vmatmul.mubr.f32.gmra.mxu0 %v11725
  %v11941 = vpop.f32.mrf.mxu0
  %v11942 = vadd.f32 0.0, %v11941
  %v11943 = vpop.f32.mrf.mxu0
  %11944 = vmatprep.mubr.f32.mxu0 0.0
  %11945 = vmatmul.mubr.f32.gmra.mxu0 %v11728
  %v11946 = vpop.f32.mrf.mxu0
  %v11947 = vadd.f32 0.0, %v11946
  %v11948 = vpop.f32.mrf.mxu0
  %11949 = vmatprep.mubr.f32.mxu0 0.0
  %11950 = vmatmul.mubr.f32.gmra.mxu0 %v11731
  %v11951 = vpop.f32.mrf.mxu0
  %v11952 = vadd.f32 0.0, %v11951
  %v11953 = vpop.f32.mrf.mxu0
  %11954 = vmatprep.mubr.f32.mxu0 0.0
  %11955 = vmatmul.mubr.f32.gmra.mxu0 %v11734
  %v11956 = vpop.f32.mrf.mxu0
  %v11957 = vadd.f32 0.0, %v11956
  %v11958 = vpop.f32.mrf.mxu0
  %11959 = vmatprep.mubr.f32.mxu0 0.0
  %11960 = vmatmul.mubr.f32.gmra.mxu0 %v11737
  %v11961 = vpop.f32.mrf.mxu0
  %v11962 = vadd.f32 0.0, %v11961
  %v11963 = vpop.f32.mrf.mxu0
  %11964 = vmatprep.mubr.f32.mxu0 0.0
  %11965 = vmatmul.mubr.f32.gmra.mxu0 %v11740
  %v11966 = vpop.f32.mrf.mxu0
  %v11967 = vadd.f32 0.0, %v11966
  %v11968 = vpop.f32.mrf.mxu0
  %11969 = vmatprep.mubr.f32.mxu0 0.0
  %11970 = vmatmul.mubr.f32.gmra.mxu0 %v11743
  %v11971 = vpop.f32.mrf.mxu0
  %v11972 = vadd.f32 0.0, %v11971
  %v11973 = vpop.f32.mrf.mxu0
  %11974 = vmatprep.mubr.f32.mxu0 0.0
  %11975 = vmatmul.mubr.f32.gmra.mxu0 %v11746
  %v11976 = vpop.f32.mrf.mxu0
  %v11977 = vadd.f32 0.0, %v11976
  %v11978 = vpop.f32.mrf.mxu0
  %11979 = vmatprep.mubr.f32.mxu0 0.0
  %11980 = vmatmul.mubr.f32.gmra.mxu0 %v11749
  %v11981 = vpop.f32.mrf.mxu0
  %v11982 = vadd.f32 0.0, %v11981
  %v11983 = vpop.f32.mrf.mxu0
  %11984 = vmatprep.mubr.f32.mxu0 0.0
  %11985 = vmatmul.mubr.f32.gmra.mxu0 %v11752
  %v11986 = vpop.f32.mrf.mxu0
  %v11987 = vadd.f32 0.0, %v11986
  %v11988 = vpop.f32.mrf.mxu0
  %11989 = vmatprep.mubr.f32.mxu0 0.0
  %11990 = vmatmul.mubr.f32.gmra.mxu0 %v11755
  %v11991 = vpop.f32.mrf.mxu0
  %v11992 = vadd.f32 0.0, %v11991
  %v11993 = vpop.f32.mrf.mxu0
  %11994 = vmatprep.mubr.f32.mxu0 0.0
  %11995 = vmatmul.mubr.f32.gmra.mxu0 %v11758
  %v11996 = vpop.f32.mrf.mxu0
  %v11997 = vadd.f32 0.0, %v11996
  %v11998 = vpop.f32.mrf.mxu0
  %11999 = vmatprep.mubr.f32.mxu0 0.0
  %12000 = vmatmul.mubr.f32.gmra.mxu0 %v11761
  %v12001 = vpop.f32.mrf.mxu0
  %v12002 = vadd.f32 0.0, %v12001
  %v12003 = vpop.f32.mrf.mxu0
  %12004 = vmatprep.mubr.f32.mxu0 0.0
  %12005 = vmatmul.mubr.f32.gmra.mxu0 %v11764
  %v12006 = vpop.f32.mrf.mxu0
  %v12007 = vadd.f32 0.0, %v12006
  %v12008 = vpop.f32.mrf.mxu0
  %12009 = vmatprep.mubr.f32.mxu0 0.0
  %12010 = vmatmul.mubr.f32.gmra.mxu0 %v11767
  %v12011 = vpop.f32.mrf.mxu0
  %v12012 = vadd.f32 0.0, %v12011
  %v12013 = vpop.f32.mrf.mxu0
  %12014 = vmatprep.mubr.f32.mxu0 0.0
  %12015 = vmatmul.mubr.f32.gmra.mxu0 %v11770
  %v12016 = vpop.f32.mrf.mxu0
  %v12017 = vadd.f32 0.0, %v12016
  %v12018 = vpop.f32.mrf.mxu0
  %12019 = vmatprep.mubr.f32.mxu0 0.0
  %12020 = vmatmul.mubr.f32.gmra.mxu0 %v11773
  %v12021 = vpop.f32.mrf.mxu0
  %v12022 = vadd.f32 0.0, %v12021
  %v12023 = vpop.f32.mrf.mxu0
  %12024 = vmatprep.mubr.f32.mxu0 0.0
  %12025 = vmatmul.mubr.f32.gmra.mxu0 %v11776
  %v12026 = vpop.f32.mrf.mxu0
  %v12027 = vadd.f32 0.0, %v12026
  %v12028 = vpop.f32.mrf.mxu0
  %12029 = vmatprep.mubr.f32.mxu0 0.0
  %12030 = vmatmul.mubr.f32.gmra.mxu0 %v11779
  %v12031 = vpop.f32.mrf.mxu0
  %v12032 = vadd.f32 0.0, %v12031
  %v12033 = vpop.f32.mrf.mxu0
  %12034 = vmatprep.mubr.f32.mxu0 0.0
  %12035 = vmatmul.mubr.f32.gmra.mxu0 %v11782
  %v12036 = vpop.f32.mrf.mxu0
  %v12037 = vadd.f32 0.0, %v12036
  %v12038 = vpop.f32.mrf.mxu0
  %12039 = vmatprep.mubr.f32.mxu0 0.0
  %12040 = vmatmul.mubr.f32.gmra.mxu0 %v11785
  %v12041 = vpop.f32.mrf.mxu0
  %v12042 = vadd.f32 0.0, %v12041
  %v12043 = vpop.f32.mrf.mxu0
  %12044 = vmatprep.mubr.f32.mxu0 0.0
  %12045 = vmatmul.mubr.f32.gmra.mxu0 %v11788
  %v12046 = vpop.f32.mrf.mxu0
  %v12047 = vadd.f32 0.0, %v12046
  %v12048 = vpop.f32.mrf.mxu0
  %12049 = vmatprep.mubr.f32.mxu0 0.0
  %12050 = vmatmul.mubr.f32.gmra.mxu0 %v11791
  %v12051 = vpop.f32.mrf.mxu0
  %v12052 = vadd.f32 0.0, %v12051
  %v12053 = vpop.f32.mrf.mxu0
  %12054 = vmatprep.mubr.f32.mxu0 0.0
  %12055 = vmatmul.mubr.f32.gmra.mxu0 %v11794
  %v12056 = vpop.f32.mrf.mxu0
  %v12057 = vadd.f32 0.0, %v12056
  %v12058 = vpop.f32.mrf.mxu0
  %12059 = vmatprep.mubr.f32.mxu0 0.0
  %12060 = vmatmul.mubr.f32.gmra.mxu0 %v11797
  %v12061 = vpop.f32.mrf.mxu0
  %v12062 = vadd.f32 0.0, %v12061
  %v12063 = vpop.f32.mrf.mxu0
  %12064 = vmatprep.mubr.f32.mxu0 0.0
  %12065 = vmatmul.mubr.f32.gmra.mxu0 %v11800
  %v12066 = vpop.f32.mrf.mxu0
  %v12067 = vadd.f32 0.0, %v12066
  %v12068 = vpop.f32.mrf.mxu0
  %12069 = vdwg.mxu0
  %v12070 = vadd.f32 %v11559, %v11872
  %v12071 = vadd.f32 %v11560, %v11877
  %v12072 = vadd.f32 %v11561, %v11882
  %v12073 = vadd.f32 %v11562, %v11887
  %v12074 = vadd.f32 %v11563, %v11892
  %v12075 = vadd.f32 %v11564, %v11897
  %v12076 = vadd.f32 %v11565, %v11902
  %v12077 = vadd.f32 %v11566, %v11907
  %v12078 = vadd.f32 %v11567, %v11912
  %v12079 = vadd.f32 %v11568, %v11917
  %v12080 = vadd.f32 %v11569, %v11922
  %v12081 = vadd.f32 %v11570, %v11927
  %v12082 = vadd.f32 %v11571, %v11932
  %v12083 = vadd.f32 %v11572, %v11937
  %v12084 = vadd.f32 %v11573, %v11942
  %v12085 = vadd.f32 %v11574, %v11947
  %v12086 = vadd.f32 %v11575, %v11952
  %v12087 = vadd.f32 %v11576, %v11957
  %v12088 = vadd.f32 %v11577, %v11962
  %v12089 = vadd.f32 %v11578, %v11967
  %v12090 = vadd.f32 %v11579, %v11972
  %v12091 = vadd.f32 %v11580, %v11977
  %v12092 = vadd.f32 %v11581, %v11982
  %v12093 = vadd.f32 %v11582, %v11987
  %v12094 = vadd.f32 %v11583, %v11992
  %v12095 = vadd.f32 %v11584, %v11997
  %v12096 = vadd.f32 %v11585, %v12002
  %v12097 = vadd.f32 %v11586, %v12007
  %v12098 = vadd.f32 %v11587, %v12012
  %v12099 = vadd.f32 %v11588, %v12017
  %v12100 = vadd.f32 %v11589, %v12022
  %v12101 = vadd.f32 %v11590, %v12027
  %v12102 = vadd.f32 %v11591, %v12032
  %v12103 = vadd.f32 %v11592, %v12037
  %v12104 = vadd.f32 %v11593, %v12042
  %v12105 = vadd.f32 %v11594, %v12047
  %v12106 = vadd.f32 %v11595, %v12052
  %v12107 = vadd.f32 %v11596, %v12057
  %v12108 = vadd.f32 %v11597, %v12062
  %v12109 = vadd.f32 %v11598, %v12067
  %v12110 = vrot.slane %v8652, 7
  %v12111 = vrot.slane %v8653, 7
  %v12112 = vrot.slane %v8654, 7
  %v12113 = vrot.slane %v8655, 7
  %v12114 = vrot.slane %v8656, 7
  %v12115 = vrot.slane %v8657, 7
  %v12116 = vrot.slane %v8658, 7
  %v12117 = vrot.slane %v8659, 7
  %v12118 = vrot.slane %v8660, 7
  %v12119 = vrot.slane %v8661, 7
  %v12120 = vrot.slane %v8662, 7
  %v12121 = vrot.slane %v8663, 7
  %v12122 = vrot.slane %v8664, 7
  %v12123 = vrot.slane %v8665, 7
  %v12124 = vrot.slane %v8666, 7
  %v12125 = vrot.slane %v8667, 7
  %v12126 = vrot.slane %v8668, 7
  %v12127 = vrot.slane %v8669, 7
  %v12128 = vrot.slane %v8670, 7
  %v12129 = vrot.slane %v8671, 7
  %v12130 = vrot.slane %v8672, 7
  %v12131 = vrot.slane %v8673, 7
  %v12132 = vrot.slane %v8674, 7
  %v12133 = vrot.slane %v8675, 7
  %v12134 = vrot.slane %v8676, 7
  %v12135 = vrot.slane %v8677, 7
  %v12136 = vrot.slane %v8678, 7
  %v12137 = vrot.slane %v8679, 7
  %v12138 = vrot.slane %v8680, 7
  %v12139 = vrot.slane %v8681, 7
  %v12140 = vrot.slane %v8682, 7
  %v12141 = vrot.slane %v8683, 7
  %v12142 = vrot.slane %v8684, 7
  %v12143 = vrot.slane %v8685, 7
  %v12144 = vrot.slane %v8686, 7
  %v12145 = vrot.slane %v8687, 7
  %v12146 = vrot.slane %v8688, 7
  %v12147 = vrot.slane %v8689, 7
  %v12148 = vrot.slane %v8690, 7
  %v12149 = vrot.slane %v8691, 7
  %v12150 = vsel %vm3503, %v12148, %v12149
  %v12151 = vsel %vm3503, %v12147, %v12148
  %v12152 = vsel %vm3503, %v12146, %v12147
  %v12153 = vsel %vm3503, %v12145, %v12146
  %v12154 = vsel %vm3503, %v12144, %v12145
  %v12155 = vsel %vm3503, %v12143, %v12144
  %v12156 = vsel %vm3503, %v12142, %v12143
  %v12157 = vsel %vm3503, %v12141, %v12142
  %v12158 = vsel %vm3503, %v12140, %v12141
  %v12159 = vsel %vm3503, %v12139, %v12140
  %v12160 = vsel %vm3503, %v12138, %v12139
  %v12161 = vsel %vm3503, %v12137, %v12138
  %v12162 = vsel %vm3503, %v12136, %v12137
  %v12163 = vsel %vm3503, %v12135, %v12136
  %v12164 = vsel %vm3503, %v12134, %v12135
  %v12165 = vsel %vm3503, %v12133, %v12134
  %v12166 = vsel %vm3503, %v12132, %v12133
  %v12167 = vsel %vm3503, %v12131, %v12132
  %v12168 = vsel %vm3503, %v12130, %v12131
  %v12169 = vsel %vm3503, %v12129, %v12130
  %v12170 = vsel %vm3503, %v12128, %v12129
  %v12171 = vsel %vm3503, %v12127, %v12128
  %v12172 = vsel %vm3503, %v12126, %v12127
  %v12173 = vsel %vm3503, %v12125, %v12126
  %v12174 = vsel %vm3503, %v12124, %v12125
  %v12175 = vsel %vm3503, %v12123, %v12124
  %v12176 = vsel %vm3503, %v12122, %v12123
  %v12177 = vsel %vm3503, %v12121, %v12122
  %v12178 = vsel %vm3503, %v12120, %v12121
  %v12179 = vsel %vm3503, %v12119, %v12120
  %v12180 = vsel %vm3503, %v12118, %v12119
  %v12181 = vsel %vm3503, %v12117, %v12118
  %v12182 = vsel %vm3503, %v12116, %v12117
  %v12183 = vsel %vm3503, %v12115, %v12116
  %v12184 = vsel %vm3503, %v12114, %v12115
  %v12185 = vsel %vm3503, %v12113, %v12114
  %v12186 = vsel %vm3503, %v12112, %v12113
  %v12187 = vsel %vm3503, %v12111, %v12112
  %v12188 = vsel %vm3503, %v12110, %v12111
  %v12189 = vsel %vm3503, %v12149, %v12110
  %s12190 = scalar_lea.vmem %s5, 112
  %v12191 = vld [vmem:[%s12190] sm:$0xff]
  %v12192 = vld [vmem:[%s12190 + $0x8] sm:$0x3]
  %v12194 = vsel %vm8777, %v12188, 0
  %v12197 = vsel %vm8777, %v12187, 0
  %v12200 = vsel %vm8777, %v12186, 0
  %v12203 = vsel %vm8777, %v12185, 0
  %v12206 = vsel %vm8777, %v12184, 0
  %v12209 = vsel %vm8777, %v12183, 0
  %v12212 = vsel %vm8777, %v12182, 0
  %v12215 = vsel %vm8777, %v12181, 0
  %v12218 = vsel %vm8777, %v12180, 0
  %v12221 = vsel %vm8777, %v12179, 0
  %v12224 = vsel %vm8777, %v12178, 0
  %v12227 = vsel %vm8777, %v12177, 0
  %v12230 = vsel %vm8777, %v12176, 0
  %v12233 = vsel %vm8777, %v12175, 0
  %v12236 = vsel %vm8777, %v12174, 0
  %v12239 = vsel %vm8777, %v12173, 0
  %v12242 = vsel %vm8777, %v12172, 0
  %v12245 = vsel %vm8777, %v12171, 0
  %v12248 = vsel %vm8777, %v12170, 0
  %v12251 = vsel %vm8777, %v12169, 0
  %v12254 = vsel %vm8777, %v12168, 0
  %v12257 = vsel %vm8777, %v12167, 0
  %v12260 = vsel %vm8777, %v12166, 0
  %v12263 = vsel %vm8777, %v12165, 0
  %v12266 = vsel %vm8777, %v12164, 0
  %v12269 = vsel %vm8777, %v12163, 0
  %v12272 = vsel %vm8777, %v12162, 0
  %v12275 = vsel %vm8777, %v12161, 0
  %v12278 = vsel %vm8777, %v12160, 0
  %v12281 = vsel %vm8777, %v12159, 0
  %v12284 = vsel %vm8777, %v12158, 0
  %v12287 = vsel %vm8777, %v12157, 0
  %v12290 = vsel %vm8777, %v12156, 0
  %v12293 = vsel %vm8777, %v12155, 0
  %v12296 = vsel %vm8777, %v12154, 0
  %v12299 = vsel %vm8777, %v12153, 0
  %v12302 = vsel %vm8777, %v12152, 0
  %v12305 = vsel %vm8777, %v12151, 0
  %v12308 = vsel %vm8777, %v12150, 0
  %v12311 = vsel %vm8777, %v12189, 0
  %v12314 = vsel %vm8898, %v12192, 0
  %12316 = vmatprep.subr.mxu0 0.0
  %12317 = vmatpush1.msra.mxu0 0.0
  %12318 = vmatprep.subr.mxu0 0.0
  %12319 = vmatpush1.msra.mxu0 0.0
  %12320 = vmatprep.subr.mxu0 0.0
  %12321 = vmatpush1.msra.mxu0 0.0
  %12322 = vmatprep.subr.mxu0 0.0
  %12323 = vmatpush1.msra.mxu0 0.0
  %12324 = vmatprep.subr.mxu0 0.0
  %12325 = vmatpush1.msra.mxu0 0.0
  %12326 = vmatprep.subr.mxu0 0.0
  %12327 = vmatpush1.msra.mxu0 0.0
  %12328 = vmatprep.subr.mxu0 0.0
  %12329 = vmatpush1.msra.mxu0 0.0
  %12330 = vmatprep.subr.mxu0 0.0
  %12331 = vmatpush1.msra.mxu0 0.0
  %12332 = vmatprep.subr.mxu0 0.0
  %12333 = vmatpush1.msra.mxu0 0.0
  %12334 = vmatprep.subr.mxu0 0.0
  %12335 = vmatpush1.msra.mxu0 0.0
  %12336 = vmatprep.subr.mxu0 0.0
  %12337 = vmatpush1.msra.mxu0 0.0
  %12338 = vmatprep.subr.mxu0 0.0
  %12339 = vmatpush1.msra.mxu0 0.0
  %12340 = vmatprep.subr.mxu0 0.0
  %12341 = vmatpush1.msra.mxu0 0.0
  %12342 = vmatprep.subr.mxu0 0.0
  %12343 = vmatpush1.msra.mxu0 0.0
  %12344 = vmatprep.subr.mxu0 0.0
  %12345 = vmatpush1.msra.mxu0 %v12314
  %12346 = vmatprep.subr.mxu0 0.0
  %12347 = vmatpush1.msra.mxu0 %v12191
  %12348 = vmatprep.subr.mxu0 0.0
  %12349 = vmatpush2.msra.mxu0 0.0
  %12350 = vmatprep.subr.mxu0 0.0
  %12351 = vmatpush2.msra.mxu0 0.0
  %12352 = vmatprep.subr.mxu0 0.0
  %12353 = vmatpush2.msra.mxu0 0.0
  %12354 = vmatprep.subr.mxu0 0.0
  %12355 = vmatpush2.msra.mxu0 0.0
  %12356 = vmatprep.subr.mxu0 0.0
  %12357 = vmatpush2.msra.mxu0 0.0
  %12358 = vmatprep.subr.mxu0 0.0
  %12359 = vmatpush2.msra.mxu0 0.0
  %12360 = vmatprep.subr.mxu0 0.0
  %12361 = vmatpush2.msra.mxu0 0.0
  %12362 = vmatprep.subr.mxu0 0.0
  %12363 = vmatpush2.msra.mxu0 0.0
  %12364 = vmatprep.subr.mxu0 0.0
  %12365 = vmatpush2.msra.mxu0 0.0
  %12366 = vmatprep.subr.mxu0 0.0
  %12367 = vmatpush2.msra.mxu0 0.0
  %12368 = vmatprep.subr.mxu0 0.0
  %12369 = vmatpush2.msra.mxu0 0.0
  %12370 = vmatprep.subr.mxu0 0.0
  %12371 = vmatpush2.msra.mxu0 0.0
  %12372 = vmatprep.subr.mxu0 0.0
  %12373 = vmatpush2.msra.mxu0 0.0
  %12374 = vmatprep.subr.mxu0 0.0
  %12375 = vmatpush2.msra.mxu0 0.0
  %12376 = vmatprep.subr.mxu0 0.0
  %12377 = vmatpush2.msra.mxu0 0.0
  %12378 = vmatprep.subr.mxu0 0.0
  %12379 = vmatpush2.msra.mxu0 0.0
  %12380 = vmatprep.mubr.f32.mxu0 0.0
  %12381 = vmatmul.mubr.f32.gmra.mxu0 %v12194
  %v12382 = vpop.f32.mrf.mxu0
  %v12383 = vadd.f32 0.0, %v12382
  %v12384 = vpop.f32.mrf.mxu0
  %12385 = vmatprep.mubr.f32.mxu0 0.0
  %12386 = vmatmul.mubr.f32.gmra.mxu0 %v12197
  %v12387 = vpop.f32.mrf.mxu0
  %v12388 = vadd.f32 0.0, %v12387
  %v12389 = vpop.f32.mrf.mxu0
  %12390 = vmatprep.mubr.f32.mxu0 0.0
  %12391 = vmatmul.mubr.f32.gmra.mxu0 %v12200
  %v12392 = vpop.f32.mrf.mxu0
  %v12393 = vadd.f32 0.0, %v12392
  %v12394 = vpop.f32.mrf.mxu0
  %12395 = vmatprep.mubr.f32.mxu0 0.0
  %12396 = vmatmul.mubr.f32.gmra.mxu0 %v12203
  %v12397 = vpop.f32.mrf.mxu0
  %v12398 = vadd.f32 0.0, %v12397
  %v12399 = vpop.f32.mrf.mxu0
  %12400 = vmatprep.mubr.f32.mxu0 0.0
  %12401 = vmatmul.mubr.f32.gmra.mxu0 %v12206
  %v12402 = vpop.f32.mrf.mxu0
  %v12403 = vadd.f32 0.0, %v12402
  %v12404 = vpop.f32.mrf.mxu0
  %12405 = vmatprep.mubr.f32.mxu0 0.0
  %12406 = vmatmul.mubr.f32.gmra.mxu0 %v12209
  %v12407 = vpop.f32.mrf.mxu0
  %v12408 = vadd.f32 0.0, %v12407
  %v12409 = vpop.f32.mrf.mxu0
  %12410 = vmatprep.mubr.f32.mxu0 0.0
  %12411 = vmatmul.mubr.f32.gmra.mxu0 %v12212
  %v12412 = vpop.f32.mrf.mxu0
  %v12413 = vadd.f32 0.0, %v12412
  %v12414 = vpop.f32.mrf.mxu0
  %12415 = vmatprep.mubr.f32.mxu0 0.0
  %12416 = vmatmul.mubr.f32.gmra.mxu0 %v12215
  %v12417 = vpop.f32.mrf.mxu0
  %v12418 = vadd.f32 0.0, %v12417
  %v12419 = vpop.f32.mrf.mxu0
  %12420 = vmatprep.mubr.f32.mxu0 0.0
  %12421 = vmatmul.mubr.f32.gmra.mxu0 %v12218
  %v12422 = vpop.f32.mrf.mxu0
  %v12423 = vadd.f32 0.0, %v12422
  %v12424 = vpop.f32.mrf.mxu0
  %12425 = vmatprep.mubr.f32.mxu0 0.0
  %12426 = vmatmul.mubr.f32.gmra.mxu0 %v12221
  %v12427 = vpop.f32.mrf.mxu0
  %v12428 = vadd.f32 0.0, %v12427
  %v12429 = vpop.f32.mrf.mxu0
  %12430 = vmatprep.mubr.f32.mxu0 0.0
  %12431 = vmatmul.mubr.f32.gmra.mxu0 %v12224
  %v12432 = vpop.f32.mrf.mxu0
  %v12433 = vadd.f32 0.0, %v12432
  %v12434 = vpop.f32.mrf.mxu0
  %12435 = vmatprep.mubr.f32.mxu0 0.0
  %12436 = vmatmul.mubr.f32.gmra.mxu0 %v12227
  %v12437 = vpop.f32.mrf.mxu0
  %v12438 = vadd.f32 0.0, %v12437
  %v12439 = vpop.f32.mrf.mxu0
  %12440 = vmatprep.mubr.f32.mxu0 0.0
  %12441 = vmatmul.mubr.f32.gmra.mxu0 %v12230
  %v12442 = vpop.f32.mrf.mxu0
  %v12443 = vadd.f32 0.0, %v12442
  %v12444 = vpop.f32.mrf.mxu0
  %12445 = vmatprep.mubr.f32.mxu0 0.0
  %12446 = vmatmul.mubr.f32.gmra.mxu0 %v12233
  %v12447 = vpop.f32.mrf.mxu0
  %v12448 = vadd.f32 0.0, %v12447
  %v12449 = vpop.f32.mrf.mxu0
  %12450 = vmatprep.mubr.f32.mxu0 0.0
  %12451 = vmatmul.mubr.f32.gmra.mxu0 %v12236
  %v12452 = vpop.f32.mrf.mxu0
  %v12453 = vadd.f32 0.0, %v12452
  %v12454 = vpop.f32.mrf.mxu0
  %12455 = vmatprep.mubr.f32.mxu0 0.0
  %12456 = vmatmul.mubr.f32.gmra.mxu0 %v12239
  %v12457 = vpop.f32.mrf.mxu0
  %v12458 = vadd.f32 0.0, %v12457
  %v12459 = vpop.f32.mrf.mxu0
  %12460 = vmatprep.mubr.f32.mxu0 0.0
  %12461 = vmatmul.mubr.f32.gmra.mxu0 %v12242
  %v12462 = vpop.f32.mrf.mxu0
  %v12463 = vadd.f32 0.0, %v12462
  %v12464 = vpop.f32.mrf.mxu0
  %12465 = vmatprep.mubr.f32.mxu0 0.0
  %12466 = vmatmul.mubr.f32.gmra.mxu0 %v12245
  %v12467 = vpop.f32.mrf.mxu0
  %v12468 = vadd.f32 0.0, %v12467
  %v12469 = vpop.f32.mrf.mxu0
  %12470 = vmatprep.mubr.f32.mxu0 0.0
  %12471 = vmatmul.mubr.f32.gmra.mxu0 %v12248
  %v12472 = vpop.f32.mrf.mxu0
  %v12473 = vadd.f32 0.0, %v12472
  %v12474 = vpop.f32.mrf.mxu0
  %12475 = vmatprep.mubr.f32.mxu0 0.0
  %12476 = vmatmul.mubr.f32.gmra.mxu0 %v12251
  %v12477 = vpop.f32.mrf.mxu0
  %v12478 = vadd.f32 0.0, %v12477
  %v12479 = vpop.f32.mrf.mxu0
  %12480 = vmatprep.mubr.f32.mxu0 0.0
  %12481 = vmatmul.mubr.f32.gmra.mxu0 %v12254
  %v12482 = vpop.f32.mrf.mxu0
  %v12483 = vadd.f32 0.0, %v12482
  %v12484 = vpop.f32.mrf.mxu0
  %12485 = vmatprep.mubr.f32.mxu0 0.0
  %12486 = vmatmul.mubr.f32.gmra.mxu0 %v12257
  %v12487 = vpop.f32.mrf.mxu0
  %v12488 = vadd.f32 0.0, %v12487
  %v12489 = vpop.f32.mrf.mxu0
  %12490 = vmatprep.mubr.f32.mxu0 0.0
  %12491 = vmatmul.mubr.f32.gmra.mxu0 %v12260
  %v12492 = vpop.f32.mrf.mxu0
  %v12493 = vadd.f32 0.0, %v12492
  %v12494 = vpop.f32.mrf.mxu0
  %12495 = vmatprep.mubr.f32.mxu0 0.0
  %12496 = vmatmul.mubr.f32.gmra.mxu0 %v12263
  %v12497 = vpop.f32.mrf.mxu0
  %v12498 = vadd.f32 0.0, %v12497
  %v12499 = vpop.f32.mrf.mxu0
  %12500 = vmatprep.mubr.f32.mxu0 0.0
  %12501 = vmatmul.mubr.f32.gmra.mxu0 %v12266
  %v12502 = vpop.f32.mrf.mxu0
  %v12503 = vadd.f32 0.0, %v12502
  %v12504 = vpop.f32.mrf.mxu0
  %12505 = vmatprep.mubr.f32.mxu0 0.0
  %12506 = vmatmul.mubr.f32.gmra.mxu0 %v12269
  %v12507 = vpop.f32.mrf.mxu0
  %v12508 = vadd.f32 0.0, %v12507
  %v12509 = vpop.f32.mrf.mxu0
  %12510 = vmatprep.mubr.f32.mxu0 0.0
  %12511 = vmatmul.mubr.f32.gmra.mxu0 %v12272
  %v12512 = vpop.f32.mrf.mxu0
  %v12513 = vadd.f32 0.0, %v12512
  %v12514 = vpop.f32.mrf.mxu0
  %12515 = vmatprep.mubr.f32.mxu0 0.0
  %12516 = vmatmul.mubr.f32.gmra.mxu0 %v12275
  %v12517 = vpop.f32.mrf.mxu0
  %v12518 = vadd.f32 0.0, %v12517
  %v12519 = vpop.f32.mrf.mxu0
  %12520 = vmatprep.mubr.f32.mxu0 0.0
  %12521 = vmatmul.mubr.f32.gmra.mxu0 %v12278
  %v12522 = vpop.f32.mrf.mxu0
  %v12523 = vadd.f32 0.0, %v12522
  %v12524 = vpop.f32.mrf.mxu0
  %12525 = vmatprep.mubr.f32.mxu0 0.0
  %12526 = vmatmul.mubr.f32.gmra.mxu0 %v12281
  %v12527 = vpop.f32.mrf.mxu0
  %v12528 = vadd.f32 0.0, %v12527
  %v12529 = vpop.f32.mrf.mxu0
  %12530 = vmatprep.mubr.f32.mxu0 0.0
  %12531 = vmatmul.mubr.f32.gmra.mxu0 %v12284
  %v12532 = vpop.f32.mrf.mxu0
  %v12533 = vadd.f32 0.0, %v12532
  %v12534 = vpop.f32.mrf.mxu0
  %12535 = vmatprep.mubr.f32.mxu0 0.0
  %12536 = vmatmul.mubr.f32.gmra.mxu0 %v12287
  %v12537 = vpop.f32.mrf.mxu0
  %v12538 = vadd.f32 0.0, %v12537
  %v12539 = vpop.f32.mrf.mxu0
  %12540 = vmatprep.mubr.f32.mxu0 0.0
  %12541 = vmatmul.mubr.f32.gmra.mxu0 %v12290
  %v12542 = vpop.f32.mrf.mxu0
  %v12543 = vadd.f32 0.0, %v12542
  %v12544 = vpop.f32.mrf.mxu0
  %12545 = vmatprep.mubr.f32.mxu0 0.0
  %12546 = vmatmul.mubr.f32.gmra.mxu0 %v12293
  %v12547 = vpop.f32.mrf.mxu0
  %v12548 = vadd.f32 0.0, %v12547
  %v12549 = vpop.f32.mrf.mxu0
  %12550 = vmatprep.mubr.f32.mxu0 0.0
  %12551 = vmatmul.mubr.f32.gmra.mxu0 %v12296
  %v12552 = vpop.f32.mrf.mxu0
  %v12553 = vadd.f32 0.0, %v12552
  %v12554 = vpop.f32.mrf.mxu0
  %12555 = vmatprep.mubr.f32.mxu0 0.0
  %12556 = vmatmul.mubr.f32.gmra.mxu0 %v12299
  %v12557 = vpop.f32.mrf.mxu0
  %v12558 = vadd.f32 0.0, %v12557
  %v12559 = vpop.f32.mrf.mxu0
  %12560 = vmatprep.mubr.f32.mxu0 0.0
  %12561 = vmatmul.mubr.f32.gmra.mxu0 %v12302
  %v12562 = vpop.f32.mrf.mxu0
  %v12563 = vadd.f32 0.0, %v12562
  %v12564 = vpop.f32.mrf.mxu0
  %12565 = vmatprep.mubr.f32.mxu0 0.0
  %12566 = vmatmul.mubr.f32.gmra.mxu0 %v12305
  %v12567 = vpop.f32.mrf.mxu0
  %v12568 = vadd.f32 0.0, %v12567
  %v12569 = vpop.f32.mrf.mxu0
  %12570 = vmatprep.mubr.f32.mxu0 0.0
  %12571 = vmatmul.mubr.f32.gmra.mxu0 %v12308
  %v12572 = vpop.f32.mrf.mxu0
  %v12573 = vadd.f32 0.0, %v12572
  %v12574 = vpop.f32.mrf.mxu0
  %12575 = vmatprep.mubr.f32.mxu0 0.0
  %12576 = vmatmul.mubr.f32.gmra.mxu0 %v12311
  %v12577 = vpop.f32.mrf.mxu0
  %v12578 = vadd.f32 0.0, %v12577
  %v12579 = vpop.f32.mrf.mxu0
  %12580 = vdwg.mxu0
  %v12581 = vadd.f32 %v12070, %v12383
  %v12582 = vadd.f32 %v12071, %v12388
  %v12583 = vadd.f32 %v12072, %v12393
  %v12584 = vadd.f32 %v12073, %v12398
  %v12585 = vadd.f32 %v12074, %v12403
  %v12586 = vadd.f32 %v12075, %v12408
  %v12587 = vadd.f32 %v12076, %v12413
  %v12588 = vadd.f32 %v12077, %v12418
  %v12589 = vadd.f32 %v12078, %v12423
  %v12590 = vadd.f32 %v12079, %v12428
  %v12591 = vadd.f32 %v12080, %v12433
  %v12592 = vadd.f32 %v12081, %v12438
  %v12593 = vadd.f32 %v12082, %v12443
  %v12594 = vadd.f32 %v12083, %v12448
  %v12595 = vadd.f32 %v12084, %v12453
  %v12596 = vadd.f32 %v12085, %v12458
  %v12597 = vadd.f32 %v12086, %v12463
  %v12598 = vadd.f32 %v12087, %v12468
  %v12599 = vadd.f32 %v12088, %v12473
  %v12600 = vadd.f32 %v12089, %v12478
  %v12601 = vadd.f32 %v12090, %v12483
  %v12602 = vadd.f32 %v12091, %v12488
  %v12603 = vadd.f32 %v12092, %v12493
  %v12604 = vadd.f32 %v12093, %v12498
  %v12605 = vadd.f32 %v12094, %v12503
  %v12606 = vadd.f32 %v12095, %v12508
  %v12607 = vadd.f32 %v12096, %v12513
  %v12608 = vadd.f32 %v12097, %v12518
  %v12609 = vadd.f32 %v12098, %v12523
  %v12610 = vadd.f32 %v12099, %v12528
  %v12611 = vadd.f32 %v12100, %v12533
  %v12612 = vadd.f32 %v12101, %v12538
  %v12613 = vadd.f32 %v12102, %v12543
  %v12614 = vadd.f32 %v12103, %v12548
  %v12615 = vadd.f32 %v12104, %v12553
  %v12616 = vadd.f32 %v12105, %v12558
  %v12617 = vadd.f32 %v12106, %v12563
  %v12618 = vadd.f32 %v12107, %v12568
  %v12619 = vadd.f32 %v12108, %v12573
  %v12620 = vadd.f32 %v12109, %v12578
  %s12621 = scalar_lea.vmem %s5, 128
  %v12622 = vld [vmem:[%s12621] sm:$0xff]
  %v12623 = vld [vmem:[%s12621 + $0x8] sm:$0x3]
  %v12625 = vsel %vm8898, %v12623, 0
  %12627 = vmatprep.subr.mxu0 0.0
  %12628 = vmatpush1.msra.mxu0 0.0
  %12629 = vmatprep.subr.mxu0 0.0
  %12630 = vmatpush1.msra.mxu0 0.0
  %12631 = vmatprep.subr.mxu0 0.0
  %12632 = vmatpush1.msra.mxu0 0.0
  %12633 = vmatprep.subr.mxu0 0.0
  %12634 = vmatpush1.msra.mxu0 0.0
  %12635 = vmatprep.subr.mxu0 0.0
  %12636 = vmatpush1.msra.mxu0 0.0
  %12637 = vmatprep.subr.mxu0 0.0
  %12638 = vmatpush1.msra.mxu0 0.0
  %12639 = vmatprep.subr.mxu0 0.0
  %12640 = vmatpush1.msra.mxu0 0.0
  %12641 = vmatprep.subr.mxu0 0.0
  %12642 = vmatpush1.msra.mxu0 0.0
  %12643 = vmatprep.subr.mxu0 0.0
  %12644 = vmatpush1.msra.mxu0 0.0
  %12645 = vmatprep.subr.mxu0 0.0
  %12646 = vmatpush1.msra.mxu0 0.0
  %12647 = vmatprep.subr.mxu0 0.0
  %12648 = vmatpush1.msra.mxu0 0.0
  %12649 = vmatprep.subr.mxu0 0.0
  %12650 = vmatpush1.msra.mxu0 0.0
  %12651 = vmatprep.subr.mxu0 0.0
  %12652 = vmatpush1.msra.mxu0 0.0
  %12653 = vmatprep.subr.mxu0 0.0
  %12654 = vmatpush1.msra.mxu0 0.0
  %12655 = vmatprep.subr.mxu0 0.0
  %12656 = vmatpush1.msra.mxu0 %v12625
  %12657 = vmatprep.subr.mxu0 0.0
  %12658 = vmatpush1.msra.mxu0 %v12622
  %12659 = vmatprep.subr.mxu0 0.0
  %12660 = vmatpush2.msra.mxu0 0.0
  %12661 = vmatprep.subr.mxu0 0.0
  %12662 = vmatpush2.msra.mxu0 0.0
  %12663 = vmatprep.subr.mxu0 0.0
  %12664 = vmatpush2.msra.mxu0 0.0
  %12665 = vmatprep.subr.mxu0 0.0
  %12666 = vmatpush2.msra.mxu0 0.0
  %12667 = vmatprep.subr.mxu0 0.0
  %12668 = vmatpush2.msra.mxu0 0.0
  %12669 = vmatprep.subr.mxu0 0.0
  %12670 = vmatpush2.msra.mxu0 0.0
  %12671 = vmatprep.subr.mxu0 0.0
  %12672 = vmatpush2.msra.mxu0 0.0
  %12673 = vmatprep.subr.mxu0 0.0
  %12674 = vmatpush2.msra.mxu0 0.0
  %12675 = vmatprep.subr.mxu0 0.0
  %12676 = vmatpush2.msra.mxu0 0.0
  %12677 = vmatprep.subr.mxu0 0.0
  %12678 = vmatpush2.msra.mxu0 0.0
  %12679 = vmatprep.subr.mxu0 0.0
  %12680 = vmatpush2.msra.mxu0 0.0
  %12681 = vmatprep.subr.mxu0 0.0
  %12682 = vmatpush2.msra.mxu0 0.0
  %12683 = vmatprep.subr.mxu0 0.0
  %12684 = vmatpush2.msra.mxu0 0.0
  %12685 = vmatprep.subr.mxu0 0.0
  %12686 = vmatpush2.msra.mxu0 0.0
  %12687 = vmatprep.subr.mxu0 0.0
  %12688 = vmatpush2.msra.mxu0 0.0
  %12689 = vmatprep.subr.mxu0 0.0
  %12690 = vmatpush2.msra.mxu0 0.0
  %12691 = vmatprep.mubr.f32.mxu0 0.0
  %12692 = vmatmul.mubr.f32.gmra.mxu0 %v9171
  %v12693 = vpop.f32.mrf.mxu0
  %v12694 = vadd.f32 0.0, %v12693
  %v12695 = vpop.f32.mrf.mxu0
  %12696 = vmatprep.mubr.f32.mxu0 0.0
  %12697 = vmatmul.mubr.f32.gmra.mxu0 %v9174
  %v12698 = vpop.f32.mrf.mxu0
  %v12699 = vadd.f32 0.0, %v12698
  %v12700 = vpop.f32.mrf.mxu0
  %12701 = vmatprep.mubr.f32.mxu0 0.0
  %12702 = vmatmul.mubr.f32.gmra.mxu0 %v9177
  %v12703 = vpop.f32.mrf.mxu0
  %v12704 = vadd.f32 0.0, %v12703
  %v12705 = vpop.f32.mrf.mxu0
  %12706 = vmatprep.mubr.f32.mxu0 0.0
  %12707 = vmatmul.mubr.f32.gmra.mxu0 %v9180
  %v12708 = vpop.f32.mrf.mxu0
  %v12709 = vadd.f32 0.0, %v12708
  %v12710 = vpop.f32.mrf.mxu0
  %12711 = vmatprep.mubr.f32.mxu0 0.0
  %12712 = vmatmul.mubr.f32.gmra.mxu0 %v9183
  %v12713 = vpop.f32.mrf.mxu0
  %v12714 = vadd.f32 0.0, %v12713
  %v12715 = vpop.f32.mrf.mxu0
  %12716 = vmatprep.mubr.f32.mxu0 0.0
  %12717 = vmatmul.mubr.f32.gmra.mxu0 %v9186
  %v12718 = vpop.f32.mrf.mxu0
  %v12719 = vadd.f32 0.0, %v12718
  %v12720 = vpop.f32.mrf.mxu0
  %12721 = vmatprep.mubr.f32.mxu0 0.0
  %12722 = vmatmul.mubr.f32.gmra.mxu0 %v9189
  %v12723 = vpop.f32.mrf.mxu0
  %v12724 = vadd.f32 0.0, %v12723
  %v12725 = vpop.f32.mrf.mxu0
  %12726 = vmatprep.mubr.f32.mxu0 0.0
  %12727 = vmatmul.mubr.f32.gmra.mxu0 %v9192
  %v12728 = vpop.f32.mrf.mxu0
  %v12729 = vadd.f32 0.0, %v12728
  %v12730 = vpop.f32.mrf.mxu0
  %12731 = vmatprep.mubr.f32.mxu0 0.0
  %12732 = vmatmul.mubr.f32.gmra.mxu0 %v9195
  %v12733 = vpop.f32.mrf.mxu0
  %v12734 = vadd.f32 0.0, %v12733
  %v12735 = vpop.f32.mrf.mxu0
  %12736 = vmatprep.mubr.f32.mxu0 0.0
  %12737 = vmatmul.mubr.f32.gmra.mxu0 %v9198
  %v12738 = vpop.f32.mrf.mxu0
  %v12739 = vadd.f32 0.0, %v12738
  %v12740 = vpop.f32.mrf.mxu0
  %12741 = vmatprep.mubr.f32.mxu0 0.0
  %12742 = vmatmul.mubr.f32.gmra.mxu0 %v9201
  %v12743 = vpop.f32.mrf.mxu0
  %v12744 = vadd.f32 0.0, %v12743
  %v12745 = vpop.f32.mrf.mxu0
  %12746 = vmatprep.mubr.f32.mxu0 0.0
  %12747 = vmatmul.mubr.f32.gmra.mxu0 %v9204
  %v12748 = vpop.f32.mrf.mxu0
  %v12749 = vadd.f32 0.0, %v12748
  %v12750 = vpop.f32.mrf.mxu0
  %12751 = vmatprep.mubr.f32.mxu0 0.0
  %12752 = vmatmul.mubr.f32.gmra.mxu0 %v9207
  %v12753 = vpop.f32.mrf.mxu0
  %v12754 = vadd.f32 0.0, %v12753
  %v12755 = vpop.f32.mrf.mxu0
  %12756 = vmatprep.mubr.f32.mxu0 0.0
  %12757 = vmatmul.mubr.f32.gmra.mxu0 %v9210
  %v12758 = vpop.f32.mrf.mxu0
  %v12759 = vadd.f32 0.0, %v12758
  %v12760 = vpop.f32.mrf.mxu0
  %12761 = vmatprep.mubr.f32.mxu0 0.0
  %12762 = vmatmul.mubr.f32.gmra.mxu0 %v9213
  %v12763 = vpop.f32.mrf.mxu0
  %v12764 = vadd.f32 0.0, %v12763
  %v12765 = vpop.f32.mrf.mxu0
  %12766 = vmatprep.mubr.f32.mxu0 0.0
  %12767 = vmatmul.mubr.f32.gmra.mxu0 %v9216
  %v12768 = vpop.f32.mrf.mxu0
  %v12769 = vadd.f32 0.0, %v12768
  %v12770 = vpop.f32.mrf.mxu0
  %12771 = vmatprep.mubr.f32.mxu0 0.0
  %12772 = vmatmul.mubr.f32.gmra.mxu0 %v9219
  %v12773 = vpop.f32.mrf.mxu0
  %v12774 = vadd.f32 0.0, %v12773
  %v12775 = vpop.f32.mrf.mxu0
  %12776 = vmatprep.mubr.f32.mxu0 0.0
  %12777 = vmatmul.mubr.f32.gmra.mxu0 %v9222
  %v12778 = vpop.f32.mrf.mxu0
  %v12779 = vadd.f32 0.0, %v12778
  %v12780 = vpop.f32.mrf.mxu0
  %12781 = vmatprep.mubr.f32.mxu0 0.0
  %12782 = vmatmul.mubr.f32.gmra.mxu0 %v9225
  %v12783 = vpop.f32.mrf.mxu0
  %v12784 = vadd.f32 0.0, %v12783
  %v12785 = vpop.f32.mrf.mxu0
  %12786 = vmatprep.mubr.f32.mxu0 0.0
  %12787 = vmatmul.mubr.f32.gmra.mxu0 %v9228
  %v12788 = vpop.f32.mrf.mxu0
  %v12789 = vadd.f32 0.0, %v12788
  %v12790 = vpop.f32.mrf.mxu0
  %12791 = vmatprep.mubr.f32.mxu0 0.0
  %12792 = vmatmul.mubr.f32.gmra.mxu0 %v9231
  %v12793 = vpop.f32.mrf.mxu0
  %v12794 = vadd.f32 0.0, %v12793
  %v12795 = vpop.f32.mrf.mxu0
  %12796 = vmatprep.mubr.f32.mxu0 0.0
  %12797 = vmatmul.mubr.f32.gmra.mxu0 %v9234
  %v12798 = vpop.f32.mrf.mxu0
  %v12799 = vadd.f32 0.0, %v12798
  %v12800 = vpop.f32.mrf.mxu0
  %12801 = vmatprep.mubr.f32.mxu0 0.0
  %12802 = vmatmul.mubr.f32.gmra.mxu0 %v9237
  %v12803 = vpop.f32.mrf.mxu0
  %v12804 = vadd.f32 0.0, %v12803
  %v12805 = vpop.f32.mrf.mxu0
  %12806 = vmatprep.mubr.f32.mxu0 0.0
  %12807 = vmatmul.mubr.f32.gmra.mxu0 %v9240
  %v12808 = vpop.f32.mrf.mxu0
  %v12809 = vadd.f32 0.0, %v12808
  %v12810 = vpop.f32.mrf.mxu0
  %12811 = vmatprep.mubr.f32.mxu0 0.0
  %12812 = vmatmul.mubr.f32.gmra.mxu0 %v9243
  %v12813 = vpop.f32.mrf.mxu0
  %v12814 = vadd.f32 0.0, %v12813
  %v12815 = vpop.f32.mrf.mxu0
  %12816 = vmatprep.mubr.f32.mxu0 0.0
  %12817 = vmatmul.mubr.f32.gmra.mxu0 %v9246
  %v12818 = vpop.f32.mrf.mxu0
  %v12819 = vadd.f32 0.0, %v12818
  %v12820 = vpop.f32.mrf.mxu0
  %12821 = vmatprep.mubr.f32.mxu0 0.0
  %12822 = vmatmul.mubr.f32.gmra.mxu0 %v9249
  %v12823 = vpop.f32.mrf.mxu0
  %v12824 = vadd.f32 0.0, %v12823
  %v12825 = vpop.f32.mrf.mxu0
  %12826 = vmatprep.mubr.f32.mxu0 0.0
  %12827 = vmatmul.mubr.f32.gmra.mxu0 %v9252
  %v12828 = vpop.f32.mrf.mxu0
  %v12829 = vadd.f32 0.0, %v12828
  %v12830 = vpop.f32.mrf.mxu0
  %12831 = vmatprep.mubr.f32.mxu0 0.0
  %12832 = vmatmul.mubr.f32.gmra.mxu0 %v9255
  %v12833 = vpop.f32.mrf.mxu0
  %v12834 = vadd.f32 0.0, %v12833
  %v12835 = vpop.f32.mrf.mxu0
  %12836 = vmatprep.mubr.f32.mxu0 0.0
  %12837 = vmatmul.mubr.f32.gmra.mxu0 %v9258
  %v12838 = vpop.f32.mrf.mxu0
  %v12839 = vadd.f32 0.0, %v12838
  %v12840 = vpop.f32.mrf.mxu0
  %12841 = vmatprep.mubr.f32.mxu0 0.0
  %12842 = vmatmul.mubr.f32.gmra.mxu0 %v9261
  %v12843 = vpop.f32.mrf.mxu0
  %v12844 = vadd.f32 0.0, %v12843
  %v12845 = vpop.f32.mrf.mxu0
  %12846 = vmatprep.mubr.f32.mxu0 0.0
  %12847 = vmatmul.mubr.f32.gmra.mxu0 %v9264
  %v12848 = vpop.f32.mrf.mxu0
  %v12849 = vadd.f32 0.0, %v12848
  %v12850 = vpop.f32.mrf.mxu0
  %12851 = vmatprep.mubr.f32.mxu0 0.0
  %12852 = vmatmul.mubr.f32.gmra.mxu0 %v9267
  %v12853 = vpop.f32.mrf.mxu0
  %v12854 = vadd.f32 0.0, %v12853
  %v12855 = vpop.f32.mrf.mxu0
  %12856 = vmatprep.mubr.f32.mxu0 0.0
  %12857 = vmatmul.mubr.f32.gmra.mxu0 %v9270
  %v12858 = vpop.f32.mrf.mxu0
  %v12859 = vadd.f32 0.0, %v12858
  %v12860 = vpop.f32.mrf.mxu0
  %12861 = vmatprep.mubr.f32.mxu0 0.0
  %12862 = vmatmul.mubr.f32.gmra.mxu0 %v9273
  %v12863 = vpop.f32.mrf.mxu0
  %v12864 = vadd.f32 0.0, %v12863
  %v12865 = vpop.f32.mrf.mxu0
  %12866 = vmatprep.mubr.f32.mxu0 0.0
  %12867 = vmatmul.mubr.f32.gmra.mxu0 %v9276
  %v12868 = vpop.f32.mrf.mxu0
  %v12869 = vadd.f32 0.0, %v12868
  %v12870 = vpop.f32.mrf.mxu0
  %12871 = vmatprep.mubr.f32.mxu0 0.0
  %12872 = vmatmul.mubr.f32.gmra.mxu0 %v9279
  %v12873 = vpop.f32.mrf.mxu0
  %v12874 = vadd.f32 0.0, %v12873
  %v12875 = vpop.f32.mrf.mxu0
  %12876 = vmatprep.mubr.f32.mxu0 0.0
  %12877 = vmatmul.mubr.f32.gmra.mxu0 %v9282
  %v12878 = vpop.f32.mrf.mxu0
  %v12879 = vadd.f32 0.0, %v12878
  %v12880 = vpop.f32.mrf.mxu0
  %12881 = vmatprep.mubr.f32.mxu0 0.0
  %12882 = vmatmul.mubr.f32.gmra.mxu0 %v9285
  %v12883 = vpop.f32.mrf.mxu0
  %v12884 = vadd.f32 0.0, %v12883
  %v12885 = vpop.f32.mrf.mxu0
  %12886 = vmatprep.mubr.f32.mxu0 0.0
  %12887 = vmatmul.mubr.f32.gmra.mxu0 %v9168
  %v12888 = vpop.f32.mrf.mxu0
  %v12889 = vadd.f32 0.0, %v12888
  %v12890 = vpop.f32.mrf.mxu0
  %12891 = vdwg.mxu0
  %v12892 = vadd.f32 %v12581, %v12694
  %v12893 = vadd.f32 %v12582, %v12699
  %v12894 = vadd.f32 %v12583, %v12704
  %v12895 = vadd.f32 %v12584, %v12709
  %v12896 = vadd.f32 %v12585, %v12714
  %v12897 = vadd.f32 %v12586, %v12719
  %v12898 = vadd.f32 %v12587, %v12724
  %v12899 = vadd.f32 %v12588, %v12729
  %v12900 = vadd.f32 %v12589, %v12734
  %v12901 = vadd.f32 %v12590, %v12739
  %v12902 = vadd.f32 %v12591, %v12744
  %v12903 = vadd.f32 %v12592, %v12749
  %v12904 = vadd.f32 %v12593, %v12754
  %v12905 = vadd.f32 %v12594, %v12759
  %v12906 = vadd.f32 %v12595, %v12764
  %v12907 = vadd.f32 %v12596, %v12769
  %v12908 = vadd.f32 %v12597, %v12774
  %v12909 = vadd.f32 %v12598, %v12779
  %v12910 = vadd.f32 %v12599, %v12784
  %v12911 = vadd.f32 %v12600, %v12789
  %v12912 = vadd.f32 %v12601, %v12794
  %v12913 = vadd.f32 %v12602, %v12799
  %v12914 = vadd.f32 %v12603, %v12804
  %v12915 = vadd.f32 %v12604, %v12809
  %v12916 = vadd.f32 %v12605, %v12814
  %v12917 = vadd.f32 %v12606, %v12819
  %v12918 = vadd.f32 %v12607, %v12824
  %v12919 = vadd.f32 %v12608, %v12829
  %v12920 = vadd.f32 %v12609, %v12834
  %v12921 = vadd.f32 %v12610, %v12839
  %v12922 = vadd.f32 %v12611, %v12844
  %v12923 = vadd.f32 %v12612, %v12849
  %v12924 = vadd.f32 %v12613, %v12854
  %v12925 = vadd.f32 %v12614, %v12859
  %v12926 = vadd.f32 %v12615, %v12864
  %v12927 = vadd.f32 %v12616, %v12869
  %v12928 = vadd.f32 %v12617, %v12874
  %v12929 = vadd.f32 %v12618, %v12879
  %v12930 = vadd.f32 %v12619, %v12884
  %v12931 = vadd.f32 %v12620, %v12889
  %s12932 = scalar_lea.vmem %s5, 144
  %v12933 = vld [vmem:[%s12932] sm:$0xff]
  %v12934 = vld [vmem:[%s12932 + $0x8] sm:$0x3]
  %v12936 = vsel %vm8898, %v12934, 0
  %12938 = vmatprep.subr.mxu0 0.0
  %12939 = vmatpush1.msra.mxu0 0.0
  %12940 = vmatprep.subr.mxu0 0.0
  %12941 = vmatpush1.msra.mxu0 0.0
  %12942 = vmatprep.subr.mxu0 0.0
  %12943 = vmatpush1.msra.mxu0 0.0
  %12944 = vmatprep.subr.mxu0 0.0
  %12945 = vmatpush1.msra.mxu0 0.0
  %12946 = vmatprep.subr.mxu0 0.0
  %12947 = vmatpush1.msra.mxu0 0.0
  %12948 = vmatprep.subr.mxu0 0.0
  %12949 = vmatpush1.msra.mxu0 0.0
  %12950 = vmatprep.subr.mxu0 0.0
  %12951 = vmatpush1.msra.mxu0 0.0
  %12952 = vmatprep.subr.mxu0 0.0
  %12953 = vmatpush1.msra.mxu0 0.0
  %12954 = vmatprep.subr.mxu0 0.0
  %12955 = vmatpush1.msra.mxu0 0.0
  %12956 = vmatprep.subr.mxu0 0.0
  %12957 = vmatpush1.msra.mxu0 0.0
  %12958 = vmatprep.subr.mxu0 0.0
  %12959 = vmatpush1.msra.mxu0 0.0
  %12960 = vmatprep.subr.mxu0 0.0
  %12961 = vmatpush1.msra.mxu0 0.0
  %12962 = vmatprep.subr.mxu0 0.0
  %12963 = vmatpush1.msra.mxu0 0.0
  %12964 = vmatprep.subr.mxu0 0.0
  %12965 = vmatpush1.msra.mxu0 0.0
  %12966 = vmatprep.subr.mxu0 0.0
  %12967 = vmatpush1.msra.mxu0 %v12936
  %12968 = vmatprep.subr.mxu0 0.0
  %12969 = vmatpush1.msra.mxu0 %v12933
  %12970 = vmatprep.subr.mxu0 0.0
  %12971 = vmatpush2.msra.mxu0 0.0
  %12972 = vmatprep.subr.mxu0 0.0
  %12973 = vmatpush2.msra.mxu0 0.0
  %12974 = vmatprep.subr.mxu0 0.0
  %12975 = vmatpush2.msra.mxu0 0.0
  %12976 = vmatprep.subr.mxu0 0.0
  %12977 = vmatpush2.msra.mxu0 0.0
  %12978 = vmatprep.subr.mxu0 0.0
  %12979 = vmatpush2.msra.mxu0 0.0
  %12980 = vmatprep.subr.mxu0 0.0
  %12981 = vmatpush2.msra.mxu0 0.0
  %12982 = vmatprep.subr.mxu0 0.0
  %12983 = vmatpush2.msra.mxu0 0.0
  %12984 = vmatprep.subr.mxu0 0.0
  %12985 = vmatpush2.msra.mxu0 0.0
  %12986 = vmatprep.subr.mxu0 0.0
  %12987 = vmatpush2.msra.mxu0 0.0
  %12988 = vmatprep.subr.mxu0 0.0
  %12989 = vmatpush2.msra.mxu0 0.0
  %12990 = vmatprep.subr.mxu0 0.0
  %12991 = vmatpush2.msra.mxu0 0.0
  %12992 = vmatprep.subr.mxu0 0.0
  %12993 = vmatpush2.msra.mxu0 0.0
  %12994 = vmatprep.subr.mxu0 0.0
  %12995 = vmatpush2.msra.mxu0 0.0
  %12996 = vmatprep.subr.mxu0 0.0
  %12997 = vmatpush2.msra.mxu0 0.0
  %12998 = vmatprep.subr.mxu0 0.0
  %12999 = vmatpush2.msra.mxu0 0.0
  %13000 = vmatprep.subr.mxu0 0.0
  %13001 = vmatpush2.msra.mxu0 0.0
  %13002 = vmatprep.mubr.f32.mxu0 0.0
  %13003 = vmatmul.mubr.f32.gmra.mxu0 %v8782
  %v13004 = vpop.f32.mrf.mxu0
  %v13005 = vadd.f32 0.0, %v13004
  %v13006 = vpop.f32.mrf.mxu0
  %13007 = vmatprep.mubr.f32.mxu0 0.0
  %13008 = vmatmul.mubr.f32.gmra.mxu0 %v8785
  %v13009 = vpop.f32.mrf.mxu0
  %v13010 = vadd.f32 0.0, %v13009
  %v13011 = vpop.f32.mrf.mxu0
  %13012 = vmatprep.mubr.f32.mxu0 0.0
  %13013 = vmatmul.mubr.f32.gmra.mxu0 %v8788
  %v13014 = vpop.f32.mrf.mxu0
  %v13015 = vadd.f32 0.0, %v13014
  %v13016 = vpop.f32.mrf.mxu0
  %13017 = vmatprep.mubr.f32.mxu0 0.0
  %13018 = vmatmul.mubr.f32.gmra.mxu0 %v8791
  %v13019 = vpop.f32.mrf.mxu0
  %v13020 = vadd.f32 0.0, %v13019
  %v13021 = vpop.f32.mrf.mxu0
  %13022 = vmatprep.mubr.f32.mxu0 0.0
  %13023 = vmatmul.mubr.f32.gmra.mxu0 %v8794
  %v13024 = vpop.f32.mrf.mxu0
  %v13025 = vadd.f32 0.0, %v13024
  %v13026 = vpop.f32.mrf.mxu0
  %13027 = vmatprep.mubr.f32.mxu0 0.0
  %13028 = vmatmul.mubr.f32.gmra.mxu0 %v8797
  %v13029 = vpop.f32.mrf.mxu0
  %v13030 = vadd.f32 0.0, %v13029
  %v13031 = vpop.f32.mrf.mxu0
  %13032 = vmatprep.mubr.f32.mxu0 0.0
  %13033 = vmatmul.mubr.f32.gmra.mxu0 %v8800
  %v13034 = vpop.f32.mrf.mxu0
  %v13035 = vadd.f32 0.0, %v13034
  %v13036 = vpop.f32.mrf.mxu0
  %13037 = vmatprep.mubr.f32.mxu0 0.0
  %13038 = vmatmul.mubr.f32.gmra.mxu0 %v8803
  %v13039 = vpop.f32.mrf.mxu0
  %v13040 = vadd.f32 0.0, %v13039
  %v13041 = vpop.f32.mrf.mxu0
  %13042 = vmatprep.mubr.f32.mxu0 0.0
  %13043 = vmatmul.mubr.f32.gmra.mxu0 %v8806
  %v13044 = vpop.f32.mrf.mxu0
  %v13045 = vadd.f32 0.0, %v13044
  %v13046 = vpop.f32.mrf.mxu0
  %13047 = vmatprep.mubr.f32.mxu0 0.0
  %13048 = vmatmul.mubr.f32.gmra.mxu0 %v8809
  %v13049 = vpop.f32.mrf.mxu0
  %v13050 = vadd.f32 0.0, %v13049
  %v13051 = vpop.f32.mrf.mxu0
  %13052 = vmatprep.mubr.f32.mxu0 0.0
  %13053 = vmatmul.mubr.f32.gmra.mxu0 %v8812
  %v13054 = vpop.f32.mrf.mxu0
  %v13055 = vadd.f32 0.0, %v13054
  %v13056 = vpop.f32.mrf.mxu0
  %13057 = vmatprep.mubr.f32.mxu0 0.0
  %13058 = vmatmul.mubr.f32.gmra.mxu0 %v8815
  %v13059 = vpop.f32.mrf.mxu0
  %v13060 = vadd.f32 0.0, %v13059
  %v13061 = vpop.f32.mrf.mxu0
  %13062 = vmatprep.mubr.f32.mxu0 0.0
  %13063 = vmatmul.mubr.f32.gmra.mxu0 %v8818
  %v13064 = vpop.f32.mrf.mxu0
  %v13065 = vadd.f32 0.0, %v13064
  %v13066 = vpop.f32.mrf.mxu0
  %13067 = vmatprep.mubr.f32.mxu0 0.0
  %13068 = vmatmul.mubr.f32.gmra.mxu0 %v8821
  %v13069 = vpop.f32.mrf.mxu0
  %v13070 = vadd.f32 0.0, %v13069
  %v13071 = vpop.f32.mrf.mxu0
  %13072 = vmatprep.mubr.f32.mxu0 0.0
  %13073 = vmatmul.mubr.f32.gmra.mxu0 %v8824
  %v13074 = vpop.f32.mrf.mxu0
  %v13075 = vadd.f32 0.0, %v13074
  %v13076 = vpop.f32.mrf.mxu0
  %13077 = vmatprep.mubr.f32.mxu0 0.0
  %13078 = vmatmul.mubr.f32.gmra.mxu0 %v8827
  %v13079 = vpop.f32.mrf.mxu0
  %v13080 = vadd.f32 0.0, %v13079
  %v13081 = vpop.f32.mrf.mxu0
  %13082 = vmatprep.mubr.f32.mxu0 0.0
  %13083 = vmatmul.mubr.f32.gmra.mxu0 %v8830
  %v13084 = vpop.f32.mrf.mxu0
  %v13085 = vadd.f32 0.0, %v13084
  %v13086 = vpop.f32.mrf.mxu0
  %13087 = vmatprep.mubr.f32.mxu0 0.0
  %13088 = vmatmul.mubr.f32.gmra.mxu0 %v8833
  %v13089 = vpop.f32.mrf.mxu0
  %v13090 = vadd.f32 0.0, %v13089
  %v13091 = vpop.f32.mrf.mxu0
  %13092 = vmatprep.mubr.f32.mxu0 0.0
  %13093 = vmatmul.mubr.f32.gmra.mxu0 %v8836
  %v13094 = vpop.f32.mrf.mxu0
  %v13095 = vadd.f32 0.0, %v13094
  %v13096 = vpop.f32.mrf.mxu0
  %13097 = vmatprep.mubr.f32.mxu0 0.0
  %13098 = vmatmul.mubr.f32.gmra.mxu0 %v8839
  %v13099 = vpop.f32.mrf.mxu0
  %v13100 = vadd.f32 0.0, %v13099
  %v13101 = vpop.f32.mrf.mxu0
  %13102 = vmatprep.mubr.f32.mxu0 0.0
  %13103 = vmatmul.mubr.f32.gmra.mxu0 %v8842
  %v13104 = vpop.f32.mrf.mxu0
  %v13105 = vadd.f32 0.0, %v13104
  %v13106 = vpop.f32.mrf.mxu0
  %13107 = vmatprep.mubr.f32.mxu0 0.0
  %13108 = vmatmul.mubr.f32.gmra.mxu0 %v8845
  %v13109 = vpop.f32.mrf.mxu0
  %v13110 = vadd.f32 0.0, %v13109
  %v13111 = vpop.f32.mrf.mxu0
  %13112 = vmatprep.mubr.f32.mxu0 0.0
  %13113 = vmatmul.mubr.f32.gmra.mxu0 %v8848
  %v13114 = vpop.f32.mrf.mxu0
  %v13115 = vadd.f32 0.0, %v13114
  %v13116 = vpop.f32.mrf.mxu0
  %13117 = vmatprep.mubr.f32.mxu0 0.0
  %13118 = vmatmul.mubr.f32.gmra.mxu0 %v8851
  %v13119 = vpop.f32.mrf.mxu0
  %v13120 = vadd.f32 0.0, %v13119
  %v13121 = vpop.f32.mrf.mxu0
  %13122 = vmatprep.mubr.f32.mxu0 0.0
  %13123 = vmatmul.mubr.f32.gmra.mxu0 %v8854
  %v13124 = vpop.f32.mrf.mxu0
  %v13125 = vadd.f32 0.0, %v13124
  %v13126 = vpop.f32.mrf.mxu0
  %13127 = vmatprep.mubr.f32.mxu0 0.0
  %13128 = vmatmul.mubr.f32.gmra.mxu0 %v8857
  %v13129 = vpop.f32.mrf.mxu0
  %v13130 = vadd.f32 0.0, %v13129
  %v13131 = vpop.f32.mrf.mxu0
  %13132 = vmatprep.mubr.f32.mxu0 0.0
  %13133 = vmatmul.mubr.f32.gmra.mxu0 %v8860
  %v13134 = vpop.f32.mrf.mxu0
  %v13135 = vadd.f32 0.0, %v13134
  %v13136 = vpop.f32.mrf.mxu0
  %13137 = vmatprep.mubr.f32.mxu0 0.0
  %13138 = vmatmul.mubr.f32.gmra.mxu0 %v8863
  %v13139 = vpop.f32.mrf.mxu0
  %v13140 = vadd.f32 0.0, %v13139
  %v13141 = vpop.f32.mrf.mxu0
  %13142 = vmatprep.mubr.f32.mxu0 0.0
  %13143 = vmatmul.mubr.f32.gmra.mxu0 %v8866
  %v13144 = vpop.f32.mrf.mxu0
  %v13145 = vadd.f32 0.0, %v13144
  %v13146 = vpop.f32.mrf.mxu0
  %13147 = vmatprep.mubr.f32.mxu0 0.0
  %13148 = vmatmul.mubr.f32.gmra.mxu0 %v8869
  %v13149 = vpop.f32.mrf.mxu0
  %v13150 = vadd.f32 0.0, %v13149
  %v13151 = vpop.f32.mrf.mxu0
  %13152 = vmatprep.mubr.f32.mxu0 0.0
  %13153 = vmatmul.mubr.f32.gmra.mxu0 %v8872
  %v13154 = vpop.f32.mrf.mxu0
  %v13155 = vadd.f32 0.0, %v13154
  %v13156 = vpop.f32.mrf.mxu0
  %13157 = vmatprep.mubr.f32.mxu0 0.0
  %13158 = vmatmul.mubr.f32.gmra.mxu0 %v8875
  %v13159 = vpop.f32.mrf.mxu0
  %v13160 = vadd.f32 0.0, %v13159
  %v13161 = vpop.f32.mrf.mxu0
  %13162 = vmatprep.mubr.f32.mxu0 0.0
  %13163 = vmatmul.mubr.f32.gmra.mxu0 %v8878
  %v13164 = vpop.f32.mrf.mxu0
  %v13165 = vadd.f32 0.0, %v13164
  %v13166 = vpop.f32.mrf.mxu0
  %13167 = vmatprep.mubr.f32.mxu0 0.0
  %13168 = vmatmul.mubr.f32.gmra.mxu0 %v8881
  %v13169 = vpop.f32.mrf.mxu0
  %v13170 = vadd.f32 0.0, %v13169
  %v13171 = vpop.f32.mrf.mxu0
  %13172 = vmatprep.mubr.f32.mxu0 0.0
  %13173 = vmatmul.mubr.f32.gmra.mxu0 %v8884
  %v13174 = vpop.f32.mrf.mxu0
  %v13175 = vadd.f32 0.0, %v13174
  %v13176 = vpop.f32.mrf.mxu0
  %13177 = vmatprep.mubr.f32.mxu0 0.0
  %13178 = vmatmul.mubr.f32.gmra.mxu0 %v8887
  %v13179 = vpop.f32.mrf.mxu0
  %v13180 = vadd.f32 0.0, %v13179
  %v13181 = vpop.f32.mrf.mxu0
  %13182 = vmatprep.mubr.f32.mxu0 0.0
  %13183 = vmatmul.mubr.f32.gmra.mxu0 %v8890
  %v13184 = vpop.f32.mrf.mxu0
  %v13185 = vadd.f32 0.0, %v13184
  %v13186 = vpop.f32.mrf.mxu0
  %13187 = vmatprep.mubr.f32.mxu0 0.0
  %13188 = vmatmul.mubr.f32.gmra.mxu0 %v8893
  %v13189 = vpop.f32.mrf.mxu0
  %v13190 = vadd.f32 0.0, %v13189
  %v13191 = vpop.f32.mrf.mxu0
  %13192 = vmatprep.mubr.f32.mxu0 0.0
  %13193 = vmatmul.mubr.f32.gmra.mxu0 %v8896
  %v13194 = vpop.f32.mrf.mxu0
  %v13195 = vadd.f32 0.0, %v13194
  %v13196 = vpop.f32.mrf.mxu0
  %13197 = vmatprep.mubr.f32.mxu0 0.0
  %13198 = vmatmul.mubr.f32.gmra.mxu0 %v8779
  %v13199 = vpop.f32.mrf.mxu0
  %v13200 = vadd.f32 0.0, %v13199
  %v13201 = vpop.f32.mrf.mxu0
  %13202 = vdwg.mxu0
  %v13203 = vadd.f32 %v12892, %v13005
  %v13204 = vadd.f32 %v12893, %v13010
  %v13205 = vadd.f32 %v12894, %v13015
  %v13206 = vadd.f32 %v12895, %v13020
  %v13207 = vadd.f32 %v12896, %v13025
  %v13208 = vadd.f32 %v12897, %v13030
  %v13209 = vadd.f32 %v12898, %v13035
  %v13210 = vadd.f32 %v12899, %v13040
  %v13211 = vadd.f32 %v12900, %v13045
  %v13212 = vadd.f32 %v12901, %v13050
  %v13213 = vadd.f32 %v12902, %v13055
  %v13214 = vadd.f32 %v12903, %v13060
  %v13215 = vadd.f32 %v12904, %v13065
  %v13216 = vadd.f32 %v12905, %v13070
  %v13217 = vadd.f32 %v12906, %v13075
  %v13218 = vadd.f32 %v12907, %v13080
  %v13219 = vadd.f32 %v12908, %v13085
  %v13220 = vadd.f32 %v12909, %v13090
  %v13221 = vadd.f32 %v12910, %v13095
  %v13222 = vadd.f32 %v12911, %v13100
  %v13223 = vadd.f32 %v12912, %v13105
  %v13224 = vadd.f32 %v12913, %v13110
  %v13225 = vadd.f32 %v12914, %v13115
  %v13226 = vadd.f32 %v12915, %v13120
  %v13227 = vadd.f32 %v12916, %v13125
  %v13228 = vadd.f32 %v12917, %v13130
  %v13229 = vadd.f32 %v12918, %v13135
  %v13230 = vadd.f32 %v12919, %v13140
  %v13231 = vadd.f32 %v12920, %v13145
  %v13232 = vadd.f32 %v12921, %v13150
  %v13233 = vadd.f32 %v12922, %v13155
  %v13234 = vadd.f32 %v12923, %v13160
  %v13235 = vadd.f32 %v12924, %v13165
  %v13236 = vadd.f32 %v12925, %v13170
  %v13237 = vadd.f32 %v12926, %v13175
  %v13238 = vadd.f32 %v12927, %v13180
  %v13239 = vadd.f32 %v12928, %v13185
  %v13240 = vadd.f32 %v12929, %v13190
  %v13241 = vadd.f32 %v12930, %v13195
  %v13242 = vadd.f32 %v12931, %v13200
  %s13243 = scalar_lea.vmem %s5, 160
  %v13244 = vld [vmem:[%s13243] sm:$0xff]
  %v13245 = vld [vmem:[%s13243 + $0x8] sm:$0x3]
  %v13247 = vsel %vm8898, %v13245, 0
  %13249 = vmatprep.subr.mxu0 0.0
  %13250 = vmatpush1.msra.mxu0 0.0
  %13251 = vmatprep.subr.mxu0 0.0
  %13252 = vmatpush1.msra.mxu0 0.0
  %13253 = vmatprep.subr.mxu0 0.0
  %13254 = vmatpush1.msra.mxu0 0.0
  %13255 = vmatprep.subr.mxu0 0.0
  %13256 = vmatpush1.msra.mxu0 0.0
  %13257 = vmatprep.subr.mxu0 0.0
  %13258 = vmatpush1.msra.mxu0 0.0
  %13259 = vmatprep.subr.mxu0 0.0
  %13260 = vmatpush1.msra.mxu0 0.0
  %13261 = vmatprep.subr.mxu0 0.0
  %13262 = vmatpush1.msra.mxu0 0.0
  %13263 = vmatprep.subr.mxu0 0.0
  %13264 = vmatpush1.msra.mxu0 0.0
  %13265 = vmatprep.subr.mxu0 0.0
  %13266 = vmatpush1.msra.mxu0 0.0
  %13267 = vmatprep.subr.mxu0 0.0
  %13268 = vmatpush1.msra.mxu0 0.0
  %13269 = vmatprep.subr.mxu0 0.0
  %13270 = vmatpush1.msra.mxu0 0.0
  %13271 = vmatprep.subr.mxu0 0.0
  %13272 = vmatpush1.msra.mxu0 0.0
  %13273 = vmatprep.subr.mxu0 0.0
  %13274 = vmatpush1.msra.mxu0 0.0
  %13275 = vmatprep.subr.mxu0 0.0
  %13276 = vmatpush1.msra.mxu0 0.0
  %13277 = vmatprep.subr.mxu0 0.0
  %13278 = vmatpush1.msra.mxu0 %v13247
  %13279 = vmatprep.subr.mxu0 0.0
  %13280 = vmatpush1.msra.mxu0 %v13244
  %13281 = vmatprep.subr.mxu0 0.0
  %13282 = vmatpush2.msra.mxu0 0.0
  %13283 = vmatprep.subr.mxu0 0.0
  %13284 = vmatpush2.msra.mxu0 0.0
  %13285 = vmatprep.subr.mxu0 0.0
  %13286 = vmatpush2.msra.mxu0 0.0
  %13287 = vmatprep.subr.mxu0 0.0
  %13288 = vmatpush2.msra.mxu0 0.0
  %13289 = vmatprep.subr.mxu0 0.0
  %13290 = vmatpush2.msra.mxu0 0.0
  %13291 = vmatprep.subr.mxu0 0.0
  %13292 = vmatpush2.msra.mxu0 0.0
  %13293 = vmatprep.subr.mxu0 0.0
  %13294 = vmatpush2.msra.mxu0 0.0
  %13295 = vmatprep.subr.mxu0 0.0
  %13296 = vmatpush2.msra.mxu0 0.0
  %13297 = vmatprep.subr.mxu0 0.0
  %13298 = vmatpush2.msra.mxu0 0.0
  %13299 = vmatprep.subr.mxu0 0.0
  %13300 = vmatpush2.msra.mxu0 0.0
  %13301 = vmatprep.subr.mxu0 0.0
  %13302 = vmatpush2.msra.mxu0 0.0
  %13303 = vmatprep.subr.mxu0 0.0
  %13304 = vmatpush2.msra.mxu0 0.0
  %13305 = vmatprep.subr.mxu0 0.0
  %13306 = vmatpush2.msra.mxu0 0.0
  %13307 = vmatprep.subr.mxu0 0.0
  %13308 = vmatpush2.msra.mxu0 0.0
  %13309 = vmatprep.subr.mxu0 0.0
  %13310 = vmatpush2.msra.mxu0 0.0
  %13311 = vmatprep.subr.mxu0 0.0
  %13312 = vmatpush2.msra.mxu0 0.0
  %13313 = vmatprep.mubr.f32.mxu0 0.0
  %13314 = vmatmul.mubr.f32.gmra.mxu0 %v9642
  %v13315 = vpop.f32.mrf.mxu0
  %v13316 = vadd.f32 0.0, %v13315
  %v13317 = vpop.f32.mrf.mxu0
  %13318 = vmatprep.mubr.f32.mxu0 0.0
  %13319 = vmatmul.mubr.f32.gmra.mxu0 %v9645
  %v13320 = vpop.f32.mrf.mxu0
  %v13321 = vadd.f32 0.0, %v13320
  %v13322 = vpop.f32.mrf.mxu0
  %13323 = vmatprep.mubr.f32.mxu0 0.0
  %13324 = vmatmul.mubr.f32.gmra.mxu0 %v9648
  %v13325 = vpop.f32.mrf.mxu0
  %v13326 = vadd.f32 0.0, %v13325
  %v13327 = vpop.f32.mrf.mxu0
  %13328 = vmatprep.mubr.f32.mxu0 0.0
  %13329 = vmatmul.mubr.f32.gmra.mxu0 %v9651
  %v13330 = vpop.f32.mrf.mxu0
  %v13331 = vadd.f32 0.0, %v13330
  %v13332 = vpop.f32.mrf.mxu0
  %13333 = vmatprep.mubr.f32.mxu0 0.0
  %13334 = vmatmul.mubr.f32.gmra.mxu0 %v9654
  %v13335 = vpop.f32.mrf.mxu0
  %v13336 = vadd.f32 0.0, %v13335
  %v13337 = vpop.f32.mrf.mxu0
  %13338 = vmatprep.mubr.f32.mxu0 0.0
  %13339 = vmatmul.mubr.f32.gmra.mxu0 %v9657
  %v13340 = vpop.f32.mrf.mxu0
  %v13341 = vadd.f32 0.0, %v13340
  %v13342 = vpop.f32.mrf.mxu0
  %13343 = vmatprep.mubr.f32.mxu0 0.0
  %13344 = vmatmul.mubr.f32.gmra.mxu0 %v9660
  %v13345 = vpop.f32.mrf.mxu0
  %v13346 = vadd.f32 0.0, %v13345
  %v13347 = vpop.f32.mrf.mxu0
  %13348 = vmatprep.mubr.f32.mxu0 0.0
  %13349 = vmatmul.mubr.f32.gmra.mxu0 %v9663
  %v13350 = vpop.f32.mrf.mxu0
  %v13351 = vadd.f32 0.0, %v13350
  %v13352 = vpop.f32.mrf.mxu0
  %13353 = vmatprep.mubr.f32.mxu0 0.0
  %13354 = vmatmul.mubr.f32.gmra.mxu0 %v9666
  %v13355 = vpop.f32.mrf.mxu0
  %v13356 = vadd.f32 0.0, %v13355
  %v13357 = vpop.f32.mrf.mxu0
  %13358 = vmatprep.mubr.f32.mxu0 0.0
  %13359 = vmatmul.mubr.f32.gmra.mxu0 %v9669
  %v13360 = vpop.f32.mrf.mxu0
  %v13361 = vadd.f32 0.0, %v13360
  %v13362 = vpop.f32.mrf.mxu0
  %13363 = vmatprep.mubr.f32.mxu0 0.0
  %13364 = vmatmul.mubr.f32.gmra.mxu0 %v9672
  %v13365 = vpop.f32.mrf.mxu0
  %v13366 = vadd.f32 0.0, %v13365
  %v13367 = vpop.f32.mrf.mxu0
  %13368 = vmatprep.mubr.f32.mxu0 0.0
  %13369 = vmatmul.mubr.f32.gmra.mxu0 %v9675
  %v13370 = vpop.f32.mrf.mxu0
  %v13371 = vadd.f32 0.0, %v13370
  %v13372 = vpop.f32.mrf.mxu0
  %13373 = vmatprep.mubr.f32.mxu0 0.0
  %13374 = vmatmul.mubr.f32.gmra.mxu0 %v9678
  %v13375 = vpop.f32.mrf.mxu0
  %v13376 = vadd.f32 0.0, %v13375
  %v13377 = vpop.f32.mrf.mxu0
  %13378 = vmatprep.mubr.f32.mxu0 0.0
  %13379 = vmatmul.mubr.f32.gmra.mxu0 %v9681
  %v13380 = vpop.f32.mrf.mxu0
  %v13381 = vadd.f32 0.0, %v13380
  %v13382 = vpop.f32.mrf.mxu0
  %13383 = vmatprep.mubr.f32.mxu0 0.0
  %13384 = vmatmul.mubr.f32.gmra.mxu0 %v9684
  %v13385 = vpop.f32.mrf.mxu0
  %v13386 = vadd.f32 0.0, %v13385
  %v13387 = vpop.f32.mrf.mxu0
  %13388 = vmatprep.mubr.f32.mxu0 0.0
  %13389 = vmatmul.mubr.f32.gmra.mxu0 %v9687
  %v13390 = vpop.f32.mrf.mxu0
  %v13391 = vadd.f32 0.0, %v13390
  %v13392 = vpop.f32.mrf.mxu0
  %13393 = vmatprep.mubr.f32.mxu0 0.0
  %13394 = vmatmul.mubr.f32.gmra.mxu0 %v9690
  %v13395 = vpop.f32.mrf.mxu0
  %v13396 = vadd.f32 0.0, %v13395
  %v13397 = vpop.f32.mrf.mxu0
  %13398 = vmatprep.mubr.f32.mxu0 0.0
  %13399 = vmatmul.mubr.f32.gmra.mxu0 %v9693
  %v13400 = vpop.f32.mrf.mxu0
  %v13401 = vadd.f32 0.0, %v13400
  %v13402 = vpop.f32.mrf.mxu0
  %13403 = vmatprep.mubr.f32.mxu0 0.0
  %13404 = vmatmul.mubr.f32.gmra.mxu0 %v9696
  %v13405 = vpop.f32.mrf.mxu0
  %v13406 = vadd.f32 0.0, %v13405
  %v13407 = vpop.f32.mrf.mxu0
  %13408 = vmatprep.mubr.f32.mxu0 0.0
  %13409 = vmatmul.mubr.f32.gmra.mxu0 %v9699
  %v13410 = vpop.f32.mrf.mxu0
  %v13411 = vadd.f32 0.0, %v13410
  %v13412 = vpop.f32.mrf.mxu0
  %13413 = vmatprep.mubr.f32.mxu0 0.0
  %13414 = vmatmul.mubr.f32.gmra.mxu0 %v9702
  %v13415 = vpop.f32.mrf.mxu0
  %v13416 = vadd.f32 0.0, %v13415
  %v13417 = vpop.f32.mrf.mxu0
  %13418 = vmatprep.mubr.f32.mxu0 0.0
  %13419 = vmatmul.mubr.f32.gmra.mxu0 %v9705
  %v13420 = vpop.f32.mrf.mxu0
  %v13421 = vadd.f32 0.0, %v13420
  %v13422 = vpop.f32.mrf.mxu0
  %13423 = vmatprep.mubr.f32.mxu0 0.0
  %13424 = vmatmul.mubr.f32.gmra.mxu0 %v9708
  %v13425 = vpop.f32.mrf.mxu0
  %v13426 = vadd.f32 0.0, %v13425
  %v13427 = vpop.f32.mrf.mxu0
  %13428 = vmatprep.mubr.f32.mxu0 0.0
  %13429 = vmatmul.mubr.f32.gmra.mxu0 %v9711
  %v13430 = vpop.f32.mrf.mxu0
  %v13431 = vadd.f32 0.0, %v13430
  %v13432 = vpop.f32.mrf.mxu0
  %13433 = vmatprep.mubr.f32.mxu0 0.0
  %13434 = vmatmul.mubr.f32.gmra.mxu0 %v9714
  %v13435 = vpop.f32.mrf.mxu0
  %v13436 = vadd.f32 0.0, %v13435
  %v13437 = vpop.f32.mrf.mxu0
  %13438 = vmatprep.mubr.f32.mxu0 0.0
  %13439 = vmatmul.mubr.f32.gmra.mxu0 %v9717
  %v13440 = vpop.f32.mrf.mxu0
  %v13441 = vadd.f32 0.0, %v13440
  %v13442 = vpop.f32.mrf.mxu0
  %13443 = vmatprep.mubr.f32.mxu0 0.0
  %13444 = vmatmul.mubr.f32.gmra.mxu0 %v9720
  %v13445 = vpop.f32.mrf.mxu0
  %v13446 = vadd.f32 0.0, %v13445
  %v13447 = vpop.f32.mrf.mxu0
  %13448 = vmatprep.mubr.f32.mxu0 0.0
  %13449 = vmatmul.mubr.f32.gmra.mxu0 %v9723
  %v13450 = vpop.f32.mrf.mxu0
  %v13451 = vadd.f32 0.0, %v13450
  %v13452 = vpop.f32.mrf.mxu0
  %13453 = vmatprep.mubr.f32.mxu0 0.0
  %13454 = vmatmul.mubr.f32.gmra.mxu0 %v9726
  %v13455 = vpop.f32.mrf.mxu0
  %v13456 = vadd.f32 0.0, %v13455
  %v13457 = vpop.f32.mrf.mxu0
  %13458 = vmatprep.mubr.f32.mxu0 0.0
  %13459 = vmatmul.mubr.f32.gmra.mxu0 %v9729
  %v13460 = vpop.f32.mrf.mxu0
  %v13461 = vadd.f32 0.0, %v13460
  %v13462 = vpop.f32.mrf.mxu0
  %13463 = vmatprep.mubr.f32.mxu0 0.0
  %13464 = vmatmul.mubr.f32.gmra.mxu0 %v9732
  %v13465 = vpop.f32.mrf.mxu0
  %v13466 = vadd.f32 0.0, %v13465
  %v13467 = vpop.f32.mrf.mxu0
  %13468 = vmatprep.mubr.f32.mxu0 0.0
  %13469 = vmatmul.mubr.f32.gmra.mxu0 %v9735
  %v13470 = vpop.f32.mrf.mxu0
  %v13471 = vadd.f32 0.0, %v13470
  %v13472 = vpop.f32.mrf.mxu0
  %13473 = vmatprep.mubr.f32.mxu0 0.0
  %13474 = vmatmul.mubr.f32.gmra.mxu0 %v9738
  %v13475 = vpop.f32.mrf.mxu0
  %v13476 = vadd.f32 0.0, %v13475
  %v13477 = vpop.f32.mrf.mxu0
  %13478 = vmatprep.mubr.f32.mxu0 0.0
  %13479 = vmatmul.mubr.f32.gmra.mxu0 %v9741
  %v13480 = vpop.f32.mrf.mxu0
  %v13481 = vadd.f32 0.0, %v13480
  %v13482 = vpop.f32.mrf.mxu0
  %13483 = vmatprep.mubr.f32.mxu0 0.0
  %13484 = vmatmul.mubr.f32.gmra.mxu0 %v9744
  %v13485 = vpop.f32.mrf.mxu0
  %v13486 = vadd.f32 0.0, %v13485
  %v13487 = vpop.f32.mrf.mxu0
  %13488 = vmatprep.mubr.f32.mxu0 0.0
  %13489 = vmatmul.mubr.f32.gmra.mxu0 %v9747
  %v13490 = vpop.f32.mrf.mxu0
  %v13491 = vadd.f32 0.0, %v13490
  %v13492 = vpop.f32.mrf.mxu0
  %13493 = vmatprep.mubr.f32.mxu0 0.0
  %13494 = vmatmul.mubr.f32.gmra.mxu0 %v9750
  %v13495 = vpop.f32.mrf.mxu0
  %v13496 = vadd.f32 0.0, %v13495
  %v13497 = vpop.f32.mrf.mxu0
  %13498 = vmatprep.mubr.f32.mxu0 0.0
  %13499 = vmatmul.mubr.f32.gmra.mxu0 %v9753
  %v13500 = vpop.f32.mrf.mxu0
  %v13501 = vadd.f32 0.0, %v13500
  %v13502 = vpop.f32.mrf.mxu0
  %13503 = vmatprep.mubr.f32.mxu0 0.0
  %13504 = vmatmul.mubr.f32.gmra.mxu0 %v9756
  %v13505 = vpop.f32.mrf.mxu0
  %v13506 = vadd.f32 0.0, %v13505
  %v13507 = vpop.f32.mrf.mxu0
  %13508 = vmatprep.mubr.f32.mxu0 0.0
  %13509 = vmatmul.mubr.f32.gmra.mxu0 %v9639
  %v13510 = vpop.f32.mrf.mxu0
  %v13511 = vadd.f32 0.0, %v13510
  %v13512 = vpop.f32.mrf.mxu0
  %13513 = vdwg.mxu0
  %v13514 = vadd.f32 %v13203, %v13316
  %v13515 = vadd.f32 %v13204, %v13321
  %v13516 = vadd.f32 %v13205, %v13326
  %v13517 = vadd.f32 %v13206, %v13331
  %v13518 = vadd.f32 %v13207, %v13336
  %v13519 = vadd.f32 %v13208, %v13341
  %v13520 = vadd.f32 %v13209, %v13346
  %v13521 = vadd.f32 %v13210, %v13351
  %v13522 = vadd.f32 %v13211, %v13356
  %v13523 = vadd.f32 %v13212, %v13361
  %v13524 = vadd.f32 %v13213, %v13366
  %v13525 = vadd.f32 %v13214, %v13371
  %v13526 = vadd.f32 %v13215, %v13376
  %v13527 = vadd.f32 %v13216, %v13381
  %v13528 = vadd.f32 %v13217, %v13386
  %v13529 = vadd.f32 %v13218, %v13391
  %v13530 = vadd.f32 %v13219, %v13396
  %v13531 = vadd.f32 %v13220, %v13401
  %v13532 = vadd.f32 %v13221, %v13406
  %v13533 = vadd.f32 %v13222, %v13411
  %v13534 = vadd.f32 %v13223, %v13416
  %v13535 = vadd.f32 %v13224, %v13421
  %v13536 = vadd.f32 %v13225, %v13426
  %v13537 = vadd.f32 %v13226, %v13431
  %v13538 = vadd.f32 %v13227, %v13436
  %v13539 = vadd.f32 %v13228, %v13441
  %v13540 = vadd.f32 %v13229, %v13446
  %v13541 = vadd.f32 %v13230, %v13451
  %v13542 = vadd.f32 %v13231, %v13456
  %v13543 = vadd.f32 %v13232, %v13461
  %v13544 = vadd.f32 %v13233, %v13466
  %v13545 = vadd.f32 %v13234, %v13471
  %v13546 = vadd.f32 %v13235, %v13476
  %v13547 = vadd.f32 %v13236, %v13481
  %v13548 = vadd.f32 %v13237, %v13486
  %v13549 = vadd.f32 %v13238, %v13491
  %v13550 = vadd.f32 %v13239, %v13496
  %v13551 = vadd.f32 %v13240, %v13501
  %v13552 = vadd.f32 %v13241, %v13506
  %v13553 = vadd.f32 %v13242, %v13511
  %v13554 = vld [vmem:[%s6] sm:$0x1]
  %v13556 = vlaneseq
  %v13557 = vshrl.u32 %v13556, 7
  %v13558 = vsub.s32 0, %v13557
  %v13559 = vrot.slane %v13554, %v13558
  %v13561 = vadd.f32 %v13514, %v13559
  %v13562 = vadd.f32 %v13515, %v13559
  %v13563 = vadd.f32 %v13516, %v13559
  %v13564 = vadd.f32 %v13517, %v13559
  %v13565 = vadd.f32 %v13518, %v13559
  %v13566 = vadd.f32 %v13519, %v13559
  %v13567 = vadd.f32 %v13520, %v13559
  %v13568 = vadd.f32 %v13521, %v13559
  %v13569 = vadd.f32 %v13522, %v13559
  %v13570 = vadd.f32 %v13523, %v13559
  %v13571 = vadd.f32 %v13524, %v13559
  %v13572 = vadd.f32 %v13525, %v13559
  %v13573 = vadd.f32 %v13526, %v13559
  %v13574 = vadd.f32 %v13527, %v13559
  %v13575 = vadd.f32 %v13528, %v13559
  %v13576 = vadd.f32 %v13529, %v13559
  %v13577 = vadd.f32 %v13530, %v13559
  %v13578 = vadd.f32 %v13531, %v13559
  %v13579 = vadd.f32 %v13532, %v13559
  %v13580 = vadd.f32 %v13533, %v13559
  %v13581 = vadd.f32 %v13534, %v13559
  %v13582 = vadd.f32 %v13535, %v13559
  %v13583 = vadd.f32 %v13536, %v13559
  %v13584 = vadd.f32 %v13537, %v13559
  %v13585 = vadd.f32 %v13538, %v13559
  %v13586 = vadd.f32 %v13539, %v13559
  %v13587 = vadd.f32 %v13540, %v13559
  %v13588 = vadd.f32 %v13541, %v13559
  %v13589 = vadd.f32 %v13542, %v13559
  %v13590 = vadd.f32 %v13543, %v13559
  %v13591 = vadd.f32 %v13544, %v13559
  %v13592 = vadd.f32 %v13545, %v13559
  %v13593 = vadd.f32 %v13546, %v13559
  %v13594 = vadd.f32 %v13547, %v13559
  %v13595 = vadd.f32 %v13548, %v13559
  %v13596 = vadd.f32 %v13549, %v13559
  %v13597 = vadd.f32 %v13550, %v13559
  %v13598 = vadd.f32 %v13551, %v13559
  %v13599 = vadd.f32 %v13552, %v13559
  %v13600 = vadd.f32 %v13553, %v13559
  %v13601 = vmax.f32 %v13561, 0.0
  %v13602 = vmax.f32 %v13562, 0.0
  %v13603 = vmax.f32 %v13563, 0.0
  %v13604 = vmax.f32 %v13564, 0.0
  %v13605 = vmax.f32 %v13565, 0.0
  %v13606 = vmax.f32 %v13566, 0.0
  %v13607 = vmax.f32 %v13567, 0.0
  %v13608 = vmax.f32 %v13568, 0.0
  %v13609 = vmax.f32 %v13569, 0.0
  %v13610 = vmax.f32 %v13570, 0.0
  %v13611 = vmax.f32 %v13571, 0.0
  %v13612 = vmax.f32 %v13572, 0.0
  %v13613 = vmax.f32 %v13573, 0.0
  %v13614 = vmax.f32 %v13574, 0.0
  %v13615 = vmax.f32 %v13575, 0.0
  %v13616 = vmax.f32 %v13576, 0.0
  %v13617 = vmax.f32 %v13577, 0.0
  %v13618 = vmax.f32 %v13578, 0.0
  %v13619 = vmax.f32 %v13579, 0.0
  %v13620 = vmax.f32 %v13580, 0.0
  %v13621 = vmax.f32 %v13581, 0.0
  %v13622 = vmax.f32 %v13582, 0.0
  %v13623 = vmax.f32 %v13583, 0.0
  %v13624 = vmax.f32 %v13584, 0.0
  %v13625 = vmax.f32 %v13585, 0.0
  %v13626 = vmax.f32 %v13586, 0.0
  %v13627 = vmax.f32 %v13587, 0.0
  %v13628 = vmax.f32 %v13588, 0.0
  %v13629 = vmax.f32 %v13589, 0.0
  %v13630 = vmax.f32 %v13590, 0.0
  %v13631 = vmax.f32 %v13591, 0.0
  %v13632 = vmax.f32 %v13592, 0.0
  %v13633 = vmax.f32 %v13593, 0.0
  %v13634 = vmax.f32 %v13594, 0.0
  %v13635 = vmax.f32 %v13595, 0.0
  %v13636 = vmax.f32 %v13596, 0.0
  %v13637 = vmax.f32 %v13597, 0.0
  %v13638 = vmax.f32 %v13598, 0.0
  %v13639 = vmax.f32 %v13599, 0.0
  %v13640 = vmax.f32 %v13600, 0.0
  %13641 = vxpose.xlu0.b32.start [1/16] %v13601, 128
  %13642 = vxpose.xlu0.b32.cont [2/16] %v13602, 128
  %13643 = vxpose.xlu0.b32.cont [3/16] %v13603, 128
  %13644 = vxpose.xlu0.b32.cont [4/16] %v13604, 128
  %13645 = vxpose.xlu0.b32.cont [5/16] %v13605, 128
  %13646 = vxpose.xlu0.b32.cont [6/16] %v13606, 128
  %13647 = vxpose.xlu0.b32.cont [7/16] %v13607, 128
  %13648 = vxpose.xlu0.b32.cont [8/16] %v13608, 128
  %13649 = vxpose.xlu0.b32.cont [9/16] %v13609, 128
  %13650 = vxpose.xlu0.b32.cont [10/16] %v13610, 128
  %13651 = vxpose.xlu0.b32.cont [11/16] %v13611, 128
  %13652 = vxpose.xlu0.b32.cont [12/16] %v13612, 128
  %13653 = vxpose.xlu0.b32.cont [13/16] %v13613, 128
  %13654 = vxpose.xlu0.b32.cont [14/16] %v13614, 128
  %13655 = vxpose.xlu0.b32.cont [15/16] %v13615, 128
  %13656 = vxpose.xlu0.b32.end [16/16] %v13616, 128
  %v13657 = vpop.trf.xlu0
  %v13658 = vpop.trf.xlu0
  %v13659 = vpop.trf.xlu0
  %v13660 = vpop.trf.xlu0
  %v13661 = vpop.trf.xlu0
  %v13662 = vpop.trf.xlu0
  %v13663 = vpop.trf.xlu0
  %v13664 = vpop.trf.xlu0
  %v13665 = vpop.trf.xlu0
  %v13666 = vpop.trf.xlu0
  %v13667 = vpop.trf.xlu0
  %v13668 = vpop.trf.xlu0
  %v13669 = vpop.trf.xlu0
  %v13670 = vpop.trf.xlu0
  %v13671 = vpop.trf.xlu0
  %v13672 = vpop.trf.xlu0
  %13673 = vxpose.xlu0.b32.start [1/16] %v13617, 128
  %13674 = vxpose.xlu0.b32.cont [2/16] %v13618, 128
  %13675 = vxpose.xlu0.b32.cont [3/16] %v13619, 128
  %13676 = vxpose.xlu0.b32.cont [4/16] %v13620, 128
  %13677 = vxpose.xlu0.b32.cont [5/16] %v13621, 128
  %13678 = vxpose.xlu0.b32.cont [6/16] %v13622, 128
  %13679 = vxpose.xlu0.b32.cont [7/16] %v13623, 128
  %13680 = vxpose.xlu0.b32.cont [8/16] %v13624, 128
  %13681 = vxpose.xlu0.b32.cont [9/16] %v13625, 128
  %13682 = vxpose.xlu0.b32.cont [10/16] %v13626, 128
  %13683 = vxpose.xlu0.b32.cont [11/16] %v13627, 128
  %13684 = vxpose.xlu0.b32.cont [12/16] %v13628, 128
  %13685 = vxpose.xlu0.b32.cont [13/16] %v13629, 128
  %13686 = vxpose.xlu0.b32.cont [14/16] %v13630, 128
  %13687 = vxpose.xlu0.b32.cont [15/16] %v13631, 128
  %13688 = vxpose.xlu0.b32.end [16/16] %v13632, 128
  %v13689 = vpop.trf.xlu0
  %v13690 = vpop.trf.xlu0
  %v13691 = vpop.trf.xlu0
  %v13692 = vpop.trf.xlu0
  %v13693 = vpop.trf.xlu0
  %v13694 = vpop.trf.xlu0
  %v13695 = vpop.trf.xlu0
  %v13696 = vpop.trf.xlu0
  %v13697 = vpop.trf.xlu0
  %v13698 = vpop.trf.xlu0
  %v13699 = vpop.trf.xlu0
  %v13700 = vpop.trf.xlu0
  %v13701 = vpop.trf.xlu0
  %v13702 = vpop.trf.xlu0
  %v13703 = vpop.trf.xlu0
  %v13704 = vpop.trf.xlu0
  %13705 = vxpose.xlu0.b32.start [1/16] %v13633, 128
  %13706 = vxpose.xlu0.b32.cont [2/16] %v13634, 128
  %13707 = vxpose.xlu0.b32.cont [3/16] %v13635, 128
  %13708 = vxpose.xlu0.b32.cont [4/16] %v13636, 128
  %13709 = vxpose.xlu0.b32.cont [5/16] %v13637, 128
  %13710 = vxpose.xlu0.b32.cont [6/16] %v13638, 128
  %13711 = vxpose.xlu0.b32.cont [7/16] %v13639, 128
  %13712 = vxpose.xlu0.b32.cont [8/16] %v13640, 128
  %13713 = vxpose.xlu0.b32.cont [9/16] 0.0, 128
  %13714 = vxpose.xlu0.b32.cont [10/16] 0.0, 128
  %13715 = vxpose.xlu0.b32.cont [11/16] 0.0, 128
  %13716 = vxpose.xlu0.b32.cont [12/16] 0.0, 128
  %13717 = vxpose.xlu0.b32.cont [13/16] 0.0, 128
  %13718 = vxpose.xlu0.b32.cont [14/16] 0.0, 128
  %13719 = vxpose.xlu0.b32.cont [15/16] 0.0, 128
  %13720 = vxpose.xlu0.b32.end [16/16] 0.0, 128
  %v13721 = vpop.trf.xlu0
  %v13722 = vpop.trf.xlu0
  %v13723 = vpop.trf.xlu0
  %v13724 = vpop.trf.xlu0
  %v13725 = vpop.trf.xlu0
  %v13726 = vpop.trf.xlu0
  %v13727 = vpop.trf.xlu0
  %v13728 = vpop.trf.xlu0
  %v13729 = vpop.trf.xlu0
  %v13730 = vpop.trf.xlu0
  %v13731 = vpop.trf.xlu0
  %v13732 = vpop.trf.xlu0
  %v13733 = vpop.trf.xlu0
  %v13734 = vpop.trf.xlu0
  %v13735 = vpop.trf.xlu0
  %v13736 = vpop.trf.xlu0
  %vm13737 = vcmask 113664
  %13738 = vst.msk [vmem:[%s7] sm:$0xff] %vm13737, %v13657
  %vm13739 = vcmask 108544
  %13740 = vst.msk [vmem:[%s7 + $0x8] sm:$0x7] %vm13739, %v13658
  %13743 = vrot.lane.b32.xlu0 %v13657, 88
  %v13744 = vpop.permute.xlu0 %13743
  %13745 = vrot.lane.b32.xlu0 %v13658, 88
  %v13746 = vpop.permute.xlu0 %13745
  %s13749 = scalar_lea.vmem %s7, 16
  %13750 = vst.msk [vmem:[%s13749] sm:$0xff] %vm13737, %v13744
  %13751 = vst.msk [vmem:[%s13749 + $0x8] sm:$0x7] %vm13739, %v13746
  %13752 = vrot.lane.b32.xlu0 %v13657, 48
  %v13753 = vpop.permute.xlu0 %13752
  %13754 = vrot.lane.b32.xlu0 %v13658, 48
  %v13755 = vpop.permute.xlu0 %13754
  %s13758 = scalar_lea.vmem %s7, 32
  %13759 = vst.msk [vmem:[%s13758] sm:$0xff] %vm13737, %v13753
  %13760 = vst.msk [vmem:[%s13758 + $0x8] sm:$0x7] %vm13739, %v13755
  %13763 = vrot.lane.b32.xlu0 %v13657, 8
  %v13764 = vpop.permute.xlu0 %13763
  %13765 = vrot.lane.b32.xlu0 %v13689, 8
  %v13766 = vpop.permute.xlu0 %13765
  %13767 = vrot.lane.b32.xlu0 %v13658, 8
  %v13768 = vpop.permute.xlu0 %13767
  %13769 = vrot.lane.b32.xlu0 %v13690, 8
  %v13770 = vpop.permute.xlu0 %13769
  %v13771 = vsel %vm152, %v13764, %v13766
  %v13772 = vsel %vm152, %v13768, %v13770
  %s13775 = scalar_lea.vmem %s7, 48
  %13776 = vst.msk [vmem:[%s13775] sm:$0xff] %vm13737, %v13771
  %13777 = vst.msk [vmem:[%s13775 + $0x8] sm:$0x7] %vm13739, %v13772
  %13778 = vrot.lane.b32.xlu0 %v13689, 96
  %v13779 = vpop.permute.xlu0 %13778
  %13780 = vrot.lane.b32.xlu0 %v13690, 96
  %v13781 = vpop.permute.xlu0 %13780
  %s13784 = scalar_lea.vmem %s7, 64
  %13785 = vst.msk [vmem:[%s13784] sm:$0xff] %vm13737, %v13779
  %13786 = vst.msk [vmem:[%s13784 + $0x8] sm:$0x7] %vm13739, %v13781
  %13787 = vrot.lane.b32.xlu0 %v13689, 56
  %v13788 = vpop.permute.xlu0 %13787
  %13789 = vrot.lane.b32.xlu0 %v13690, 56
  %v13790 = vpop.permute.xlu0 %13789
  %s13793 = scalar_lea.vmem %s7, 80
  %13794 = vst.msk [vmem:[%s13793] sm:$0xff] %vm13737, %v13788
  %13795 = vst.msk [vmem:[%s13793 + $0x8] sm:$0x7] %vm13739, %v13790
  %13796 = vrot.lane.b32.xlu0 %v13689, 16
  %v13797 = vpop.permute.xlu0 %13796
  %13798 = vrot.lane.b32.xlu0 %v13690, 16
  %v13799 = vpop.permute.xlu0 %13798
  %s13802 = scalar_lea.vmem %s7, 96
  %13803 = vst.msk [vmem:[%s13802] sm:$0xff] %vm13737, %v13797
  %13804 = vst.msk [vmem:[%s13802 + $0x8] sm:$0x7] %vm13739, %v13799
  %13807 = vrot.lane.b32.xlu0 %v13721, 104
  %v13808 = vpop.permute.xlu0 %13807
  %13809 = vrot.lane.b32.xlu0 %v13722, 104
  %v13810 = vpop.permute.xlu0 %13809
  %s13813 = scalar_lea.vmem %s7, 112
  %13814 = vst.msk [vmem:[%s13813] sm:$0xff] %vm13737, %v13808
  %13815 = vst.msk [vmem:[%s13813 + $0x8] sm:$0x7] %vm13739, %v13810
  // Predicated region
  $region30: #{encoder_zinc_forward.2} parent=0 // pred_check
    _
  $region31: #{encoder_zinc_forward.2} parent=0 // pred_check_branch
    %13817 = sbr.rel (0) target = $region33
  $region32: #{encoder_zinc_forward.2} parent=0 // pred_region
    _
  $region33: #{encoder_zinc_forward.2} parent=0 // pred_fallthru
    _
  // Predicated region
  $region34: #{encoder_zinc_forward.2} parent=0 // pred_check
    _
  $region35: #{encoder_zinc_forward.2} parent=0 // pred_check_branch
    %13819 = sbr.rel (0) target = $region37
  $region36: #{encoder_zinc_forward.2} parent=0 // pred_region
    _
  $region37: #{encoder_zinc_forward.2} parent=0 // pred_fallthru
    _

</llo_original>
